<compile_context>
chip_gen: v7x
topology: tpu7x:2x2x1
jax: 0.10.0
libtpu: 0.0.40
codegen_flags: <defaults>
</compile_context>

<pallas_src>
import math

import jax
import jax.numpy as jnp
from jax import lax
from jax.experimental import pallas as pl
from jax.experimental.pallas import tpu as pltpu

# ------------------------- model configuration (small) -------------------------
BATCH = 2
CHANNELS = 3
IMG = 16                # image_size
P1 = P2 = 8             # image_patch_size
FRAMES = 4
PF = 2                  # frame_patch_size
DIM = 32
DEPTH = 2
HEADS = 4
DIM_HEAD = 8
INNER = HEADS * DIM_HEAD          # 32
MLP_DIM = 64
NUM_CLASSES = 10
POOL = "cls"

NUM_PATCHES = (IMG // P1) * (IMG // P2) * (FRAMES // PF)   # 2*2*2 = 8
PATCH_DIM = CHANNELS * P1 * P2 * PF                        # 3*8*8*2 = 384
NTOK = NUM_PATCHES + 1                                     # 9 real tokens (cls + patches)
NPAD = 16                                                  # padded tokens per batch

EPS = 1e-5  # PyTorch LayerNorm default
_SQRT1_2 = 1.0 / math.sqrt(2.0)


# ------------------------------ kernel helpers ---------------------------------
def _layernorm(x, g, b):
    mu = jnp.mean(x, axis=-1, keepdims=True)
    var = jnp.mean((x - mu) ** 2, axis=-1, keepdims=True)
    return (x - mu) * lax.rsqrt(var + EPS) * g + b


def _erf(x):
    # Abramowitz & Stegun 7.1.26 polynomial approximation, |abs err| < 1.5e-7.
    # Uses only exp/div/mul/add/where -> guaranteed Mosaic lowering.
    a1, a2, a3, a4, a5 = (0.254829592, -0.284496736, 1.421413741,
                          -1.453152027, 1.061405429)
    p = 0.3275911
    ax = jnp.abs(x)
    t = 1.0 / (1.0 + p * ax)
    poly = ((((a5 * t + a4) * t + a3) * t + a2) * t + a1) * t
    y = 1.0 - poly * jnp.exp(-ax * ax)
    return jnp.where(x >= 0, y, -y)


def _gelu_exact(x):
    return 0.5 * x * (1.0 + _erf(x * _SQRT1_2))


# ------------------------------ fused ViT kernel --------------------------------
def vit_fused_kernel(patches_ref,
                     pe_g1_ref, pe_b1_ref, pe_w_ref, pe_bw_ref, pe_g2_ref, pe_b2_ref,
                     cls_ref, pos_ref,
                     ln1_g_ref, ln1_b_ref, wq_ref, wk_ref, wv_ref, wo_ref, bo_ref,
                     ln2_g_ref, ln2_b_ref, w1_ref, b1_ref, w2_ref, b2_ref,
                     hg_ref, hb_ref, hw_ref, hbw_ref,
                     o_ref):
    # ---- patch embedding: LN -> Linear -> LN, on the padded (B*NPAD, PATCH_DIM) slab.
    # Non-patch rows (cls slot, pad slots) are zero-filled in the wrapper; their
    # bogus embeddings are masked out below (no NaN risk since var + eps > 0).
    p = patches_ref[...]                                               # (B*NPAD, PATCH_DIM)
    pe = _layernorm(p, pe_g1_ref[...], pe_b1_ref[...])
    emb = jnp.dot(pe, pe_w_ref[...], preferred_element_type=jnp.float32) + pe_bw_ref[...]
    emb = _layernorm(emb, pe_g2_ref[...], pe_b2_ref[...])              # (B*NPAD, DIM)

    # ---- token assembly, fully vectorised (no scratch, no row scatter) -------------
    # per-batch token t: t==0 -> cls + pos[0];  1<=t<9 -> patch emb + pos[t];  else 0.
    t = lax.broadcasted_iota(jnp.int32, (BATCH * NPAD, 1), 0) & (NPAD - 1)
    is_patch = jnp.where((t >= 1) & (t < NTOK), 1.0, 0.0).astype(jnp.float32)
    is_cls = jnp.where(t == 0, 1.0, 0.0).astype(jnp.float32)
    # pos_ref: per-batch tiled positional embedding, zero at pad rows (t >= NTOK).
    x = emb * is_patch + pos_ref[...] + cls_ref[...] * is_cls          # (B*NPAD, DIM)
    # emb_dropout / dropout: p = 0.0 -> identity

    # additive key mask: padded key columns (>= NTOK) never attended to
    col = lax.broadcasted_iota(jnp.int32, (NPAD, NPAD), 1)
    kmask = jnp.where(col >= NTOK, jnp.float32(-1e30), jnp.float32(0.0))
    scale = DIM_HEAD ** -0.5
    BH = BATCH * HEADS

    # ------------------------------ transformer layers --------------------------------
    for l in range(DEPTH):
        # ------ attention: LN -> q,k,v -> MHSA -> out proj -> +residual ------
        xn = _layernorm(x, ln1_g_ref[l], ln1_b_ref[l])                 # (B*NPAD, DIM)
        xn_bh = jnp.broadcast_to(
            xn.reshape(BATCH, 1, NPAD, DIM), (BATCH, HEADS, NPAD, DIM)
        ).reshape(BH, NPAD, DIM)
        wq = jnp.broadcast_to(wq_ref[l][None],
                              (BATCH, HEADS, DIM, DIM_HEAD)).reshape(BH, DIM, DIM_HEAD)
        wk = jnp.broadcast_to(wk_ref[l][None],
                              (BATCH, HEADS, DIM, DIM_HEAD)).reshape(BH, DIM, DIM_HEAD)
        wv = jnp.broadcast_to(wv_ref[l][None],
                              (BATCH, HEADS, DIM, DIM_HEAD)).reshape(BH, DIM, DIM_HEAD)

        q = jnp.einsum('znd,zdk->znk', xn_bh, wq, preferred_element_type=jnp.float32)
        k = jnp.einsum('znd,zdk->znk', xn_bh, wk, preferred_element_type=jnp.float32)
        v = jnp.einsum('znd,zdk->znk', xn_bh, wv, preferred_element_type=jnp.float32)

        q = q * scale
        dots = jnp.einsum('znd,zmd->znm', q, k,
                          preferred_element_type=jnp.float32)          # (BH, NPAD, NPAD)
        dots = dots + kmask
        dots = dots - jnp.max(dots, axis=-1, keepdims=True)
        e = jnp.exp(dots)
        attn = e * pl.reciprocal(jnp.sum(e, axis=-1, keepdims=True), approx=True)
        o = jnp.einsum('znm,zmd->znd', attn, v,
                       preferred_element_type=jnp.float32)             # (BH, NPAD, DH)

        wo = jnp.broadcast_to(wo_ref[l][None],
                              (BATCH, HEADS, DIM_HEAD, DIM)).reshape(BH, DIM_HEAD, DIM)
        proj = jnp.einsum('znk,zkd->znd', o, wo,
                          preferred_element_type=jnp.float32)          # (BH, NPAD, DIM)
        proj4 = proj.reshape(BATCH, HEADS, NPAD, DIM)
        attn_out = proj4[:, 0]
        for h in range(1, HEADS):
            attn_out = attn_out + proj4[:, h]                          # head-sum == concat@Wo
        x = x + attn_out.reshape(BATCH * NPAD, DIM) + bo_ref[l]

        # ------ feed-forward: LN -> Linear -> GELU(erf) -> Linear -> +residual ------
        xn = _layernorm(x, ln2_g_ref[l], ln2_b_ref[l])
        h1 = jnp.dot(xn, w1_ref[l], preferred_element_type=jnp.float32) + b1_ref[l]
        h1 = _gelu_exact(h1)
        x = x + jnp.dot(h1, w2_ref[l], preferred_element_type=jnp.float32) + b2_ref[l]

    # ------------------------------ pool + classifier head ----------------------------
    x3 = x.reshape(BATCH, NPAD, DIM)
    if POOL == "mean":
        pooled = jnp.mean(x3[:, :NTOK, :], axis=1)                     # only real tokens
    else:
        pooled = x3[:, 0, :]                                           # cls token
    pooled = _layernorm(pooled, hg_ref[...], hb_ref[...])
    o_ref[...] = jnp.dot(pooled, hw_ref[...],
                         preferred_element_type=jnp.float32) + hbw_ref[...]


# --------------------------------- glue (JAX) -----------------------------------
def patchify(video):
    # 'b c (f pf) (h p1) (w p2) -> b (f h w) (p1 p2 pf c)'
    b, c, F, H, W = video.shape
    f, h, w = F // PF, H // P1, W // P2
    x = video.reshape(b, c, f, PF, h, P1, w, P2)
    x = jnp.transpose(x, (0, 2, 4, 6, 5, 7, 3, 1))  # b f h w p1 p2 pf c
    return x.reshape(b, f * h * w, P1 * P2 * PF * c)


def _stack(layers, key):
    return jnp.stack([lyr[key] for lyr in layers], axis=0)


def vit_forward(video, params):
    # ----- wrapper-side layout work only: patchify, pad tokens 9->16, split heads -----
    patches = patchify(video)                                    # (B, N, PATCH_DIM)
    patches_pad = jnp.pad(patches,
                          ((0, 0), (1, NPAD - 1 - NUM_PATCHES), (0, 0)))
    patches_pad = patches_pad.reshape(BATCH * NPAD, PATCH_DIM)   # row b*16+t holds patch t-1

    pos = params["pos_emb"].reshape(NTOK, DIM)
    pos_pad = jnp.pad(pos, ((0, NPAD - NTOK), (0, 0)))           # (NPAD, DIM), zeros at pad
    pos_tile = jnp.tile(pos_pad, (BATCH, 1))                     # (B*NPAD, DIM)

    layers = params["layers"]
    ln1_g = _stack(layers, "attn_g")
    ln1_b = _stack(layers, "attn_b")
    wqkv = _stack(layers, "wqkv")                                # (DEPTH, DIM, 3*INNER)
    wqkv = wqkv.reshape(DEPTH, DIM, 3, HEADS, DIM_HEAD)
    wqkv = jnp.transpose(wqkv, (0, 2, 3, 1, 4))                  # (DEPTH, 3, H, DIM, DH)
    wq, wk, wv = wqkv[:, 0], wqkv[:, 1], wqkv[:, 2]              # (DEPTH, H, DIM, DH)
    wo = _stack(layers, "wo").reshape(DEPTH, HEADS, DIM_HEAD, DIM)
    bo = _stack(layers, "bo")
    ln2_g = _stack(layers, "ff_g")
    ln2_b = _stack(layers, "ff_b")
    w1 = _stack(layers, "w1")
    b1 = _stack(layers, "b1")
    w2 = _stack(layers, "w2")
    b2 = _stack(layers, "b2")

    inputs = (
        patches_pad,
        params["pe_g1"], params["pe_b1"], params["pe_w"], params["pe_bw"],
        params["pe_g2"], params["pe_b2"],
        params["cls_token"].reshape(1, DIM), pos_tile,
        ln1_g, ln1_b, wq, wk, wv, wo, bo,
        ln2_g, ln2_b, w1, b1, w2, b2,
        params["head_g"], params["head_b"], params["head_w"], params["head_bw"],
    )

    vmem_spec = pl.BlockSpec(memory_space=pltpu.MemorySpace.VMEM)
    return pl.pallas_call(
        vit_fused_kernel,
        out_shape=jax.ShapeDtypeStruct((BATCH, NUM_CLASSES), jnp.float32),
        in_specs=[vmem_spec] * len(inputs),
        out_specs=vmem_spec,
    )(*inputs)


# ------------------------- pure-JAX reference (PyTorch semantics) ------------------
def _ln_ref(x, g, b):
    mu = x.mean(-1, keepdims=True)
    var = ((x - mu) ** 2).mean(-1, keepdims=True)
    return (x - mu) * lax.rsqrt(var + EPS) * g + b


def vit_reference(video, params):
    x = patchify(video)                                          # (B, N, PATCH_DIM)
    x = _ln_ref(x, params["pe_g1"], params["pe_b1"])
    x = x @ params["pe_w"] + params["pe_bw"]
    x = _ln_ref(x, params["pe_g2"], params["pe_b2"])             # (B, N, DIM)
    cls = jnp.broadcast_to(params["cls_token"], (BATCH, 1, DIM))
    x = jnp.concatenate([cls, x], axis=1) + params["pos_emb"][:, :NTOK]
    scale = DIM_HEAD ** -0.5
    for lyr in params["layers"]:
        xn = _ln_ref(x, lyr["attn_g"], lyr["attn_b"])
        qkv = xn @ lyr["wqkv"]
        q, k, v = jnp.split(qkv, 3, axis=-1)
        split = lambda z: z.reshape(BATCH, NTOK, HEADS, DIM_HEAD).transpose(0, 2, 1, 3)
        q, k, v = split(q), split(k), split(v)
        dots = jnp.einsum('bhnd,bhmd->bhnm', q, k) * scale
        attn = jax.nn.softmax(dots, axis=-1)
        o = jnp.einsum('bhnm,bhmd->bhnd', attn, v)
        o = o.transpose(0, 2, 1, 3).reshape(BATCH, NTOK, INNER)
        x = x + o @ lyr["wo"] + lyr["bo"]
        xn = _ln_ref(x, lyr["ff_g"], lyr["ff_b"])
        h = xn @ lyr["w1"] + lyr["b1"]
        h = jax.nn.gelu(h, approximate=False)
        x = x + h @ lyr["w2"] + lyr["b2"]
    pooled = x.mean(axis=1) if POOL == "mean" else x[:, 0]
    pooled = _ln_ref(pooled, params["head_g"], params["head_b"])
    return pooled @ params["head_w"] + params["head_bw"]


# ------------------------------ deterministic init ------------------------------
def init_params(key):
    keys = iter(jax.random.split(key, 64))

    def nrm(shape, scale=0.02):
        return (scale * jax.random.normal(next(keys), shape)).astype(jnp.float32)

    def ones(shape):
        return jnp.ones(shape, jnp.float32)

    def zeros(shape):
        return jnp.zeros(shape, jnp.float32)

    params = dict(
        pe_g1=ones((1, PATCH_DIM)), pe_b1=zeros((1, PATCH_DIM)),
        pe_w=nrm((PATCH_DIM, DIM)), pe_bw=zeros((1, DIM)),
        pe_g2=ones((1, DIM)), pe_b2=zeros((1, DIM)),
        cls_token=nrm((1, 1, DIM), 1.0),
        pos_emb=nrm((1, NUM_PATCHES + 1, DIM), 1.0),
        head_g=ones((1, DIM)), head_b=zeros((1, DIM)),
        head_w=nrm((DIM, NUM_CLASSES)), head_bw=zeros((1, NUM_CLASSES)),
    )
    layers = []
    for _ in range(DEPTH):
        layers.append(dict(
            attn_g=ones((1, DIM)), attn_b=zeros((1, DIM)),
            wqkv=nrm((DIM, 3 * INNER)),
            wo=nrm((INNER, DIM)), bo=zeros((1, DIM)),
            ff_g=ones((1, DIM)), ff_b=zeros((1, DIM)),
            w1=nrm((DIM, MLP_DIM)), b1=zeros((1, MLP_DIM)),
            w2=nrm((MLP_DIM, DIM)), b2=zeros((1, DIM)),
        ))
    params["layers"] = layers
    return params


# ------------------------------------ main ---------------------------------------
if __name__ == "__main__":
    root = jax.random.PRNGKey(0)
    pkey, vkey = jax.random.split(root)
    params = init_params(pkey)
    video = jax.random.normal(
        vkey, (BATCH, CHANNELS, FRAMES, IMG, IMG), dtype=jnp.float32)

    logits = jax.jit(vit_forward)(video, params)
    logits = jax.block_until_ready(logits)
    assert logits.shape == (BATCH, NUM_CLASSES)
    assert bool(jnp.all(jnp.isfinite(logits)))

    ref = jax.block_until_ready(jax.jit(vit_reference)(video, params))
    assert bool(jnp.allclose(logits, ref, atol=1e-2, rtol=1e-2))

    print("KERNEL_OK")
</pallas_src>

<mosaic_0001>
module attributes {stable_mosaic.version = 11 : i64} {
  func.func @vit_fused_kernel(%arg0: memref<32x384xf32, #tpu.memory_space<vmem>>, %arg1: memref<1x384xf32, #tpu.memory_space<vmem>>, %arg2: memref<1x384xf32, #tpu.memory_space<vmem>>, %arg3: memref<384x32xf32, #tpu.memory_space<vmem>>, %arg4: memref<1x32xf32, #tpu.memory_space<vmem>>, %arg5: memref<1x32xf32, #tpu.memory_space<vmem>>, %arg6: memref<1x32xf32, #tpu.memory_space<vmem>>, %arg7: memref<1x32xf32, #tpu.memory_space<vmem>>, %arg8: memref<32x32xf32, #tpu.memory_space<vmem>>, %arg9: memref<2x1x32xf32, #tpu.memory_space<vmem>>, %arg10: memref<2x1x32xf32, #tpu.memory_space<vmem>>, %arg11: memref<2x4x32x8xf32, #tpu.memory_space<vmem>>, %arg12: memref<2x4x32x8xf32, #tpu.memory_space<vmem>>, %arg13: memref<2x4x32x8xf32, #tpu.memory_space<vmem>>, %arg14: memref<2x4x8x32xf32, #tpu.memory_space<vmem>>, %arg15: memref<2x1x32xf32, #tpu.memory_space<vmem>>, %arg16: memref<2x1x32xf32, #tpu.memory_space<vmem>>, %arg17: memref<2x1x32xf32, #tpu.memory_space<vmem>>, %arg18: memref<2x32x64xf32, #tpu.memory_space<vmem>>, %arg19: memref<2x1x64xf32, #tpu.memory_space<vmem>>, %arg20: memref<2x64x32xf32, #tpu.memory_space<vmem>>, %arg21: memref<2x1x32xf32, #tpu.memory_space<vmem>>, %arg22: memref<1x32xf32, #tpu.memory_space<vmem>>, %arg23: memref<1x32xf32, #tpu.memory_space<vmem>>, %arg24: memref<32x10xf32, #tpu.memory_space<vmem>>, %arg25: memref<1x10xf32, #tpu.memory_space<vmem>>, %arg26: memref<2x10xf32, #tpu.memory_space<vmem>>) attributes {dimension_semantics = [], scalar_prefetch = 0 : i64, scratch_operands = 0 : i64, tpu.core_type = #tpu.core_type<tc>} {
    %c0 = arith.constant 0 : index
    %c0_0 = arith.constant 0 : index
    %0 = vector.load %arg0[%c0, %c0_0] : memref<32x384xf32, #tpu.memory_space<vmem>>, vector<32x384xf32>
    %c0_1 = arith.constant 0 : index
    %c0_2 = arith.constant 0 : index
    %1 = vector.load %arg1[%c0_1, %c0_2] : memref<1x384xf32, #tpu.memory_space<vmem>>, vector<1x384xf32>
    %c0_3 = arith.constant 0 : index
    %c0_4 = arith.constant 0 : index
    %2 = vector.load %arg2[%c0_3, %c0_4] : memref<1x384xf32, #tpu.memory_space<vmem>>, vector<1x384xf32>
    %cst = arith.constant dense<0.000000e+00> : vector<32xf32>
    %3 = vector.multi_reduction <add>, %0, %cst [1] : vector<32x384xf32> to vector<32xf32>
    %4 = vector.shape_cast %3 : vector<32xf32> to vector<32x1xf32>
    %cst_5 = arith.constant 3.840000e+02 : f32
    %5 = vector.broadcast %cst_5 : f32 to vector<32x1xf32>
    %6 = arith.divf %4, %5 : vector<32x1xf32>
    %7 = vector.broadcast %6 : vector<32x1xf32> to vector<32x384xf32>
    %8 = arith.subf %0, %7 : vector<32x384xf32>
    %9 = arith.mulf %8, %8 : vector<32x384xf32>
    %cst_6 = arith.constant dense<0.000000e+00> : vector<32xf32>
    %10 = vector.multi_reduction <add>, %9, %cst_6 [1] : vector<32x384xf32> to vector<32xf32>
    %11 = vector.shape_cast %10 : vector<32xf32> to vector<32x1xf32>
    %cst_7 = arith.constant 3.840000e+02 : f32
    %12 = vector.broadcast %cst_7 : f32 to vector<32x1xf32>
    %13 = arith.divf %11, %12 : vector<32x1xf32>
    %14 = vector.broadcast %6 : vector<32x1xf32> to vector<32x384xf32>
    %15 = arith.subf %0, %14 : vector<32x384xf32>
    %cst_8 = arith.constant 9.99999974E-6 : f32
    %16 = vector.broadcast %cst_8 : f32 to vector<32x1xf32>
    %17 = arith.addf %13, %16 : vector<32x1xf32>
    %18 = math.rsqrt %17 : vector<32x1xf32>
    %19 = vector.broadcast %18 : vector<32x1xf32> to vector<32x384xf32>
    %20 = arith.mulf %15, %19 : vector<32x384xf32>
    %21 = vector.broadcast %1 : vector<1x384xf32> to vector<32x384xf32>
    %22 = arith.mulf %20, %21 : vector<32x384xf32>
    %23 = vector.broadcast %2 : vector<1x384xf32> to vector<32x384xf32>
    %24 = arith.addf %22, %23 : vector<32x384xf32>
    %c0_9 = arith.constant 0 : index
    %c0_10 = arith.constant 0 : index
    %25 = vector.load %arg3[%c0_9, %c0_10] : memref<384x32xf32, #tpu.memory_space<vmem>>, vector<384x32xf32>
    %cst_11 = arith.constant dense<0.000000e+00> : vector<32x32xf32>
    %26 = tpu.matmul %24, %25, %cst_11 {dimension_numbers = #tpu.dot_dimension_numbers<[1], [0], [0], [1], [0, 0, 1, 1], [], []>} : vector<32x384xf32>, vector<384x32xf32>, vector<32x32xf32> -> vector<32x32xf32>
    %c0_12 = arith.constant 0 : index
    %c0_13 = arith.constant 0 : index
    %27 = vector.load %arg4[%c0_12, %c0_13] : memref<1x32xf32, #tpu.memory_space<vmem>>, vector<1x32xf32>
    %28 = vector.broadcast %27 : vector<1x32xf32> to vector<32x32xf32>
    %29 = arith.addf %26, %28 : vector<32x32xf32>
    %c0_14 = arith.constant 0 : index
    %c0_15 = arith.constant 0 : index
    %30 = vector.load %arg5[%c0_14, %c0_15] : memref<1x32xf32, #tpu.memory_space<vmem>>, vector<1x32xf32>
    %c0_16 = arith.constant 0 : index
    %c0_17 = arith.constant 0 : index
    %31 = vector.load %arg6[%c0_16, %c0_17] : memref<1x32xf32, #tpu.memory_space<vmem>>, vector<1x32xf32>
    %cst_18 = arith.constant dense<0.000000e+00> : vector<32xf32>
    %32 = vector.multi_reduction <add>, %29, %cst_18 [1] : vector<32x32xf32> to vector<32xf32>
    %33 = vector.shape_cast %32 : vector<32xf32> to vector<32x1xf32>
    %cst_19 = arith.constant 3.200000e+01 : f32
    %34 = vector.broadcast %cst_19 : f32 to vector<32x1xf32>
    %35 = arith.divf %33, %34 : vector<32x1xf32>
    %36 = vector.broadcast %35 : vector<32x1xf32> to vector<32x32xf32>
    %37 = arith.subf %29, %36 : vector<32x32xf32>
    %38 = arith.mulf %37, %37 : vector<32x32xf32>
    %cst_20 = arith.constant dense<0.000000e+00> : vector<32xf32>
    %39 = vector.multi_reduction <add>, %38, %cst_20 [1] : vector<32x32xf32> to vector<32xf32>
    %40 = vector.shape_cast %39 : vector<32xf32> to vector<32x1xf32>
    %cst_21 = arith.constant 3.200000e+01 : f32
    %41 = vector.broadcast %cst_21 : f32 to vector<32x1xf32>
    %42 = arith.divf %40, %41 : vector<32x1xf32>
    %43 = vector.broadcast %35 : vector<32x1xf32> to vector<32x32xf32>
    %44 = arith.subf %29, %43 : vector<32x32xf32>
    %cst_22 = arith.constant 9.99999974E-6 : f32
    %45 = vector.broadcast %cst_22 : f32 to vector<32x1xf32>
    %46 = arith.addf %42, %45 : vector<32x1xf32>
    %47 = math.rsqrt %46 : vector<32x1xf32>
    %48 = vector.broadcast %47 : vector<32x1xf32> to vector<32x32xf32>
    %49 = arith.mulf %44, %48 : vector<32x32xf32>
    %50 = vector.broadcast %30 : vector<1x32xf32> to vector<32x32xf32>
    %51 = arith.mulf %49, %50 : vector<32x32xf32>
    %52 = vector.broadcast %31 : vector<1x32xf32> to vector<32x32xf32>
    %53 = arith.addf %51, %52 : vector<32x32xf32>
    %54 = tpu.iota {dimensions = array<i32: 0>} : vector<32x1xi32>
    %c15_i32 = arith.constant 15 : i32
    %55 = vector.broadcast %c15_i32 : i32 to vector<32x1xi32>
    %56 = arith.andi %54, %55 : vector<32x1xi32>
    %c1_i32 = arith.constant 1 : i32
    %57 = vector.broadcast %c1_i32 : i32 to vector<32x1xi32>
    %58 = arith.cmpi sge, %56, %57 : vector<32x1xi32>
    %c9_i32 = arith.constant 9 : i32
    %59 = vector.broadcast %c9_i32 : i32 to vector<32x1xi32>
    %60 = arith.cmpi slt, %56, %59 : vector<32x1xi32>
    %61 = arith.andi %58, %60 : vector<32x1xi1>
    %cst_23 = arith.constant 1.000000e+00 : f32
    %cst_24 = arith.constant 0.000000e+00 : f32
    %62 = vector.broadcast %cst_23 : f32 to vector<32x1xf32>
    %63 = vector.broadcast %cst_24 : f32 to vector<32x1xf32>
    %64 = arith.select %61, %62, %63 : vector<32x1xi1>, vector<32x1xf32>
    %c0_i32 = arith.constant 0 : i32
    %65 = vector.broadcast %c0_i32 : i32 to vector<32x1xi32>
    %66 = arith.cmpi eq, %56, %65 : vector<32x1xi32>
    %cst_25 = arith.constant 1.000000e+00 : f32
    %cst_26 = arith.constant 0.000000e+00 : f32
    %67 = vector.broadcast %cst_25 : f32 to vector<32x1xf32>
    %68 = vector.broadcast %cst_26 : f32 to vector<32x1xf32>
    %69 = arith.select %66, %67, %68 : vector<32x1xi1>, vector<32x1xf32>
    %70 = vector.broadcast %64 : vector<32x1xf32> to vector<32x32xf32>
    %71 = arith.mulf %53, %70 : vector<32x32xf32>
    %c0_27 = arith.constant 0 : index
    %c0_28 = arith.constant 0 : index
    %72 = vector.load %arg8[%c0_27, %c0_28] : memref<32x32xf32, #tpu.memory_space<vmem>>, vector<32x32xf32>
    %73 = arith.addf %71, %72 : vector<32x32xf32>
    %c0_29 = arith.constant 0 : index
    %c0_30 = arith.constant 0 : index
    %74 = vector.load %arg7[%c0_29, %c0_30] : memref<1x32xf32, #tpu.memory_space<vmem>>, vector<1x32xf32>
    %75 = vector.broadcast %74 : vector<1x32xf32> to vector<32x32xf32>
    %76 = vector.broadcast %69 : vector<32x1xf32> to vector<32x32xf32>
    %77 = arith.mulf %75, %76 : vector<32x32xf32>
    %78 = arith.addf %73, %77 : vector<32x32xf32>
    %79 = tpu.iota {dimensions = array<i32: 1>} : vector<16x16xi32>
    %c9_i32_31 = arith.constant 9 : i32
    %80 = vector.broadcast %c9_i32_31 : i32 to vector<16x16xi32>
    %81 = arith.cmpi sge, %79, %80 : vector<16x16xi32>
    %cst_32 = arith.constant -1.000000e+30 : f32
    %cst_33 = arith.constant 0.000000e+00 : f32
    %82 = vector.broadcast %cst_32 : f32 to vector<16x16xf32>
    %83 = vector.broadcast %cst_33 : f32 to vector<16x16xf32>
    %84 = arith.select %81, %82, %83 : vector<16x16xi1>, vector<16x16xf32>
    %c0_34 = arith.constant 0 : index
    %c0_35 = arith.constant 0 : index
    %c0_36 = arith.constant 0 : index
    %85 = vector.load %arg9[%c0_34, %c0_35, %c0_36] : memref<2x1x32xf32, #tpu.memory_space<vmem>>, vector<1x1x32xf32>
    %86 = vector.shape_cast %85 : vector<1x1x32xf32> to vector<1x32xf32>
    %c0_37 = arith.constant 0 : index
    %c0_38 = arith.constant 0 : index
    %c0_39 = arith.constant 0 : index
    %87 = vector.load %arg10[%c0_37, %c0_38, %c0_39] : memref<2x1x32xf32, #tpu.memory_space<vmem>>, vector<1x1x32xf32>
    %88 = vector.shape_cast %87 : vector<1x1x32xf32> to vector<1x32xf32>
    %cst_40 = arith.constant dense<0.000000e+00> : vector<32xf32>
    %89 = vector.multi_reduction <add>, %78, %cst_40 [1] : vector<32x32xf32> to vector<32xf32>
    %90 = vector.shape_cast %89 : vector<32xf32> to vector<32x1xf32>
    %cst_41 = arith.constant 3.200000e+01 : f32
    %91 = vector.broadcast %cst_41 : f32 to vector<32x1xf32>
    %92 = arith.divf %90, %91 : vector<32x1xf32>
    %93 = vector.broadcast %92 : vector<32x1xf32> to vector<32x32xf32>
    %94 = arith.subf %78, %93 : vector<32x32xf32>
    %95 = arith.mulf %94, %94 : vector<32x32xf32>
    %cst_42 = arith.constant dense<0.000000e+00> : vector<32xf32>
    %96 = vector.multi_reduction <add>, %95, %cst_42 [1] : vector<32x32xf32> to vector<32xf32>
    %97 = vector.shape_cast %96 : vector<32xf32> to vector<32x1xf32>
    %cst_43 = arith.constant 3.200000e+01 : f32
    %98 = vector.broadcast %cst_43 : f32 to vector<32x1xf32>
    %99 = arith.divf %97, %98 : vector<32x1xf32>
    %100 = vector.broadcast %92 : vector<32x1xf32> to vector<32x32xf32>
    %101 = arith.subf %78, %100 : vector<32x32xf32>
    %cst_44 = arith.constant 9.99999974E-6 : f32
    %102 = vector.broadcast %cst_44 : f32 to vector<32x1xf32>
    %103 = arith.addf %99, %102 : vector<32x1xf32>
    %104 = math.rsqrt %103 : vector<32x1xf32>
    %105 = vector.broadcast %104 : vector<32x1xf32> to vector<32x32xf32>
    %106 = arith.mulf %101, %105 : vector<32x32xf32>
    %107 = vector.broadcast %86 : vector<1x32xf32> to vector<32x32xf32>
    %108 = arith.mulf %106, %107 : vector<32x32xf32>
    %109 = vector.broadcast %88 : vector<1x32xf32> to vector<32x32xf32>
    %110 = arith.addf %108, %109 : vector<32x32xf32>
    %111 = vector.shape_cast %110 : vector<32x32xf32> to vector<2x1x16x32xf32>
    %112 = vector.shape_cast %111 : vector<2x1x16x32xf32> to vector<2x1x16x32xf32>
    %113 = vector.broadcast %112 : vector<2x1x16x32xf32> to vector<2x4x16x32xf32>
    %114 = vector.shape_cast %113 : vector<2x4x16x32xf32> to vector<8x16x32xf32>
    %c0_45 = arith.constant 0 : index
    %c0_46 = arith.constant 0 : index
    %c0_47 = arith.constant 0 : index
    %c0_48 = arith.constant 0 : index
    %115 = vector.load %arg11[%c0_45, %c0_46, %c0_47, %c0_48] : memref<2x4x32x8xf32, #tpu.memory_space<vmem>>, vector<1x4x32x8xf32>
    %116 = vector.shape_cast %115 : vector<1x4x32x8xf32> to vector<4x32x8xf32>
    %117 = vector.shape_cast %116 : vector<4x32x8xf32> to vector<1x4x32x8xf32>
    %118 = vector.shape_cast %117 : vector<1x4x32x8xf32> to vector<1x4x32x8xf32>
    %119 = vector.broadcast %118 : vector<1x4x32x8xf32> to vector<2x4x32x8xf32>
    %120 = vector.shape_cast %119 : vector<2x4x32x8xf32> to vector<8x32x8xf32>
    %c0_49 = arith.constant 0 : index
    %c0_50 = arith.constant 0 : index
    %c0_51 = arith.constant 0 : index
    %c0_52 = arith.constant 0 : index
    %121 = vector.load %arg12[%c0_49, %c0_50, %c0_51, %c0_52] : memref<2x4x32x8xf32, #tpu.memory_space<vmem>>, vector<1x4x32x8xf32>
    %122 = vector.shape_cast %121 : vector<1x4x32x8xf32> to vector<4x32x8xf32>
    %123 = vector.shape_cast %122 : vector<4x32x8xf32> to vector<1x4x32x8xf32>
    %124 = vector.shape_cast %123 : vector<1x4x32x8xf32> to vector<1x4x32x8xf32>
    %125 = vector.broadcast %124 : vector<1x4x32x8xf32> to vector<2x4x32x8xf32>
    %126 = vector.shape_cast %125 : vector<2x4x32x8xf32> to vector<8x32x8xf32>
    %c0_53 = arith.constant 0 : index
    %c0_54 = arith.constant 0 : index
    %c0_55 = arith.constant 0 : index
    %c0_56 = arith.constant 0 : index
    %127 = vector.load %arg13[%c0_53, %c0_54, %c0_55, %c0_56] : memref<2x4x32x8xf32, #tpu.memory_space<vmem>>, vector<1x4x32x8xf32>
    %128 = vector.shape_cast %127 : vector<1x4x32x8xf32> to vector<4x32x8xf32>
    %129 = vector.shape_cast %128 : vector<4x32x8xf32> to vector<1x4x32x8xf32>
    %130 = vector.shape_cast %129 : vector<1x4x32x8xf32> to vector<1x4x32x8xf32>
    %131 = vector.broadcast %130 : vector<1x4x32x8xf32> to vector<2x4x32x8xf32>
    %132 = vector.shape_cast %131 : vector<2x4x32x8xf32> to vector<8x32x8xf32>
    "tpu.trace_start"() <{level = 10 : i32, message = "znd,zdk->znk"}> : () -> ()
    %cst_57 = arith.constant dense<0.000000e+00> : vector<8x16x8xf32>
    %133 = tpu.matmul %114, %120, %cst_57 {dimension_numbers = #tpu.dot_dimension_numbers<[2], [1], [1], [2], [0, 0, 0, 1, 1, 2], [0], [0]>} : vector<8x16x32xf32>, vector<8x32x8xf32>, vector<8x16x8xf32> -> vector<8x16x8xf32>
    %cst_58 = arith.constant dense<0.000000e+00> : vector<8x16x8xf32>
    %134 = tpu.matmul %114, %126, %cst_58 {dimension_numbers = #tpu.dot_dimension_numbers<[2], [1], [1], [2], [0, 0, 0, 1, 1, 2], [0], [0]>} : vector<8x16x32xf32>, vector<8x32x8xf32>, vector<8x16x8xf32> -> vector<8x16x8xf32>
    %cst_59 = arith.constant dense<0.000000e+00> : vector<8x16x8xf32>
    %135 = tpu.matmul %114, %132, %cst_59 {dimension_numbers = #tpu.dot_dimension_numbers<[2], [1], [1], [2], [0, 0, 0, 1, 1, 2], [0], [0]>} : vector<8x16x32xf32>, vector<8x32x8xf32>, vector<8x16x8xf32> -> vector<8x16x8xf32>
    "tpu.trace_stop"() : () -> ()
    %cst_60 = arith.constant 0.353553385 : f32
    %136 = vector.broadcast %cst_60 : f32 to vector<8x16x8xf32>
    %137 = arith.mulf %133, %136 : vector<8x16x8xf32>
    "tpu.trace_start"() <{level = 10 : i32, message = "znd,zmd->znm"}> : () -> ()
    %cst_61 = arith.constant dense<0.000000e+00> : vector<8x16x16xf32>
    %138 = tpu.matmul %137, %134, %cst_61 {dimension_numbers = #tpu.dot_dimension_numbers<[2], [2], [1], [1], [0, 0, 0, 1, 1, 1], [0], [0]>} : vector<8x16x8xf32>, vector<8x16x8xf32>, vector<8x16x16xf32> -> vector<8x16x16xf32>
    "tpu.trace_stop"() : () -> ()
    %139 = vector.shape_cast %84 : vector<16x16xf32> to vector<1x16x16xf32>
    %140 = vector.broadcast %139 : vector<1x16x16xf32> to vector<8x16x16xf32>
    %141 = arith.addf %138, %140 : vector<8x16x16xf32>
    %cst_62 = arith.constant dense<0xFF800000> : vector<8x16xf32>
    %142 = vector.multi_reduction <maximumf>, %141, %cst_62 [2] : vector<8x16x16xf32> to vector<8x16xf32>
    %143 = vector.shape_cast %142 : vector<8x16xf32> to vector<8x16x1xf32>
    %144 = vector.broadcast %143 : vector<8x16x1xf32> to vector<8x16x16xf32>
    %145 = arith.subf %141, %144 : vector<8x16x16xf32>
    %146 = math.exp %145 : vector<8x16x16xf32>
    %cst_63 = arith.constant dense<0.000000e+00> : vector<8x16xf32>
    %147 = vector.multi_reduction <add>, %146, %cst_63 [2] : vector<8x16x16xf32> to vector<8x16xf32>
    %148 = vector.shape_cast %147 : vector<8x16xf32> to vector<8x16x1xf32>
    %149 = tpu.reciprocal %148 {approx = true} : vector<8x16x1xf32> -> vector<8x16x1xf32>
    %150 = vector.broadcast %149 : vector<8x16x1xf32> to vector<8x16x16xf32>
    %151 = arith.mulf %146, %150 : vector<8x16x16xf32>
    "tpu.trace_start"() <{level = 10 : i32, message = "znm,zmd->znd"}> : () -> ()
    %cst_64 = arith.constant dense<0.000000e+00> : vector<8x16x8xf32>
    %152 = tpu.matmul %151, %135, %cst_64 {dimension_numbers = #tpu.dot_dimension_numbers<[2], [1], [1], [2], [0, 0, 0, 1, 1, 2], [0], [0]>} : vector<8x16x16xf32>, vector<8x16x8xf32>, vector<8x16x8xf32> -> vector<8x16x8xf32>
    "tpu.trace_stop"() : () -> ()
    %c0_65 = arith.constant 0 : index
    %c0_66 = arith.constant 0 : index
    %c0_67 = arith.constant 0 : index
    %c0_68 = arith.constant 0 : index
    %153 = vector.load %arg14[%c0_65, %c0_66, %c0_67, %c0_68] : memref<2x4x8x32xf32, #tpu.memory_space<vmem>>, vector<1x4x8x32xf32>
    %154 = vector.shape_cast %153 : vector<1x4x8x32xf32> to vector<4x8x32xf32>
    %155 = vector.shape_cast %154 : vector<4x8x32xf32> to vector<1x4x8x32xf32>
    %156 = vector.shape_cast %155 : vector<1x4x8x32xf32> to vector<1x4x8x32xf32>
    %157 = vector.broadcast %156 : vector<1x4x8x32xf32> to vector<2x4x8x32xf32>
    %158 = vector.shape_cast %157 : vector<2x4x8x32xf32> to vector<8x8x32xf32>
    "tpu.trace_start"() <{level = 10 : i32, message = "znk,zkd->znd"}> : () -> ()
    %cst_69 = arith.constant dense<0.000000e+00> : vector<8x16x32xf32>
    %159 = tpu.matmul %152, %158, %cst_69 {dimension_numbers = #tpu.dot_dimension_numbers<[2], [1], [1], [2], [0, 0, 0, 1, 1, 2], [0], [0]>} : vector<8x16x8xf32>, vector<8x8x32xf32>, vector<8x16x32xf32> -> vector<8x16x32xf32>
    "tpu.trace_stop"() : () -> ()
    %160 = vector.shape_cast %159 : vector<8x16x32xf32> to vector<2x4x16x32xf32>
    %161 = vector.extract_strided_slice %160 {offsets = [0, 0, 0, 0], sizes = [2, 1, 16, 32], strides = [1, 1, 1, 1]} : vector<2x4x16x32xf32> to vector<2x1x16x32xf32>
    %162 = vector.shape_cast %161 : vector<2x1x16x32xf32> to vector<2x16x32xf32>
    %163 = vector.extract_strided_slice %160 {offsets = [0, 1, 0, 0], sizes = [2, 1, 16, 32], strides = [1, 1, 1, 1]} : vector<2x4x16x32xf32> to vector<2x1x16x32xf32>
    %164 = vector.shape_cast %163 : vector<2x1x16x32xf32> to vector<2x16x32xf32>
    %165 = arith.addf %162, %164 : vector<2x16x32xf32>
    %166 = vector.extract_strided_slice %160 {offsets = [0, 2, 0, 0], sizes = [2, 1, 16, 32], strides = [1, 1, 1, 1]} : vector<2x4x16x32xf32> to vector<2x1x16x32xf32>
    %167 = vector.shape_cast %166 : vector<2x1x16x32xf32> to vector<2x16x32xf32>
    %168 = arith.addf %165, %167 : vector<2x16x32xf32>
    %169 = vector.extract_strided_slice %160 {offsets = [0, 3, 0, 0], sizes = [2, 1, 16, 32], strides = [1, 1, 1, 1]} : vector<2x4x16x32xf32> to vector<2x1x16x32xf32>
    %170 = vector.shape_cast %169 : vector<2x1x16x32xf32> to vector<2x16x32xf32>
    %171 = arith.addf %168, %170 : vector<2x16x32xf32>
    %172 = vector.shape_cast %171 : vector<2x16x32xf32> to vector<32x32xf32>
    %173 = arith.addf %78, %172 : vector<32x32xf32>
    %c0_70 = arith.constant 0 : index
    %c0_71 = arith.constant 0 : index
    %c0_72 = arith.constant 0 : index
    %174 = vector.load %arg15[%c0_70, %c0_71, %c0_72] : memref<2x1x32xf32, #tpu.memory_space<vmem>>, vector<1x1x32xf32>
    %175 = vector.shape_cast %174 : vector<1x1x32xf32> to vector<1x32xf32>
    %176 = vector.broadcast %175 : vector<1x32xf32> to vector<32x32xf32>
    %177 = arith.addf %173, %176 : vector<32x32xf32>
    %c0_73 = arith.constant 0 : index
    %c0_74 = arith.constant 0 : index
    %c0_75 = arith.constant 0 : index
    %178 = vector.load %arg16[%c0_73, %c0_74, %c0_75] : memref<2x1x32xf32, #tpu.memory_space<vmem>>, vector<1x1x32xf32>
    %179 = vector.shape_cast %178 : vector<1x1x32xf32> to vector<1x32xf32>
    %c0_76 = arith.constant 0 : index
    %c0_77 = arith.constant 0 : index
    %c0_78 = arith.constant 0 : index
    %180 = vector.load %arg17[%c0_76, %c0_77, %c0_78] : memref<2x1x32xf32, #tpu.memory_space<vmem>>, vector<1x1x32xf32>
    %181 = vector.shape_cast %180 : vector<1x1x32xf32> to vector<1x32xf32>
    %cst_79 = arith.constant dense<0.000000e+00> : vector<32xf32>
    %182 = vector.multi_reduction <add>, %177, %cst_79 [1] : vector<32x32xf32> to vector<32xf32>
    %183 = vector.shape_cast %182 : vector<32xf32> to vector<32x1xf32>
    %cst_80 = arith.constant 3.200000e+01 : f32
    %184 = vector.broadcast %cst_80 : f32 to vector<32x1xf32>
    %185 = arith.divf %183, %184 : vector<32x1xf32>
    %186 = vector.broadcast %185 : vector<32x1xf32> to vector<32x32xf32>
    %187 = arith.subf %177, %186 : vector<32x32xf32>
    %188 = arith.mulf %187, %187 : vector<32x32xf32>
    %cst_81 = arith.constant dense<0.000000e+00> : vector<32xf32>
    %189 = vector.multi_reduction <add>, %188, %cst_81 [1] : vector<32x32xf32> to vector<32xf32>
    %190 = vector.shape_cast %189 : vector<32xf32> to vector<32x1xf32>
    %cst_82 = arith.constant 3.200000e+01 : f32
    %191 = vector.broadcast %cst_82 : f32 to vector<32x1xf32>
    %192 = arith.divf %190, %191 : vector<32x1xf32>
    %193 = vector.broadcast %185 : vector<32x1xf32> to vector<32x32xf32>
    %194 = arith.subf %177, %193 : vector<32x32xf32>
    %cst_83 = arith.constant 9.99999974E-6 : f32
    %195 = vector.broadcast %cst_83 : f32 to vector<32x1xf32>
    %196 = arith.addf %192, %195 : vector<32x1xf32>
    %197 = math.rsqrt %196 : vector<32x1xf32>
    %198 = vector.broadcast %197 : vector<32x1xf32> to vector<32x32xf32>
    %199 = arith.mulf %194, %198 : vector<32x32xf32>
    %200 = vector.broadcast %179 : vector<1x32xf32> to vector<32x32xf32>
    %201 = arith.mulf %199, %200 : vector<32x32xf32>
    %202 = vector.broadcast %181 : vector<1x32xf32> to vector<32x32xf32>
    %203 = arith.addf %201, %202 : vector<32x32xf32>
    %c0_84 = arith.constant 0 : index
    %c0_85 = arith.constant 0 : index
    %c0_86 = arith.constant 0 : index
    %204 = vector.load %arg18[%c0_84, %c0_85, %c0_86] : memref<2x32x64xf32, #tpu.memory_space<vmem>>, vector<1x32x64xf32>
    %205 = vector.shape_cast %204 : vector<1x32x64xf32> to vector<32x64xf32>
    %cst_87 = arith.constant dense<0.000000e+00> : vector<32x64xf32>
    %206 = tpu.matmul %203, %205, %cst_87 {dimension_numbers = #tpu.dot_dimension_numbers<[1], [0], [0], [1], [0, 0, 1, 1], [], []>} : vector<32x32xf32>, vector<32x64xf32>, vector<32x64xf32> -> vector<32x64xf32>
    %c0_88 = arith.constant 0 : index
    %c0_89 = arith.constant 0 : index
    %c0_90 = arith.constant 0 : index
    %207 = vector.load %arg19[%c0_88, %c0_89, %c0_90] : memref<2x1x64xf32, #tpu.memory_space<vmem>>, vector<1x1x64xf32>
    %208 = vector.shape_cast %207 : vector<1x1x64xf32> to vector<1x64xf32>
    %209 = vector.broadcast %208 : vector<1x64xf32> to vector<32x64xf32>
    %210 = arith.addf %206, %209 : vector<32x64xf32>
    %cst_91 = arith.constant 5.000000e-01 : f32
    %211 = vector.broadcast %cst_91 : f32 to vector<32x64xf32>
    %212 = arith.mulf %211, %210 : vector<32x64xf32>
    %cst_92 = arith.constant 0.707106769 : f32
    %213 = vector.broadcast %cst_92 : f32 to vector<32x64xf32>
    %214 = arith.mulf %210, %213 : vector<32x64xf32>
    %215 = math.absf %214 : vector<32x64xf32>
    %cst_93 = arith.constant 0.327591091 : f32
    %216 = vector.broadcast %cst_93 : f32 to vector<32x64xf32>
    %217 = arith.mulf %216, %215 : vector<32x64xf32>
    %cst_94 = arith.constant 1.000000e+00 : f32
    %218 = vector.broadcast %cst_94 : f32 to vector<32x64xf32>
    %219 = arith.addf %218, %217 : vector<32x64xf32>
    %cst_95 = arith.constant 1.000000e+00 : f32
    %220 = vector.broadcast %cst_95 : f32 to vector<32x64xf32>
    %221 = arith.divf %220, %219 : vector<32x64xf32>
    %cst_96 = arith.constant 1.06140542 : f32
    %222 = vector.broadcast %cst_96 : f32 to vector<32x64xf32>
    %223 = arith.mulf %222, %221 : vector<32x64xf32>
    %cst_97 = arith.constant -1.45315206 : f32
    %224 = vector.broadcast %cst_97 : f32 to vector<32x64xf32>
    %225 = arith.addf %223, %224 : vector<32x64xf32>
    %226 = arith.mulf %225, %221 : vector<32x64xf32>
    %cst_98 = arith.constant 1.42141378 : f32
    %227 = vector.broadcast %cst_98 : f32 to vector<32x64xf32>
    %228 = arith.addf %226, %227 : vector<32x64xf32>
    %229 = arith.mulf %228, %221 : vector<32x64xf32>
    %cst_99 = arith.constant -0.284496725 : f32
    %230 = vector.broadcast %cst_99 : f32 to vector<32x64xf32>
    %231 = arith.addf %229, %230 : vector<32x64xf32>
    %232 = arith.mulf %231, %221 : vector<32x64xf32>
    %cst_100 = arith.constant 0.254829586 : f32
    %233 = vector.broadcast %cst_100 : f32 to vector<32x64xf32>
    %234 = arith.addf %232, %233 : vector<32x64xf32>
    %235 = arith.mulf %234, %221 : vector<32x64xf32>
    %cst_101 = arith.constant 0.000000e+00 : f32
    %236 = vector.broadcast %cst_101 : f32 to vector<32x64xf32>
    %237 = arith.subf %236, %215 : vector<32x64xf32>
    %238 = arith.mulf %237, %215 : vector<32x64xf32>
    %239 = math.exp %238 : vector<32x64xf32>
    %240 = arith.mulf %235, %239 : vector<32x64xf32>
    %cst_102 = arith.constant 1.000000e+00 : f32
    %241 = vector.broadcast %cst_102 : f32 to vector<32x64xf32>
    %242 = arith.subf %241, %240 : vector<32x64xf32>
    %cst_103 = arith.constant 0.000000e+00 : f32
    %243 = vector.broadcast %cst_103 : f32 to vector<32x64xf32>
    %244 = arith.cmpf oge, %214, %243 : vector<32x64xf32>
    %cst_104 = arith.constant 0.000000e+00 : f32
    %245 = vector.broadcast %cst_104 : f32 to vector<32x64xf32>
    %246 = arith.subf %245, %242 : vector<32x64xf32>
    %247 = arith.select %244, %242, %246 : vector<32x64xi1>, vector<32x64xf32>
    %cst_105 = arith.constant 1.000000e+00 : f32
    %248 = vector.broadcast %cst_105 : f32 to vector<32x64xf32>
    %249 = arith.addf %248, %247 : vector<32x64xf32>
    %250 = arith.mulf %212, %249 : vector<32x64xf32>
    %c0_106 = arith.constant 0 : index
    %c0_107 = arith.constant 0 : index
    %c0_108 = arith.constant 0 : index
    %251 = vector.load %arg20[%c0_106, %c0_107, %c0_108] : memref<2x64x32xf32, #tpu.memory_space<vmem>>, vector<1x64x32xf32>
    %252 = vector.shape_cast %251 : vector<1x64x32xf32> to vector<64x32xf32>
    %cst_109 = arith.constant dense<0.000000e+00> : vector<32x32xf32>
    %253 = tpu.matmul %250, %252, %cst_109 {dimension_numbers = #tpu.dot_dimension_numbers<[1], [0], [0], [1], [0, 0, 1, 1], [], []>} : vector<32x64xf32>, vector<64x32xf32>, vector<32x32xf32> -> vector<32x32xf32>
    %254 = arith.addf %177, %253 : vector<32x32xf32>
    %c0_110 = arith.constant 0 : index
    %c0_111 = arith.constant 0 : index
    %c0_112 = arith.constant 0 : index
    %255 = vector.load %arg21[%c0_110, %c0_111, %c0_112] : memref<2x1x32xf32, #tpu.memory_space<vmem>>, vector<1x1x32xf32>
    %256 = vector.shape_cast %255 : vector<1x1x32xf32> to vector<1x32xf32>
    %257 = vector.broadcast %256 : vector<1x32xf32> to vector<32x32xf32>
    %258 = arith.addf %254, %257 : vector<32x32xf32>
    %c1 = arith.constant 1 : index
    %c0_113 = arith.constant 0 : index
    %c0_114 = arith.constant 0 : index
    %259 = vector.load %arg9[%c1, %c0_113, %c0_114] : memref<2x1x32xf32, #tpu.memory_space<vmem>>, vector<1x1x32xf32>
    %260 = vector.shape_cast %259 : vector<1x1x32xf32> to vector<1x32xf32>
    %c1_115 = arith.constant 1 : index
    %c0_116 = arith.constant 0 : index
    %c0_117 = arith.constant 0 : index
    %261 = vector.load %arg10[%c1_115, %c0_116, %c0_117] : memref<2x1x32xf32, #tpu.memory_space<vmem>>, vector<1x1x32xf32>
    %262 = vector.shape_cast %261 : vector<1x1x32xf32> to vector<1x32xf32>
    %cst_118 = arith.constant dense<0.000000e+00> : vector<32xf32>
    %263 = vector.multi_reduction <add>, %258, %cst_118 [1] : vector<32x32xf32> to vector<32xf32>
    %264 = vector.shape_cast %263 : vector<32xf32> to vector<32x1xf32>
    %cst_119 = arith.constant 3.200000e+01 : f32
    %265 = vector.broadcast %cst_119 : f32 to vector<32x1xf32>
    %266 = arith.divf %264, %265 : vector<32x1xf32>
    %267 = vector.broadcast %266 : vector<32x1xf32> to vector<32x32xf32>
    %268 = arith.subf %258, %267 : vector<32x32xf32>
    %269 = arith.mulf %268, %268 : vector<32x32xf32>
    %cst_120 = arith.constant dense<0.000000e+00> : vector<32xf32>
    %270 = vector.multi_reduction <add>, %269, %cst_120 [1] : vector<32x32xf32> to vector<32xf32>
    %271 = vector.shape_cast %270 : vector<32xf32> to vector<32x1xf32>
    %cst_121 = arith.constant 3.200000e+01 : f32
    %272 = vector.broadcast %cst_121 : f32 to vector<32x1xf32>
    %273 = arith.divf %271, %272 : vector<32x1xf32>
    %274 = vector.broadcast %266 : vector<32x1xf32> to vector<32x32xf32>
    %275 = arith.subf %258, %274 : vector<32x32xf32>
    %cst_122 = arith.constant 9.99999974E-6 : f32
    %276 = vector.broadcast %cst_122 : f32 to vector<32x1xf32>
    %277 = arith.addf %273, %276 : vector<32x1xf32>
    %278 = math.rsqrt %277 : vector<32x1xf32>
    %279 = vector.broadcast %278 : vector<32x1xf32> to vector<32x32xf32>
    %280 = arith.mulf %275, %279 : vector<32x32xf32>
    %281 = vector.broadcast %260 : vector<1x32xf32> to vector<32x32xf32>
    %282 = arith.mulf %280, %281 : vector<32x32xf32>
    %283 = vector.broadcast %262 : vector<1x32xf32> to vector<32x32xf32>
    %284 = arith.addf %282, %283 : vector<32x32xf32>
    %285 = vector.shape_cast %284 : vector<32x32xf32> to vector<2x1x16x32xf32>
    %286 = vector.shape_cast %285 : vector<2x1x16x32xf32> to vector<2x1x16x32xf32>
    %287 = vector.broadcast %286 : vector<2x1x16x32xf32> to vector<2x4x16x32xf32>
    %288 = vector.shape_cast %287 : vector<2x4x16x32xf32> to vector<8x16x32xf32>
    %c1_123 = arith.constant 1 : index
    %c0_124 = arith.constant 0 : index
    %c0_125 = arith.constant 0 : index
    %c0_126 = arith.constant 0 : index
    %289 = vector.load %arg11[%c1_123, %c0_124, %c0_125, %c0_126] : memref<2x4x32x8xf32, #tpu.memory_space<vmem>>, vector<1x4x32x8xf32>
    %290 = vector.shape_cast %289 : vector<1x4x32x8xf32> to vector<4x32x8xf32>
    %291 = vector.shape_cast %290 : vector<4x32x8xf32> to vector<1x4x32x8xf32>
    %292 = vector.shape_cast %291 : vector<1x4x32x8xf32> to vector<1x4x32x8xf32>
    %293 = vector.broadcast %292 : vector<1x4x32x8xf32> to vector<2x4x32x8xf32>
    %294 = vector.shape_cast %293 : vector<2x4x32x8xf32> to vector<8x32x8xf32>
    %c1_127 = arith.constant 1 : index
    %c0_128 = arith.constant 0 : index
    %c0_129 = arith.constant 0 : index
    %c0_130 = arith.constant 0 : index
    %295 = vector.load %arg12[%c1_127, %c0_128, %c0_129, %c0_130] : memref<2x4x32x8xf32, #tpu.memory_space<vmem>>, vector<1x4x32x8xf32>
    %296 = vector.shape_cast %295 : vector<1x4x32x8xf32> to vector<4x32x8xf32>
    %297 = vector.shape_cast %296 : vector<4x32x8xf32> to vector<1x4x32x8xf32>
    %298 = vector.shape_cast %297 : vector<1x4x32x8xf32> to vector<1x4x32x8xf32>
    %299 = vector.broadcast %298 : vector<1x4x32x8xf32> to vector<2x4x32x8xf32>
    %300 = vector.shape_cast %299 : vector<2x4x32x8xf32> to vector<8x32x8xf32>
    %c1_131 = arith.constant 1 : index
    %c0_132 = arith.constant 0 : index
    %c0_133 = arith.constant 0 : index
    %c0_134 = arith.constant 0 : index
    %301 = vector.load %arg13[%c1_131, %c0_132, %c0_133, %c0_134] : memref<2x4x32x8xf32, #tpu.memory_space<vmem>>, vector<1x4x32x8xf32>
    %302 = vector.shape_cast %301 : vector<1x4x32x8xf32> to vector<4x32x8xf32>
    %303 = vector.shape_cast %302 : vector<4x32x8xf32> to vector<1x4x32x8xf32>
    %304 = vector.shape_cast %303 : vector<1x4x32x8xf32> to vector<1x4x32x8xf32>
    %305 = vector.broadcast %304 : vector<1x4x32x8xf32> to vector<2x4x32x8xf32>
    %306 = vector.shape_cast %305 : vector<2x4x32x8xf32> to vector<8x32x8xf32>
    "tpu.trace_start"() <{level = 10 : i32, message = "znd,zdk->znk"}> : () -> ()
    %cst_135 = arith.constant dense<0.000000e+00> : vector<8x16x8xf32>
    %307 = tpu.matmul %288, %294, %cst_135 {dimension_numbers = #tpu.dot_dimension_numbers<[2], [1], [1], [2], [0, 0, 0, 1, 1, 2], [0], [0]>} : vector<8x16x32xf32>, vector<8x32x8xf32>, vector<8x16x8xf32> -> vector<8x16x8xf32>
    %cst_136 = arith.constant dense<0.000000e+00> : vector<8x16x8xf32>
    %308 = tpu.matmul %288, %300, %cst_136 {dimension_numbers = #tpu.dot_dimension_numbers<[2], [1], [1], [2], [0, 0, 0, 1, 1, 2], [0], [0]>} : vector<8x16x32xf32>, vector<8x32x8xf32>, vector<8x16x8xf32> -> vector<8x16x8xf32>
    %cst_137 = arith.constant dense<0.000000e+00> : vector<8x16x8xf32>
    %309 = tpu.matmul %288, %306, %cst_137 {dimension_numbers = #tpu.dot_dimension_numbers<[2], [1], [1], [2], [0, 0, 0, 1, 1, 2], [0], [0]>} : vector<8x16x32xf32>, vector<8x32x8xf32>, vector<8x16x8xf32> -> vector<8x16x8xf32>
    "tpu.trace_stop"() : () -> ()
    %cst_138 = arith.constant 0.353553385 : f32
    %310 = vector.broadcast %cst_138 : f32 to vector<8x16x8xf32>
    %311 = arith.mulf %307, %310 : vector<8x16x8xf32>
    "tpu.trace_start"() <{level = 10 : i32, message = "znd,zmd->znm"}> : () -> ()
    %cst_139 = arith.constant dense<0.000000e+00> : vector<8x16x16xf32>
    %312 = tpu.matmul %311, %308, %cst_139 {dimension_numbers = #tpu.dot_dimension_numbers<[2], [2], [1], [1], [0, 0, 0, 1, 1, 1], [0], [0]>} : vector<8x16x8xf32>, vector<8x16x8xf32>, vector<8x16x16xf32> -> vector<8x16x16xf32>
    "tpu.trace_stop"() : () -> ()
    %313 = vector.shape_cast %84 : vector<16x16xf32> to vector<1x16x16xf32>
    %314 = vector.broadcast %313 : vector<1x16x16xf32> to vector<8x16x16xf32>
    %315 = arith.addf %312, %314 : vector<8x16x16xf32>
    %cst_140 = arith.constant dense<0xFF800000> : vector<8x16xf32>
    %316 = vector.multi_reduction <maximumf>, %315, %cst_140 [2] : vector<8x16x16xf32> to vector<8x16xf32>
    %317 = vector.shape_cast %316 : vector<8x16xf32> to vector<8x16x1xf32>
    %318 = vector.broadcast %317 : vector<8x16x1xf32> to vector<8x16x16xf32>
    %319 = arith.subf %315, %318 : vector<8x16x16xf32>
    %320 = math.exp %319 : vector<8x16x16xf32>
    %cst_141 = arith.constant dense<0.000000e+00> : vector<8x16xf32>
    %321 = vector.multi_reduction <add>, %320, %cst_141 [2] : vector<8x16x16xf32> to vector<8x16xf32>
    %322 = vector.shape_cast %321 : vector<8x16xf32> to vector<8x16x1xf32>
    %323 = tpu.reciprocal %322 {approx = true} : vector<8x16x1xf32> -> vector<8x16x1xf32>
    %324 = vector.broadcast %323 : vector<8x16x1xf32> to vector<8x16x16xf32>
    %325 = arith.mulf %320, %324 : vector<8x16x16xf32>
    "tpu.trace_start"() <{level = 10 : i32, message = "znm,zmd->znd"}> : () -> ()
    %cst_142 = arith.constant dense<0.000000e+00> : vector<8x16x8xf32>
    %326 = tpu.matmul %325, %309, %cst_142 {dimension_numbers = #tpu.dot_dimension_numbers<[2], [1], [1], [2], [0, 0, 0, 1, 1, 2], [0], [0]>} : vector<8x16x16xf32>, vector<8x16x8xf32>, vector<8x16x8xf32> -> vector<8x16x8xf32>
    "tpu.trace_stop"() : () -> ()
    %c1_143 = arith.constant 1 : index
    %c0_144 = arith.constant 0 : index
    %c0_145 = arith.constant 0 : index
    %c0_146 = arith.constant 0 : index
    %327 = vector.load %arg14[%c1_143, %c0_144, %c0_145, %c0_146] : memref<2x4x8x32xf32, #tpu.memory_space<vmem>>, vector<1x4x8x32xf32>
    %328 = vector.shape_cast %327 : vector<1x4x8x32xf32> to vector<4x8x32xf32>
    %329 = vector.shape_cast %328 : vector<4x8x32xf32> to vector<1x4x8x32xf32>
    %330 = vector.shape_cast %329 : vector<1x4x8x32xf32> to vector<1x4x8x32xf32>
    %331 = vector.broadcast %330 : vector<1x4x8x32xf32> to vector<2x4x8x32xf32>
    %332 = vector.shape_cast %331 : vector<2x4x8x32xf32> to vector<8x8x32xf32>
    "tpu.trace_start"() <{level = 10 : i32, message = "znk,zkd->znd"}> : () -> ()
    %cst_147 = arith.constant dense<0.000000e+00> : vector<8x16x32xf32>
    %333 = tpu.matmul %326, %332, %cst_147 {dimension_numbers = #tpu.dot_dimension_numbers<[2], [1], [1], [2], [0, 0, 0, 1, 1, 2], [0], [0]>} : vector<8x16x8xf32>, vector<8x8x32xf32>, vector<8x16x32xf32> -> vector<8x16x32xf32>
    "tpu.trace_stop"() : () -> ()
    %334 = vector.shape_cast %333 : vector<8x16x32xf32> to vector<2x4x16x32xf32>
    %335 = vector.extract_strided_slice %334 {offsets = [0, 0, 0, 0], sizes = [2, 1, 16, 32], strides = [1, 1, 1, 1]} : vector<2x4x16x32xf32> to vector<2x1x16x32xf32>
    %336 = vector.shape_cast %335 : vector<2x1x16x32xf32> to vector<2x16x32xf32>
    %337 = vector.extract_strided_slice %334 {offsets = [0, 1, 0, 0], sizes = [2, 1, 16, 32], strides = [1, 1, 1, 1]} : vector<2x4x16x32xf32> to vector<2x1x16x32xf32>
    %338 = vector.shape_cast %337 : vector<2x1x16x32xf32> to vector<2x16x32xf32>
    %339 = arith.addf %336, %338 : vector<2x16x32xf32>
    %340 = vector.extract_strided_slice %334 {offsets = [0, 2, 0, 0], sizes = [2, 1, 16, 32], strides = [1, 1, 1, 1]} : vector<2x4x16x32xf32> to vector<2x1x16x32xf32>
    %341 = vector.shape_cast %340 : vector<2x1x16x32xf32> to vector<2x16x32xf32>
    %342 = arith.addf %339, %341 : vector<2x16x32xf32>
    %343 = vector.extract_strided_slice %334 {offsets = [0, 3, 0, 0], sizes = [2, 1, 16, 32], strides = [1, 1, 1, 1]} : vector<2x4x16x32xf32> to vector<2x1x16x32xf32>
    %344 = vector.shape_cast %343 : vector<2x1x16x32xf32> to vector<2x16x32xf32>
    %345 = arith.addf %342, %344 : vector<2x16x32xf32>
    %346 = vector.shape_cast %345 : vector<2x16x32xf32> to vector<32x32xf32>
    %347 = arith.addf %258, %346 : vector<32x32xf32>
    %c1_148 = arith.constant 1 : index
    %c0_149 = arith.constant 0 : index
    %c0_150 = arith.constant 0 : index
    %348 = vector.load %arg15[%c1_148, %c0_149, %c0_150] : memref<2x1x32xf32, #tpu.memory_space<vmem>>, vector<1x1x32xf32>
    %349 = vector.shape_cast %348 : vector<1x1x32xf32> to vector<1x32xf32>
    %350 = vector.broadcast %349 : vector<1x32xf32> to vector<32x32xf32>
    %351 = arith.addf %347, %350 : vector<32x32xf32>
    %c1_151 = arith.constant 1 : index
    %c0_152 = arith.constant 0 : index
    %c0_153 = arith.constant 0 : index
    %352 = vector.load %arg16[%c1_151, %c0_152, %c0_153] : memref<2x1x32xf32, #tpu.memory_space<vmem>>, vector<1x1x32xf32>
    %353 = vector.shape_cast %352 : vector<1x1x32xf32> to vector<1x32xf32>
    %c1_154 = arith.constant 1 : index
    %c0_155 = arith.constant 0 : index
    %c0_156 = arith.constant 0 : index
    %354 = vector.load %arg17[%c1_154, %c0_155, %c0_156] : memref<2x1x32xf32, #tpu.memory_space<vmem>>, vector<1x1x32xf32>
    %355 = vector.shape_cast %354 : vector<1x1x32xf32> to vector<1x32xf32>
    %cst_157 = arith.constant dense<0.000000e+00> : vector<32xf32>
    %356 = vector.multi_reduction <add>, %351, %cst_157 [1] : vector<32x32xf32> to vector<32xf32>
    %357 = vector.shape_cast %356 : vector<32xf32> to vector<32x1xf32>
    %cst_158 = arith.constant 3.200000e+01 : f32
    %358 = vector.broadcast %cst_158 : f32 to vector<32x1xf32>
    %359 = arith.divf %357, %358 : vector<32x1xf32>
    %360 = vector.broadcast %359 : vector<32x1xf32> to vector<32x32xf32>
    %361 = arith.subf %351, %360 : vector<32x32xf32>
    %362 = arith.mulf %361, %361 : vector<32x32xf32>
    %cst_159 = arith.constant dense<0.000000e+00> : vector<32xf32>
    %363 = vector.multi_reduction <add>, %362, %cst_159 [1] : vector<32x32xf32> to vector<32xf32>
    %364 = vector.shape_cast %363 : vector<32xf32> to vector<32x1xf32>
    %cst_160 = arith.constant 3.200000e+01 : f32
    %365 = vector.broadcast %cst_160 : f32 to vector<32x1xf32>
    %366 = arith.divf %364, %365 : vector<32x1xf32>
    %367 = vector.broadcast %359 : vector<32x1xf32> to vector<32x32xf32>
    %368 = arith.subf %351, %367 : vector<32x32xf32>
    %cst_161 = arith.constant 9.99999974E-6 : f32
    %369 = vector.broadcast %cst_161 : f32 to vector<32x1xf32>
    %370 = arith.addf %366, %369 : vector<32x1xf32>
    %371 = math.rsqrt %370 : vector<32x1xf32>
    %372 = vector.broadcast %371 : vector<32x1xf32> to vector<32x32xf32>
    %373 = arith.mulf %368, %372 : vector<32x32xf32>
    %374 = vector.broadcast %353 : vector<1x32xf32> to vector<32x32xf32>
    %375 = arith.mulf %373, %374 : vector<32x32xf32>
    %376 = vector.broadcast %355 : vector<1x32xf32> to vector<32x32xf32>
    %377 = arith.addf %375, %376 : vector<32x32xf32>
    %c1_162 = arith.constant 1 : index
    %c0_163 = arith.constant 0 : index
    %c0_164 = arith.constant 0 : index
    %378 = vector.load %arg18[%c1_162, %c0_163, %c0_164] : memref<2x32x64xf32, #tpu.memory_space<vmem>>, vector<1x32x64xf32>
    %379 = vector.shape_cast %378 : vector<1x32x64xf32> to vector<32x64xf32>
    %cst_165 = arith.constant dense<0.000000e+00> : vector<32x64xf32>
    %380 = tpu.matmul %377, %379, %cst_165 {dimension_numbers = #tpu.dot_dimension_numbers<[1], [0], [0], [1], [0, 0, 1, 1], [], []>} : vector<32x32xf32>, vector<32x64xf32>, vector<32x64xf32> -> vector<32x64xf32>
    %c1_166 = arith.constant 1 : index
    %c0_167 = arith.constant 0 : index
    %c0_168 = arith.constant 0 : index
    %381 = vector.load %arg19[%c1_166, %c0_167, %c0_168] : memref<2x1x64xf32, #tpu.memory_space<vmem>>, vector<1x1x64xf32>
    %382 = vector.shape_cast %381 : vector<1x1x64xf32> to vector<1x64xf32>
    %383 = vector.broadcast %382 : vector<1x64xf32> to vector<32x64xf32>
    %384 = arith.addf %380, %383 : vector<32x64xf32>
    %cst_169 = arith.constant 5.000000e-01 : f32
    %385 = vector.broadcast %cst_169 : f32 to vector<32x64xf32>
    %386 = arith.mulf %385, %384 : vector<32x64xf32>
    %cst_170 = arith.constant 0.707106769 : f32
    %387 = vector.broadcast %cst_170 : f32 to vector<32x64xf32>
    %388 = arith.mulf %384, %387 : vector<32x64xf32>
    %389 = math.absf %388 : vector<32x64xf32>
    %cst_171 = arith.constant 0.327591091 : f32
    %390 = vector.broadcast %cst_171 : f32 to vector<32x64xf32>
    %391 = arith.mulf %390, %389 : vector<32x64xf32>
    %cst_172 = arith.constant 1.000000e+00 : f32
    %392 = vector.broadcast %cst_172 : f32 to vector<32x64xf32>
    %393 = arith.addf %392, %391 : vector<32x64xf32>
    %cst_173 = arith.constant 1.000000e+00 : f32
    %394 = vector.broadcast %cst_173 : f32 to vector<32x64xf32>
    %395 = arith.divf %394, %393 : vector<32x64xf32>
    %cst_174 = arith.constant 1.06140542 : f32
    %396 = vector.broadcast %cst_174 : f32 to vector<32x64xf32>
    %397 = arith.mulf %396, %395 : vector<32x64xf32>
    %cst_175 = arith.constant -1.45315206 : f32
    %398 = vector.broadcast %cst_175 : f32 to vector<32x64xf32>
    %399 = arith.addf %397, %398 : vector<32x64xf32>
    %400 = arith.mulf %399, %395 : vector<32x64xf32>
    %cst_176 = arith.constant 1.42141378 : f32
    %401 = vector.broadcast %cst_176 : f32 to vector<32x64xf32>
    %402 = arith.addf %400, %401 : vector<32x64xf32>
    %403 = arith.mulf %402, %395 : vector<32x64xf32>
    %cst_177 = arith.constant -0.284496725 : f32
    %404 = vector.broadcast %cst_177 : f32 to vector<32x64xf32>
    %405 = arith.addf %403, %404 : vector<32x64xf32>
    %406 = arith.mulf %405, %395 : vector<32x64xf32>
    %cst_178 = arith.constant 0.254829586 : f32
    %407 = vector.broadcast %cst_178 : f32 to vector<32x64xf32>
    %408 = arith.addf %406, %407 : vector<32x64xf32>
    %409 = arith.mulf %408, %395 : vector<32x64xf32>
    %cst_179 = arith.constant 0.000000e+00 : f32
    %410 = vector.broadcast %cst_179 : f32 to vector<32x64xf32>
    %411 = arith.subf %410, %389 : vector<32x64xf32>
    %412 = arith.mulf %411, %389 : vector<32x64xf32>
    %413 = math.exp %412 : vector<32x64xf32>
    %414 = arith.mulf %409, %413 : vector<32x64xf32>
    %cst_180 = arith.constant 1.000000e+00 : f32
    %415 = vector.broadcast %cst_180 : f32 to vector<32x64xf32>
    %416 = arith.subf %415, %414 : vector<32x64xf32>
    %cst_181 = arith.constant 0.000000e+00 : f32
    %417 = vector.broadcast %cst_181 : f32 to vector<32x64xf32>
    %418 = arith.cmpf oge, %388, %417 : vector<32x64xf32>
    %cst_182 = arith.constant 0.000000e+00 : f32
    %419 = vector.broadcast %cst_182 : f32 to vector<32x64xf32>
    %420 = arith.subf %419, %416 : vector<32x64xf32>
    %421 = arith.select %418, %416, %420 : vector<32x64xi1>, vector<32x64xf32>
    %cst_183 = arith.constant 1.000000e+00 : f32
    %422 = vector.broadcast %cst_183 : f32 to vector<32x64xf32>
    %423 = arith.addf %422, %421 : vector<32x64xf32>
    %424 = arith.mulf %386, %423 : vector<32x64xf32>
    %c1_184 = arith.constant 1 : index
    %c0_185 = arith.constant 0 : index
    %c0_186 = arith.constant 0 : index
    %425 = vector.load %arg20[%c1_184, %c0_185, %c0_186] : memref<2x64x32xf32, #tpu.memory_space<vmem>>, vector<1x64x32xf32>
    %426 = vector.shape_cast %425 : vector<1x64x32xf32> to vector<64x32xf32>
    %cst_187 = arith.constant dense<0.000000e+00> : vector<32x32xf32>
    %427 = tpu.matmul %424, %426, %cst_187 {dimension_numbers = #tpu.dot_dimension_numbers<[1], [0], [0], [1], [0, 0, 1, 1], [], []>} : vector<32x64xf32>, vector<64x32xf32>, vector<32x32xf32> -> vector<32x32xf32>
    %428 = arith.addf %351, %427 : vector<32x32xf32>
    %c1_188 = arith.constant 1 : index
    %c0_189 = arith.constant 0 : index
    %c0_190 = arith.constant 0 : index
    %429 = vector.load %arg21[%c1_188, %c0_189, %c0_190] : memref<2x1x32xf32, #tpu.memory_space<vmem>>, vector<1x1x32xf32>
    %430 = vector.shape_cast %429 : vector<1x1x32xf32> to vector<1x32xf32>
    %431 = vector.broadcast %430 : vector<1x32xf32> to vector<32x32xf32>
    %432 = arith.addf %428, %431 : vector<32x32xf32>
    %433 = vector.shape_cast %432 : vector<32x32xf32> to vector<2x16x32xf32>
    %434 = vector.extract_strided_slice %433 {offsets = [0, 0, 0], sizes = [2, 1, 32], strides = [1, 1, 1]} : vector<2x16x32xf32> to vector<2x1x32xf32>
    %435 = vector.shape_cast %434 : vector<2x1x32xf32> to vector<2x32xf32>
    %c0_191 = arith.constant 0 : index
    %c0_192 = arith.constant 0 : index
    %436 = vector.load %arg22[%c0_191, %c0_192] : memref<1x32xf32, #tpu.memory_space<vmem>>, vector<1x32xf32>
    %c0_193 = arith.constant 0 : index
    %c0_194 = arith.constant 0 : index
    %437 = vector.load %arg23[%c0_193, %c0_194] : memref<1x32xf32, #tpu.memory_space<vmem>>, vector<1x32xf32>
    %cst_195 = arith.constant dense<0.000000e+00> : vector<2xf32>
    %438 = vector.multi_reduction <add>, %435, %cst_195 [1] : vector<2x32xf32> to vector<2xf32>
    %439 = vector.shape_cast %438 : vector<2xf32> to vector<2x1xf32>
    %cst_196 = arith.constant 3.200000e+01 : f32
    %440 = vector.broadcast %cst_196 : f32 to vector<2x1xf32>
    %441 = arith.divf %439, %440 : vector<2x1xf32>
    %442 = vector.broadcast %441 : vector<2x1xf32> to vector<2x32xf32>
    %443 = arith.subf %435, %442 : vector<2x32xf32>
    %444 = arith.mulf %443, %443 : vector<2x32xf32>
    %cst_197 = arith.constant dense<0.000000e+00> : vector<2xf32>
    %445 = vector.multi_reduction <add>, %444, %cst_197 [1] : vector<2x32xf32> to vector<2xf32>
    %446 = vector.shape_cast %445 : vector<2xf32> to vector<2x1xf32>
    %cst_198 = arith.constant 3.200000e+01 : f32
    %447 = vector.broadcast %cst_198 : f32 to vector<2x1xf32>
    %448 = arith.divf %446, %447 : vector<2x1xf32>
    %449 = vector.broadcast %441 : vector<2x1xf32> to vector<2x32xf32>
    %450 = arith.subf %435, %449 : vector<2x32xf32>
    %cst_199 = arith.constant 9.99999974E-6 : f32
    %451 = vector.broadcast %cst_199 : f32 to vector<2x1xf32>
    %452 = arith.addf %448, %451 : vector<2x1xf32>
    %453 = math.rsqrt %452 : vector<2x1xf32>
    %454 = vector.broadcast %453 : vector<2x1xf32> to vector<2x32xf32>
    %455 = arith.mulf %450, %454 : vector<2x32xf32>
    %456 = vector.broadcast %436 : vector<1x32xf32> to vector<2x32xf32>
    %457 = arith.mulf %455, %456 : vector<2x32xf32>
    %458 = vector.broadcast %437 : vector<1x32xf32> to vector<2x32xf32>
    %459 = arith.addf %457, %458 : vector<2x32xf32>
    %c0_200 = arith.constant 0 : index
    %c0_201 = arith.constant 0 : index
    %460 = vector.load %arg24[%c0_200, %c0_201] : memref<32x10xf32, #tpu.memory_space<vmem>>, vector<32x10xf32>
    %cst_202 = arith.constant dense<0.000000e+00> : vector<2x10xf32>
    %461 = tpu.matmul %459, %460, %cst_202 {dimension_numbers = #tpu.dot_dimension_numbers<[1], [0], [0], [1], [0, 0, 1, 1], [], []>} : vector<2x32xf32>, vector<32x10xf32>, vector<2x10xf32> -> vector<2x10xf32>
    %c0_203 = arith.constant 0 : index
    %c0_204 = arith.constant 0 : index
    %462 = vector.load %arg25[%c0_203, %c0_204] : memref<1x10xf32, #tpu.memory_space<vmem>>, vector<1x10xf32>
    %463 = vector.broadcast %462 : vector<1x10xf32> to vector<2x10xf32>
    %464 = arith.addf %461, %463 : vector<2x10xf32>
    %c0_205 = arith.constant 0 : index
    %c0_206 = arith.constant 0 : index
    %465 = vector.load %arg26[%c0_205, %c0_206] : memref<2x10xf32, #tpu.memory_space<vmem>>, vector<2x10xf32>
    tpu.vector_store %arg26[%c0_205, %c0_206], %464 {strides = array<i32>} : memref<2x10xf32, #tpu.memory_space<vmem>>, vector<2x10xf32>,
    return
  }
}

</mosaic_0001>

<llo_original>
// kernel: vit_forward.1
$region0: #{vit_forward.1}
  #allocation0 [shape = 'u32[]', space=smem, size = 0x4, offset = 0x4, fixed_abs, tag = 'smem constant byte address 0x4 - core index']
  #allocation1 [shape = 'u32[144,128]{1,0:T(1,128)}', space=vmem, size = 0x12000, scoped, tag = 'internal scratch']
  %s0 = inlined_call_operand.vmem [shape: f32[32,384], index: 0, kind: input, shape index: {}]
  %s1 = inlined_call_operand.vmem [shape: f32[1,384], index: 1, kind: input, shape index: {}]
  %s2 = inlined_call_operand.vmem [shape: f32[1,384], index: 2, kind: input, shape index: {}]
  %s3 = inlined_call_operand.vmem [shape: f32[384,32], index: 3, kind: input, shape index: {}]
  %s4 = inlined_call_operand.vmem [shape: f32[1,32], index: 4, kind: input, shape index: {}]
  %s5 = inlined_call_operand.vmem [shape: f32[1,32], index: 5, kind: input, shape index: {}]
  %s6 = inlined_call_operand.vmem [shape: f32[1,32], index: 6, kind: input, shape index: {}]
  %s7 = inlined_call_operand.vmem [shape: f32[1,32], index: 7, kind: input, shape index: {}]
  %s8 = inlined_call_operand.vmem [shape: f32[32,32], index: 8, kind: input, shape index: {}]
  %s9 = inlined_call_operand.vmem [shape: f32[2,1,32], index: 9, kind: input, shape index: {}]
  %s10 = inlined_call_operand.vmem [shape: f32[2,1,32], index: 10, kind: input, shape index: {}]
  %s11 = inlined_call_operand.vmem [shape: f32[2,4,32,8], index: 11, kind: input, shape index: {}]
  %s12 = inlined_call_operand.vmem [shape: f32[2,4,32,8], index: 12, kind: input, shape index: {}]
  %s13 = inlined_call_operand.vmem [shape: f32[2,4,32,8], index: 13, kind: input, shape index: {}]
  %s14 = inlined_call_operand.vmem [shape: f32[2,4,8,32], index: 14, kind: input, shape index: {}]
  %s15 = inlined_call_operand.vmem [shape: f32[2,1,32], index: 15, kind: input, shape index: {}]
  %s16 = inlined_call_operand.vmem [shape: f32[2,1,32], index: 16, kind: input, shape index: {}]
  %s17 = inlined_call_operand.vmem [shape: f32[2,1,32], index: 17, kind: input, shape index: {}]
  %s18 = inlined_call_operand.vmem [shape: f32[2,32,64], index: 18, kind: input, shape index: {}]
  %s19 = inlined_call_operand.vmem [shape: f32[2,1,64], index: 19, kind: input, shape index: {}]
  %s20 = inlined_call_operand.vmem [shape: f32[2,64,32], index: 20, kind: input, shape index: {}]
  %s21 = inlined_call_operand.vmem [shape: f32[2,1,32], index: 21, kind: input, shape index: {}]
  %s22 = inlined_call_operand.vmem [shape: f32[1,32], index: 22, kind: input, shape index: {}]
  %s23 = inlined_call_operand.vmem [shape: f32[1,32], index: 23, kind: input, shape index: {}]
  %s24 = inlined_call_operand.vmem [shape: f32[32,10], index: 24, kind: input, shape index: {}]
  %s25 = inlined_call_operand.vmem [shape: f32[1,10], index: 25, kind: input, shape index: {}]
  %s26 = inlined_call_operand.hbm [shape: f32[2,10], index: 26, kind: output, shape index: {}]
  %s27 = sld [smem:[#allocation0]]
  $region114: #{vit_forward.1} parent=0
    _
  %s29 = ssub.s32 1, %s27
  %s30 = scalar_select 0, %s29, %s27
  $region1: #{vit_forward.1} parent=0
    #allocation2 [shape = 'u8[1024]{0}', space=vmem, size = 0x400, scoped, tag = 'output window, operand 0, single buffered']
    #allocation3 [shape = 's32[1]{0}', space=sflag, size = 0x4, scoped, tag = 'scoped memory for vit_forward.1']
    %31 = vsyncpa [#allocation3], 0
    // Predicated region
    $region2: #{vit_forward.1} parent=1 // pred_check
      _
    $region3: #{vit_forward.1} parent=1 // pred_check_branch
      %33 = sbr.rel (0) target = $region5
    $region4: #{vit_forward.1} parent=1 // pred_region
      _
    $region5: #{vit_forward.1} parent=1 // pred_fallthru
      _
    // Predicated region
    $region6: #{vit_forward.1} parent=1 // pred_check
      _
    $region7: #{vit_forward.1} parent=1 // pred_check_branch
      %35 = sbr.rel (0) target = $region9
    $region8: #{vit_forward.1} parent=1 // pred_region
      _
    $region9: #{vit_forward.1} parent=1 // pred_fallthru
      _
    // Predicated region
    $region10: #{vit_forward.1} parent=1 // pred_check
      _
    $region11: #{vit_forward.1} parent=1 // pred_check_branch
      %37 = sbr.rel (0) target = $region13
    $region12: #{vit_forward.1} parent=1 // pred_region
      _
    $region13: #{vit_forward.1} parent=1 // pred_fallthru
      _
    // Predicated region
    $region14: #{vit_forward.1} parent=1 // pred_check
      _
    $region15: #{vit_forward.1} parent=1 // pred_check_branch
      %39 = sbr.rel (0) target = $region17
    $region16: #{vit_forward.1} parent=1 // pred_region
      _
    $region17: #{vit_forward.1} parent=1 // pred_fallthru
      _
    // Predicated region
    $region18: #{vit_forward.1} parent=1 // pred_check
      _
    $region19: #{vit_forward.1} parent=1 // pred_check_branch
      %41 = sbr.rel (0) target = $region21
    $region20: #{vit_forward.1} parent=1 // pred_region
      _
    $region21: #{vit_forward.1} parent=1 // pred_fallthru
      _
    // Predicated region
    $region22: #{vit_forward.1} parent=1 // pred_check
      _
    $region23: #{vit_forward.1} parent=1 // pred_check_branch
      %43 = sbr.rel (0) target = $region25
    $region24: #{vit_forward.1} parent=1 // pred_region
      _
    $region25: #{vit_forward.1} parent=1 // pred_fallthru
      _
    // Predicated region
    $region26: #{vit_forward.1} parent=1 // pred_check
      _
    $region27: #{vit_forward.1} parent=1 // pred_check_branch
      %45 = sbr.rel (0) target = $region29
    $region28: #{vit_forward.1} parent=1 // pred_region
      _
    $region29: #{vit_forward.1} parent=1 // pred_fallthru
      _
    // Predicated region
    $region30: #{vit_forward.1} parent=1 // pred_check
      _
    $region31: #{vit_forward.1} parent=1 // pred_check_branch
      %47 = sbr.rel (0) target = $region33
    $region32: #{vit_forward.1} parent=1 // pred_region
      _
    $region33: #{vit_forward.1} parent=1 // pred_fallthru
      _
    // Predicated region
    $region34: #{vit_forward.1} parent=1 // pred_check
      _
    $region35: #{vit_forward.1} parent=1 // pred_check_branch
      %49 = sbr.rel (0) target = $region37
    $region36: #{vit_forward.1} parent=1 // pred_region
      _
    $region37: #{vit_forward.1} parent=1 // pred_fallthru
      _
    // Predicated region
    $region38: #{vit_forward.1} parent=1 // pred_check
      _
    $region39: #{vit_forward.1} parent=1 // pred_check_branch
      %51 = sbr.rel (0) target = $region41
    $region40: #{vit_forward.1} parent=1 // pred_region
      _
    $region41: #{vit_forward.1} parent=1 // pred_fallthru
      _
    // Predicated region
    $region42: #{vit_forward.1} parent=1 // pred_check
      _
    $region43: #{vit_forward.1} parent=1 // pred_check_branch
      %53 = sbr.rel (0) target = $region45
    $region44: #{vit_forward.1} parent=1 // pred_region
      _
    $region45: #{vit_forward.1} parent=1 // pred_fallthru
      _
    // Predicated region
    $region46: #{vit_forward.1} parent=1 // pred_check
      _
    $region47: #{vit_forward.1} parent=1 // pred_check_branch
      %55 = sbr.rel (0) target = $region49
    $region48: #{vit_forward.1} parent=1 // pred_region
      _
    $region49: #{vit_forward.1} parent=1 // pred_fallthru
      _
    // Predicated region
    $region50: #{vit_forward.1} parent=1 // pred_check
      _
    $region51: #{vit_forward.1} parent=1 // pred_check_branch
      %57 = sbr.rel (0) target = $region53
    $region52: #{vit_forward.1} parent=1 // pred_region
      _
    $region53: #{vit_forward.1} parent=1 // pred_fallthru
      _
    // Predicated region
    $region54: #{vit_forward.1} parent=1 // pred_check
      _
    $region55: #{vit_forward.1} parent=1 // pred_check_branch
      %59 = sbr.rel (0) target = $region57
    $region56: #{vit_forward.1} parent=1 // pred_region
      _
    $region57: #{vit_forward.1} parent=1 // pred_fallthru
      _
    // Predicated region
    $region58: #{vit_forward.1} parent=1 // pred_check
      _
    $region59: #{vit_forward.1} parent=1 // pred_check_branch
      %61 = sbr.rel (0) target = $region61
    $region60: #{vit_forward.1} parent=1 // pred_region
      _
    $region61: #{vit_forward.1} parent=1 // pred_fallthru
      _
    // Predicated region
    $region62: #{vit_forward.1} parent=1 // pred_check
      _
    $region63: #{vit_forward.1} parent=1 // pred_check_branch
      %63 = sbr.rel (0) target = $region65
    $region64: #{vit_forward.1} parent=1 // pred_region
      _
    $region65: #{vit_forward.1} parent=1 // pred_fallthru
      _
    // Predicated region
    $region66: #{vit_forward.1} parent=1 // pred_check
      _
    $region67: #{vit_forward.1} parent=1 // pred_check_branch
      %65 = sbr.rel (0) target = $region69
    $region68: #{vit_forward.1} parent=1 // pred_region
      _
    $region69: #{vit_forward.1} parent=1 // pred_fallthru
      _
    // Predicated region
    $region70: #{vit_forward.1} parent=1 // pred_check
      _
    $region71: #{vit_forward.1} parent=1 // pred_check_branch
      %67 = sbr.rel (0) target = $region73
    $region72: #{vit_forward.1} parent=1 // pred_region
      _
    $region73: #{vit_forward.1} parent=1 // pred_fallthru
      _
    // Predicated region
    $region74: #{vit_forward.1} parent=1 // pred_check
      _
    $region75: #{vit_forward.1} parent=1 // pred_check_branch
      %69 = sbr.rel (0) target = $region77
    $region76: #{vit_forward.1} parent=1 // pred_region
      _
    $region77: #{vit_forward.1} parent=1 // pred_fallthru
      _
    // Predicated region
    $region78: #{vit_forward.1} parent=1 // pred_check
      _
    $region79: #{vit_forward.1} parent=1 // pred_check_branch
      %71 = sbr.rel (0) target = $region81
    $region80: #{vit_forward.1} parent=1 // pred_region
      _
    $region81: #{vit_forward.1} parent=1 // pred_fallthru
      _
    // Predicated region
    $region82: #{vit_forward.1} parent=1 // pred_check
      _
    $region83: #{vit_forward.1} parent=1 // pred_check_branch
      %73 = sbr.rel (0) target = $region85
    $region84: #{vit_forward.1} parent=1 // pred_region
      _
    $region85: #{vit_forward.1} parent=1 // pred_fallthru
      _
    // Predicated region
    $region86: #{vit_forward.1} parent=1 // pred_check
      _
    $region87: #{vit_forward.1} parent=1 // pred_check_branch
      %75 = sbr.rel (0) target = $region89
    $region88: #{vit_forward.1} parent=1 // pred_region
      _
    $region89: #{vit_forward.1} parent=1 // pred_fallthru
      _
    // Predicated region
    $region90: #{vit_forward.1} parent=1 // pred_check
      _
    $region91: #{vit_forward.1} parent=1 // pred_check_branch
      %77 = sbr.rel (0) target = $region93
    $region92: #{vit_forward.1} parent=1 // pred_region
      _
    $region93: #{vit_forward.1} parent=1 // pred_fallthru
      _
    // Predicated region
    $region94: #{vit_forward.1} parent=1 // pred_check
      _
    $region95: #{vit_forward.1} parent=1 // pred_check_branch
      %79 = sbr.rel (0) target = $region97
    $region96: #{vit_forward.1} parent=1 // pred_region
      _
    $region97: #{vit_forward.1} parent=1 // pred_fallthru
      _
    // Predicated region
    $region98: #{vit_forward.1} parent=1 // pred_check
      _
    $region99: #{vit_forward.1} parent=1 // pred_check_branch
      %81 = sbr.rel (0) target = $region101
    $region100: #{vit_forward.1} parent=1 // pred_region
      _
    $region101: #{vit_forward.1} parent=1 // pred_fallthru
      _
    // Predicated region
    $region102: #{vit_forward.1} parent=1 // pred_check
      _
    $region103: #{vit_forward.1} parent=1 // pred_check_branch
      %83 = sbr.rel (0) target = $region105
    $region104: #{vit_forward.1} parent=1 // pred_region
      _
    $region105: #{vit_forward.1} parent=1 // pred_fallthru
      _
    %v84 = vld [vmem:[%s0] sm:$0xff]
    %v85 = vld [vmem:[%s0 + $0x8] sm:$0xff]
    %v86 = vld [vmem:[%s0 + $0x10] sm:$0xff]
    %v87 = vld [vmem:[%s0 + $0x18] sm:$0xff]
    %v88 = vld [vmem:[%s0 + $0x20] sm:$0xff]
    %v89 = vld [vmem:[%s0 + $0x28] sm:$0xff]
    %v90 = vld [vmem:[%s0 + $0x30] sm:$0xff]
    %v91 = vld [vmem:[%s0 + $0x38] sm:$0xff]
    %v92 = vld [vmem:[%s0 + $0x40] sm:$0xff]
    %v93 = vld [vmem:[%s0 + $0x48] sm:$0xff]
    %v94 = vld [vmem:[%s0 + $0x50] sm:$0xff]
    %v95 = vld [vmem:[%s0 + $0x58] sm:$0xff]
    %v96 = vld [vmem:[%s1] sm:$0x7]
    %v97 = vld [vmem:[%s2] sm:$0x7]
    %v98 = vadd.f32 %v84, %v85
    %v99 = vadd.f32 %v98, %v86
    %100 = vadd.xlane.f32.xlu0 %v99
    %v101 = vpop.xlane.xlu0 %100
    %v102 = vadd.f32 %v87, %v88
    %v103 = vadd.f32 %v102, %v89
    %104 = vadd.xlane.f32.xlu0 %v103
    %v105 = vpop.xlane.xlu0 %104
    %v106 = vadd.f32 %v90, %v91
    %v107 = vadd.f32 %v106, %v92
    %108 = vadd.xlane.f32.xlu0 %v107
    %v109 = vpop.xlane.xlu0 %108
    %v110 = vadd.f32 %v93, %v94
    %v111 = vadd.f32 %v110, %v95
    %112 = vadd.xlane.f32.xlu0 %v111
    %v113 = vpop.xlane.xlu0 %112
    %v114 = vrcp.pop 384.0
    %v115 = vmul.f32 %v101, %v114
    %v116 = vmul.f32 %v105, %v114
    %v117 = vmul.f32 %v109, %v114
    %v118 = vmul.f32 %v113, %v114
    %v119 = vsub.f32 %v84, %v115
    %v120 = vsub.f32 %v85, %v115
    %v121 = vsub.f32 %v86, %v115
    %v122 = vsub.f32 %v87, %v116
    %v123 = vsub.f32 %v88, %v116
    %v124 = vsub.f32 %v89, %v116
    %v125 = vsub.f32 %v90, %v117
    %v126 = vsub.f32 %v91, %v117
    %v127 = vsub.f32 %v92, %v117
    %v128 = vsub.f32 %v93, %v118
    %v129 = vsub.f32 %v94, %v118
    %v130 = vsub.f32 %v95, %v118
    %v131 = vmul.f32 %v119, %v119
    %v132 = vmul.f32 %v120, %v120
    %v133 = vmul.f32 %v121, %v121
    %v134 = vmul.f32 %v122, %v122
    %v135 = vmul.f32 %v123, %v123
    %v136 = vmul.f32 %v124, %v124
    %v137 = vmul.f32 %v125, %v125
    %v138 = vmul.f32 %v126, %v126
    %v139 = vmul.f32 %v127, %v127
    %v140 = vmul.f32 %v128, %v128
    %v141 = vmul.f32 %v129, %v129
    %v142 = vmul.f32 %v130, %v130
    %v143 = vadd.f32 %v131, %v132
    %v144 = vadd.f32 %v143, %v133
    %145 = vadd.xlane.f32.xlu0 %v144
    %v146 = vpop.xlane.xlu0 %145
    %v147 = vadd.f32 %v134, %v135
    %v148 = vadd.f32 %v147, %v136
    %149 = vadd.xlane.f32.xlu0 %v148
    %v150 = vpop.xlane.xlu0 %149
    %v151 = vadd.f32 %v137, %v138
    %v152 = vadd.f32 %v151, %v139
    %153 = vadd.xlane.f32.xlu0 %v152
    %v154 = vpop.xlane.xlu0 %153
    %v155 = vadd.f32 %v140, %v141
    %v156 = vadd.f32 %v155, %v142
    %157 = vadd.xlane.f32.xlu0 %v156
    %v158 = vpop.xlane.xlu0 %157
    %v159 = vmul.f32 %v146, %v114
    %v160 = vmul.f32 %v150, %v114
    %v161 = vmul.f32 %v154, %v114
    %v162 = vmul.f32 %v158, %v114
    %v163 = vadd.f32 %v159, 1e-05
    %v164 = vadd.f32 %v160, 1e-05
    %v165 = vadd.f32 %v161, 1e-05
    %v166 = vadd.f32 %v162, 1e-05
    %v167 = vrsqrt.pop %v163
    %v168 = vrsqrt.pop %v164
    %v169 = vrsqrt.pop %v165
    %v170 = vrsqrt.pop %v166
    %v171 = vmul.f32 %v119, %v167
    %v172 = vmul.f32 %v120, %v167
    %v173 = vmul.f32 %v121, %v167
    %v174 = vmul.f32 %v122, %v168
    %v175 = vmul.f32 %v123, %v168
    %v176 = vmul.f32 %v124, %v168
    %v177 = vmul.f32 %v125, %v169
    %v178 = vmul.f32 %v126, %v169
    %v179 = vmul.f32 %v127, %v169
    %v180 = vmul.f32 %v128, %v170
    %v181 = vmul.f32 %v129, %v170
    %v182 = vmul.f32 %v130, %v170
    %v184 = vlaneseq
    %v185 = vshrl.u32 %v184, 7
    %v186 = vsub.s32 0, %v185
    %v187 = vrot.slane %v96, %v186
    %v188 = vlaneseq
    %v189 = vshrl.u32 %v188, 7
    %v190 = vsub.s32 1, %v189
    %v191 = vrot.slane %v96, %v190
    %v192 = vlaneseq
    %v193 = vshrl.u32 %v192, 7
    %v194 = vsub.s32 2, %v193
    %v195 = vrot.slane %v96, %v194
    %v199 = vmul.f32 %v171, %v187
    %v200 = vmul.f32 %v172, %v191
    %v201 = vmul.f32 %v173, %v195
    %v202 = vmul.f32 %v174, %v187
    %v203 = vmul.f32 %v175, %v191
    %v204 = vmul.f32 %v176, %v195
    %v205 = vmul.f32 %v177, %v187
    %v206 = vmul.f32 %v178, %v191
    %v207 = vmul.f32 %v179, %v195
    %v208 = vmul.f32 %v180, %v187
    %v209 = vmul.f32 %v181, %v191
    %v210 = vmul.f32 %v182, %v195
    %v212 = vlaneseq
    %v213 = vshrl.u32 %v212, 7
    %v214 = vsub.s32 0, %v213
    %v215 = vrot.slane %v97, %v214
    %v216 = vlaneseq
    %v217 = vshrl.u32 %v216, 7
    %v218 = vsub.s32 1, %v217
    %v219 = vrot.slane %v97, %v218
    %v220 = vlaneseq
    %v221 = vshrl.u32 %v220, 7
    %v222 = vsub.s32 2, %v221
    %v223 = vrot.slane %v97, %v222
    %v227 = vadd.f32 %v199, %v215
    %v228 = vadd.f32 %v200, %v219
    %v229 = vadd.f32 %v201, %v223
    %v230 = vadd.f32 %v202, %v215
    %v231 = vadd.f32 %v203, %v219
    %v232 = vadd.f32 %v204, %v223
    %v233 = vadd.f32 %v205, %v215
    %v234 = vadd.f32 %v206, %v219
    %v235 = vadd.f32 %v207, %v223
    %v236 = vadd.f32 %v208, %v215
    %v237 = vadd.f32 %v209, %v219
    %v238 = vadd.f32 %v210, %v223
    %v239 = vld [vmem:[%s3] sm:$0xff]
    %v240 = vld [vmem:[%s3 + $0x8] sm:$0xff]
    %v241 = vld [vmem:[%s3 + $0x10] sm:$0xff]
    %v242 = vld [vmem:[%s3 + $0x18] sm:$0xff]
    %v243 = vld [vmem:[%s3 + $0x20] sm:$0xff]
    %v244 = vld [vmem:[%s3 + $0x28] sm:$0xff]
    %v245 = vld [vmem:[%s3 + $0x30] sm:$0xff]
    %v246 = vld [vmem:[%s3 + $0x38] sm:$0xff]
    %v247 = vld [vmem:[%s3 + $0x40] sm:$0xff]
    %v248 = vld [vmem:[%s3 + $0x48] sm:$0xff]
    %v249 = vld [vmem:[%s3 + $0x50] sm:$0xff]
    %v250 = vld [vmem:[%s3 + $0x58] sm:$0xff]
    %v251 = vld [vmem:[%s3 + $0x60] sm:$0xff]
    %v252 = vld [vmem:[%s3 + $0x68] sm:$0xff]
    %v253 = vld [vmem:[%s3 + $0x70] sm:$0xff]
    %v254 = vld [vmem:[%s3 + $0x78] sm:$0xff]
    %v255 = vld [vmem:[%s3 + $0x80] sm:$0xff]
    %v256 = vld [vmem:[%s3 + $0x88] sm:$0xff]
    %v257 = vld [vmem:[%s3 + $0x90] sm:$0xff]
    %v258 = vld [vmem:[%s3 + $0x98] sm:$0xff]
    %v259 = vld [vmem:[%s3 + $0xa0] sm:$0xff]
    %v260 = vld [vmem:[%s3 + $0xa8] sm:$0xff]
    %v261 = vld [vmem:[%s3 + $0xb0] sm:$0xff]
    %v262 = vld [vmem:[%s3 + $0xb8] sm:$0xff]
    %v263 = vld [vmem:[%s3 + $0xc0] sm:$0xff]
    %v264 = vld [vmem:[%s3 + $0xc8] sm:$0xff]
    %v265 = vld [vmem:[%s3 + $0xd0] sm:$0xff]
    %v266 = vld [vmem:[%s3 + $0xd8] sm:$0xff]
    %v267 = vld [vmem:[%s3 + $0xe0] sm:$0xff]
    %v268 = vld [vmem:[%s3 + $0xe8] sm:$0xff]
    %v269 = vld [vmem:[%s3 + $0xf0] sm:$0xff]
    %v270 = vld [vmem:[%s3 + $0xf8] sm:$0xff]
    %v271 = vld [vmem:[%s3 + $0x100] sm:$0xff]
    %v272 = vld [vmem:[%s3 + $0x108] sm:$0xff]
    %v273 = vld [vmem:[%s3 + $0x110] sm:$0xff]
    %v274 = vld [vmem:[%s3 + $0x118] sm:$0xff]
    %v275 = vld [vmem:[%s3 + $0x120] sm:$0xff]
    %v276 = vld [vmem:[%s3 + $0x128] sm:$0xff]
    %v277 = vld [vmem:[%s3 + $0x130] sm:$0xff]
    %v278 = vld [vmem:[%s3 + $0x138] sm:$0xff]
    %v279 = vld [vmem:[%s3 + $0x140] sm:$0xff]
    %v280 = vld [vmem:[%s3 + $0x148] sm:$0xff]
    %v281 = vld [vmem:[%s3 + $0x150] sm:$0xff]
    %v282 = vld [vmem:[%s3 + $0x158] sm:$0xff]
    %v283 = vld [vmem:[%s3 + $0x160] sm:$0xff]
    %v284 = vld [vmem:[%s3 + $0x168] sm:$0xff]
    %v285 = vld [vmem:[%s3 + $0x170] sm:$0xff]
    %v286 = vld [vmem:[%s3 + $0x178] sm:$0xff]
    %v287 = vld [vmem:[%s4] sm:$0x1]
    %v289 = vlaneseq
    %v290 = vshrl.u32 %v289, 7
    %v291 = vsub.s32 0, %v290
    %v292 = vrot.slane %v287, %v291
    %294 = vmatprep.subr.mxu0 0.0
    %295 = vmatpush1.msra.mxu0 %v239
    %296 = vmatprep.subr.mxu0 0.0
    %297 = vmatpush1.msra.mxu0 %v240
    %298 = vmatprep.subr.mxu0 0.0
    %299 = vmatpush1.msra.mxu0 %v241
    %300 = vmatprep.subr.mxu0 0.0
    %301 = vmatpush1.msra.mxu0 %v242
    %302 = vmatprep.subr.mxu0 0.0
    %303 = vmatpush1.msra.mxu0 %v243
    %304 = vmatprep.subr.mxu0 0.0
    %305 = vmatpush1.msra.mxu0 %v244
    %306 = vmatprep.subr.mxu0 0.0
    %307 = vmatpush1.msra.mxu0 %v245
    %308 = vmatprep.subr.mxu0 0.0
    %309 = vmatpush1.msra.mxu0 %v246
    %310 = vmatprep.subr.mxu0 0.0
    %311 = vmatpush1.msra.mxu0 %v247
    %312 = vmatprep.subr.mxu0 0.0
    %313 = vmatpush1.msra.mxu0 %v248
    %314 = vmatprep.subr.mxu0 0.0
    %315 = vmatpush1.msra.mxu0 %v249
    %316 = vmatprep.subr.mxu0 0.0
    %317 = vmatpush1.msra.mxu0 %v250
    %318 = vmatprep.subr.mxu0 0.0
    %319 = vmatpush1.msra.mxu0 %v251
    %320 = vmatprep.subr.mxu0 0.0
    %321 = vmatpush1.msra.mxu0 %v252
    %322 = vmatprep.subr.mxu0 0.0
    %323 = vmatpush1.msra.mxu0 %v253
    %324 = vmatprep.subr.mxu0 0.0
    %325 = vmatpush1.msra.mxu0 %v254
    %326 = vmatprep.subr.mxu0 0.0
    %327 = vmatpush1.msra.mxu0 %v255
    %328 = vmatprep.subr.mxu0 0.0
    %329 = vmatpush1.msra.mxu0 %v256
    %330 = vmatprep.subr.mxu0 0.0
    %331 = vmatpush1.msra.mxu0 %v257
    %332 = vmatprep.subr.mxu0 0.0
    %333 = vmatpush1.msra.mxu0 %v258
    %334 = vmatprep.subr.mxu0 0.0
    %335 = vmatpush1.msra.mxu0 %v259
    %336 = vmatprep.subr.mxu0 0.0
    %337 = vmatpush1.msra.mxu0 %v260
    %338 = vmatprep.subr.mxu0 0.0
    %339 = vmatpush1.msra.mxu0 %v261
    %340 = vmatprep.subr.mxu0 0.0
    %341 = vmatpush1.msra.mxu0 %v262
    %342 = vmatprep.subr.mxu0 0.0
    %343 = vmatpush1.msra.mxu0 %v263
    %344 = vmatprep.subr.mxu0 0.0
    %345 = vmatpush1.msra.mxu0 %v264
    %346 = vmatprep.subr.mxu0 0.0
    %347 = vmatpush1.msra.mxu0 %v265
    %348 = vmatprep.subr.mxu0 0.0
    %349 = vmatpush1.msra.mxu0 %v266
    %350 = vmatprep.subr.mxu0 0.0
    %351 = vmatpush1.msra.mxu0 %v267
    %352 = vmatprep.subr.mxu0 0.0
    %353 = vmatpush1.msra.mxu0 %v268
    %354 = vmatprep.subr.mxu0 0.0
    %355 = vmatpush1.msra.mxu0 %v269
    %356 = vmatprep.subr.mxu0 0.0
    %357 = vmatpush1.msra.mxu0 %v270
    %358 = vmatprep.mubr.f32.mxu0 %v228
    %359 = vmatmul.mubr.f32.gmra.mrb[0].mxu0 %v227
    %v360 = vpop.f32.mrb[0].mxu0
    %v361 = vadd.f32 %v292, %v360
    %v362 = vpop.f32.mrb[0].mxu0
    %363 = vmatprep.mubr.f32.mxu0 %v231
    %364 = vmatmul.mubr.f32.gmra.mrb[0].mxu0 %v230
    %v365 = vpop.f32.mrb[0].mxu0
    %v366 = vadd.f32 %v292, %v365
    %v367 = vpop.f32.mrb[0].mxu0
    %368 = vmatprep.mubr.f32.mxu0 %v234
    %369 = vmatmul.mubr.f32.gmra.mrb[0].mxu0 %v233
    %v370 = vpop.f32.mrb[0].mxu0
    %v371 = vadd.f32 %v292, %v370
    %v372 = vpop.f32.mrb[0].mxu0
    %373 = vmatprep.mubr.f32.mxu0 %v237
    %374 = vmatmul.mubr.f32.gmra.mrb[0].mxu0 %v236
    %v375 = vpop.f32.mrb[0].mxu0
    %v376 = vadd.f32 %v292, %v375
    %v377 = vpop.f32.mrb[0].mxu0
    %378 = vdwg.mxu0
    %379 = vmatprep.subr.mxu0 0.0
    %380 = vmatpush1.msra.mxu0 %v271
    %381 = vmatprep.subr.mxu0 0.0
    %382 = vmatpush1.msra.mxu0 %v272
    %383 = vmatprep.subr.mxu0 0.0
    %384 = vmatpush1.msra.mxu0 %v273
    %385 = vmatprep.subr.mxu0 0.0
    %386 = vmatpush1.msra.mxu0 %v274
    %387 = vmatprep.subr.mxu0 0.0
    %388 = vmatpush1.msra.mxu0 %v275
    %389 = vmatprep.subr.mxu0 0.0
    %390 = vmatpush1.msra.mxu0 %v276
    %391 = vmatprep.subr.mxu0 0.0
    %392 = vmatpush1.msra.mxu0 %v277
    %393 = vmatprep.subr.mxu0 0.0
    %394 = vmatpush1.msra.mxu0 %v278
    %395 = vmatprep.subr.mxu0 0.0
    %396 = vmatpush1.msra.mxu0 %v279
    %397 = vmatprep.subr.mxu0 0.0
    %398 = vmatpush1.msra.mxu0 %v280
    %399 = vmatprep.subr.mxu0 0.0
    %400 = vmatpush1.msra.mxu0 %v281
    %401 = vmatprep.subr.mxu0 0.0
    %402 = vmatpush1.msra.mxu0 %v282
    %403 = vmatprep.subr.mxu0 0.0
    %404 = vmatpush1.msra.mxu0 %v283
    %405 = vmatprep.subr.mxu0 0.0
    %406 = vmatpush1.msra.mxu0 %v284
    %407 = vmatprep.subr.mxu0 0.0
    %408 = vmatpush1.msra.mxu0 %v285
    %409 = vmatprep.subr.mxu0 0.0
    %410 = vmatpush1.msra.mxu0 %v286
    %411 = vmatprep.subr.mxu0 0.0
    %412 = vmatpush1.msra.mxu0 0.0
    %413 = vmatprep.subr.mxu0 0.0
    %414 = vmatpush1.msra.mxu0 0.0
    %415 = vmatprep.subr.mxu0 0.0
    %416 = vmatpush1.msra.mxu0 0.0
    %417 = vmatprep.subr.mxu0 0.0
    %418 = vmatpush1.msra.mxu0 0.0
    %419 = vmatprep.subr.mxu0 0.0
    %420 = vmatpush1.msra.mxu0 0.0
    %421 = vmatprep.subr.mxu0 0.0
    %422 = vmatpush1.msra.mxu0 0.0
    %423 = vmatprep.subr.mxu0 0.0
    %424 = vmatpush1.msra.mxu0 0.0
    %425 = vmatprep.subr.mxu0 0.0
    %426 = vmatpush1.msra.mxu0 0.0
    %427 = vmatprep.subr.mxu0 0.0
    %428 = vmatpush1.msra.mxu0 0.0
    %429 = vmatprep.subr.mxu0 0.0
    %430 = vmatpush1.msra.mxu0 0.0
    %431 = vmatprep.subr.mxu0 0.0
    %432 = vmatpush1.msra.mxu0 0.0
    %433 = vmatprep.subr.mxu0 0.0
    %434 = vmatpush1.msra.mxu0 0.0
    %435 = vmatprep.subr.mxu0 0.0
    %436 = vmatpush1.msra.mxu0 0.0
    %437 = vmatprep.subr.mxu0 0.0
    %438 = vmatpush1.msra.mxu0 0.0
    %439 = vmatprep.subr.mxu0 0.0
    %440 = vmatpush1.msra.mxu0 0.0
    %441 = vmatprep.subr.mxu0 0.0
    %442 = vmatpush1.msra.mxu0 0.0
    %443 = vmatprep.mubr.f32.mxu0 0.0
    %444 = vmatmul.mubr.f32.gmra.mrb[0].mxu0 %v229
    %v445 = vpop.f32.mrb[0].mxu0
    %v446 = vadd.f32 %v361, %v445
    %v447 = vpop.f32.mrb[0].mxu0
    %448 = vmatprep.mubr.f32.mxu0 0.0
    %449 = vmatmul.mubr.f32.gmra.mrb[0].mxu0 %v232
    %v450 = vpop.f32.mrb[0].mxu0
    %v451 = vadd.f32 %v366, %v450
    %v452 = vpop.f32.mrb[0].mxu0
    %453 = vmatprep.mubr.f32.mxu0 0.0
    %454 = vmatmul.mubr.f32.gmra.mrb[0].mxu0 %v235
    %v455 = vpop.f32.mrb[0].mxu0
    %v456 = vadd.f32 %v371, %v455
    %v457 = vpop.f32.mrb[0].mxu0
    %458 = vmatprep.mubr.f32.mxu0 0.0
    %459 = vmatmul.mubr.f32.gmra.mrb[0].mxu0 %v238
    %v460 = vpop.f32.mrb[0].mxu0
    %v461 = vadd.f32 %v376, %v460
    %v462 = vpop.f32.mrb[0].mxu0
    %463 = vdwg.mxu0
    %v464 = vld [vmem:[%s5] sm:$0x1]
    %v465 = vld [vmem:[%s6] sm:$0x1]
    %vm466 = vcmask 261120
    %v467 = vsel %vm466, %v446, 0.0
    %468 = vadd.xlane.f32.xlu0 %v467
    %v469 = vpop.xlane.xlu0 %468
    %v470 = vsel %vm466, %v451, 0.0
    %471 = vadd.xlane.f32.xlu0 %v470
    %v472 = vpop.xlane.xlu0 %471
    %v473 = vsel %vm466, %v456, 0.0
    %474 = vadd.xlane.f32.xlu0 %v473
    %v475 = vpop.xlane.xlu0 %474
    %v476 = vsel %vm466, %v461, 0.0
    %477 = vadd.xlane.f32.xlu0 %v476
    %v478 = vpop.xlane.xlu0 %477
    %v479 = vrcp.pop 32.0
    %v480 = vmul.f32 %v469, %v479
    %v481 = vmul.f32 %v472, %v479
    %v482 = vmul.f32 %v475, %v479
    %v483 = vmul.f32 %v478, %v479
    %v484 = vsub.f32 %v446, %v480
    %v485 = vsub.f32 %v451, %v481
    %v486 = vsub.f32 %v456, %v482
    %v487 = vsub.f32 %v461, %v483
    %v488 = vmul.f32 %v484, %v484
    %v489 = vmul.f32 %v485, %v485
    %v490 = vmul.f32 %v486, %v486
    %v491 = vmul.f32 %v487, %v487
    %v492 = vsel %vm466, %v488, 0.0
    %493 = vadd.xlane.f32.xlu0 %v492
    %v494 = vpop.xlane.xlu0 %493
    %v495 = vsel %vm466, %v489, 0.0
    %496 = vadd.xlane.f32.xlu0 %v495
    %v497 = vpop.xlane.xlu0 %496
    %v498 = vsel %vm466, %v490, 0.0
    %499 = vadd.xlane.f32.xlu0 %v498
    %v500 = vpop.xlane.xlu0 %499
    %v501 = vsel %vm466, %v491, 0.0
    %502 = vadd.xlane.f32.xlu0 %v501
    %v503 = vpop.xlane.xlu0 %502
    %v504 = vmul.f32 %v494, %v479
    %v505 = vmul.f32 %v497, %v479
    %v506 = vmul.f32 %v500, %v479
    %v507 = vmul.f32 %v503, %v479
    %v508 = vadd.f32 %v504, 1e-05
    %v509 = vadd.f32 %v505, 1e-05
    %v510 = vadd.f32 %v506, 1e-05
    %v511 = vadd.f32 %v507, 1e-05
    %v512 = vrsqrt.pop %v508
    %v513 = vrsqrt.pop %v509
    %v514 = vrsqrt.pop %v510
    %v515 = vrsqrt.pop %v511
    %v516 = vmul.f32 %v484, %v512
    %v517 = vmul.f32 %v485, %v513
    %v518 = vmul.f32 %v486, %v514
    %v519 = vmul.f32 %v487, %v515
    %v521 = vlaneseq
    %v522 = vshrl.u32 %v521, 7
    %v523 = vsub.s32 0, %v522
    %v524 = vrot.slane %v464, %v523
    %v526 = vmul.f32 %v516, %v524
    %v527 = vmul.f32 %v517, %v524
    %v528 = vmul.f32 %v518, %v524
    %v529 = vmul.f32 %v519, %v524
    %v531 = vlaneseq
    %v532 = vshrl.u32 %v531, 7
    %v533 = vsub.s32 0, %v532
    %v534 = vrot.slane %v465, %v533
    %v536 = vadd.f32 %v526, %v534
    %v537 = vadd.f32 %v527, %v534
    %v538 = vadd.f32 %v528, %v534
    %v539 = vadd.f32 %v529, %v534
    %v540 = vlaneseq
    %v541 = vshrl.u32 %v540, 7
    %v542 = vadd.s32 %v541, 8
    %v543 = vadd.s32 %v541, 16
    %v544 = vadd.s32 %v541, 24
    %v545 = vand.u32 %v541, 15
    %v546 = vand.u32 %v542, 15
    %v547 = vand.u32 %v543, 15
    %v548 = vand.u32 %v544, 15
    %vm549 = vcmp.ge.s32.totalorder %v545, 1
    %vm550 = vcmp.ge.s32.totalorder %v546, 1
    %vm551 = vcmp.ge.s32.totalorder %v547, 1
    %vm552 = vcmp.ge.s32.totalorder %v548, 1
    %vm553 = vcmp.lt.s32.totalorder %v545, 9
    %vm554 = vcmp.lt.s32.totalorder %v546, 9
    %vm555 = vcmp.lt.s32.totalorder %v547, 9
    %vm556 = vcmp.lt.s32.totalorder %v548, 9
    %vm557 = vmand %vm549, %vm553
    %vm558 = vmand %vm550, %vm554
    %vm559 = vmand %vm551, %vm555
    %vm560 = vmand %vm552, %vm556
    %v561 = vsel %vm557, 1.0, 0.0
    %v562 = vsel %vm558, 1.0, 0.0
    %v563 = vsel %vm559, 1.0, 0.0
    %v564 = vsel %vm560, 1.0, 0.0
    %vm565 = vcmp.eq.s32.totalorder %v545, 0
    %vm566 = vcmp.eq.s32.totalorder %v546, 0
    %vm567 = vcmp.eq.s32.totalorder %v547, 0
    %vm568 = vcmp.eq.s32.totalorder %v548, 0
    %v569 = vsel %vm565, 1.0, 0.0
    %v570 = vsel %vm566, 1.0, 0.0
    %v571 = vsel %vm567, 1.0, 0.0
    %v572 = vsel %vm568, 1.0, 0.0
    %v573 = vmul.f32 %v536, %v561
    %v574 = vmul.f32 %v537, %v562
    %v575 = vmul.f32 %v538, %v563
    %v576 = vmul.f32 %v539, %v564
    %v577 = vld [vmem:[%s8] sm:$0xff]
    %v578 = vld [vmem:[%s8 + $0x8] sm:$0xff]
    %v579 = vld [vmem:[%s8 + $0x10] sm:$0xff]
    %v580 = vld [vmem:[%s8 + $0x18] sm:$0xff]
    %v581 = vadd.f32 %v573, %v577
    %v582 = vadd.f32 %v574, %v578
    %v583 = vadd.f32 %v575, %v579
    %v584 = vadd.f32 %v576, %v580
    %v585 = vld [vmem:[%s7] sm:$0x1]
    %v587 = vlaneseq
    %v588 = vshrl.u32 %v587, 7
    %v589 = vsub.s32 0, %v588
    %v590 = vrot.slane %v585, %v589
    %v592 = vmul.f32 %v590, %v569
    %v593 = vmul.f32 %v590, %v570
    %v594 = vmul.f32 %v590, %v571
    %v595 = vmul.f32 %v590, %v572
    %v596 = vadd.f32 %v581, %v592
    %v597 = vadd.f32 %v582, %v593
    %v598 = vadd.f32 %v583, %v594
    %v599 = vadd.f32 %v584, %v595
    %v600 = vlaneseq
    %v601 = vand.u32 %v600, 127
    %vm602 = vcmp.ge.s32.totalorder %v601, 9
    %v603 = vsel %vm602, -1e+30, 0.0
    %v604 = vld [vmem:[%s9] sm:$0x1]
    %v605 = vld [vmem:[%s10] sm:$0x1]
    %v606 = vsel %vm466, %v596, 0.0
    %607 = vadd.xlane.f32.xlu0 %v606
    %v608 = vpop.xlane.xlu0 %607
    %v609 = vsel %vm466, %v597, 0.0
    %610 = vadd.xlane.f32.xlu0 %v609
    %v611 = vpop.xlane.xlu0 %610
    %v612 = vsel %vm466, %v598, 0.0
    %613 = vadd.xlane.f32.xlu0 %v612
    %v614 = vpop.xlane.xlu0 %613
    %v615 = vsel %vm466, %v599, 0.0
    %616 = vadd.xlane.f32.xlu0 %v615
    %v617 = vpop.xlane.xlu0 %616
    %v618 = vmul.f32 %v608, %v479
    %v619 = vmul.f32 %v611, %v479
    %v620 = vmul.f32 %v614, %v479
    %v621 = vmul.f32 %v617, %v479
    %v622 = vsub.f32 %v596, %v618
    %v623 = vsub.f32 %v597, %v619
    %v624 = vsub.f32 %v598, %v620
    %v625 = vsub.f32 %v599, %v621
    %v626 = vmul.f32 %v622, %v622
    %v627 = vmul.f32 %v623, %v623
    %v628 = vmul.f32 %v624, %v624
    %v629 = vmul.f32 %v625, %v625
    %v630 = vsel %vm466, %v626, 0.0
    %631 = vadd.xlane.f32.xlu0 %v630
    %v632 = vpop.xlane.xlu0 %631
    %v633 = vsel %vm466, %v627, 0.0
    %634 = vadd.xlane.f32.xlu0 %v633
    %v635 = vpop.xlane.xlu0 %634
    %v636 = vsel %vm466, %v628, 0.0
    %637 = vadd.xlane.f32.xlu0 %v636
    %v638 = vpop.xlane.xlu0 %637
    %v639 = vsel %vm466, %v629, 0.0
    %640 = vadd.xlane.f32.xlu0 %v639
    %v641 = vpop.xlane.xlu0 %640
    %v642 = vmul.f32 %v632, %v479
    %v643 = vmul.f32 %v635, %v479
    %v644 = vmul.f32 %v638, %v479
    %v645 = vmul.f32 %v641, %v479
    %v646 = vadd.f32 %v642, 1e-05
    %v647 = vadd.f32 %v643, 1e-05
    %v648 = vadd.f32 %v644, 1e-05
    %v649 = vadd.f32 %v645, 1e-05
    %v650 = vrsqrt.pop %v646
    %v651 = vrsqrt.pop %v647
    %v652 = vrsqrt.pop %v648
    %v653 = vrsqrt.pop %v649
    %v654 = vmul.f32 %v622, %v650
    %v655 = vmul.f32 %v623, %v651
    %v656 = vmul.f32 %v624, %v652
    %v657 = vmul.f32 %v625, %v653
    %v659 = vlaneseq
    %v660 = vshrl.u32 %v659, 7
    %v661 = vsub.s32 0, %v660
    %v662 = vrot.slane %v604, %v661
    %v664 = vmul.f32 %v654, %v662
    %v665 = vmul.f32 %v655, %v662
    %v666 = vmul.f32 %v656, %v662
    %v667 = vmul.f32 %v657, %v662
    %v669 = vlaneseq
    %v670 = vshrl.u32 %v669, 7
    %v671 = vsub.s32 0, %v670
    %v672 = vrot.slane %v605, %v671
    %v674 = vadd.f32 %v664, %v672
    %v675 = vadd.f32 %v665, %v672
    %v676 = vadd.f32 %v666, %v672
    %v677 = vadd.f32 %v667, %v672
    %v678 = vld [vmem:[%s11] sm:$0xff]
    %v679 = vld [vmem:[%s11 + $0x8] sm:$0xff]
    %v680 = vld [vmem:[%s11 + $0x10] sm:$0xff]
    %v681 = vld [vmem:[%s11 + $0x18] sm:$0xff]
    %v682 = vld [vmem:[%s11 + $0x20] sm:$0xff]
    %v683 = vld [vmem:[%s11 + $0x28] sm:$0xff]
    %v684 = vld [vmem:[%s11 + $0x30] sm:$0xff]
    %v685 = vld [vmem:[%s11 + $0x38] sm:$0xff]
    %v686 = vld [vmem:[%s11 + $0x40] sm:$0xff]
    %v687 = vld [vmem:[%s11 + $0x48] sm:$0xff]
    %v688 = vld [vmem:[%s11 + $0x50] sm:$0xff]
    %v689 = vld [vmem:[%s11 + $0x58] sm:$0xff]
    %v690 = vld [vmem:[%s11 + $0x60] sm:$0xff]
    %v691 = vld [vmem:[%s11 + $0x68] sm:$0xff]
    %v692 = vld [vmem:[%s11 + $0x70] sm:$0xff]
    %v693 = vld [vmem:[%s11 + $0x78] sm:$0xff]
    %v694 = vld [vmem:[%s12] sm:$0xff]
    %v695 = vld [vmem:[%s12 + $0x8] sm:$0xff]
    %v696 = vld [vmem:[%s12 + $0x10] sm:$0xff]
    %v697 = vld [vmem:[%s12 + $0x18] sm:$0xff]
    %v698 = vld [vmem:[%s12 + $0x20] sm:$0xff]
    %v699 = vld [vmem:[%s12 + $0x28] sm:$0xff]
    %v700 = vld [vmem:[%s12 + $0x30] sm:$0xff]
    %v701 = vld [vmem:[%s12 + $0x38] sm:$0xff]
    %v702 = vld [vmem:[%s12 + $0x40] sm:$0xff]
    %v703 = vld [vmem:[%s12 + $0x48] sm:$0xff]
    %v704 = vld [vmem:[%s12 + $0x50] sm:$0xff]
    %v705 = vld [vmem:[%s12 + $0x58] sm:$0xff]
    %v706 = vld [vmem:[%s12 + $0x60] sm:$0xff]
    %v707 = vld [vmem:[%s12 + $0x68] sm:$0xff]
    %v708 = vld [vmem:[%s12 + $0x70] sm:$0xff]
    %v709 = vld [vmem:[%s12 + $0x78] sm:$0xff]
    %v710 = vld [vmem:[%s13] sm:$0xff]
    %v711 = vld [vmem:[%s13 + $0x8] sm:$0xff]
    %v712 = vld [vmem:[%s13 + $0x10] sm:$0xff]
    %v713 = vld [vmem:[%s13 + $0x18] sm:$0xff]
    %v714 = vld [vmem:[%s13 + $0x20] sm:$0xff]
    %v715 = vld [vmem:[%s13 + $0x28] sm:$0xff]
    %v716 = vld [vmem:[%s13 + $0x30] sm:$0xff]
    %v717 = vld [vmem:[%s13 + $0x38] sm:$0xff]
    %v718 = vld [vmem:[%s13 + $0x40] sm:$0xff]
    %v719 = vld [vmem:[%s13 + $0x48] sm:$0xff]
    %v720 = vld [vmem:[%s13 + $0x50] sm:$0xff]
    %v721 = vld [vmem:[%s13 + $0x58] sm:$0xff]
    %v722 = vld [vmem:[%s13 + $0x60] sm:$0xff]
    %v723 = vld [vmem:[%s13 + $0x68] sm:$0xff]
    %v724 = vld [vmem:[%s13 + $0x70] sm:$0xff]
    %v725 = vld [vmem:[%s13 + $0x78] sm:$0xff]
    %v727 = vsel %vm466, %v674, 0
    %v730 = vsel %vm466, %v675, 0
    %732 = vmatprep.subr.mxu0 0.0
    %733 = vmatpush1.msra.mxu0 %v678
    %734 = vmatprep.subr.mxu0 0.0
    %735 = vmatpush1.msra.mxu0 %v679
    %736 = vmatprep.subr.mxu0 0.0
    %737 = vmatpush1.msra.mxu0 %v680
    %738 = vmatprep.subr.mxu0 0.0
    %739 = vmatpush1.msra.mxu0 %v681
    %740 = vmatprep.subr.mxu0 0.0
    %741 = vmatpush1.msra.mxu0 0.0
    %742 = vmatprep.subr.mxu0 0.0
    %743 = vmatpush1.msra.mxu0 0.0
    %744 = vmatprep.subr.mxu0 0.0
    %745 = vmatpush1.msra.mxu0 0.0
    %746 = vmatprep.subr.mxu0 0.0
    %747 = vmatpush1.msra.mxu0 0.0
    %748 = vmatprep.subr.mxu0 0.0
    %749 = vmatpush1.msra.mxu0 0.0
    %750 = vmatprep.subr.mxu0 0.0
    %751 = vmatpush1.msra.mxu0 0.0
    %752 = vmatprep.subr.mxu0 0.0
    %753 = vmatpush1.msra.mxu0 0.0
    %754 = vmatprep.subr.mxu0 0.0
    %755 = vmatpush1.msra.mxu0 0.0
    %756 = vmatprep.subr.mxu0 0.0
    %757 = vmatpush1.msra.mxu0 0.0
    %758 = vmatprep.subr.mxu0 0.0
    %759 = vmatpush1.msra.mxu0 0.0
    %760 = vmatprep.subr.mxu0 0.0
    %761 = vmatpush1.msra.mxu0 0.0
    %762 = vmatprep.subr.mxu0 0.0
    %763 = vmatpush1.msra.mxu0 0.0
    %764 = vmatprep.subr.mxu0 0.0
    %765 = vmatpush1.msra.mxu0 0.0
    %766 = vmatprep.subr.mxu0 0.0
    %767 = vmatpush1.msra.mxu0 0.0
    %768 = vmatprep.subr.mxu0 0.0
    %769 = vmatpush1.msra.mxu0 0.0
    %770 = vmatprep.subr.mxu0 0.0
    %771 = vmatpush1.msra.mxu0 0.0
    %772 = vmatprep.subr.mxu0 0.0
    %773 = vmatpush1.msra.mxu0 0.0
    %774 = vmatprep.subr.mxu0 0.0
    %775 = vmatpush1.msra.mxu0 0.0
    %776 = vmatprep.subr.mxu0 0.0
    %777 = vmatpush1.msra.mxu0 0.0
    %778 = vmatprep.subr.mxu0 0.0
    %779 = vmatpush1.msra.mxu0 0.0
    %780 = vmatprep.subr.mxu0 0.0
    %781 = vmatpush1.msra.mxu0 0.0
    %782 = vmatprep.subr.mxu0 0.0
    %783 = vmatpush1.msra.mxu0 0.0
    %784 = vmatprep.subr.mxu0 0.0
    %785 = vmatpush1.msra.mxu0 0.0
    %786 = vmatprep.subr.mxu0 0.0
    %787 = vmatpush1.msra.mxu0 0.0
    %788 = vmatprep.subr.mxu0 0.0
    %789 = vmatpush1.msra.mxu0 0.0
    %790 = vmatprep.subr.mxu0 0.0
    %791 = vmatpush1.msra.mxu0 0.0
    %792 = vmatprep.subr.mxu0 0.0
    %793 = vmatpush1.msra.mxu0 0.0
    %794 = vmatprep.subr.mxu0 0.0
    %795 = vmatpush1.msra.mxu0 0.0
    %796 = vmatprep.mubr.f32.mxu0 0.0
    %797 = vmatmul.mubr.f32.gmra.mrb[0].mxu0 %v727
    %v798 = vpop.f32.mrb[0].mxu0
    %v799 = vadd.f32 0.0, %v798
    %v800 = vpop.f32.mrb[0].mxu0
    %801 = vmatprep.mubr.f32.mxu0 0.0
    %802 = vmatmul.mubr.f32.gmra.mrb[0].mxu0 %v730
    %v803 = vpop.f32.mrb[0].mxu0
    %v804 = vadd.f32 0.0, %v803
    %v805 = vpop.f32.mrb[0].mxu0
    %806 = vdwg.mxu0
    %807 = vmatprep.subr.mxu0 0.0
    %808 = vmatpush1.msra.mxu0 %v682
    %809 = vmatprep.subr.mxu0 0.0
    %810 = vmatpush1.msra.mxu0 %v683
    %811 = vmatprep.subr.mxu0 0.0
    %812 = vmatpush1.msra.mxu0 %v684
    %813 = vmatprep.subr.mxu0 0.0
    %814 = vmatpush1.msra.mxu0 %v685
    %815 = vmatprep.subr.mxu0 0.0
    %816 = vmatpush1.msra.mxu0 0.0
    %817 = vmatprep.subr.mxu0 0.0
    %818 = vmatpush1.msra.mxu0 0.0
    %819 = vmatprep.subr.mxu0 0.0
    %820 = vmatpush1.msra.mxu0 0.0
    %821 = vmatprep.subr.mxu0 0.0
    %822 = vmatpush1.msra.mxu0 0.0
    %823 = vmatprep.subr.mxu0 0.0
    %824 = vmatpush1.msra.mxu0 0.0
    %825 = vmatprep.subr.mxu0 0.0
    %826 = vmatpush1.msra.mxu0 0.0
    %827 = vmatprep.subr.mxu0 0.0
    %828 = vmatpush1.msra.mxu0 0.0
    %829 = vmatprep.subr.mxu0 0.0
    %830 = vmatpush1.msra.mxu0 0.0
    %831 = vmatprep.subr.mxu0 0.0
    %832 = vmatpush1.msra.mxu0 0.0
    %833 = vmatprep.subr.mxu0 0.0
    %834 = vmatpush1.msra.mxu0 0.0
    %835 = vmatprep.subr.mxu0 0.0
    %836 = vmatpush1.msra.mxu0 0.0
    %837 = vmatprep.subr.mxu0 0.0
    %838 = vmatpush1.msra.mxu0 0.0
    %839 = vmatprep.subr.mxu0 0.0
    %840 = vmatpush1.msra.mxu0 0.0
    %841 = vmatprep.subr.mxu0 0.0
    %842 = vmatpush1.msra.mxu0 0.0
    %843 = vmatprep.subr.mxu0 0.0
    %844 = vmatpush1.msra.mxu0 0.0
    %845 = vmatprep.subr.mxu0 0.0
    %846 = vmatpush1.msra.mxu0 0.0
    %847 = vmatprep.subr.mxu0 0.0
    %848 = vmatpush1.msra.mxu0 0.0
    %849 = vmatprep.subr.mxu0 0.0
    %850 = vmatpush1.msra.mxu0 0.0
    %851 = vmatprep.subr.mxu0 0.0
    %852 = vmatpush1.msra.mxu0 0.0
    %853 = vmatprep.subr.mxu0 0.0
    %854 = vmatpush1.msra.mxu0 0.0
    %855 = vmatprep.subr.mxu0 0.0
    %856 = vmatpush1.msra.mxu0 0.0
    %857 = vmatprep.subr.mxu0 0.0
    %858 = vmatpush1.msra.mxu0 0.0
    %859 = vmatprep.subr.mxu0 0.0
    %860 = vmatpush1.msra.mxu0 0.0
    %861 = vmatprep.subr.mxu0 0.0
    %862 = vmatpush1.msra.mxu0 0.0
    %863 = vmatprep.subr.mxu0 0.0
    %864 = vmatpush1.msra.mxu0 0.0
    %865 = vmatprep.subr.mxu0 0.0
    %866 = vmatpush1.msra.mxu0 0.0
    %867 = vmatprep.subr.mxu0 0.0
    %868 = vmatpush1.msra.mxu0 0.0
    %869 = vmatprep.subr.mxu0 0.0
    %870 = vmatpush1.msra.mxu0 0.0
    %871 = vmatprep.mubr.f32.mxu0 0.0
    %872 = vmatmul.mubr.f32.gmra.mrb[0].mxu0 %v727
    %v873 = vpop.f32.mrb[0].mxu0
    %v874 = vadd.f32 0.0, %v873
    %v875 = vpop.f32.mrb[0].mxu0
    %876 = vmatprep.mubr.f32.mxu0 0.0
    %877 = vmatmul.mubr.f32.gmra.mrb[0].mxu0 %v730
    %v878 = vpop.f32.mrb[0].mxu0
    %v879 = vadd.f32 0.0, %v878
    %v880 = vpop.f32.mrb[0].mxu0
    %881 = vdwg.mxu0
    %882 = vmatprep.subr.mxu0 0.0
    %883 = vmatpush1.msra.mxu0 %v686
    %884 = vmatprep.subr.mxu0 0.0
    %885 = vmatpush1.msra.mxu0 %v687
    %886 = vmatprep.subr.mxu0 0.0
    %887 = vmatpush1.msra.mxu0 %v688
    %888 = vmatprep.subr.mxu0 0.0
    %889 = vmatpush1.msra.mxu0 %v689
    %890 = vmatprep.subr.mxu0 0.0
    %891 = vmatpush1.msra.mxu0 0.0
    %892 = vmatprep.subr.mxu0 0.0
    %893 = vmatpush1.msra.mxu0 0.0
    %894 = vmatprep.subr.mxu0 0.0
    %895 = vmatpush1.msra.mxu0 0.0
    %896 = vmatprep.subr.mxu0 0.0
    %897 = vmatpush1.msra.mxu0 0.0
    %898 = vmatprep.subr.mxu0 0.0
    %899 = vmatpush1.msra.mxu0 0.0
    %900 = vmatprep.subr.mxu0 0.0
    %901 = vmatpush1.msra.mxu0 0.0
    %902 = vmatprep.subr.mxu0 0.0
    %903 = vmatpush1.msra.mxu0 0.0
    %904 = vmatprep.subr.mxu0 0.0
    %905 = vmatpush1.msra.mxu0 0.0
    %906 = vmatprep.subr.mxu0 0.0
    %907 = vmatpush1.msra.mxu0 0.0
    %908 = vmatprep.subr.mxu0 0.0
    %909 = vmatpush1.msra.mxu0 0.0
    %910 = vmatprep.subr.mxu0 0.0
    %911 = vmatpush1.msra.mxu0 0.0
    %912 = vmatprep.subr.mxu0 0.0
    %913 = vmatpush1.msra.mxu0 0.0
    %914 = vmatprep.subr.mxu0 0.0
    %915 = vmatpush1.msra.mxu0 0.0
    %916 = vmatprep.subr.mxu0 0.0
    %917 = vmatpush1.msra.mxu0 0.0
    %918 = vmatprep.subr.mxu0 0.0
    %919 = vmatpush1.msra.mxu0 0.0
    %920 = vmatprep.subr.mxu0 0.0
    %921 = vmatpush1.msra.mxu0 0.0
    %922 = vmatprep.subr.mxu0 0.0
    %923 = vmatpush1.msra.mxu0 0.0
    %924 = vmatprep.subr.mxu0 0.0
    %925 = vmatpush1.msra.mxu0 0.0
    %926 = vmatprep.subr.mxu0 0.0
    %927 = vmatpush1.msra.mxu0 0.0
    %928 = vmatprep.subr.mxu0 0.0
    %929 = vmatpush1.msra.mxu0 0.0
    %930 = vmatprep.subr.mxu0 0.0
    %931 = vmatpush1.msra.mxu0 0.0
    %932 = vmatprep.subr.mxu0 0.0
    %933 = vmatpush1.msra.mxu0 0.0
    %934 = vmatprep.subr.mxu0 0.0
    %935 = vmatpush1.msra.mxu0 0.0
    %936 = vmatprep.subr.mxu0 0.0
    %937 = vmatpush1.msra.mxu0 0.0
    %938 = vmatprep.subr.mxu0 0.0
    %939 = vmatpush1.msra.mxu0 0.0
    %940 = vmatprep.subr.mxu0 0.0
    %941 = vmatpush1.msra.mxu0 0.0
    %942 = vmatprep.subr.mxu0 0.0
    %943 = vmatpush1.msra.mxu0 0.0
    %944 = vmatprep.subr.mxu0 0.0
    %945 = vmatpush1.msra.mxu0 0.0
    %946 = vmatprep.mubr.f32.mxu0 0.0
    %947 = vmatmul.mubr.f32.gmra.mrb[0].mxu0 %v727
    %v948 = vpop.f32.mrb[0].mxu0
    %v949 = vadd.f32 0.0, %v948
    %v950 = vpop.f32.mrb[0].mxu0
    %951 = vmatprep.mubr.f32.mxu0 0.0
    %952 = vmatmul.mubr.f32.gmra.mrb[0].mxu0 %v730
    %v953 = vpop.f32.mrb[0].mxu0
    %v954 = vadd.f32 0.0, %v953
    %v955 = vpop.f32.mrb[0].mxu0
    %956 = vdwg.mxu0
    %957 = vmatprep.subr.mxu0 0.0
    %958 = vmatpush1.msra.mxu0 %v690
    %959 = vmatprep.subr.mxu0 0.0
    %960 = vmatpush1.msra.mxu0 %v691
    %961 = vmatprep.subr.mxu0 0.0
    %962 = vmatpush1.msra.mxu0 %v692
    %963 = vmatprep.subr.mxu0 0.0
    %964 = vmatpush1.msra.mxu0 %v693
    %965 = vmatprep.subr.mxu0 0.0
    %966 = vmatpush1.msra.mxu0 0.0
    %967 = vmatprep.subr.mxu0 0.0
    %968 = vmatpush1.msra.mxu0 0.0
    %969 = vmatprep.subr.mxu0 0.0
    %970 = vmatpush1.msra.mxu0 0.0
    %971 = vmatprep.subr.mxu0 0.0
    %972 = vmatpush1.msra.mxu0 0.0
    %973 = vmatprep.subr.mxu0 0.0
    %974 = vmatpush1.msra.mxu0 0.0
    %975 = vmatprep.subr.mxu0 0.0
    %976 = vmatpush1.msra.mxu0 0.0
    %977 = vmatprep.subr.mxu0 0.0
    %978 = vmatpush1.msra.mxu0 0.0
    %979 = vmatprep.subr.mxu0 0.0
    %980 = vmatpush1.msra.mxu0 0.0
    %981 = vmatprep.subr.mxu0 0.0
    %982 = vmatpush1.msra.mxu0 0.0
    %983 = vmatprep.subr.mxu0 0.0
    %984 = vmatpush1.msra.mxu0 0.0
    %985 = vmatprep.subr.mxu0 0.0
    %986 = vmatpush1.msra.mxu0 0.0
    %987 = vmatprep.subr.mxu0 0.0
    %988 = vmatpush1.msra.mxu0 0.0
    %989 = vmatprep.subr.mxu0 0.0
    %990 = vmatpush1.msra.mxu0 0.0
    %991 = vmatprep.subr.mxu0 0.0
    %992 = vmatpush1.msra.mxu0 0.0
    %993 = vmatprep.subr.mxu0 0.0
    %994 = vmatpush1.msra.mxu0 0.0
    %995 = vmatprep.subr.mxu0 0.0
    %996 = vmatpush1.msra.mxu0 0.0
    %997 = vmatprep.subr.mxu0 0.0
    %998 = vmatpush1.msra.mxu0 0.0
    %999 = vmatprep.subr.mxu0 0.0
    %1000 = vmatpush1.msra.mxu0 0.0
    %1001 = vmatprep.subr.mxu0 0.0
    %1002 = vmatpush1.msra.mxu0 0.0
    %1003 = vmatprep.subr.mxu0 0.0
    %1004 = vmatpush1.msra.mxu0 0.0
    %1005 = vmatprep.subr.mxu0 0.0
    %1006 = vmatpush1.msra.mxu0 0.0
    %1007 = vmatprep.subr.mxu0 0.0
    %1008 = vmatpush1.msra.mxu0 0.0
    %1009 = vmatprep.subr.mxu0 0.0
    %1010 = vmatpush1.msra.mxu0 0.0
    %1011 = vmatprep.subr.mxu0 0.0
    %1012 = vmatpush1.msra.mxu0 0.0
    %1013 = vmatprep.subr.mxu0 0.0
    %1014 = vmatpush1.msra.mxu0 0.0
    %1015 = vmatprep.subr.mxu0 0.0
    %1016 = vmatpush1.msra.mxu0 0.0
    %1017 = vmatprep.subr.mxu0 0.0
    %1018 = vmatpush1.msra.mxu0 0.0
    %1019 = vmatprep.subr.mxu0 0.0
    %1020 = vmatpush1.msra.mxu0 0.0
    %1021 = vmatprep.mubr.f32.mxu0 0.0
    %1022 = vmatmul.mubr.f32.gmra.mrb[0].mxu0 %v727
    %v1023 = vpop.f32.mrb[0].mxu0
    %v1024 = vadd.f32 0.0, %v1023
    %v1025 = vpop.f32.mrb[0].mxu0
    %1026 = vmatprep.mubr.f32.mxu0 0.0
    %1027 = vmatmul.mubr.f32.gmra.mrb[0].mxu0 %v730
    %v1028 = vpop.f32.mrb[0].mxu0
    %v1029 = vadd.f32 0.0, %v1028
    %v1030 = vpop.f32.mrb[0].mxu0
    %1031 = vdwg.mxu0
    %v1033 = vsel %vm466, %v676, 0
    %v1036 = vsel %vm466, %v677, 0
    %1038 = vmatprep.subr.mxu0 0.0
    %1039 = vmatpush1.msra.mxu0 %v678
    %1040 = vmatprep.subr.mxu0 0.0
    %1041 = vmatpush1.msra.mxu0 %v679
    %1042 = vmatprep.subr.mxu0 0.0
    %1043 = vmatpush1.msra.mxu0 %v680
    %1044 = vmatprep.subr.mxu0 0.0
    %1045 = vmatpush1.msra.mxu0 %v681
    %1046 = vmatprep.subr.mxu0 0.0
    %1047 = vmatpush1.msra.mxu0 0.0
    %1048 = vmatprep.subr.mxu0 0.0
    %1049 = vmatpush1.msra.mxu0 0.0
    %1050 = vmatprep.subr.mxu0 0.0
    %1051 = vmatpush1.msra.mxu0 0.0
    %1052 = vmatprep.subr.mxu0 0.0
    %1053 = vmatpush1.msra.mxu0 0.0
    %1054 = vmatprep.subr.mxu0 0.0
    %1055 = vmatpush1.msra.mxu0 0.0
    %1056 = vmatprep.subr.mxu0 0.0
    %1057 = vmatpush1.msra.mxu0 0.0
    %1058 = vmatprep.subr.mxu0 0.0
    %1059 = vmatpush1.msra.mxu0 0.0
    %1060 = vmatprep.subr.mxu0 0.0
    %1061 = vmatpush1.msra.mxu0 0.0
    %1062 = vmatprep.subr.mxu0 0.0
    %1063 = vmatpush1.msra.mxu0 0.0
    %1064 = vmatprep.subr.mxu0 0.0
    %1065 = vmatpush1.msra.mxu0 0.0
    %1066 = vmatprep.subr.mxu0 0.0
    %1067 = vmatpush1.msra.mxu0 0.0
    %1068 = vmatprep.subr.mxu0 0.0
    %1069 = vmatpush1.msra.mxu0 0.0
    %1070 = vmatprep.subr.mxu0 0.0
    %1071 = vmatpush1.msra.mxu0 0.0
    %1072 = vmatprep.subr.mxu0 0.0
    %1073 = vmatpush1.msra.mxu0 0.0
    %1074 = vmatprep.subr.mxu0 0.0
    %1075 = vmatpush1.msra.mxu0 0.0
    %1076 = vmatprep.subr.mxu0 0.0
    %1077 = vmatpush1.msra.mxu0 0.0
    %1078 = vmatprep.subr.mxu0 0.0
    %1079 = vmatpush1.msra.mxu0 0.0
    %1080 = vmatprep.subr.mxu0 0.0
    %1081 = vmatpush1.msra.mxu0 0.0
    %1082 = vmatprep.subr.mxu0 0.0
    %1083 = vmatpush1.msra.mxu0 0.0
    %1084 = vmatprep.subr.mxu0 0.0
    %1085 = vmatpush1.msra.mxu0 0.0
    %1086 = vmatprep.subr.mxu0 0.0
    %1087 = vmatpush1.msra.mxu0 0.0
    %1088 = vmatprep.subr.mxu0 0.0
    %1089 = vmatpush1.msra.mxu0 0.0
    %1090 = vmatprep.subr.mxu0 0.0
    %1091 = vmatpush1.msra.mxu0 0.0
    %1092 = vmatprep.subr.mxu0 0.0
    %1093 = vmatpush1.msra.mxu0 0.0
    %1094 = vmatprep.subr.mxu0 0.0
    %1095 = vmatpush1.msra.mxu0 0.0
    %1096 = vmatprep.subr.mxu0 0.0
    %1097 = vmatpush1.msra.mxu0 0.0
    %1098 = vmatprep.subr.mxu0 0.0
    %1099 = vmatpush1.msra.mxu0 0.0
    %1100 = vmatprep.subr.mxu0 0.0
    %1101 = vmatpush1.msra.mxu0 0.0
    %1102 = vmatprep.mubr.f32.mxu0 0.0
    %1103 = vmatmul.mubr.f32.gmra.mrb[0].mxu0 %v1033
    %v1104 = vpop.f32.mrb[0].mxu0
    %v1105 = vadd.f32 0.0, %v1104
    %v1106 = vpop.f32.mrb[0].mxu0
    %1107 = vmatprep.mubr.f32.mxu0 0.0
    %1108 = vmatmul.mubr.f32.gmra.mrb[0].mxu0 %v1036
    %v1109 = vpop.f32.mrb[0].mxu0
    %v1110 = vadd.f32 0.0, %v1109
    %v1111 = vpop.f32.mrb[0].mxu0
    %1112 = vdwg.mxu0
    %1113 = vmatprep.subr.mxu0 0.0
    %1114 = vmatpush1.msra.mxu0 %v682
    %1115 = vmatprep.subr.mxu0 0.0
    %1116 = vmatpush1.msra.mxu0 %v683
    %1117 = vmatprep.subr.mxu0 0.0
    %1118 = vmatpush1.msra.mxu0 %v684
    %1119 = vmatprep.subr.mxu0 0.0
    %1120 = vmatpush1.msra.mxu0 %v685
    %1121 = vmatprep.subr.mxu0 0.0
    %1122 = vmatpush1.msra.mxu0 0.0
    %1123 = vmatprep.subr.mxu0 0.0
    %1124 = vmatpush1.msra.mxu0 0.0
    %1125 = vmatprep.subr.mxu0 0.0
    %1126 = vmatpush1.msra.mxu0 0.0
    %1127 = vmatprep.subr.mxu0 0.0
    %1128 = vmatpush1.msra.mxu0 0.0
    %1129 = vmatprep.subr.mxu0 0.0
    %1130 = vmatpush1.msra.mxu0 0.0
    %1131 = vmatprep.subr.mxu0 0.0
    %1132 = vmatpush1.msra.mxu0 0.0
    %1133 = vmatprep.subr.mxu0 0.0
    %1134 = vmatpush1.msra.mxu0 0.0
    %1135 = vmatprep.subr.mxu0 0.0
    %1136 = vmatpush1.msra.mxu0 0.0
    %1137 = vmatprep.subr.mxu0 0.0
    %1138 = vmatpush1.msra.mxu0 0.0
    %1139 = vmatprep.subr.mxu0 0.0
    %1140 = vmatpush1.msra.mxu0 0.0
    %1141 = vmatprep.subr.mxu0 0.0
    %1142 = vmatpush1.msra.mxu0 0.0
    %1143 = vmatprep.subr.mxu0 0.0
    %1144 = vmatpush1.msra.mxu0 0.0
    %1145 = vmatprep.subr.mxu0 0.0
    %1146 = vmatpush1.msra.mxu0 0.0
    %1147 = vmatprep.subr.mxu0 0.0
    %1148 = vmatpush1.msra.mxu0 0.0
    %1149 = vmatprep.subr.mxu0 0.0
    %1150 = vmatpush1.msra.mxu0 0.0
    %1151 = vmatprep.subr.mxu0 0.0
    %1152 = vmatpush1.msra.mxu0 0.0
    %1153 = vmatprep.subr.mxu0 0.0
    %1154 = vmatpush1.msra.mxu0 0.0
    %1155 = vmatprep.subr.mxu0 0.0
    %1156 = vmatpush1.msra.mxu0 0.0
    %1157 = vmatprep.subr.mxu0 0.0
    %1158 = vmatpush1.msra.mxu0 0.0
    %1159 = vmatprep.subr.mxu0 0.0
    %1160 = vmatpush1.msra.mxu0 0.0
    %1161 = vmatprep.subr.mxu0 0.0
    %1162 = vmatpush1.msra.mxu0 0.0
    %1163 = vmatprep.subr.mxu0 0.0
    %1164 = vmatpush1.msra.mxu0 0.0
    %1165 = vmatprep.subr.mxu0 0.0
    %1166 = vmatpush1.msra.mxu0 0.0
    %1167 = vmatprep.subr.mxu0 0.0
    %1168 = vmatpush1.msra.mxu0 0.0
    %1169 = vmatprep.subr.mxu0 0.0
    %1170 = vmatpush1.msra.mxu0 0.0
    %1171 = vmatprep.subr.mxu0 0.0
    %1172 = vmatpush1.msra.mxu0 0.0
    %1173 = vmatprep.subr.mxu0 0.0
    %1174 = vmatpush1.msra.mxu0 0.0
    %1175 = vmatprep.subr.mxu0 0.0
    %1176 = vmatpush1.msra.mxu0 0.0
    %1177 = vmatprep.mubr.f32.mxu0 0.0
    %1178 = vmatmul.mubr.f32.gmra.mrb[0].mxu0 %v1033
    %v1179 = vpop.f32.mrb[0].mxu0
    %v1180 = vadd.f32 0.0, %v1179
    %v1181 = vpop.f32.mrb[0].mxu0
    %1182 = vmatprep.mubr.f32.mxu0 0.0
    %1183 = vmatmul.mubr.f32.gmra.mrb[0].mxu0 %v1036
    %v1184 = vpop.f32.mrb[0].mxu0
    %v1185 = vadd.f32 0.0, %v1184
    %v1186 = vpop.f32.mrb[0].mxu0
    %1187 = vdwg.mxu0
    %1188 = vmatprep.subr.mxu0 0.0
    %1189 = vmatpush1.msra.mxu0 %v686
    %1190 = vmatprep.subr.mxu0 0.0
    %1191 = vmatpush1.msra.mxu0 %v687
    %1192 = vmatprep.subr.mxu0 0.0
    %1193 = vmatpush1.msra.mxu0 %v688
    %1194 = vmatprep.subr.mxu0 0.0
    %1195 = vmatpush1.msra.mxu0 %v689
    %1196 = vmatprep.subr.mxu0 0.0
    %1197 = vmatpush1.msra.mxu0 0.0
    %1198 = vmatprep.subr.mxu0 0.0
    %1199 = vmatpush1.msra.mxu0 0.0
    %1200 = vmatprep.subr.mxu0 0.0
    %1201 = vmatpush1.msra.mxu0 0.0
    %1202 = vmatprep.subr.mxu0 0.0
    %1203 = vmatpush1.msra.mxu0 0.0
    %1204 = vmatprep.subr.mxu0 0.0
    %1205 = vmatpush1.msra.mxu0 0.0
    %1206 = vmatprep.subr.mxu0 0.0
    %1207 = vmatpush1.msra.mxu0 0.0
    %1208 = vmatprep.subr.mxu0 0.0
    %1209 = vmatpush1.msra.mxu0 0.0
    %1210 = vmatprep.subr.mxu0 0.0
    %1211 = vmatpush1.msra.mxu0 0.0
    %1212 = vmatprep.subr.mxu0 0.0
    %1213 = vmatpush1.msra.mxu0 0.0
    %1214 = vmatprep.subr.mxu0 0.0
    %1215 = vmatpush1.msra.mxu0 0.0
    %1216 = vmatprep.subr.mxu0 0.0
    %1217 = vmatpush1.msra.mxu0 0.0
    %1218 = vmatprep.subr.mxu0 0.0
    %1219 = vmatpush1.msra.mxu0 0.0
    %1220 = vmatprep.subr.mxu0 0.0
    %1221 = vmatpush1.msra.mxu0 0.0
    %1222 = vmatprep.subr.mxu0 0.0
    %1223 = vmatpush1.msra.mxu0 0.0
    %1224 = vmatprep.subr.mxu0 0.0
    %1225 = vmatpush1.msra.mxu0 0.0
    %1226 = vmatprep.subr.mxu0 0.0
    %1227 = vmatpush1.msra.mxu0 0.0
    %1228 = vmatprep.subr.mxu0 0.0
    %1229 = vmatpush1.msra.mxu0 0.0
    %1230 = vmatprep.subr.mxu0 0.0
    %1231 = vmatpush1.msra.mxu0 0.0
    %1232 = vmatprep.subr.mxu0 0.0
    %1233 = vmatpush1.msra.mxu0 0.0
    %1234 = vmatprep.subr.mxu0 0.0
    %1235 = vmatpush1.msra.mxu0 0.0
    %1236 = vmatprep.subr.mxu0 0.0
    %1237 = vmatpush1.msra.mxu0 0.0
    %1238 = vmatprep.subr.mxu0 0.0
    %1239 = vmatpush1.msra.mxu0 0.0
    %1240 = vmatprep.subr.mxu0 0.0
    %1241 = vmatpush1.msra.mxu0 0.0
    %1242 = vmatprep.subr.mxu0 0.0
    %1243 = vmatpush1.msra.mxu0 0.0
    %1244 = vmatprep.subr.mxu0 0.0
    %1245 = vmatpush1.msra.mxu0 0.0
    %1246 = vmatprep.subr.mxu0 0.0
    %1247 = vmatpush1.msra.mxu0 0.0
    %1248 = vmatprep.subr.mxu0 0.0
    %1249 = vmatpush1.msra.mxu0 0.0
    %1250 = vmatprep.subr.mxu0 0.0
    %1251 = vmatpush1.msra.mxu0 0.0
    %1252 = vmatprep.mubr.f32.mxu0 0.0
    %1253 = vmatmul.mubr.f32.gmra.mrb[0].mxu0 %v1033
    %v1254 = vpop.f32.mrb[0].mxu0
    %v1255 = vadd.f32 0.0, %v1254
    %v1256 = vpop.f32.mrb[0].mxu0
    %1257 = vmatprep.mubr.f32.mxu0 0.0
    %1258 = vmatmul.mubr.f32.gmra.mrb[0].mxu0 %v1036
    %v1259 = vpop.f32.mrb[0].mxu0
    %v1260 = vadd.f32 0.0, %v1259
    %v1261 = vpop.f32.mrb[0].mxu0
    %1262 = vdwg.mxu0
    %1263 = vmatprep.subr.mxu0 0.0
    %1264 = vmatpush1.msra.mxu0 %v690
    %1265 = vmatprep.subr.mxu0 0.0
    %1266 = vmatpush1.msra.mxu0 %v691
    %1267 = vmatprep.subr.mxu0 0.0
    %1268 = vmatpush1.msra.mxu0 %v692
    %1269 = vmatprep.subr.mxu0 0.0
    %1270 = vmatpush1.msra.mxu0 %v693
    %1271 = vmatprep.subr.mxu0 0.0
    %1272 = vmatpush1.msra.mxu0 0.0
    %1273 = vmatprep.subr.mxu0 0.0
    %1274 = vmatpush1.msra.mxu0 0.0
    %1275 = vmatprep.subr.mxu0 0.0
    %1276 = vmatpush1.msra.mxu0 0.0
    %1277 = vmatprep.subr.mxu0 0.0
    %1278 = vmatpush1.msra.mxu0 0.0
    %1279 = vmatprep.subr.mxu0 0.0
    %1280 = vmatpush1.msra.mxu0 0.0
    %1281 = vmatprep.subr.mxu0 0.0
    %1282 = vmatpush1.msra.mxu0 0.0
    %1283 = vmatprep.subr.mxu0 0.0
    %1284 = vmatpush1.msra.mxu0 0.0
    %1285 = vmatprep.subr.mxu0 0.0
    %1286 = vmatpush1.msra.mxu0 0.0
    %1287 = vmatprep.subr.mxu0 0.0
    %1288 = vmatpush1.msra.mxu0 0.0
    %1289 = vmatprep.subr.mxu0 0.0
    %1290 = vmatpush1.msra.mxu0 0.0
    %1291 = vmatprep.subr.mxu0 0.0
    %1292 = vmatpush1.msra.mxu0 0.0
    %1293 = vmatprep.subr.mxu0 0.0
    %1294 = vmatpush1.msra.mxu0 0.0
    %1295 = vmatprep.subr.mxu0 0.0
    %1296 = vmatpush1.msra.mxu0 0.0
    %1297 = vmatprep.subr.mxu0 0.0
    %1298 = vmatpush1.msra.mxu0 0.0
    %1299 = vmatprep.subr.mxu0 0.0
    %1300 = vmatpush1.msra.mxu0 0.0
    %1301 = vmatprep.subr.mxu0 0.0
    %1302 = vmatpush1.msra.mxu0 0.0
    %1303 = vmatprep.subr.mxu0 0.0
    %1304 = vmatpush1.msra.mxu0 0.0
    %1305 = vmatprep.subr.mxu0 0.0
    %1306 = vmatpush1.msra.mxu0 0.0
    %1307 = vmatprep.subr.mxu0 0.0
    %1308 = vmatpush1.msra.mxu0 0.0
    %1309 = vmatprep.subr.mxu0 0.0
    %1310 = vmatpush1.msra.mxu0 0.0
    %1311 = vmatprep.subr.mxu0 0.0
    %1312 = vmatpush1.msra.mxu0 0.0
    %1313 = vmatprep.subr.mxu0 0.0
    %1314 = vmatpush1.msra.mxu0 0.0
    %1315 = vmatprep.subr.mxu0 0.0
    %1316 = vmatpush1.msra.mxu0 0.0
    %1317 = vmatprep.subr.mxu0 0.0
    %1318 = vmatpush1.msra.mxu0 0.0
    %1319 = vmatprep.subr.mxu0 0.0
    %1320 = vmatpush1.msra.mxu0 0.0
    %1321 = vmatprep.subr.mxu0 0.0
    %1322 = vmatpush1.msra.mxu0 0.0
    %1323 = vmatprep.subr.mxu0 0.0
    %1324 = vmatpush1.msra.mxu0 0.0
    %1325 = vmatprep.subr.mxu0 0.0
    %1326 = vmatpush1.msra.mxu0 0.0
    %1327 = vmatprep.mubr.f32.mxu0 0.0
    %1328 = vmatmul.mubr.f32.gmra.mrb[0].mxu0 %v1033
    %v1329 = vpop.f32.mrb[0].mxu0
    %v1330 = vadd.f32 0.0, %v1329
    %v1331 = vpop.f32.mrb[0].mxu0
    %1332 = vmatprep.mubr.f32.mxu0 0.0
    %1333 = vmatmul.mubr.f32.gmra.mrb[0].mxu0 %v1036
    %v1334 = vpop.f32.mrb[0].mxu0
    %v1335 = vadd.f32 0.0, %v1334
    %v1336 = vpop.f32.mrb[0].mxu0
    %1337 = vdwg.mxu0
    %1338 = vmatprep.subr.mxu0 0.0
    %1339 = vmatpush1.msra.mxu0 %v694
    %1340 = vmatprep.subr.mxu0 0.0
    %1341 = vmatpush1.msra.mxu0 %v695
    %1342 = vmatprep.subr.mxu0 0.0
    %1343 = vmatpush1.msra.mxu0 %v696
    %1344 = vmatprep.subr.mxu0 0.0
    %1345 = vmatpush1.msra.mxu0 %v697
    %1346 = vmatprep.subr.mxu0 0.0
    %1347 = vmatpush1.msra.mxu0 0.0
    %1348 = vmatprep.subr.mxu0 0.0
    %1349 = vmatpush1.msra.mxu0 0.0
    %1350 = vmatprep.subr.mxu0 0.0
    %1351 = vmatpush1.msra.mxu0 0.0
    %1352 = vmatprep.subr.mxu0 0.0
    %1353 = vmatpush1.msra.mxu0 0.0
    %1354 = vmatprep.subr.mxu0 0.0
    %1355 = vmatpush1.msra.mxu0 0.0
    %1356 = vmatprep.subr.mxu0 0.0
    %1357 = vmatpush1.msra.mxu0 0.0
    %1358 = vmatprep.subr.mxu0 0.0
    %1359 = vmatpush1.msra.mxu0 0.0
    %1360 = vmatprep.subr.mxu0 0.0
    %1361 = vmatpush1.msra.mxu0 0.0
    %1362 = vmatprep.subr.mxu0 0.0
    %1363 = vmatpush1.msra.mxu0 0.0
    %1364 = vmatprep.subr.mxu0 0.0
    %1365 = vmatpush1.msra.mxu0 0.0
    %1366 = vmatprep.subr.mxu0 0.0
    %1367 = vmatpush1.msra.mxu0 0.0
    %1368 = vmatprep.subr.mxu0 0.0
    %1369 = vmatpush1.msra.mxu0 0.0
    %1370 = vmatprep.subr.mxu0 0.0
    %1371 = vmatpush1.msra.mxu0 0.0
    %1372 = vmatprep.subr.mxu0 0.0
    %1373 = vmatpush1.msra.mxu0 0.0
    %1374 = vmatprep.subr.mxu0 0.0
    %1375 = vmatpush1.msra.mxu0 0.0
    %1376 = vmatprep.subr.mxu0 0.0
    %1377 = vmatpush1.msra.mxu0 0.0
    %1378 = vmatprep.subr.mxu0 0.0
    %1379 = vmatpush1.msra.mxu0 0.0
    %1380 = vmatprep.subr.mxu0 0.0
    %1381 = vmatpush1.msra.mxu0 0.0
    %1382 = vmatprep.subr.mxu0 0.0
    %1383 = vmatpush1.msra.mxu0 0.0
    %1384 = vmatprep.subr.mxu0 0.0
    %1385 = vmatpush1.msra.mxu0 0.0
    %1386 = vmatprep.subr.mxu0 0.0
    %1387 = vmatpush1.msra.mxu0 0.0
    %1388 = vmatprep.subr.mxu0 0.0
    %1389 = vmatpush1.msra.mxu0 0.0
    %1390 = vmatprep.subr.mxu0 0.0
    %1391 = vmatpush1.msra.mxu0 0.0
    %1392 = vmatprep.subr.mxu0 0.0
    %1393 = vmatpush1.msra.mxu0 0.0
    %1394 = vmatprep.subr.mxu0 0.0
    %1395 = vmatpush1.msra.mxu0 0.0
    %1396 = vmatprep.subr.mxu0 0.0
    %1397 = vmatpush1.msra.mxu0 0.0
    %1398 = vmatprep.subr.mxu0 0.0
    %1399 = vmatpush1.msra.mxu0 0.0
    %1400 = vmatprep.subr.mxu0 0.0
    %1401 = vmatpush1.msra.mxu0 0.0
    %1402 = vmatprep.mubr.f32.mxu0 0.0
    %1403 = vmatmul.mubr.f32.gmra.mrb[0].mxu0 %v727
    %v1404 = vpop.f32.mrb[0].mxu0
    %v1405 = vadd.f32 0.0, %v1404
    %v1406 = vpop.f32.mrb[0].mxu0
    %1407 = vmatprep.mubr.f32.mxu0 0.0
    %1408 = vmatmul.mubr.f32.gmra.mrb[0].mxu0 %v730
    %v1409 = vpop.f32.mrb[0].mxu0
    %v1410 = vadd.f32 0.0, %v1409
    %v1411 = vpop.f32.mrb[0].mxu0
    %1412 = vdwg.mxu0
    %1413 = vmatprep.subr.mxu0 0.0
    %1414 = vmatpush1.msra.mxu0 %v698
    %1415 = vmatprep.subr.mxu0 0.0
    %1416 = vmatpush1.msra.mxu0 %v699
    %1417 = vmatprep.subr.mxu0 0.0
    %1418 = vmatpush1.msra.mxu0 %v700
    %1419 = vmatprep.subr.mxu0 0.0
    %1420 = vmatpush1.msra.mxu0 %v701
    %1421 = vmatprep.subr.mxu0 0.0
    %1422 = vmatpush1.msra.mxu0 0.0
    %1423 = vmatprep.subr.mxu0 0.0
    %1424 = vmatpush1.msra.mxu0 0.0
    %1425 = vmatprep.subr.mxu0 0.0
    %1426 = vmatpush1.msra.mxu0 0.0
    %1427 = vmatprep.subr.mxu0 0.0
    %1428 = vmatpush1.msra.mxu0 0.0
    %1429 = vmatprep.subr.mxu0 0.0
    %1430 = vmatpush1.msra.mxu0 0.0
    %1431 = vmatprep.subr.mxu0 0.0
    %1432 = vmatpush1.msra.mxu0 0.0
    %1433 = vmatprep.subr.mxu0 0.0
    %1434 = vmatpush1.msra.mxu0 0.0
    %1435 = vmatprep.subr.mxu0 0.0
    %1436 = vmatpush1.msra.mxu0 0.0
    %1437 = vmatprep.subr.mxu0 0.0
    %1438 = vmatpush1.msra.mxu0 0.0
    %1439 = vmatprep.subr.mxu0 0.0
    %1440 = vmatpush1.msra.mxu0 0.0
    %1441 = vmatprep.subr.mxu0 0.0
    %1442 = vmatpush1.msra.mxu0 0.0
    %1443 = vmatprep.subr.mxu0 0.0
    %1444 = vmatpush1.msra.mxu0 0.0
    %1445 = vmatprep.subr.mxu0 0.0
    %1446 = vmatpush1.msra.mxu0 0.0
    %1447 = vmatprep.subr.mxu0 0.0
    %1448 = vmatpush1.msra.mxu0 0.0
    %1449 = vmatprep.subr.mxu0 0.0
    %1450 = vmatpush1.msra.mxu0 0.0
    %1451 = vmatprep.subr.mxu0 0.0
    %1452 = vmatpush1.msra.mxu0 0.0
    %1453 = vmatprep.subr.mxu0 0.0
    %1454 = vmatpush1.msra.mxu0 0.0
    %1455 = vmatprep.subr.mxu0 0.0
    %1456 = vmatpush1.msra.mxu0 0.0
    %1457 = vmatprep.subr.mxu0 0.0
    %1458 = vmatpush1.msra.mxu0 0.0
    %1459 = vmatprep.subr.mxu0 0.0
    %1460 = vmatpush1.msra.mxu0 0.0
    %1461 = vmatprep.subr.mxu0 0.0
    %1462 = vmatpush1.msra.mxu0 0.0
    %1463 = vmatprep.subr.mxu0 0.0
    %1464 = vmatpush1.msra.mxu0 0.0
    %1465 = vmatprep.subr.mxu0 0.0
    %1466 = vmatpush1.msra.mxu0 0.0
    %1467 = vmatprep.subr.mxu0 0.0
    %1468 = vmatpush1.msra.mxu0 0.0
    %1469 = vmatprep.subr.mxu0 0.0
    %1470 = vmatpush1.msra.mxu0 0.0
    %1471 = vmatprep.subr.mxu0 0.0
    %1472 = vmatpush1.msra.mxu0 0.0
    %1473 = vmatprep.subr.mxu0 0.0
    %1474 = vmatpush1.msra.mxu0 0.0
    %1475 = vmatprep.subr.mxu0 0.0
    %1476 = vmatpush1.msra.mxu0 0.0
    %1477 = vmatprep.mubr.f32.mxu0 0.0
    %1478 = vmatmul.mubr.f32.gmra.mrb[0].mxu0 %v727
    %v1479 = vpop.f32.mrb[0].mxu0
    %v1480 = vadd.f32 0.0, %v1479
    %v1481 = vpop.f32.mrb[0].mxu0
    %1482 = vmatprep.mubr.f32.mxu0 0.0
    %1483 = vmatmul.mubr.f32.gmra.mrb[0].mxu0 %v730
    %v1484 = vpop.f32.mrb[0].mxu0
    %v1485 = vadd.f32 0.0, %v1484
    %v1486 = vpop.f32.mrb[0].mxu0
    %1487 = vdwg.mxu0
    %1488 = vmatprep.subr.mxu0 0.0
    %1489 = vmatpush1.msra.mxu0 %v702
    %1490 = vmatprep.subr.mxu0 0.0
    %1491 = vmatpush1.msra.mxu0 %v703
    %1492 = vmatprep.subr.mxu0 0.0
    %1493 = vmatpush1.msra.mxu0 %v704
    %1494 = vmatprep.subr.mxu0 0.0
    %1495 = vmatpush1.msra.mxu0 %v705
    %1496 = vmatprep.subr.mxu0 0.0
    %1497 = vmatpush1.msra.mxu0 0.0
    %1498 = vmatprep.subr.mxu0 0.0
    %1499 = vmatpush1.msra.mxu0 0.0
    %1500 = vmatprep.subr.mxu0 0.0
    %1501 = vmatpush1.msra.mxu0 0.0
    %1502 = vmatprep.subr.mxu0 0.0
    %1503 = vmatpush1.msra.mxu0 0.0
    %1504 = vmatprep.subr.mxu0 0.0
    %1505 = vmatpush1.msra.mxu0 0.0
    %1506 = vmatprep.subr.mxu0 0.0
    %1507 = vmatpush1.msra.mxu0 0.0
    %1508 = vmatprep.subr.mxu0 0.0
    %1509 = vmatpush1.msra.mxu0 0.0
    %1510 = vmatprep.subr.mxu0 0.0
    %1511 = vmatpush1.msra.mxu0 0.0
    %1512 = vmatprep.subr.mxu0 0.0
    %1513 = vmatpush1.msra.mxu0 0.0
    %1514 = vmatprep.subr.mxu0 0.0
    %1515 = vmatpush1.msra.mxu0 0.0
    %1516 = vmatprep.subr.mxu0 0.0
    %1517 = vmatpush1.msra.mxu0 0.0
    %1518 = vmatprep.subr.mxu0 0.0
    %1519 = vmatpush1.msra.mxu0 0.0
    %1520 = vmatprep.subr.mxu0 0.0
    %1521 = vmatpush1.msra.mxu0 0.0
    %1522 = vmatprep.subr.mxu0 0.0
    %1523 = vmatpush1.msra.mxu0 0.0
    %1524 = vmatprep.subr.mxu0 0.0
    %1525 = vmatpush1.msra.mxu0 0.0
    %1526 = vmatprep.subr.mxu0 0.0
    %1527 = vmatpush1.msra.mxu0 0.0
    %1528 = vmatprep.subr.mxu0 0.0
    %1529 = vmatpush1.msra.mxu0 0.0
    %1530 = vmatprep.subr.mxu0 0.0
    %1531 = vmatpush1.msra.mxu0 0.0
    %1532 = vmatprep.subr.mxu0 0.0
    %1533 = vmatpush1.msra.mxu0 0.0
    %1534 = vmatprep.subr.mxu0 0.0
    %1535 = vmatpush1.msra.mxu0 0.0
    %1536 = vmatprep.subr.mxu0 0.0
    %1537 = vmatpush1.msra.mxu0 0.0
    %1538 = vmatprep.subr.mxu0 0.0
    %1539 = vmatpush1.msra.mxu0 0.0
    %1540 = vmatprep.subr.mxu0 0.0
    %1541 = vmatpush1.msra.mxu0 0.0
    %1542 = vmatprep.subr.mxu0 0.0
    %1543 = vmatpush1.msra.mxu0 0.0
    %1544 = vmatprep.subr.mxu0 0.0
    %1545 = vmatpush1.msra.mxu0 0.0
    %1546 = vmatprep.subr.mxu0 0.0
    %1547 = vmatpush1.msra.mxu0 0.0
    %1548 = vmatprep.subr.mxu0 0.0
    %1549 = vmatpush1.msra.mxu0 0.0
    %1550 = vmatprep.subr.mxu0 0.0
    %1551 = vmatpush1.msra.mxu0 0.0
    %1552 = vmatprep.mubr.f32.mxu0 0.0
    %1553 = vmatmul.mubr.f32.gmra.mrb[0].mxu0 %v727
    %v1554 = vpop.f32.mrb[0].mxu0
    %v1555 = vadd.f32 0.0, %v1554
    %v1556 = vpop.f32.mrb[0].mxu0
    %1557 = vmatprep.mubr.f32.mxu0 0.0
    %1558 = vmatmul.mubr.f32.gmra.mrb[0].mxu0 %v730
    %v1559 = vpop.f32.mrb[0].mxu0
    %v1560 = vadd.f32 0.0, %v1559
    %v1561 = vpop.f32.mrb[0].mxu0
    %1562 = vdwg.mxu0
    %1563 = vmatprep.subr.mxu0 0.0
    %1564 = vmatpush1.msra.mxu0 %v706
    %1565 = vmatprep.subr.mxu0 0.0
    %1566 = vmatpush1.msra.mxu0 %v707
    %1567 = vmatprep.subr.mxu0 0.0
    %1568 = vmatpush1.msra.mxu0 %v708
    %1569 = vmatprep.subr.mxu0 0.0
    %1570 = vmatpush1.msra.mxu0 %v709
    %1571 = vmatprep.subr.mxu0 0.0
    %1572 = vmatpush1.msra.mxu0 0.0
    %1573 = vmatprep.subr.mxu0 0.0
    %1574 = vmatpush1.msra.mxu0 0.0
    %1575 = vmatprep.subr.mxu0 0.0
    %1576 = vmatpush1.msra.mxu0 0.0
    %1577 = vmatprep.subr.mxu0 0.0
    %1578 = vmatpush1.msra.mxu0 0.0
    %1579 = vmatprep.subr.mxu0 0.0
    %1580 = vmatpush1.msra.mxu0 0.0
    %1581 = vmatprep.subr.mxu0 0.0
    %1582 = vmatpush1.msra.mxu0 0.0
    %1583 = vmatprep.subr.mxu0 0.0
    %1584 = vmatpush1.msra.mxu0 0.0
    %1585 = vmatprep.subr.mxu0 0.0
    %1586 = vmatpush1.msra.mxu0 0.0
    %1587 = vmatprep.subr.mxu0 0.0
    %1588 = vmatpush1.msra.mxu0 0.0
    %1589 = vmatprep.subr.mxu0 0.0
    %1590 = vmatpush1.msra.mxu0 0.0
    %1591 = vmatprep.subr.mxu0 0.0
    %1592 = vmatpush1.msra.mxu0 0.0
    %1593 = vmatprep.subr.mxu0 0.0
    %1594 = vmatpush1.msra.mxu0 0.0
    %1595 = vmatprep.subr.mxu0 0.0
    %1596 = vmatpush1.msra.mxu0 0.0
    %1597 = vmatprep.subr.mxu0 0.0
    %1598 = vmatpush1.msra.mxu0 0.0
    %1599 = vmatprep.subr.mxu0 0.0
    %1600 = vmatpush1.msra.mxu0 0.0
    %1601 = vmatprep.subr.mxu0 0.0
    %1602 = vmatpush1.msra.mxu0 0.0
    %1603 = vmatprep.subr.mxu0 0.0
    %1604 = vmatpush1.msra.mxu0 0.0
    %1605 = vmatprep.subr.mxu0 0.0
    %1606 = vmatpush1.msra.mxu0 0.0
    %1607 = vmatprep.subr.mxu0 0.0
    %1608 = vmatpush1.msra.mxu0 0.0
    %1609 = vmatprep.subr.mxu0 0.0
    %1610 = vmatpush1.msra.mxu0 0.0
    %1611 = vmatprep.subr.mxu0 0.0
    %1612 = vmatpush1.msra.mxu0 0.0
    %1613 = vmatprep.subr.mxu0 0.0
    %1614 = vmatpush1.msra.mxu0 0.0
    %1615 = vmatprep.subr.mxu0 0.0
    %1616 = vmatpush1.msra.mxu0 0.0
    %1617 = vmatprep.subr.mxu0 0.0
    %1618 = vmatpush1.msra.mxu0 0.0
    %1619 = vmatprep.subr.mxu0 0.0
    %1620 = vmatpush1.msra.mxu0 0.0
    %1621 = vmatprep.subr.mxu0 0.0
    %1622 = vmatpush1.msra.mxu0 0.0
    %1623 = vmatprep.subr.mxu0 0.0
    %1624 = vmatpush1.msra.mxu0 0.0
    %1625 = vmatprep.subr.mxu0 0.0
    %1626 = vmatpush1.msra.mxu0 0.0
    %1627 = vmatprep.mubr.f32.mxu0 0.0
    %1628 = vmatmul.mubr.f32.gmra.mrb[0].mxu0 %v727
    %v1629 = vpop.f32.mrb[0].mxu0
    %v1630 = vadd.f32 0.0, %v1629
    %v1631 = vpop.f32.mrb[0].mxu0
    %1632 = vmatprep.mubr.f32.mxu0 0.0
    %1633 = vmatmul.mubr.f32.gmra.mrb[0].mxu0 %v730
    %v1634 = vpop.f32.mrb[0].mxu0
    %v1635 = vadd.f32 0.0, %v1634
    %v1636 = vpop.f32.mrb[0].mxu0
    %1637 = vdwg.mxu0
    %1638 = vmatprep.subr.mxu0 0.0
    %1639 = vmatpush1.msra.mxu0 %v694
    %1640 = vmatprep.subr.mxu0 0.0
    %1641 = vmatpush1.msra.mxu0 %v695
    %1642 = vmatprep.subr.mxu0 0.0
    %1643 = vmatpush1.msra.mxu0 %v696
    %1644 = vmatprep.subr.mxu0 0.0
    %1645 = vmatpush1.msra.mxu0 %v697
    %1646 = vmatprep.subr.mxu0 0.0
    %1647 = vmatpush1.msra.mxu0 0.0
    %1648 = vmatprep.subr.mxu0 0.0
    %1649 = vmatpush1.msra.mxu0 0.0
    %1650 = vmatprep.subr.mxu0 0.0
    %1651 = vmatpush1.msra.mxu0 0.0
    %1652 = vmatprep.subr.mxu0 0.0
    %1653 = vmatpush1.msra.mxu0 0.0
    %1654 = vmatprep.subr.mxu0 0.0
    %1655 = vmatpush1.msra.mxu0 0.0
    %1656 = vmatprep.subr.mxu0 0.0
    %1657 = vmatpush1.msra.mxu0 0.0
    %1658 = vmatprep.subr.mxu0 0.0
    %1659 = vmatpush1.msra.mxu0 0.0
    %1660 = vmatprep.subr.mxu0 0.0
    %1661 = vmatpush1.msra.mxu0 0.0
    %1662 = vmatprep.subr.mxu0 0.0
    %1663 = vmatpush1.msra.mxu0 0.0
    %1664 = vmatprep.subr.mxu0 0.0
    %1665 = vmatpush1.msra.mxu0 0.0
    %1666 = vmatprep.subr.mxu0 0.0
    %1667 = vmatpush1.msra.mxu0 0.0
    %1668 = vmatprep.subr.mxu0 0.0
    %1669 = vmatpush1.msra.mxu0 0.0
    %1670 = vmatprep.subr.mxu0 0.0
    %1671 = vmatpush1.msra.mxu0 0.0
    %1672 = vmatprep.subr.mxu0 0.0
    %1673 = vmatpush1.msra.mxu0 0.0
    %1674 = vmatprep.subr.mxu0 0.0
    %1675 = vmatpush1.msra.mxu0 0.0
    %1676 = vmatprep.subr.mxu0 0.0
    %1677 = vmatpush1.msra.mxu0 0.0
    %1678 = vmatprep.subr.mxu0 0.0
    %1679 = vmatpush1.msra.mxu0 0.0
    %1680 = vmatprep.subr.mxu0 0.0
    %1681 = vmatpush1.msra.mxu0 0.0
    %1682 = vmatprep.subr.mxu0 0.0
    %1683 = vmatpush1.msra.mxu0 0.0
    %1684 = vmatprep.subr.mxu0 0.0
    %1685 = vmatpush1.msra.mxu0 0.0
    %1686 = vmatprep.subr.mxu0 0.0
    %1687 = vmatpush1.msra.mxu0 0.0
    %1688 = vmatprep.subr.mxu0 0.0
    %1689 = vmatpush1.msra.mxu0 0.0
    %1690 = vmatprep.subr.mxu0 0.0
    %1691 = vmatpush1.msra.mxu0 0.0
    %1692 = vmatprep.subr.mxu0 0.0
    %1693 = vmatpush1.msra.mxu0 0.0
    %1694 = vmatprep.subr.mxu0 0.0
    %1695 = vmatpush1.msra.mxu0 0.0
    %1696 = vmatprep.subr.mxu0 0.0
    %1697 = vmatpush1.msra.mxu0 0.0
    %1698 = vmatprep.subr.mxu0 0.0
    %1699 = vmatpush1.msra.mxu0 0.0
    %1700 = vmatprep.subr.mxu0 0.0
    %1701 = vmatpush1.msra.mxu0 0.0
    %1702 = vmatprep.mubr.f32.mxu0 0.0
    %1703 = vmatmul.mubr.f32.gmra.mrb[0].mxu0 %v1033
    %v1704 = vpop.f32.mrb[0].mxu0
    %v1705 = vadd.f32 0.0, %v1704
    %v1706 = vpop.f32.mrb[0].mxu0
    %1707 = vmatprep.mubr.f32.mxu0 0.0
    %1708 = vmatmul.mubr.f32.gmra.mrb[0].mxu0 %v1036
    %v1709 = vpop.f32.mrb[0].mxu0
    %v1710 = vadd.f32 0.0, %v1709
    %v1711 = vpop.f32.mrb[0].mxu0
    %1712 = vdwg.mxu0
    %1713 = vmatprep.subr.mxu0 0.0
    %1714 = vmatpush1.msra.mxu0 %v698
    %1715 = vmatprep.subr.mxu0 0.0
    %1716 = vmatpush1.msra.mxu0 %v699
    %1717 = vmatprep.subr.mxu0 0.0
    %1718 = vmatpush1.msra.mxu0 %v700
    %1719 = vmatprep.subr.mxu0 0.0
    %1720 = vmatpush1.msra.mxu0 %v701
    %1721 = vmatprep.subr.mxu0 0.0
    %1722 = vmatpush1.msra.mxu0 0.0
    %1723 = vmatprep.subr.mxu0 0.0
    %1724 = vmatpush1.msra.mxu0 0.0
    %1725 = vmatprep.subr.mxu0 0.0
    %1726 = vmatpush1.msra.mxu0 0.0
    %1727 = vmatprep.subr.mxu0 0.0
    %1728 = vmatpush1.msra.mxu0 0.0
    %1729 = vmatprep.subr.mxu0 0.0
    %1730 = vmatpush1.msra.mxu0 0.0
    %1731 = vmatprep.subr.mxu0 0.0
    %1732 = vmatpush1.msra.mxu0 0.0
    %1733 = vmatprep.subr.mxu0 0.0
    %1734 = vmatpush1.msra.mxu0 0.0
    %1735 = vmatprep.subr.mxu0 0.0
    %1736 = vmatpush1.msra.mxu0 0.0
    %1737 = vmatprep.subr.mxu0 0.0
    %1738 = vmatpush1.msra.mxu0 0.0
    %1739 = vmatprep.subr.mxu0 0.0
    %1740 = vmatpush1.msra.mxu0 0.0
    %1741 = vmatprep.subr.mxu0 0.0
    %1742 = vmatpush1.msra.mxu0 0.0
    %1743 = vmatprep.subr.mxu0 0.0
    %1744 = vmatpush1.msra.mxu0 0.0
    %1745 = vmatprep.subr.mxu0 0.0
    %1746 = vmatpush1.msra.mxu0 0.0
    %1747 = vmatprep.subr.mxu0 0.0
    %1748 = vmatpush1.msra.mxu0 0.0
    %1749 = vmatprep.subr.mxu0 0.0
    %1750 = vmatpush1.msra.mxu0 0.0
    %1751 = vmatprep.subr.mxu0 0.0
    %1752 = vmatpush1.msra.mxu0 0.0
    %1753 = vmatprep.subr.mxu0 0.0
    %1754 = vmatpush1.msra.mxu0 0.0
    %1755 = vmatprep.subr.mxu0 0.0
    %1756 = vmatpush1.msra.mxu0 0.0
    %1757 = vmatprep.subr.mxu0 0.0
    %1758 = vmatpush1.msra.mxu0 0.0
    %1759 = vmatprep.subr.mxu0 0.0
    %1760 = vmatpush1.msra.mxu0 0.0
    %1761 = vmatprep.subr.mxu0 0.0
    %1762 = vmatpush1.msra.mxu0 0.0
    %1763 = vmatprep.subr.mxu0 0.0
    %1764 = vmatpush1.msra.mxu0 0.0
    %1765 = vmatprep.subr.mxu0 0.0
    %1766 = vmatpush1.msra.mxu0 0.0
    %1767 = vmatprep.subr.mxu0 0.0
    %1768 = vmatpush1.msra.mxu0 0.0
    %1769 = vmatprep.subr.mxu0 0.0
    %1770 = vmatpush1.msra.mxu0 0.0
    %1771 = vmatprep.subr.mxu0 0.0
    %1772 = vmatpush1.msra.mxu0 0.0
    %1773 = vmatprep.subr.mxu0 0.0
    %1774 = vmatpush1.msra.mxu0 0.0
    %1775 = vmatprep.subr.mxu0 0.0
    %1776 = vmatpush1.msra.mxu0 0.0
    %1777 = vmatprep.mubr.f32.mxu0 0.0
    %1778 = vmatmul.mubr.f32.gmra.mrb[0].mxu0 %v1033
    %v1779 = vpop.f32.mrb[0].mxu0
    %v1780 = vadd.f32 0.0, %v1779
    %v1781 = vpop.f32.mrb[0].mxu0
    %1782 = vmatprep.mubr.f32.mxu0 0.0
    %1783 = vmatmul.mubr.f32.gmra.mrb[0].mxu0 %v1036
    %v1784 = vpop.f32.mrb[0].mxu0
    %v1785 = vadd.f32 0.0, %v1784
    %v1786 = vpop.f32.mrb[0].mxu0
    %1787 = vdwg.mxu0
    %1788 = vmatprep.subr.mxu0 0.0
    %1789 = vmatpush1.msra.mxu0 %v702
    %1790 = vmatprep.subr.mxu0 0.0
    %1791 = vmatpush1.msra.mxu0 %v703
    %1792 = vmatprep.subr.mxu0 0.0
    %1793 = vmatpush1.msra.mxu0 %v704
    %1794 = vmatprep.subr.mxu0 0.0
    %1795 = vmatpush1.msra.mxu0 %v705
    %1796 = vmatprep.subr.mxu0 0.0
    %1797 = vmatpush1.msra.mxu0 0.0
    %1798 = vmatprep.subr.mxu0 0.0
    %1799 = vmatpush1.msra.mxu0 0.0
    %1800 = vmatprep.subr.mxu0 0.0
    %1801 = vmatpush1.msra.mxu0 0.0
    %1802 = vmatprep.subr.mxu0 0.0
    %1803 = vmatpush1.msra.mxu0 0.0
    %1804 = vmatprep.subr.mxu0 0.0
    %1805 = vmatpush1.msra.mxu0 0.0
    %1806 = vmatprep.subr.mxu0 0.0
    %1807 = vmatpush1.msra.mxu0 0.0
    %1808 = vmatprep.subr.mxu0 0.0
    %1809 = vmatpush1.msra.mxu0 0.0
    %1810 = vmatprep.subr.mxu0 0.0
    %1811 = vmatpush1.msra.mxu0 0.0
    %1812 = vmatprep.subr.mxu0 0.0
    %1813 = vmatpush1.msra.mxu0 0.0
    %1814 = vmatprep.subr.mxu0 0.0
    %1815 = vmatpush1.msra.mxu0 0.0
    %1816 = vmatprep.subr.mxu0 0.0
    %1817 = vmatpush1.msra.mxu0 0.0
    %1818 = vmatprep.subr.mxu0 0.0
    %1819 = vmatpush1.msra.mxu0 0.0
    %1820 = vmatprep.subr.mxu0 0.0
    %1821 = vmatpush1.msra.mxu0 0.0
    %1822 = vmatprep.subr.mxu0 0.0
    %1823 = vmatpush1.msra.mxu0 0.0
    %1824 = vmatprep.subr.mxu0 0.0
    %1825 = vmatpush1.msra.mxu0 0.0
    %1826 = vmatprep.subr.mxu0 0.0
    %1827 = vmatpush1.msra.mxu0 0.0
    %1828 = vmatprep.subr.mxu0 0.0
    %1829 = vmatpush1.msra.mxu0 0.0
    %1830 = vmatprep.subr.mxu0 0.0
    %1831 = vmatpush1.msra.mxu0 0.0
    %1832 = vmatprep.subr.mxu0 0.0
    %1833 = vmatpush1.msra.mxu0 0.0
    %1834 = vmatprep.subr.mxu0 0.0
    %1835 = vmatpush1.msra.mxu0 0.0
    %1836 = vmatprep.subr.mxu0 0.0
    %1837 = vmatpush1.msra.mxu0 0.0
    %1838 = vmatprep.subr.mxu0 0.0
    %1839 = vmatpush1.msra.mxu0 0.0
    %1840 = vmatprep.subr.mxu0 0.0
    %1841 = vmatpush1.msra.mxu0 0.0
    %1842 = vmatprep.subr.mxu0 0.0
    %1843 = vmatpush1.msra.mxu0 0.0
    %1844 = vmatprep.subr.mxu0 0.0
    %1845 = vmatpush1.msra.mxu0 0.0
    %1846 = vmatprep.subr.mxu0 0.0
    %1847 = vmatpush1.msra.mxu0 0.0
    %1848 = vmatprep.subr.mxu0 0.0
    %1849 = vmatpush1.msra.mxu0 0.0
    %1850 = vmatprep.subr.mxu0 0.0
    %1851 = vmatpush1.msra.mxu0 0.0
    %1852 = vmatprep.mubr.f32.mxu0 0.0
    %1853 = vmatmul.mubr.f32.gmra.mrb[0].mxu0 %v1033
    %v1854 = vpop.f32.mrb[0].mxu0
    %v1855 = vadd.f32 0.0, %v1854
    %v1856 = vpop.f32.mrb[0].mxu0
    %1857 = vmatprep.mubr.f32.mxu0 0.0
    %1858 = vmatmul.mubr.f32.gmra.mrb[0].mxu0 %v1036
    %v1859 = vpop.f32.mrb[0].mxu0
    %v1860 = vadd.f32 0.0, %v1859
    %v1861 = vpop.f32.mrb[0].mxu0
    %1862 = vdwg.mxu0
    %1863 = vmatprep.subr.mxu0 0.0
    %1864 = vmatpush1.msra.mxu0 %v706
    %1865 = vmatprep.subr.mxu0 0.0
    %1866 = vmatpush1.msra.mxu0 %v707
    %1867 = vmatprep.subr.mxu0 0.0
    %1868 = vmatpush1.msra.mxu0 %v708
    %1869 = vmatprep.subr.mxu0 0.0
    %1870 = vmatpush1.msra.mxu0 %v709
    %1871 = vmatprep.subr.mxu0 0.0
    %1872 = vmatpush1.msra.mxu0 0.0
    %1873 = vmatprep.subr.mxu0 0.0
    %1874 = vmatpush1.msra.mxu0 0.0
    %1875 = vmatprep.subr.mxu0 0.0
    %1876 = vmatpush1.msra.mxu0 0.0
    %1877 = vmatprep.subr.mxu0 0.0
    %1878 = vmatpush1.msra.mxu0 0.0
    %1879 = vmatprep.subr.mxu0 0.0
    %1880 = vmatpush1.msra.mxu0 0.0
    %1881 = vmatprep.subr.mxu0 0.0
    %1882 = vmatpush1.msra.mxu0 0.0
    %1883 = vmatprep.subr.mxu0 0.0
    %1884 = vmatpush1.msra.mxu0 0.0
    %1885 = vmatprep.subr.mxu0 0.0
    %1886 = vmatpush1.msra.mxu0 0.0
    %1887 = vmatprep.subr.mxu0 0.0
    %1888 = vmatpush1.msra.mxu0 0.0
    %1889 = vmatprep.subr.mxu0 0.0
    %1890 = vmatpush1.msra.mxu0 0.0
    %1891 = vmatprep.subr.mxu0 0.0
    %1892 = vmatpush1.msra.mxu0 0.0
    %1893 = vmatprep.subr.mxu0 0.0
    %1894 = vmatpush1.msra.mxu0 0.0
    %1895 = vmatprep.subr.mxu0 0.0
    %1896 = vmatpush1.msra.mxu0 0.0
    %1897 = vmatprep.subr.mxu0 0.0
    %1898 = vmatpush1.msra.mxu0 0.0
    %1899 = vmatprep.subr.mxu0 0.0
    %1900 = vmatpush1.msra.mxu0 0.0
    %1901 = vmatprep.subr.mxu0 0.0
    %1902 = vmatpush1.msra.mxu0 0.0
    %1903 = vmatprep.subr.mxu0 0.0
    %1904 = vmatpush1.msra.mxu0 0.0
    %1905 = vmatprep.subr.mxu0 0.0
    %1906 = vmatpush1.msra.mxu0 0.0
    %1907 = vmatprep.subr.mxu0 0.0
    %1908 = vmatpush1.msra.mxu0 0.0
    %1909 = vmatprep.subr.mxu0 0.0
    %1910 = vmatpush1.msra.mxu0 0.0
    %1911 = vmatprep.subr.mxu0 0.0
    %1912 = vmatpush1.msra.mxu0 0.0
    %1913 = vmatprep.subr.mxu0 0.0
    %1914 = vmatpush1.msra.mxu0 0.0
    %1915 = vmatprep.subr.mxu0 0.0
    %1916 = vmatpush1.msra.mxu0 0.0
    %1917 = vmatprep.subr.mxu0 0.0
    %1918 = vmatpush1.msra.mxu0 0.0
    %1919 = vmatprep.subr.mxu0 0.0
    %1920 = vmatpush1.msra.mxu0 0.0
    %1921 = vmatprep.subr.mxu0 0.0
    %1922 = vmatpush1.msra.mxu0 0.0
    %1923 = vmatprep.subr.mxu0 0.0
    %1924 = vmatpush1.msra.mxu0 0.0
    %1925 = vmatprep.subr.mxu0 0.0
    %1926 = vmatpush1.msra.mxu0 0.0
    %1927 = vmatprep.mubr.f32.mxu0 0.0
    %1928 = vmatmul.mubr.f32.gmra.mrb[0].mxu0 %v1033
    %v1929 = vpop.f32.mrb[0].mxu0
    %v1930 = vadd.f32 0.0, %v1929
    %v1931 = vpop.f32.mrb[0].mxu0
    %1932 = vmatprep.mubr.f32.mxu0 0.0
    %1933 = vmatmul.mubr.f32.gmra.mrb[0].mxu0 %v1036
    %v1934 = vpop.f32.mrb[0].mxu0
    %v1935 = vadd.f32 0.0, %v1934
    %v1936 = vpop.f32.mrb[0].mxu0
    %1937 = vdwg.mxu0
    %1938 = vmatprep.subr.mxu0 0.0
    %1939 = vmatpush1.msra.mxu0 %v710
    %1940 = vmatprep.subr.mxu0 0.0
    %1941 = vmatpush1.msra.mxu0 %v711
    %1942 = vmatprep.subr.mxu0 0.0
    %1943 = vmatpush1.msra.mxu0 %v712
    %1944 = vmatprep.subr.mxu0 0.0
    %1945 = vmatpush1.msra.mxu0 %v713
    %1946 = vmatprep.subr.mxu0 0.0
    %1947 = vmatpush1.msra.mxu0 0.0
    %1948 = vmatprep.subr.mxu0 0.0
    %1949 = vmatpush1.msra.mxu0 0.0
    %1950 = vmatprep.subr.mxu0 0.0
    %1951 = vmatpush1.msra.mxu0 0.0
    %1952 = vmatprep.subr.mxu0 0.0
    %1953 = vmatpush1.msra.mxu0 0.0
    %1954 = vmatprep.subr.mxu0 0.0
    %1955 = vmatpush1.msra.mxu0 0.0
    %1956 = vmatprep.subr.mxu0 0.0
    %1957 = vmatpush1.msra.mxu0 0.0
    %1958 = vmatprep.subr.mxu0 0.0
    %1959 = vmatpush1.msra.mxu0 0.0
    %1960 = vmatprep.subr.mxu0 0.0
    %1961 = vmatpush1.msra.mxu0 0.0
    %1962 = vmatprep.subr.mxu0 0.0
    %1963 = vmatpush1.msra.mxu0 0.0
    %1964 = vmatprep.subr.mxu0 0.0
    %1965 = vmatpush1.msra.mxu0 0.0
    %1966 = vmatprep.subr.mxu0 0.0
    %1967 = vmatpush1.msra.mxu0 0.0
    %1968 = vmatprep.subr.mxu0 0.0
    %1969 = vmatpush1.msra.mxu0 0.0
    %1970 = vmatprep.subr.mxu0 0.0
    %1971 = vmatpush1.msra.mxu0 0.0
    %1972 = vmatprep.subr.mxu0 0.0
    %1973 = vmatpush1.msra.mxu0 0.0
    %1974 = vmatprep.subr.mxu0 0.0
    %1975 = vmatpush1.msra.mxu0 0.0
    %1976 = vmatprep.subr.mxu0 0.0
    %1977 = vmatpush1.msra.mxu0 0.0
    %1978 = vmatprep.subr.mxu0 0.0
    %1979 = vmatpush1.msra.mxu0 0.0
    %1980 = vmatprep.subr.mxu0 0.0
    %1981 = vmatpush1.msra.mxu0 0.0
    %1982 = vmatprep.subr.mxu0 0.0
    %1983 = vmatpush1.msra.mxu0 0.0
    %1984 = vmatprep.subr.mxu0 0.0
    %1985 = vmatpush1.msra.mxu0 0.0
    %1986 = vmatprep.subr.mxu0 0.0
    %1987 = vmatpush1.msra.mxu0 0.0
    %1988 = vmatprep.subr.mxu0 0.0
    %1989 = vmatpush1.msra.mxu0 0.0
    %1990 = vmatprep.subr.mxu0 0.0
    %1991 = vmatpush1.msra.mxu0 0.0
    %1992 = vmatprep.subr.mxu0 0.0
    %1993 = vmatpush1.msra.mxu0 0.0
    %1994 = vmatprep.subr.mxu0 0.0
    %1995 = vmatpush1.msra.mxu0 0.0
    %1996 = vmatprep.subr.mxu0 0.0
    %1997 = vmatpush1.msra.mxu0 0.0
    %1998 = vmatprep.subr.mxu0 0.0
    %1999 = vmatpush1.msra.mxu0 0.0
    %2000 = vmatprep.subr.mxu0 0.0
    %2001 = vmatpush1.msra.mxu0 0.0
    %2002 = vmatprep.mubr.f32.mxu0 0.0
    %2003 = vmatmul.mubr.f32.gmra.mrb[0].mxu0 %v727
    %v2004 = vpop.f32.mrb[0].mxu0
    %v2005 = vadd.f32 0.0, %v2004
    %v2006 = vpop.f32.mrb[0].mxu0
    %2007 = vmatprep.mubr.f32.mxu0 0.0
    %2008 = vmatmul.mubr.f32.gmra.mrb[0].mxu0 %v730
    %v2009 = vpop.f32.mrb[0].mxu0
    %v2010 = vadd.f32 0.0, %v2009
    %v2011 = vpop.f32.mrb[0].mxu0
    %2012 = vdwg.mxu0
    %2013 = vmatprep.subr.mxu0 0.0
    %2014 = vmatpush1.msra.mxu0 %v714
    %2015 = vmatprep.subr.mxu0 0.0
    %2016 = vmatpush1.msra.mxu0 %v715
    %2017 = vmatprep.subr.mxu0 0.0
    %2018 = vmatpush1.msra.mxu0 %v716
    %2019 = vmatprep.subr.mxu0 0.0
    %2020 = vmatpush1.msra.mxu0 %v717
    %2021 = vmatprep.subr.mxu0 0.0
    %2022 = vmatpush1.msra.mxu0 0.0
    %2023 = vmatprep.subr.mxu0 0.0
    %2024 = vmatpush1.msra.mxu0 0.0
    %2025 = vmatprep.subr.mxu0 0.0
    %2026 = vmatpush1.msra.mxu0 0.0
    %2027 = vmatprep.subr.mxu0 0.0
    %2028 = vmatpush1.msra.mxu0 0.0
    %2029 = vmatprep.subr.mxu0 0.0
    %2030 = vmatpush1.msra.mxu0 0.0
    %2031 = vmatprep.subr.mxu0 0.0
    %2032 = vmatpush1.msra.mxu0 0.0
    %2033 = vmatprep.subr.mxu0 0.0
    %2034 = vmatpush1.msra.mxu0 0.0
    %2035 = vmatprep.subr.mxu0 0.0
    %2036 = vmatpush1.msra.mxu0 0.0
    %2037 = vmatprep.subr.mxu0 0.0
    %2038 = vmatpush1.msra.mxu0 0.0
    %2039 = vmatprep.subr.mxu0 0.0
    %2040 = vmatpush1.msra.mxu0 0.0
    %2041 = vmatprep.subr.mxu0 0.0
    %2042 = vmatpush1.msra.mxu0 0.0
    %2043 = vmatprep.subr.mxu0 0.0
    %2044 = vmatpush1.msra.mxu0 0.0
    %2045 = vmatprep.subr.mxu0 0.0
    %2046 = vmatpush1.msra.mxu0 0.0
    %2047 = vmatprep.subr.mxu0 0.0
    %2048 = vmatpush1.msra.mxu0 0.0
    %2049 = vmatprep.subr.mxu0 0.0
    %2050 = vmatpush1.msra.mxu0 0.0
    %2051 = vmatprep.subr.mxu0 0.0
    %2052 = vmatpush1.msra.mxu0 0.0
    %2053 = vmatprep.subr.mxu0 0.0
    %2054 = vmatpush1.msra.mxu0 0.0
    %2055 = vmatprep.subr.mxu0 0.0
    %2056 = vmatpush1.msra.mxu0 0.0
    %2057 = vmatprep.subr.mxu0 0.0
    %2058 = vmatpush1.msra.mxu0 0.0
    %2059 = vmatprep.subr.mxu0 0.0
    %2060 = vmatpush1.msra.mxu0 0.0
    %2061 = vmatprep.subr.mxu0 0.0
    %2062 = vmatpush1.msra.mxu0 0.0
    %2063 = vmatprep.subr.mxu0 0.0
    %2064 = vmatpush1.msra.mxu0 0.0
    %2065 = vmatprep.subr.mxu0 0.0
    %2066 = vmatpush1.msra.mxu0 0.0
    %2067 = vmatprep.subr.mxu0 0.0
    %2068 = vmatpush1.msra.mxu0 0.0
    %2069 = vmatprep.subr.mxu0 0.0
    %2070 = vmatpush1.msra.mxu0 0.0
    %2071 = vmatprep.subr.mxu0 0.0
    %2072 = vmatpush1.msra.mxu0 0.0
    %2073 = vmatprep.subr.mxu0 0.0
    %2074 = vmatpush1.msra.mxu0 0.0
    %2075 = vmatprep.subr.mxu0 0.0
    %2076 = vmatpush1.msra.mxu0 0.0
    %2077 = vmatprep.mubr.f32.mxu0 0.0
    %2078 = vmatmul.mubr.f32.gmra.mrb[0].mxu0 %v727
    %v2079 = vpop.f32.mrb[0].mxu0
    %v2080 = vadd.f32 0.0, %v2079
    %v2081 = vpop.f32.mrb[0].mxu0
    %2082 = vmatprep.mubr.f32.mxu0 0.0
    %2083 = vmatmul.mubr.f32.gmra.mrb[0].mxu0 %v730
    %v2084 = vpop.f32.mrb[0].mxu0
    %v2085 = vadd.f32 0.0, %v2084
    %v2086 = vpop.f32.mrb[0].mxu0
    %2087 = vdwg.mxu0
    %2088 = vmatprep.subr.mxu0 0.0
    %2089 = vmatpush1.msra.mxu0 %v718
    %2090 = vmatprep.subr.mxu0 0.0
    %2091 = vmatpush1.msra.mxu0 %v719
    %2092 = vmatprep.subr.mxu0 0.0
    %2093 = vmatpush1.msra.mxu0 %v720
    %2094 = vmatprep.subr.mxu0 0.0
    %2095 = vmatpush1.msra.mxu0 %v721
    %2096 = vmatprep.subr.mxu0 0.0
    %2097 = vmatpush1.msra.mxu0 0.0
    %2098 = vmatprep.subr.mxu0 0.0
    %2099 = vmatpush1.msra.mxu0 0.0
    %2100 = vmatprep.subr.mxu0 0.0
    %2101 = vmatpush1.msra.mxu0 0.0
    %2102 = vmatprep.subr.mxu0 0.0
    %2103 = vmatpush1.msra.mxu0 0.0
    %2104 = vmatprep.subr.mxu0 0.0
    %2105 = vmatpush1.msra.mxu0 0.0
    %2106 = vmatprep.subr.mxu0 0.0
    %2107 = vmatpush1.msra.mxu0 0.0
    %2108 = vmatprep.subr.mxu0 0.0
    %2109 = vmatpush1.msra.mxu0 0.0
    %2110 = vmatprep.subr.mxu0 0.0
    %2111 = vmatpush1.msra.mxu0 0.0
    %2112 = vmatprep.subr.mxu0 0.0
    %2113 = vmatpush1.msra.mxu0 0.0
    %2114 = vmatprep.subr.mxu0 0.0
    %2115 = vmatpush1.msra.mxu0 0.0
    %2116 = vmatprep.subr.mxu0 0.0
    %2117 = vmatpush1.msra.mxu0 0.0
    %2118 = vmatprep.subr.mxu0 0.0
    %2119 = vmatpush1.msra.mxu0 0.0
    %2120 = vmatprep.subr.mxu0 0.0
    %2121 = vmatpush1.msra.mxu0 0.0
    %2122 = vmatprep.subr.mxu0 0.0
    %2123 = vmatpush1.msra.mxu0 0.0
    %2124 = vmatprep.subr.mxu0 0.0
    %2125 = vmatpush1.msra.mxu0 0.0
    %2126 = vmatprep.subr.mxu0 0.0
    %2127 = vmatpush1.msra.mxu0 0.0
    %2128 = vmatprep.subr.mxu0 0.0
    %2129 = vmatpush1.msra.mxu0 0.0
    %2130 = vmatprep.subr.mxu0 0.0
    %2131 = vmatpush1.msra.mxu0 0.0
    %2132 = vmatprep.subr.mxu0 0.0
    %2133 = vmatpush1.msra.mxu0 0.0
    %2134 = vmatprep.subr.mxu0 0.0
    %2135 = vmatpush1.msra.mxu0 0.0
    %2136 = vmatprep.subr.mxu0 0.0
    %2137 = vmatpush1.msra.mxu0 0.0
    %2138 = vmatprep.subr.mxu0 0.0
    %2139 = vmatpush1.msra.mxu0 0.0
    %2140 = vmatprep.subr.mxu0 0.0
    %2141 = vmatpush1.msra.mxu0 0.0
    %2142 = vmatprep.subr.mxu0 0.0
    %2143 = vmatpush1.msra.mxu0 0.0
    %2144 = vmatprep.subr.mxu0 0.0
    %2145 = vmatpush1.msra.mxu0 0.0
    %2146 = vmatprep.subr.mxu0 0.0
    %2147 = vmatpush1.msra.mxu0 0.0
    %2148 = vmatprep.subr.mxu0 0.0
    %2149 = vmatpush1.msra.mxu0 0.0
    %2150 = vmatprep.subr.mxu0 0.0
    %2151 = vmatpush1.msra.mxu0 0.0
    %2152 = vmatprep.mubr.f32.mxu0 0.0
    %2153 = vmatmul.mubr.f32.gmra.mrb[0].mxu0 %v727
    %v2154 = vpop.f32.mrb[0].mxu0
    %v2155 = vadd.f32 0.0, %v2154
    %v2156 = vpop.f32.mrb[0].mxu0
    %2157 = vmatprep.mubr.f32.mxu0 0.0
    %2158 = vmatmul.mubr.f32.gmra.mrb[0].mxu0 %v730
    %v2159 = vpop.f32.mrb[0].mxu0
    %v2160 = vadd.f32 0.0, %v2159
    %v2161 = vpop.f32.mrb[0].mxu0
    %2162 = vdwg.mxu0
    %2163 = vmatprep.subr.mxu0 0.0
    %2164 = vmatpush1.msra.mxu0 %v722
    %2165 = vmatprep.subr.mxu0 0.0
    %2166 = vmatpush1.msra.mxu0 %v723
    %2167 = vmatprep.subr.mxu0 0.0
    %2168 = vmatpush1.msra.mxu0 %v724
    %2169 = vmatprep.subr.mxu0 0.0
    %2170 = vmatpush1.msra.mxu0 %v725
    %2171 = vmatprep.subr.mxu0 0.0
    %2172 = vmatpush1.msra.mxu0 0.0
    %2173 = vmatprep.subr.mxu0 0.0
    %2174 = vmatpush1.msra.mxu0 0.0
    %2175 = vmatprep.subr.mxu0 0.0
    %2176 = vmatpush1.msra.mxu0 0.0
    %2177 = vmatprep.subr.mxu0 0.0
    %2178 = vmatpush1.msra.mxu0 0.0
    %2179 = vmatprep.subr.mxu0 0.0
    %2180 = vmatpush1.msra.mxu0 0.0
    %2181 = vmatprep.subr.mxu0 0.0
    %2182 = vmatpush1.msra.mxu0 0.0
    %2183 = vmatprep.subr.mxu0 0.0
    %2184 = vmatpush1.msra.mxu0 0.0
    %2185 = vmatprep.subr.mxu0 0.0
    %2186 = vmatpush1.msra.mxu0 0.0
    %2187 = vmatprep.subr.mxu0 0.0
    %2188 = vmatpush1.msra.mxu0 0.0
    %2189 = vmatprep.subr.mxu0 0.0
    %2190 = vmatpush1.msra.mxu0 0.0
    %2191 = vmatprep.subr.mxu0 0.0
    %2192 = vmatpush1.msra.mxu0 0.0
    %2193 = vmatprep.subr.mxu0 0.0
    %2194 = vmatpush1.msra.mxu0 0.0
    %2195 = vmatprep.subr.mxu0 0.0
    %2196 = vmatpush1.msra.mxu0 0.0
    %2197 = vmatprep.subr.mxu0 0.0
    %2198 = vmatpush1.msra.mxu0 0.0
    %2199 = vmatprep.subr.mxu0 0.0
    %2200 = vmatpush1.msra.mxu0 0.0
    %2201 = vmatprep.subr.mxu0 0.0
    %2202 = vmatpush1.msra.mxu0 0.0
    %2203 = vmatprep.subr.mxu0 0.0
    %2204 = vmatpush1.msra.mxu0 0.0
    %2205 = vmatprep.subr.mxu0 0.0
    %2206 = vmatpush1.msra.mxu0 0.0
    %2207 = vmatprep.subr.mxu0 0.0
    %2208 = vmatpush1.msra.mxu0 0.0
    %2209 = vmatprep.subr.mxu0 0.0
    %2210 = vmatpush1.msra.mxu0 0.0
    %2211 = vmatprep.subr.mxu0 0.0
    %2212 = vmatpush1.msra.mxu0 0.0
    %2213 = vmatprep.subr.mxu0 0.0
    %2214 = vmatpush1.msra.mxu0 0.0
    %2215 = vmatprep.subr.mxu0 0.0
    %2216 = vmatpush1.msra.mxu0 0.0
    %2217 = vmatprep.subr.mxu0 0.0
    %2218 = vmatpush1.msra.mxu0 0.0
    %2219 = vmatprep.subr.mxu0 0.0
    %2220 = vmatpush1.msra.mxu0 0.0
    %2221 = vmatprep.subr.mxu0 0.0
    %2222 = vmatpush1.msra.mxu0 0.0
    %2223 = vmatprep.subr.mxu0 0.0
    %2224 = vmatpush1.msra.mxu0 0.0
    %2225 = vmatprep.subr.mxu0 0.0
    %2226 = vmatpush1.msra.mxu0 0.0
    %2227 = vmatprep.mubr.f32.mxu0 0.0
    %2228 = vmatmul.mubr.f32.gmra.mrb[0].mxu0 %v727
    %v2229 = vpop.f32.mrb[0].mxu0
    %v2230 = vadd.f32 0.0, %v2229
    %v2231 = vpop.f32.mrb[0].mxu0
    %2232 = vmatprep.mubr.f32.mxu0 0.0
    %2233 = vmatmul.mubr.f32.gmra.mrb[0].mxu0 %v730
    %v2234 = vpop.f32.mrb[0].mxu0
    %v2235 = vadd.f32 0.0, %v2234
    %v2236 = vpop.f32.mrb[0].mxu0
    %2237 = vdwg.mxu0
    %2238 = vmatprep.subr.mxu0 0.0
    %2239 = vmatpush1.msra.mxu0 %v710
    %2240 = vmatprep.subr.mxu0 0.0
    %2241 = vmatpush1.msra.mxu0 %v711
    %2242 = vmatprep.subr.mxu0 0.0
    %2243 = vmatpush1.msra.mxu0 %v712
    %2244 = vmatprep.subr.mxu0 0.0
    %2245 = vmatpush1.msra.mxu0 %v713
    %2246 = vmatprep.subr.mxu0 0.0
    %2247 = vmatpush1.msra.mxu0 0.0
    %2248 = vmatprep.subr.mxu0 0.0
    %2249 = vmatpush1.msra.mxu0 0.0
    %2250 = vmatprep.subr.mxu0 0.0
    %2251 = vmatpush1.msra.mxu0 0.0
    %2252 = vmatprep.subr.mxu0 0.0
    %2253 = vmatpush1.msra.mxu0 0.0
    %2254 = vmatprep.subr.mxu0 0.0
    %2255 = vmatpush1.msra.mxu0 0.0
    %2256 = vmatprep.subr.mxu0 0.0
    %2257 = vmatpush1.msra.mxu0 0.0
    %2258 = vmatprep.subr.mxu0 0.0
    %2259 = vmatpush1.msra.mxu0 0.0
    %2260 = vmatprep.subr.mxu0 0.0
    %2261 = vmatpush1.msra.mxu0 0.0
    %2262 = vmatprep.subr.mxu0 0.0
    %2263 = vmatpush1.msra.mxu0 0.0
    %2264 = vmatprep.subr.mxu0 0.0
    %2265 = vmatpush1.msra.mxu0 0.0
    %2266 = vmatprep.subr.mxu0 0.0
    %2267 = vmatpush1.msra.mxu0 0.0
    %2268 = vmatprep.subr.mxu0 0.0
    %2269 = vmatpush1.msra.mxu0 0.0
    %2270 = vmatprep.subr.mxu0 0.0
    %2271 = vmatpush1.msra.mxu0 0.0
    %2272 = vmatprep.subr.mxu0 0.0
    %2273 = vmatpush1.msra.mxu0 0.0
    %2274 = vmatprep.subr.mxu0 0.0
    %2275 = vmatpush1.msra.mxu0 0.0
    %2276 = vmatprep.subr.mxu0 0.0
    %2277 = vmatpush1.msra.mxu0 0.0
    %2278 = vmatprep.subr.mxu0 0.0
    %2279 = vmatpush1.msra.mxu0 0.0
    %2280 = vmatprep.subr.mxu0 0.0
    %2281 = vmatpush1.msra.mxu0 0.0
    %2282 = vmatprep.subr.mxu0 0.0
    %2283 = vmatpush1.msra.mxu0 0.0
    %2284 = vmatprep.subr.mxu0 0.0
    %2285 = vmatpush1.msra.mxu0 0.0
    %2286 = vmatprep.subr.mxu0 0.0
    %2287 = vmatpush1.msra.mxu0 0.0
    %2288 = vmatprep.subr.mxu0 0.0
    %2289 = vmatpush1.msra.mxu0 0.0
    %2290 = vmatprep.subr.mxu0 0.0
    %2291 = vmatpush1.msra.mxu0 0.0
    %2292 = vmatprep.subr.mxu0 0.0
    %2293 = vmatpush1.msra.mxu0 0.0
    %2294 = vmatprep.subr.mxu0 0.0
    %2295 = vmatpush1.msra.mxu0 0.0
    %2296 = vmatprep.subr.mxu0 0.0
    %2297 = vmatpush1.msra.mxu0 0.0
    %2298 = vmatprep.subr.mxu0 0.0
    %2299 = vmatpush1.msra.mxu0 0.0
    %2300 = vmatprep.subr.mxu0 0.0
    %2301 = vmatpush1.msra.mxu0 0.0
    %2302 = vmatprep.mubr.f32.mxu0 0.0
    %2303 = vmatmul.mubr.f32.gmra.mrb[0].mxu0 %v1033
    %v2304 = vpop.f32.mrb[0].mxu0
    %v2305 = vadd.f32 0.0, %v2304
    %v2306 = vpop.f32.mrb[0].mxu0
    %2307 = vmatprep.mubr.f32.mxu0 0.0
    %2308 = vmatmul.mubr.f32.gmra.mrb[0].mxu0 %v1036
    %v2309 = vpop.f32.mrb[0].mxu0
    %v2310 = vadd.f32 0.0, %v2309
    %v2311 = vpop.f32.mrb[0].mxu0
    %2312 = vdwg.mxu0
    %2313 = vmatprep.subr.mxu0 0.0
    %2314 = vmatpush1.msra.mxu0 %v714
    %2315 = vmatprep.subr.mxu0 0.0
    %2316 = vmatpush1.msra.mxu0 %v715
    %2317 = vmatprep.subr.mxu0 0.0
    %2318 = vmatpush1.msra.mxu0 %v716
    %2319 = vmatprep.subr.mxu0 0.0
    %2320 = vmatpush1.msra.mxu0 %v717
    %2321 = vmatprep.subr.mxu0 0.0
    %2322 = vmatpush1.msra.mxu0 0.0
    %2323 = vmatprep.subr.mxu0 0.0
    %2324 = vmatpush1.msra.mxu0 0.0
    %2325 = vmatprep.subr.mxu0 0.0
    %2326 = vmatpush1.msra.mxu0 0.0
    %2327 = vmatprep.subr.mxu0 0.0
    %2328 = vmatpush1.msra.mxu0 0.0
    %2329 = vmatprep.subr.mxu0 0.0
    %2330 = vmatpush1.msra.mxu0 0.0
    %2331 = vmatprep.subr.mxu0 0.0
    %2332 = vmatpush1.msra.mxu0 0.0
    %2333 = vmatprep.subr.mxu0 0.0
    %2334 = vmatpush1.msra.mxu0 0.0
    %2335 = vmatprep.subr.mxu0 0.0
    %2336 = vmatpush1.msra.mxu0 0.0
    %2337 = vmatprep.subr.mxu0 0.0
    %2338 = vmatpush1.msra.mxu0 0.0
    %2339 = vmatprep.subr.mxu0 0.0
    %2340 = vmatpush1.msra.mxu0 0.0
    %2341 = vmatprep.subr.mxu0 0.0
    %2342 = vmatpush1.msra.mxu0 0.0
    %2343 = vmatprep.subr.mxu0 0.0
    %2344 = vmatpush1.msra.mxu0 0.0
    %2345 = vmatprep.subr.mxu0 0.0
    %2346 = vmatpush1.msra.mxu0 0.0
    %2347 = vmatprep.subr.mxu0 0.0
    %2348 = vmatpush1.msra.mxu0 0.0
    %2349 = vmatprep.subr.mxu0 0.0
    %2350 = vmatpush1.msra.mxu0 0.0
    %2351 = vmatprep.subr.mxu0 0.0
    %2352 = vmatpush1.msra.mxu0 0.0
    %2353 = vmatprep.subr.mxu0 0.0
    %2354 = vmatpush1.msra.mxu0 0.0
    %2355 = vmatprep.subr.mxu0 0.0
    %2356 = vmatpush1.msra.mxu0 0.0
    %2357 = vmatprep.subr.mxu0 0.0
    %2358 = vmatpush1.msra.mxu0 0.0
    %2359 = vmatprep.subr.mxu0 0.0
    %2360 = vmatpush1.msra.mxu0 0.0
    %2361 = vmatprep.subr.mxu0 0.0
    %2362 = vmatpush1.msra.mxu0 0.0
    %2363 = vmatprep.subr.mxu0 0.0
    %2364 = vmatpush1.msra.mxu0 0.0
    %2365 = vmatprep.subr.mxu0 0.0
    %2366 = vmatpush1.msra.mxu0 0.0
    %2367 = vmatprep.subr.mxu0 0.0
    %2368 = vmatpush1.msra.mxu0 0.0
    %2369 = vmatprep.subr.mxu0 0.0
    %2370 = vmatpush1.msra.mxu0 0.0
    %2371 = vmatprep.subr.mxu0 0.0
    %2372 = vmatpush1.msra.mxu0 0.0
    %2373 = vmatprep.subr.mxu0 0.0
    %2374 = vmatpush1.msra.mxu0 0.0
    %2375 = vmatprep.subr.mxu0 0.0
    %2376 = vmatpush1.msra.mxu0 0.0
    %2377 = vmatprep.mubr.f32.mxu0 0.0
    %2378 = vmatmul.mubr.f32.gmra.mrb[0].mxu0 %v1033
    %v2379 = vpop.f32.mrb[0].mxu0
    %v2380 = vadd.f32 0.0, %v2379
    %v2381 = vpop.f32.mrb[0].mxu0
    %2382 = vmatprep.mubr.f32.mxu0 0.0
    %2383 = vmatmul.mubr.f32.gmra.mrb[0].mxu0 %v1036
    %v2384 = vpop.f32.mrb[0].mxu0
    %v2385 = vadd.f32 0.0, %v2384
    %v2386 = vpop.f32.mrb[0].mxu0
    %2387 = vdwg.mxu0
    %2388 = vmatprep.subr.mxu0 0.0
    %2389 = vmatpush1.msra.mxu0 %v718
    %2390 = vmatprep.subr.mxu0 0.0
    %2391 = vmatpush1.msra.mxu0 %v719
    %2392 = vmatprep.subr.mxu0 0.0
    %2393 = vmatpush1.msra.mxu0 %v720
    %2394 = vmatprep.subr.mxu0 0.0
    %2395 = vmatpush1.msra.mxu0 %v721
    %2396 = vmatprep.subr.mxu0 0.0
    %2397 = vmatpush1.msra.mxu0 0.0
    %2398 = vmatprep.subr.mxu0 0.0
    %2399 = vmatpush1.msra.mxu0 0.0
    %2400 = vmatprep.subr.mxu0 0.0
    %2401 = vmatpush1.msra.mxu0 0.0
    %2402 = vmatprep.subr.mxu0 0.0
    %2403 = vmatpush1.msra.mxu0 0.0
    %2404 = vmatprep.subr.mxu0 0.0
    %2405 = vmatpush1.msra.mxu0 0.0
    %2406 = vmatprep.subr.mxu0 0.0
    %2407 = vmatpush1.msra.mxu0 0.0
    %2408 = vmatprep.subr.mxu0 0.0
    %2409 = vmatpush1.msra.mxu0 0.0
    %2410 = vmatprep.subr.mxu0 0.0
    %2411 = vmatpush1.msra.mxu0 0.0
    %2412 = vmatprep.subr.mxu0 0.0
    %2413 = vmatpush1.msra.mxu0 0.0
    %2414 = vmatprep.subr.mxu0 0.0
    %2415 = vmatpush1.msra.mxu0 0.0
    %2416 = vmatprep.subr.mxu0 0.0
    %2417 = vmatpush1.msra.mxu0 0.0
    %2418 = vmatprep.subr.mxu0 0.0
    %2419 = vmatpush1.msra.mxu0 0.0
    %2420 = vmatprep.subr.mxu0 0.0
    %2421 = vmatpush1.msra.mxu0 0.0
    %2422 = vmatprep.subr.mxu0 0.0
    %2423 = vmatpush1.msra.mxu0 0.0
    %2424 = vmatprep.subr.mxu0 0.0
    %2425 = vmatpush1.msra.mxu0 0.0
    %2426 = vmatprep.subr.mxu0 0.0
    %2427 = vmatpush1.msra.mxu0 0.0
    %2428 = vmatprep.subr.mxu0 0.0
    %2429 = vmatpush1.msra.mxu0 0.0
    %2430 = vmatprep.subr.mxu0 0.0
    %2431 = vmatpush1.msra.mxu0 0.0
    %2432 = vmatprep.subr.mxu0 0.0
    %2433 = vmatpush1.msra.mxu0 0.0
    %2434 = vmatprep.subr.mxu0 0.0
    %2435 = vmatpush1.msra.mxu0 0.0
    %2436 = vmatprep.subr.mxu0 0.0
    %2437 = vmatpush1.msra.mxu0 0.0
    %2438 = vmatprep.subr.mxu0 0.0
    %2439 = vmatpush1.msra.mxu0 0.0
    %2440 = vmatprep.subr.mxu0 0.0
    %2441 = vmatpush1.msra.mxu0 0.0
    %2442 = vmatprep.subr.mxu0 0.0
    %2443 = vmatpush1.msra.mxu0 0.0
    %2444 = vmatprep.subr.mxu0 0.0
    %2445 = vmatpush1.msra.mxu0 0.0
    %2446 = vmatprep.subr.mxu0 0.0
    %2447 = vmatpush1.msra.mxu0 0.0
    %2448 = vmatprep.subr.mxu0 0.0
    %2449 = vmatpush1.msra.mxu0 0.0
    %2450 = vmatprep.subr.mxu0 0.0
    %2451 = vmatpush1.msra.mxu0 0.0
    %2452 = vmatprep.mubr.f32.mxu0 0.0
    %2453 = vmatmul.mubr.f32.gmra.mrb[0].mxu0 %v1033
    %v2454 = vpop.f32.mrb[0].mxu0
    %v2455 = vadd.f32 0.0, %v2454
    %v2456 = vpop.f32.mrb[0].mxu0
    %2457 = vmatprep.mubr.f32.mxu0 0.0
    %2458 = vmatmul.mubr.f32.gmra.mrb[0].mxu0 %v1036
    %v2459 = vpop.f32.mrb[0].mxu0
    %v2460 = vadd.f32 0.0, %v2459
    %v2461 = vpop.f32.mrb[0].mxu0
    %2462 = vdwg.mxu0
    %2463 = vmatprep.subr.mxu0 0.0
    %2464 = vmatpush1.msra.mxu0 %v722
    %2465 = vmatprep.subr.mxu0 0.0
    %2466 = vmatpush1.msra.mxu0 %v723
    %2467 = vmatprep.subr.mxu0 0.0
    %2468 = vmatpush1.msra.mxu0 %v724
    %2469 = vmatprep.subr.mxu0 0.0
    %2470 = vmatpush1.msra.mxu0 %v725
    %2471 = vmatprep.subr.mxu0 0.0
    %2472 = vmatpush1.msra.mxu0 0.0
    %2473 = vmatprep.subr.mxu0 0.0
    %2474 = vmatpush1.msra.mxu0 0.0
    %2475 = vmatprep.subr.mxu0 0.0
    %2476 = vmatpush1.msra.mxu0 0.0
    %2477 = vmatprep.subr.mxu0 0.0
    %2478 = vmatpush1.msra.mxu0 0.0
    %2479 = vmatprep.subr.mxu0 0.0
    %2480 = vmatpush1.msra.mxu0 0.0
    %2481 = vmatprep.subr.mxu0 0.0
    %2482 = vmatpush1.msra.mxu0 0.0
    %2483 = vmatprep.subr.mxu0 0.0
    %2484 = vmatpush1.msra.mxu0 0.0
    %2485 = vmatprep.subr.mxu0 0.0
    %2486 = vmatpush1.msra.mxu0 0.0
    %2487 = vmatprep.subr.mxu0 0.0
    %2488 = vmatpush1.msra.mxu0 0.0
    %2489 = vmatprep.subr.mxu0 0.0
    %2490 = vmatpush1.msra.mxu0 0.0
    %2491 = vmatprep.subr.mxu0 0.0
    %2492 = vmatpush1.msra.mxu0 0.0
    %2493 = vmatprep.subr.mxu0 0.0
    %2494 = vmatpush1.msra.mxu0 0.0
    %2495 = vmatprep.subr.mxu0 0.0
    %2496 = vmatpush1.msra.mxu0 0.0
    %2497 = vmatprep.subr.mxu0 0.0
    %2498 = vmatpush1.msra.mxu0 0.0
    %2499 = vmatprep.subr.mxu0 0.0
    %2500 = vmatpush1.msra.mxu0 0.0
    %2501 = vmatprep.subr.mxu0 0.0
    %2502 = vmatpush1.msra.mxu0 0.0
    %2503 = vmatprep.subr.mxu0 0.0
    %2504 = vmatpush1.msra.mxu0 0.0
    %2505 = vmatprep.subr.mxu0 0.0
    %2506 = vmatpush1.msra.mxu0 0.0
    %2507 = vmatprep.subr.mxu0 0.0
    %2508 = vmatpush1.msra.mxu0 0.0
    %2509 = vmatprep.subr.mxu0 0.0
    %2510 = vmatpush1.msra.mxu0 0.0
    %2511 = vmatprep.subr.mxu0 0.0
    %2512 = vmatpush1.msra.mxu0 0.0
    %2513 = vmatprep.subr.mxu0 0.0
    %2514 = vmatpush1.msra.mxu0 0.0
    %2515 = vmatprep.subr.mxu0 0.0
    %2516 = vmatpush1.msra.mxu0 0.0
    %2517 = vmatprep.subr.mxu0 0.0
    %2518 = vmatpush1.msra.mxu0 0.0
    %2519 = vmatprep.subr.mxu0 0.0
    %2520 = vmatpush1.msra.mxu0 0.0
    %2521 = vmatprep.subr.mxu0 0.0
    %2522 = vmatpush1.msra.mxu0 0.0
    %2523 = vmatprep.subr.mxu0 0.0
    %2524 = vmatpush1.msra.mxu0 0.0
    %2525 = vmatprep.subr.mxu0 0.0
    %2526 = vmatpush1.msra.mxu0 0.0
    %2527 = vmatprep.mubr.f32.mxu0 0.0
    %2528 = vmatmul.mubr.f32.gmra.mrb[0].mxu0 %v1033
    %v2529 = vpop.f32.mrb[0].mxu0
    %v2530 = vadd.f32 0.0, %v2529
    %v2531 = vpop.f32.mrb[0].mxu0
    %2532 = vmatprep.mubr.f32.mxu0 0.0
    %2533 = vmatmul.mubr.f32.gmra.mrb[0].mxu0 %v1036
    %v2534 = vpop.f32.mrb[0].mxu0
    %v2535 = vadd.f32 0.0, %v2534
    %v2536 = vpop.f32.mrb[0].mxu0
    %2537 = vdwg.mxu0
    %v2538 = vmul.f32 %v799, 0.35355338
    %v2539 = vmul.f32 %v804, 0.35355338
    %v2540 = vmul.f32 %v874, 0.35355338
    %v2541 = vmul.f32 %v879, 0.35355338
    %v2542 = vmul.f32 %v949, 0.35355338
    %v2543 = vmul.f32 %v954, 0.35355338
    %v2544 = vmul.f32 %v1024, 0.35355338
    %v2545 = vmul.f32 %v1029, 0.35355338
    %v2546 = vmul.f32 %v1105, 0.35355338
    %v2547 = vmul.f32 %v1110, 0.35355338
    %v2548 = vmul.f32 %v1180, 0.35355338
    %v2549 = vmul.f32 %v1185, 0.35355338
    %v2550 = vmul.f32 %v1255, 0.35355338
    %v2551 = vmul.f32 %v1260, 0.35355338
    %v2552 = vmul.f32 %v1330, 0.35355338
    %v2553 = vmul.f32 %v1335, 0.35355338
    %vm2554 = vcmask 64512
    %v2556 = vsel %vm2554, %v2538, 0
    %v2559 = vsel %vm2554, %v2539, 0
    %v2562 = vsel %vm2554, %v1405, 0
    %v2565 = vsel %vm2554, %v1410, 0
    %2567 = vmatprep.subr.mxu0 0.0
    %2568 = vmatpush1.xpose.msra.mxu0 %v2562
    %2569 = vmatprep.subr.mxu0 0.0
    %2570 = vmatpush1.xpose.msra.mxu0 %v2565
    %2571 = vmatprep.subr.mxu0 0.0
    %2572 = vmatpush1.xpose.msra.mxu0 0.0
    %2573 = vmatprep.subr.mxu0 0.0
    %2574 = vmatpush1.xpose.msra.mxu0 0.0
    %2575 = vmatprep.subr.mxu0 0.0
    %2576 = vmatpush1.xpose.msra.mxu0 0.0
    %2577 = vmatprep.subr.mxu0 0.0
    %2578 = vmatpush1.xpose.msra.mxu0 0.0
    %2579 = vmatprep.subr.mxu0 0.0
    %2580 = vmatpush1.xpose.msra.mxu0 0.0
    %2581 = vmatprep.subr.mxu0 0.0
    %2582 = vmatpush1.xpose.msra.mxu0 0.0
    %2583 = vmatprep.subr.mxu0 0.0
    %2584 = vmatpush1.xpose.msra.mxu0 0.0
    %2585 = vmatprep.subr.mxu0 0.0
    %2586 = vmatpush1.xpose.msra.mxu0 0.0
    %2587 = vmatprep.subr.mxu0 0.0
    %2588 = vmatpush1.xpose.msra.mxu0 0.0
    %2589 = vmatprep.subr.mxu0 0.0
    %2590 = vmatpush1.xpose.msra.mxu0 0.0
    %2591 = vmatprep.subr.mxu0 0.0
    %2592 = vmatpush1.xpose.msra.mxu0 0.0
    %2593 = vmatprep.subr.mxu0 0.0
    %2594 = vmatpush1.xpose.msra.mxu0 0.0
    %2595 = vmatprep.subr.mxu0 0.0
    %2596 = vmatpush1.xpose.msra.mxu0 0.0
    %2597 = vmatprep.subr.mxu0 0.0
    %2598 = vmatpush1.xpose.msra.mxu0 0.0
    %2599 = vmatprep.subr.mxu0 0.0
    %2600 = vmatpush1.xpose.msra.mxu0 0.0
    %2601 = vmatprep.subr.mxu0 0.0
    %2602 = vmatpush1.xpose.msra.mxu0 0.0
    %2603 = vmatprep.subr.mxu0 0.0
    %2604 = vmatpush1.xpose.msra.mxu0 0.0
    %2605 = vmatprep.subr.mxu0 0.0
    %2606 = vmatpush1.xpose.msra.mxu0 0.0
    %2607 = vmatprep.subr.mxu0 0.0
    %2608 = vmatpush1.xpose.msra.mxu0 0.0
    %2609 = vmatprep.subr.mxu0 0.0
    %2610 = vmatpush1.xpose.msra.mxu0 0.0
    %2611 = vmatprep.subr.mxu0 0.0
    %2612 = vmatpush1.xpose.msra.mxu0 0.0
    %2613 = vmatprep.subr.mxu0 0.0
    %2614 = vmatpush1.xpose.msra.mxu0 0.0
    %2615 = vmatprep.subr.mxu0 0.0
    %2616 = vmatpush1.xpose.msra.mxu0 0.0
    %2617 = vmatprep.subr.mxu0 0.0
    %2618 = vmatpush1.xpose.msra.mxu0 0.0
    %2619 = vmatprep.subr.mxu0 0.0
    %2620 = vmatpush1.xpose.msra.mxu0 0.0
    %2621 = vmatprep.subr.mxu0 0.0
    %2622 = vmatpush1.xpose.msra.mxu0 0.0
    %2623 = vmatprep.subr.mxu0 0.0
    %2624 = vmatpush1.xpose.msra.mxu0 0.0
    %2625 = vmatprep.subr.mxu0 0.0
    %2626 = vmatpush1.xpose.msra.mxu0 0.0
    %2627 = vmatprep.subr.mxu0 0.0
    %2628 = vmatpush1.xpose.msra.mxu0 0.0
    %2629 = vmatprep.subr.mxu0 0.0
    %2630 = vmatpush1.xpose.msra.mxu0 0.0
    %2631 = vmatprep.mubr.f32.mxu0 0.0
    %2632 = vmatmul.mubr.f32.gmra.mrb[0].mxu0 %v2556
    %v2633 = vpop.f32.mrb[0].mxu0
    %v2634 = vadd.f32 %v603, %v2633
    %v2635 = vpop.f32.mrb[0].mxu0
    %2636 = vmatprep.mubr.f32.mxu0 0.0
    %2637 = vmatmul.mubr.f32.gmra.mrb[0].mxu0 %v2559
    %v2638 = vpop.f32.mrb[0].mxu0
    %v2639 = vadd.f32 %v603, %v2638
    %v2640 = vpop.f32.mrb[0].mxu0
    %2641 = vdwg.mxu0
    %v2643 = vsel %vm2554, %v2540, 0
    %v2646 = vsel %vm2554, %v2541, 0
    %v2649 = vsel %vm2554, %v1480, 0
    %v2652 = vsel %vm2554, %v1485, 0
    %2654 = vmatprep.subr.mxu0 0.0
    %2655 = vmatpush1.xpose.msra.mxu0 %v2649
    %2656 = vmatprep.subr.mxu0 0.0
    %2657 = vmatpush1.xpose.msra.mxu0 %v2652
    %2658 = vmatprep.subr.mxu0 0.0
    %2659 = vmatpush1.xpose.msra.mxu0 0.0
    %2660 = vmatprep.subr.mxu0 0.0
    %2661 = vmatpush1.xpose.msra.mxu0 0.0
    %2662 = vmatprep.subr.mxu0 0.0
    %2663 = vmatpush1.xpose.msra.mxu0 0.0
    %2664 = vmatprep.subr.mxu0 0.0
    %2665 = vmatpush1.xpose.msra.mxu0 0.0
    %2666 = vmatprep.subr.mxu0 0.0
    %2667 = vmatpush1.xpose.msra.mxu0 0.0
    %2668 = vmatprep.subr.mxu0 0.0
    %2669 = vmatpush1.xpose.msra.mxu0 0.0
    %2670 = vmatprep.subr.mxu0 0.0
    %2671 = vmatpush1.xpose.msra.mxu0 0.0
    %2672 = vmatprep.subr.mxu0 0.0
    %2673 = vmatpush1.xpose.msra.mxu0 0.0
    %2674 = vmatprep.subr.mxu0 0.0
    %2675 = vmatpush1.xpose.msra.mxu0 0.0
    %2676 = vmatprep.subr.mxu0 0.0
    %2677 = vmatpush1.xpose.msra.mxu0 0.0
    %2678 = vmatprep.subr.mxu0 0.0
    %2679 = vmatpush1.xpose.msra.mxu0 0.0
    %2680 = vmatprep.subr.mxu0 0.0
    %2681 = vmatpush1.xpose.msra.mxu0 0.0
    %2682 = vmatprep.subr.mxu0 0.0
    %2683 = vmatpush1.xpose.msra.mxu0 0.0
    %2684 = vmatprep.subr.mxu0 0.0
    %2685 = vmatpush1.xpose.msra.mxu0 0.0
    %2686 = vmatprep.subr.mxu0 0.0
    %2687 = vmatpush1.xpose.msra.mxu0 0.0
    %2688 = vmatprep.subr.mxu0 0.0
    %2689 = vmatpush1.xpose.msra.mxu0 0.0
    %2690 = vmatprep.subr.mxu0 0.0
    %2691 = vmatpush1.xpose.msra.mxu0 0.0
    %2692 = vmatprep.subr.mxu0 0.0
    %2693 = vmatpush1.xpose.msra.mxu0 0.0
    %2694 = vmatprep.subr.mxu0 0.0
    %2695 = vmatpush1.xpose.msra.mxu0 0.0
    %2696 = vmatprep.subr.mxu0 0.0
    %2697 = vmatpush1.xpose.msra.mxu0 0.0
    %2698 = vmatprep.subr.mxu0 0.0
    %2699 = vmatpush1.xpose.msra.mxu0 0.0
    %2700 = vmatprep.subr.mxu0 0.0
    %2701 = vmatpush1.xpose.msra.mxu0 0.0
    %2702 = vmatprep.subr.mxu0 0.0
    %2703 = vmatpush1.xpose.msra.mxu0 0.0
    %2704 = vmatprep.subr.mxu0 0.0
    %2705 = vmatpush1.xpose.msra.mxu0 0.0
    %2706 = vmatprep.subr.mxu0 0.0
    %2707 = vmatpush1.xpose.msra.mxu0 0.0
    %2708 = vmatprep.subr.mxu0 0.0
    %2709 = vmatpush1.xpose.msra.mxu0 0.0
    %2710 = vmatprep.subr.mxu0 0.0
    %2711 = vmatpush1.xpose.msra.mxu0 0.0
    %2712 = vmatprep.subr.mxu0 0.0
    %2713 = vmatpush1.xpose.msra.mxu0 0.0
    %2714 = vmatprep.subr.mxu0 0.0
    %2715 = vmatpush1.xpose.msra.mxu0 0.0
    %2716 = vmatprep.subr.mxu0 0.0
    %2717 = vmatpush1.xpose.msra.mxu0 0.0
    %2718 = vmatprep.mubr.f32.mxu0 0.0
    %2719 = vmatmul.mubr.f32.gmra.mrb[0].mxu0 %v2643
    %v2720 = vpop.f32.mrb[0].mxu0
    %v2721 = vadd.f32 %v603, %v2720
    %v2722 = vpop.f32.mrb[0].mxu0
    %2723 = vmatprep.mubr.f32.mxu0 0.0
    %2724 = vmatmul.mubr.f32.gmra.mrb[0].mxu0 %v2646
    %v2725 = vpop.f32.mrb[0].mxu0
    %v2726 = vadd.f32 %v603, %v2725
    %v2727 = vpop.f32.mrb[0].mxu0
    %2728 = vdwg.mxu0
    %v2730 = vsel %vm2554, %v2542, 0
    %v2733 = vsel %vm2554, %v2543, 0
    %v2736 = vsel %vm2554, %v1555, 0
    %v2739 = vsel %vm2554, %v1560, 0
    %2741 = vmatprep.subr.mxu0 0.0
    %2742 = vmatpush1.xpose.msra.mxu0 %v2736
    %2743 = vmatprep.subr.mxu0 0.0
    %2744 = vmatpush1.xpose.msra.mxu0 %v2739
    %2745 = vmatprep.subr.mxu0 0.0
    %2746 = vmatpush1.xpose.msra.mxu0 0.0
    %2747 = vmatprep.subr.mxu0 0.0
    %2748 = vmatpush1.xpose.msra.mxu0 0.0
    %2749 = vmatprep.subr.mxu0 0.0
    %2750 = vmatpush1.xpose.msra.mxu0 0.0
    %2751 = vmatprep.subr.mxu0 0.0
    %2752 = vmatpush1.xpose.msra.mxu0 0.0
    %2753 = vmatprep.subr.mxu0 0.0
    %2754 = vmatpush1.xpose.msra.mxu0 0.0
    %2755 = vmatprep.subr.mxu0 0.0
    %2756 = vmatpush1.xpose.msra.mxu0 0.0
    %2757 = vmatprep.subr.mxu0 0.0
    %2758 = vmatpush1.xpose.msra.mxu0 0.0
    %2759 = vmatprep.subr.mxu0 0.0
    %2760 = vmatpush1.xpose.msra.mxu0 0.0
    %2761 = vmatprep.subr.mxu0 0.0
    %2762 = vmatpush1.xpose.msra.mxu0 0.0
    %2763 = vmatprep.subr.mxu0 0.0
    %2764 = vmatpush1.xpose.msra.mxu0 0.0
    %2765 = vmatprep.subr.mxu0 0.0
    %2766 = vmatpush1.xpose.msra.mxu0 0.0
    %2767 = vmatprep.subr.mxu0 0.0
    %2768 = vmatpush1.xpose.msra.mxu0 0.0
    %2769 = vmatprep.subr.mxu0 0.0
    %2770 = vmatpush1.xpose.msra.mxu0 0.0
    %2771 = vmatprep.subr.mxu0 0.0
    %2772 = vmatpush1.xpose.msra.mxu0 0.0
    %2773 = vmatprep.subr.mxu0 0.0
    %2774 = vmatpush1.xpose.msra.mxu0 0.0
    %2775 = vmatprep.subr.mxu0 0.0
    %2776 = vmatpush1.xpose.msra.mxu0 0.0
    %2777 = vmatprep.subr.mxu0 0.0
    %2778 = vmatpush1.xpose.msra.mxu0 0.0
    %2779 = vmatprep.subr.mxu0 0.0
    %2780 = vmatpush1.xpose.msra.mxu0 0.0
    %2781 = vmatprep.subr.mxu0 0.0
    %2782 = vmatpush1.xpose.msra.mxu0 0.0
    %2783 = vmatprep.subr.mxu0 0.0
    %2784 = vmatpush1.xpose.msra.mxu0 0.0
    %2785 = vmatprep.subr.mxu0 0.0
    %2786 = vmatpush1.xpose.msra.mxu0 0.0
    %2787 = vmatprep.subr.mxu0 0.0
    %2788 = vmatpush1.xpose.msra.mxu0 0.0
    %2789 = vmatprep.subr.mxu0 0.0
    %2790 = vmatpush1.xpose.msra.mxu0 0.0
    %2791 = vmatprep.subr.mxu0 0.0
    %2792 = vmatpush1.xpose.msra.mxu0 0.0
    %2793 = vmatprep.subr.mxu0 0.0
    %2794 = vmatpush1.xpose.msra.mxu0 0.0
    %2795 = vmatprep.subr.mxu0 0.0
    %2796 = vmatpush1.xpose.msra.mxu0 0.0
    %2797 = vmatprep.subr.mxu0 0.0
    %2798 = vmatpush1.xpose.msra.mxu0 0.0
    %2799 = vmatprep.subr.mxu0 0.0
    %2800 = vmatpush1.xpose.msra.mxu0 0.0
    %2801 = vmatprep.subr.mxu0 0.0
    %2802 = vmatpush1.xpose.msra.mxu0 0.0
    %2803 = vmatprep.subr.mxu0 0.0
    %2804 = vmatpush1.xpose.msra.mxu0 0.0
    %2805 = vmatprep.mubr.f32.mxu0 0.0
    %2806 = vmatmul.mubr.f32.gmra.mrb[0].mxu0 %v2730
    %v2807 = vpop.f32.mrb[0].mxu0
    %v2808 = vadd.f32 %v603, %v2807
    %v2809 = vpop.f32.mrb[0].mxu0
    %2810 = vmatprep.mubr.f32.mxu0 0.0
    %2811 = vmatmul.mubr.f32.gmra.mrb[0].mxu0 %v2733
    %v2812 = vpop.f32.mrb[0].mxu0
    %v2813 = vadd.f32 %v603, %v2812
    %v2814 = vpop.f32.mrb[0].mxu0
    %2815 = vdwg.mxu0
    %v2817 = vsel %vm2554, %v2544, 0
    %v2820 = vsel %vm2554, %v2545, 0
    %v2823 = vsel %vm2554, %v1630, 0
    %v2826 = vsel %vm2554, %v1635, 0
    %2828 = vmatprep.subr.mxu0 0.0
    %2829 = vmatpush1.xpose.msra.mxu0 %v2823
    %2830 = vmatprep.subr.mxu0 0.0
    %2831 = vmatpush1.xpose.msra.mxu0 %v2826
    %2832 = vmatprep.subr.mxu0 0.0
    %2833 = vmatpush1.xpose.msra.mxu0 0.0
    %2834 = vmatprep.subr.mxu0 0.0
    %2835 = vmatpush1.xpose.msra.mxu0 0.0
    %2836 = vmatprep.subr.mxu0 0.0
    %2837 = vmatpush1.xpose.msra.mxu0 0.0
    %2838 = vmatprep.subr.mxu0 0.0
    %2839 = vmatpush1.xpose.msra.mxu0 0.0
    %2840 = vmatprep.subr.mxu0 0.0
    %2841 = vmatpush1.xpose.msra.mxu0 0.0
    %2842 = vmatprep.subr.mxu0 0.0
    %2843 = vmatpush1.xpose.msra.mxu0 0.0
    %2844 = vmatprep.subr.mxu0 0.0
    %2845 = vmatpush1.xpose.msra.mxu0 0.0
    %2846 = vmatprep.subr.mxu0 0.0
    %2847 = vmatpush1.xpose.msra.mxu0 0.0
    %2848 = vmatprep.subr.mxu0 0.0
    %2849 = vmatpush1.xpose.msra.mxu0 0.0
    %2850 = vmatprep.subr.mxu0 0.0
    %2851 = vmatpush1.xpose.msra.mxu0 0.0
    %2852 = vmatprep.subr.mxu0 0.0
    %2853 = vmatpush1.xpose.msra.mxu0 0.0
    %2854 = vmatprep.subr.mxu0 0.0
    %2855 = vmatpush1.xpose.msra.mxu0 0.0
    %2856 = vmatprep.subr.mxu0 0.0
    %2857 = vmatpush1.xpose.msra.mxu0 0.0
    %2858 = vmatprep.subr.mxu0 0.0
    %2859 = vmatpush1.xpose.msra.mxu0 0.0
    %2860 = vmatprep.subr.mxu0 0.0
    %2861 = vmatpush1.xpose.msra.mxu0 0.0
    %2862 = vmatprep.subr.mxu0 0.0
    %2863 = vmatpush1.xpose.msra.mxu0 0.0
    %2864 = vmatprep.subr.mxu0 0.0
    %2865 = vmatpush1.xpose.msra.mxu0 0.0
    %2866 = vmatprep.subr.mxu0 0.0
    %2867 = vmatpush1.xpose.msra.mxu0 0.0
    %2868 = vmatprep.subr.mxu0 0.0
    %2869 = vmatpush1.xpose.msra.mxu0 0.0
    %2870 = vmatprep.subr.mxu0 0.0
    %2871 = vmatpush1.xpose.msra.mxu0 0.0
    %2872 = vmatprep.subr.mxu0 0.0
    %2873 = vmatpush1.xpose.msra.mxu0 0.0
    %2874 = vmatprep.subr.mxu0 0.0
    %2875 = vmatpush1.xpose.msra.mxu0 0.0
    %2876 = vmatprep.subr.mxu0 0.0
    %2877 = vmatpush1.xpose.msra.mxu0 0.0
    %2878 = vmatprep.subr.mxu0 0.0
    %2879 = vmatpush1.xpose.msra.mxu0 0.0
    %2880 = vmatprep.subr.mxu0 0.0
    %2881 = vmatpush1.xpose.msra.mxu0 0.0
    %2882 = vmatprep.subr.mxu0 0.0
    %2883 = vmatpush1.xpose.msra.mxu0 0.0
    %2884 = vmatprep.subr.mxu0 0.0
    %2885 = vmatpush1.xpose.msra.mxu0 0.0
    %2886 = vmatprep.subr.mxu0 0.0
    %2887 = vmatpush1.xpose.msra.mxu0 0.0
    %2888 = vmatprep.subr.mxu0 0.0
    %2889 = vmatpush1.xpose.msra.mxu0 0.0
    %2890 = vmatprep.subr.mxu0 0.0
    %2891 = vmatpush1.xpose.msra.mxu0 0.0
    %2892 = vmatprep.mubr.f32.mxu0 0.0
    %2893 = vmatmul.mubr.f32.gmra.mrb[0].mxu0 %v2817
    %v2894 = vpop.f32.mrb[0].mxu0
    %v2895 = vadd.f32 %v603, %v2894
    %v2896 = vpop.f32.mrb[0].mxu0
    %2897 = vmatprep.mubr.f32.mxu0 0.0
    %2898 = vmatmul.mubr.f32.gmra.mrb[0].mxu0 %v2820
    %v2899 = vpop.f32.mrb[0].mxu0
    %v2900 = vadd.f32 %v603, %v2899
    %v2901 = vpop.f32.mrb[0].mxu0
    %2902 = vdwg.mxu0
    %v2904 = vsel %vm2554, %v2546, 0
    %v2907 = vsel %vm2554, %v2547, 0
    %v2910 = vsel %vm2554, %v1705, 0
    %v2913 = vsel %vm2554, %v1710, 0
    %2915 = vmatprep.subr.mxu0 0.0
    %2916 = vmatpush1.xpose.msra.mxu0 %v2910
    %2917 = vmatprep.subr.mxu0 0.0
    %2918 = vmatpush1.xpose.msra.mxu0 %v2913
    %2919 = vmatprep.subr.mxu0 0.0
    %2920 = vmatpush1.xpose.msra.mxu0 0.0
    %2921 = vmatprep.subr.mxu0 0.0
    %2922 = vmatpush1.xpose.msra.mxu0 0.0
    %2923 = vmatprep.subr.mxu0 0.0
    %2924 = vmatpush1.xpose.msra.mxu0 0.0
    %2925 = vmatprep.subr.mxu0 0.0
    %2926 = vmatpush1.xpose.msra.mxu0 0.0
    %2927 = vmatprep.subr.mxu0 0.0
    %2928 = vmatpush1.xpose.msra.mxu0 0.0
    %2929 = vmatprep.subr.mxu0 0.0
    %2930 = vmatpush1.xpose.msra.mxu0 0.0
    %2931 = vmatprep.subr.mxu0 0.0
    %2932 = vmatpush1.xpose.msra.mxu0 0.0
    %2933 = vmatprep.subr.mxu0 0.0
    %2934 = vmatpush1.xpose.msra.mxu0 0.0
    %2935 = vmatprep.subr.mxu0 0.0
    %2936 = vmatpush1.xpose.msra.mxu0 0.0
    %2937 = vmatprep.subr.mxu0 0.0
    %2938 = vmatpush1.xpose.msra.mxu0 0.0
    %2939 = vmatprep.subr.mxu0 0.0
    %2940 = vmatpush1.xpose.msra.mxu0 0.0
    %2941 = vmatprep.subr.mxu0 0.0
    %2942 = vmatpush1.xpose.msra.mxu0 0.0
    %2943 = vmatprep.subr.mxu0 0.0
    %2944 = vmatpush1.xpose.msra.mxu0 0.0
    %2945 = vmatprep.subr.mxu0 0.0
    %2946 = vmatpush1.xpose.msra.mxu0 0.0
    %2947 = vmatprep.subr.mxu0 0.0
    %2948 = vmatpush1.xpose.msra.mxu0 0.0
    %2949 = vmatprep.subr.mxu0 0.0
    %2950 = vmatpush1.xpose.msra.mxu0 0.0
    %2951 = vmatprep.subr.mxu0 0.0
    %2952 = vmatpush1.xpose.msra.mxu0 0.0
    %2953 = vmatprep.subr.mxu0 0.0
    %2954 = vmatpush1.xpose.msra.mxu0 0.0
    %2955 = vmatprep.subr.mxu0 0.0
    %2956 = vmatpush1.xpose.msra.mxu0 0.0
    %2957 = vmatprep.subr.mxu0 0.0
    %2958 = vmatpush1.xpose.msra.mxu0 0.0
    %2959 = vmatprep.subr.mxu0 0.0
    %2960 = vmatpush1.xpose.msra.mxu0 0.0
    %2961 = vmatprep.subr.mxu0 0.0
    %2962 = vmatpush1.xpose.msra.mxu0 0.0
    %2963 = vmatprep.subr.mxu0 0.0
    %2964 = vmatpush1.xpose.msra.mxu0 0.0
    %2965 = vmatprep.subr.mxu0 0.0
    %2966 = vmatpush1.xpose.msra.mxu0 0.0
    %2967 = vmatprep.subr.mxu0 0.0
    %2968 = vmatpush1.xpose.msra.mxu0 0.0
    %2969 = vmatprep.subr.mxu0 0.0
    %2970 = vmatpush1.xpose.msra.mxu0 0.0
    %2971 = vmatprep.subr.mxu0 0.0
    %2972 = vmatpush1.xpose.msra.mxu0 0.0
    %2973 = vmatprep.subr.mxu0 0.0
    %2974 = vmatpush1.xpose.msra.mxu0 0.0
    %2975 = vmatprep.subr.mxu0 0.0
    %2976 = vmatpush1.xpose.msra.mxu0 0.0
    %2977 = vmatprep.subr.mxu0 0.0
    %2978 = vmatpush1.xpose.msra.mxu0 0.0
    %2979 = vmatprep.mubr.f32.mxu0 0.0
    %2980 = vmatmul.mubr.f32.gmra.mrb[0].mxu0 %v2904
    %v2981 = vpop.f32.mrb[0].mxu0
    %v2982 = vadd.f32 %v603, %v2981
    %v2983 = vpop.f32.mrb[0].mxu0
    %2984 = vmatprep.mubr.f32.mxu0 0.0
    %2985 = vmatmul.mubr.f32.gmra.mrb[0].mxu0 %v2907
    %v2986 = vpop.f32.mrb[0].mxu0
    %v2987 = vadd.f32 %v603, %v2986
    %v2988 = vpop.f32.mrb[0].mxu0
    %2989 = vdwg.mxu0
    %v2991 = vsel %vm2554, %v2548, 0
    %v2994 = vsel %vm2554, %v2549, 0
    %v2997 = vsel %vm2554, %v1780, 0
    %v3000 = vsel %vm2554, %v1785, 0
    %3002 = vmatprep.subr.mxu0 0.0
    %3003 = vmatpush1.xpose.msra.mxu0 %v2997
    %3004 = vmatprep.subr.mxu0 0.0
    %3005 = vmatpush1.xpose.msra.mxu0 %v3000
    %3006 = vmatprep.subr.mxu0 0.0
    %3007 = vmatpush1.xpose.msra.mxu0 0.0
    %3008 = vmatprep.subr.mxu0 0.0
    %3009 = vmatpush1.xpose.msra.mxu0 0.0
    %3010 = vmatprep.subr.mxu0 0.0
    %3011 = vmatpush1.xpose.msra.mxu0 0.0
    %3012 = vmatprep.subr.mxu0 0.0
    %3013 = vmatpush1.xpose.msra.mxu0 0.0
    %3014 = vmatprep.subr.mxu0 0.0
    %3015 = vmatpush1.xpose.msra.mxu0 0.0
    %3016 = vmatprep.subr.mxu0 0.0
    %3017 = vmatpush1.xpose.msra.mxu0 0.0
    %3018 = vmatprep.subr.mxu0 0.0
    %3019 = vmatpush1.xpose.msra.mxu0 0.0
    %3020 = vmatprep.subr.mxu0 0.0
    %3021 = vmatpush1.xpose.msra.mxu0 0.0
    %3022 = vmatprep.subr.mxu0 0.0
    %3023 = vmatpush1.xpose.msra.mxu0 0.0
    %3024 = vmatprep.subr.mxu0 0.0
    %3025 = vmatpush1.xpose.msra.mxu0 0.0
    %3026 = vmatprep.subr.mxu0 0.0
    %3027 = vmatpush1.xpose.msra.mxu0 0.0
    %3028 = vmatprep.subr.mxu0 0.0
    %3029 = vmatpush1.xpose.msra.mxu0 0.0
    %3030 = vmatprep.subr.mxu0 0.0
    %3031 = vmatpush1.xpose.msra.mxu0 0.0
    %3032 = vmatprep.subr.mxu0 0.0
    %3033 = vmatpush1.xpose.msra.mxu0 0.0
    %3034 = vmatprep.subr.mxu0 0.0
    %3035 = vmatpush1.xpose.msra.mxu0 0.0
    %3036 = vmatprep.subr.mxu0 0.0
    %3037 = vmatpush1.xpose.msra.mxu0 0.0
    %3038 = vmatprep.subr.mxu0 0.0
    %3039 = vmatpush1.xpose.msra.mxu0 0.0
    %3040 = vmatprep.subr.mxu0 0.0
    %3041 = vmatpush1.xpose.msra.mxu0 0.0
    %3042 = vmatprep.subr.mxu0 0.0
    %3043 = vmatpush1.xpose.msra.mxu0 0.0
    %3044 = vmatprep.subr.mxu0 0.0
    %3045 = vmatpush1.xpose.msra.mxu0 0.0
    %3046 = vmatprep.subr.mxu0 0.0
    %3047 = vmatpush1.xpose.msra.mxu0 0.0
    %3048 = vmatprep.subr.mxu0 0.0
    %3049 = vmatpush1.xpose.msra.mxu0 0.0
    %3050 = vmatprep.subr.mxu0 0.0
    %3051 = vmatpush1.xpose.msra.mxu0 0.0
    %3052 = vmatprep.subr.mxu0 0.0
    %3053 = vmatpush1.xpose.msra.mxu0 0.0
    %3054 = vmatprep.subr.mxu0 0.0
    %3055 = vmatpush1.xpose.msra.mxu0 0.0
    %3056 = vmatprep.subr.mxu0 0.0
    %3057 = vmatpush1.xpose.msra.mxu0 0.0
    %3058 = vmatprep.subr.mxu0 0.0
    %3059 = vmatpush1.xpose.msra.mxu0 0.0
    %3060 = vmatprep.subr.mxu0 0.0
    %3061 = vmatpush1.xpose.msra.mxu0 0.0
    %3062 = vmatprep.subr.mxu0 0.0
    %3063 = vmatpush1.xpose.msra.mxu0 0.0
    %3064 = vmatprep.subr.mxu0 0.0
    %3065 = vmatpush1.xpose.msra.mxu0 0.0
    %3066 = vmatprep.mubr.f32.mxu0 0.0
    %3067 = vmatmul.mubr.f32.gmra.mrb[0].mxu0 %v2991
    %v3068 = vpop.f32.mrb[0].mxu0
    %v3069 = vadd.f32 %v603, %v3068
    %v3070 = vpop.f32.mrb[0].mxu0
    %3071 = vmatprep.mubr.f32.mxu0 0.0
    %3072 = vmatmul.mubr.f32.gmra.mrb[0].mxu0 %v2994
    %v3073 = vpop.f32.mrb[0].mxu0
    %v3074 = vadd.f32 %v603, %v3073
    %v3075 = vpop.f32.mrb[0].mxu0
    %3076 = vdwg.mxu0
    %v3078 = vsel %vm2554, %v2550, 0
    %v3081 = vsel %vm2554, %v2551, 0
    %v3084 = vsel %vm2554, %v1855, 0
    %v3087 = vsel %vm2554, %v1860, 0
    %3089 = vmatprep.subr.mxu0 0.0
    %3090 = vmatpush1.xpose.msra.mxu0 %v3084
    %3091 = vmatprep.subr.mxu0 0.0
    %3092 = vmatpush1.xpose.msra.mxu0 %v3087
    %3093 = vmatprep.subr.mxu0 0.0
    %3094 = vmatpush1.xpose.msra.mxu0 0.0
    %3095 = vmatprep.subr.mxu0 0.0
    %3096 = vmatpush1.xpose.msra.mxu0 0.0
    %3097 = vmatprep.subr.mxu0 0.0
    %3098 = vmatpush1.xpose.msra.mxu0 0.0
    %3099 = vmatprep.subr.mxu0 0.0
    %3100 = vmatpush1.xpose.msra.mxu0 0.0
    %3101 = vmatprep.subr.mxu0 0.0
    %3102 = vmatpush1.xpose.msra.mxu0 0.0
    %3103 = vmatprep.subr.mxu0 0.0
    %3104 = vmatpush1.xpose.msra.mxu0 0.0
    %3105 = vmatprep.subr.mxu0 0.0
    %3106 = vmatpush1.xpose.msra.mxu0 0.0
    %3107 = vmatprep.subr.mxu0 0.0
    %3108 = vmatpush1.xpose.msra.mxu0 0.0
    %3109 = vmatprep.subr.mxu0 0.0
    %3110 = vmatpush1.xpose.msra.mxu0 0.0
    %3111 = vmatprep.subr.mxu0 0.0
    %3112 = vmatpush1.xpose.msra.mxu0 0.0
    %3113 = vmatprep.subr.mxu0 0.0
    %3114 = vmatpush1.xpose.msra.mxu0 0.0
    %3115 = vmatprep.subr.mxu0 0.0
    %3116 = vmatpush1.xpose.msra.mxu0 0.0
    %3117 = vmatprep.subr.mxu0 0.0
    %3118 = vmatpush1.xpose.msra.mxu0 0.0
    %3119 = vmatprep.subr.mxu0 0.0
    %3120 = vmatpush1.xpose.msra.mxu0 0.0
    %3121 = vmatprep.subr.mxu0 0.0
    %3122 = vmatpush1.xpose.msra.mxu0 0.0
    %3123 = vmatprep.subr.mxu0 0.0
    %3124 = vmatpush1.xpose.msra.mxu0 0.0
    %3125 = vmatprep.subr.mxu0 0.0
    %3126 = vmatpush1.xpose.msra.mxu0 0.0
    %3127 = vmatprep.subr.mxu0 0.0
    %3128 = vmatpush1.xpose.msra.mxu0 0.0
    %3129 = vmatprep.subr.mxu0 0.0
    %3130 = vmatpush1.xpose.msra.mxu0 0.0
    %3131 = vmatprep.subr.mxu0 0.0
    %3132 = vmatpush1.xpose.msra.mxu0 0.0
    %3133 = vmatprep.subr.mxu0 0.0
    %3134 = vmatpush1.xpose.msra.mxu0 0.0
    %3135 = vmatprep.subr.mxu0 0.0
    %3136 = vmatpush1.xpose.msra.mxu0 0.0
    %3137 = vmatprep.subr.mxu0 0.0
    %3138 = vmatpush1.xpose.msra.mxu0 0.0
    %3139 = vmatprep.subr.mxu0 0.0
    %3140 = vmatpush1.xpose.msra.mxu0 0.0
    %3141 = vmatprep.subr.mxu0 0.0
    %3142 = vmatpush1.xpose.msra.mxu0 0.0
    %3143 = vmatprep.subr.mxu0 0.0
    %3144 = vmatpush1.xpose.msra.mxu0 0.0
    %3145 = vmatprep.subr.mxu0 0.0
    %3146 = vmatpush1.xpose.msra.mxu0 0.0
    %3147 = vmatprep.subr.mxu0 0.0
    %3148 = vmatpush1.xpose.msra.mxu0 0.0
    %3149 = vmatprep.subr.mxu0 0.0
    %3150 = vmatpush1.xpose.msra.mxu0 0.0
    %3151 = vmatprep.subr.mxu0 0.0
    %3152 = vmatpush1.xpose.msra.mxu0 0.0
    %3153 = vmatprep.mubr.f32.mxu0 0.0
    %3154 = vmatmul.mubr.f32.gmra.mrb[0].mxu0 %v3078
    %v3155 = vpop.f32.mrb[0].mxu0
    %v3156 = vadd.f32 %v603, %v3155
    %v3157 = vpop.f32.mrb[0].mxu0
    %3158 = vmatprep.mubr.f32.mxu0 0.0
    %3159 = vmatmul.mubr.f32.gmra.mrb[0].mxu0 %v3081
    %v3160 = vpop.f32.mrb[0].mxu0
    %v3161 = vadd.f32 %v603, %v3160
    %v3162 = vpop.f32.mrb[0].mxu0
    %3163 = vdwg.mxu0
    %v3165 = vsel %vm2554, %v2552, 0
    %v3168 = vsel %vm2554, %v2553, 0
    %v3171 = vsel %vm2554, %v1930, 0
    %v3174 = vsel %vm2554, %v1935, 0
    %3176 = vmatprep.subr.mxu0 0.0
    %3177 = vmatpush1.xpose.msra.mxu0 %v3171
    %3178 = vmatprep.subr.mxu0 0.0
    %3179 = vmatpush1.xpose.msra.mxu0 %v3174
    %3180 = vmatprep.subr.mxu0 0.0
    %3181 = vmatpush1.xpose.msra.mxu0 0.0
    %3182 = vmatprep.subr.mxu0 0.0
    %3183 = vmatpush1.xpose.msra.mxu0 0.0
    %3184 = vmatprep.subr.mxu0 0.0
    %3185 = vmatpush1.xpose.msra.mxu0 0.0
    %3186 = vmatprep.subr.mxu0 0.0
    %3187 = vmatpush1.xpose.msra.mxu0 0.0
    %3188 = vmatprep.subr.mxu0 0.0
    %3189 = vmatpush1.xpose.msra.mxu0 0.0
    %3190 = vmatprep.subr.mxu0 0.0
    %3191 = vmatpush1.xpose.msra.mxu0 0.0
    %3192 = vmatprep.subr.mxu0 0.0
    %3193 = vmatpush1.xpose.msra.mxu0 0.0
    %3194 = vmatprep.subr.mxu0 0.0
    %3195 = vmatpush1.xpose.msra.mxu0 0.0
    %3196 = vmatprep.subr.mxu0 0.0
    %3197 = vmatpush1.xpose.msra.mxu0 0.0
    %3198 = vmatprep.subr.mxu0 0.0
    %3199 = vmatpush1.xpose.msra.mxu0 0.0
    %3200 = vmatprep.subr.mxu0 0.0
    %3201 = vmatpush1.xpose.msra.mxu0 0.0
    %3202 = vmatprep.subr.mxu0 0.0
    %3203 = vmatpush1.xpose.msra.mxu0 0.0
    %3204 = vmatprep.subr.mxu0 0.0
    %3205 = vmatpush1.xpose.msra.mxu0 0.0
    %3206 = vmatprep.subr.mxu0 0.0
    %3207 = vmatpush1.xpose.msra.mxu0 0.0
    %3208 = vmatprep.subr.mxu0 0.0
    %3209 = vmatpush1.xpose.msra.mxu0 0.0
    %3210 = vmatprep.subr.mxu0 0.0
    %3211 = vmatpush1.xpose.msra.mxu0 0.0
    %3212 = vmatprep.subr.mxu0 0.0
    %3213 = vmatpush1.xpose.msra.mxu0 0.0
    %3214 = vmatprep.subr.mxu0 0.0
    %3215 = vmatpush1.xpose.msra.mxu0 0.0
    %3216 = vmatprep.subr.mxu0 0.0
    %3217 = vmatpush1.xpose.msra.mxu0 0.0
    %3218 = vmatprep.subr.mxu0 0.0
    %3219 = vmatpush1.xpose.msra.mxu0 0.0
    %3220 = vmatprep.subr.mxu0 0.0
    %3221 = vmatpush1.xpose.msra.mxu0 0.0
    %3222 = vmatprep.subr.mxu0 0.0
    %3223 = vmatpush1.xpose.msra.mxu0 0.0
    %3224 = vmatprep.subr.mxu0 0.0
    %3225 = vmatpush1.xpose.msra.mxu0 0.0
    %3226 = vmatprep.subr.mxu0 0.0
    %3227 = vmatpush1.xpose.msra.mxu0 0.0
    %3228 = vmatprep.subr.mxu0 0.0
    %3229 = vmatpush1.xpose.msra.mxu0 0.0
    %3230 = vmatprep.subr.mxu0 0.0
    %3231 = vmatpush1.xpose.msra.mxu0 0.0
    %3232 = vmatprep.subr.mxu0 0.0
    %3233 = vmatpush1.xpose.msra.mxu0 0.0
    %3234 = vmatprep.subr.mxu0 0.0
    %3235 = vmatpush1.xpose.msra.mxu0 0.0
    %3236 = vmatprep.subr.mxu0 0.0
    %3237 = vmatpush1.xpose.msra.mxu0 0.0
    %3238 = vmatprep.subr.mxu0 0.0
    %3239 = vmatpush1.xpose.msra.mxu0 0.0
    %3240 = vmatprep.mubr.f32.mxu0 0.0
    %3241 = vmatmul.mubr.f32.gmra.mrb[0].mxu0 %v3165
    %v3242 = vpop.f32.mrb[0].mxu0
    %v3243 = vadd.f32 %v603, %v3242
    %v3244 = vpop.f32.mrb[0].mxu0
    %3245 = vmatprep.mubr.f32.mxu0 0.0
    %3246 = vmatmul.mubr.f32.gmra.mrb[0].mxu0 %v3168
    %v3247 = vpop.f32.mrb[0].mxu0
    %v3248 = vadd.f32 %v603, %v3247
    %v3249 = vpop.f32.mrb[0].mxu0
    %3250 = vdwg.mxu0
    %vm3251 = vcmask 130048
    %v3252 = vsel %vm3251, %v2634, -inf
    %3253 = vmax.xlane.f32.xlu0 %v3252
    %v3254 = vpop.xlane.xlu0 %3253
    %v3255 = vsel %vm3251, %v2639, -inf
    %3256 = vmax.xlane.f32.xlu0 %v3255
    %v3257 = vpop.xlane.xlu0 %3256
    %v3258 = vsel %vm3251, %v2721, -inf
    %3259 = vmax.xlane.f32.xlu0 %v3258
    %v3260 = vpop.xlane.xlu0 %3259
    %v3261 = vsel %vm3251, %v2726, -inf
    %3262 = vmax.xlane.f32.xlu0 %v3261
    %v3263 = vpop.xlane.xlu0 %3262
    %v3264 = vsel %vm3251, %v2808, -inf
    %3265 = vmax.xlane.f32.xlu0 %v3264
    %v3266 = vpop.xlane.xlu0 %3265
    %v3267 = vsel %vm3251, %v2813, -inf
    %3268 = vmax.xlane.f32.xlu0 %v3267
    %v3269 = vpop.xlane.xlu0 %3268
    %v3270 = vsel %vm3251, %v2895, -inf
    %3271 = vmax.xlane.f32.xlu0 %v3270
    %v3272 = vpop.xlane.xlu0 %3271
    %v3273 = vsel %vm3251, %v2900, -inf
    %3274 = vmax.xlane.f32.xlu0 %v3273
    %v3275 = vpop.xlane.xlu0 %3274
    %v3276 = vsel %vm3251, %v2982, -inf
    %3277 = vmax.xlane.f32.xlu0 %v3276
    %v3278 = vpop.xlane.xlu0 %3277
    %v3279 = vsel %vm3251, %v2987, -inf
    %3280 = vmax.xlane.f32.xlu0 %v3279
    %v3281 = vpop.xlane.xlu0 %3280
    %v3282 = vsel %vm3251, %v3069, -inf
    %3283 = vmax.xlane.f32.xlu0 %v3282
    %v3284 = vpop.xlane.xlu0 %3283
    %v3285 = vsel %vm3251, %v3074, -inf
    %3286 = vmax.xlane.f32.xlu0 %v3285
    %v3287 = vpop.xlane.xlu0 %3286
    %v3288 = vsel %vm3251, %v3156, -inf
    %3289 = vmax.xlane.f32.xlu0 %v3288
    %v3290 = vpop.xlane.xlu0 %3289
    %v3291 = vsel %vm3251, %v3161, -inf
    %3292 = vmax.xlane.f32.xlu0 %v3291
    %v3293 = vpop.xlane.xlu0 %3292
    %v3294 = vsel %vm3251, %v3243, -inf
    %3295 = vmax.xlane.f32.xlu0 %v3294
    %v3296 = vpop.xlane.xlu0 %3295
    %v3297 = vsel %vm3251, %v3248, -inf
    %3298 = vmax.xlane.f32.xlu0 %v3297
    %v3299 = vpop.xlane.xlu0 %3298
    %v3300 = vsub.f32 %v2634, %v3254
    %v3301 = vsub.f32 %v2639, %v3257
    %v3302 = vsub.f32 %v2721, %v3260
    %v3303 = vsub.f32 %v2726, %v3263
    %v3304 = vsub.f32 %v2808, %v3266
    %v3305 = vsub.f32 %v2813, %v3269
    %v3306 = vsub.f32 %v2895, %v3272
    %v3307 = vsub.f32 %v2900, %v3275
    %v3308 = vsub.f32 %v2982, %v3278
    %v3309 = vsub.f32 %v2987, %v3281
    %v3310 = vsub.f32 %v3069, %v3284
    %v3311 = vsub.f32 %v3074, %v3287
    %v3312 = vsub.f32 %v3156, %v3290
    %v3313 = vsub.f32 %v3161, %v3293
    %v3314 = vsub.f32 %v3243, %v3296
    %v3315 = vsub.f32 %v3248, %v3299
    %v3316 = vmul.f32 %v3300, 1.442695
    %v3317 = vpow.pop %v3316
    %v3318 = vmul.f32 %v3301, 1.442695
    %v3319 = vpow.pop %v3318
    %v3320 = vmul.f32 %v3302, 1.442695
    %v3321 = vpow.pop %v3320
    %v3322 = vmul.f32 %v3303, 1.442695
    %v3323 = vpow.pop %v3322
    %v3324 = vmul.f32 %v3304, 1.442695
    %v3325 = vpow.pop %v3324
    %v3326 = vmul.f32 %v3305, 1.442695
    %v3327 = vpow.pop %v3326
    %v3328 = vmul.f32 %v3306, 1.442695
    %v3329 = vpow.pop %v3328
    %v3330 = vmul.f32 %v3307, 1.442695
    %v3331 = vpow.pop %v3330
    %v3332 = vmul.f32 %v3308, 1.442695
    %v3333 = vpow.pop %v3332
    %v3334 = vmul.f32 %v3309, 1.442695
    %v3335 = vpow.pop %v3334
    %v3336 = vmul.f32 %v3310, 1.442695
    %v3337 = vpow.pop %v3336
    %v3338 = vmul.f32 %v3311, 1.442695
    %v3339 = vpow.pop %v3338
    %v3340 = vmul.f32 %v3312, 1.442695
    %v3341 = vpow.pop %v3340
    %v3342 = vmul.f32 %v3313, 1.442695
    %v3343 = vpow.pop %v3342
    %v3344 = vmul.f32 %v3314, 1.442695
    %v3345 = vpow.pop %v3344
    %v3346 = vmul.f32 %v3315, 1.442695
    %v3347 = vpow.pop %v3346
    %v3348 = vsel %vm3251, %v3317, 0.0
    %3349 = vadd.xlane.f32.xlu0 %v3348
    %v3350 = vpop.xlane.xlu0 %3349
    %v3351 = vsel %vm3251, %v3319, 0.0
    %3352 = vadd.xlane.f32.xlu0 %v3351
    %v3353 = vpop.xlane.xlu0 %3352
    %v3354 = vsel %vm3251, %v3321, 0.0
    %3355 = vadd.xlane.f32.xlu0 %v3354
    %v3356 = vpop.xlane.xlu0 %3355
    %v3357 = vsel %vm3251, %v3323, 0.0
    %3358 = vadd.xlane.f32.xlu0 %v3357
    %v3359 = vpop.xlane.xlu0 %3358
    %v3360 = vsel %vm3251, %v3325, 0.0
    %3361 = vadd.xlane.f32.xlu0 %v3360
    %v3362 = vpop.xlane.xlu0 %3361
    %v3363 = vsel %vm3251, %v3327, 0.0
    %3364 = vadd.xlane.f32.xlu0 %v3363
    %v3365 = vpop.xlane.xlu0 %3364
    %v3366 = vsel %vm3251, %v3329, 0.0
    %3367 = vadd.xlane.f32.xlu0 %v3366
    %v3368 = vpop.xlane.xlu0 %3367
    %v3369 = vsel %vm3251, %v3331, 0.0
    %3370 = vadd.xlane.f32.xlu0 %v3369
    %v3371 = vpop.xlane.xlu0 %3370
    %v3372 = vsel %vm3251, %v3333, 0.0
    %3373 = vadd.xlane.f32.xlu0 %v3372
    %v3374 = vpop.xlane.xlu0 %3373
    %v3375 = vsel %vm3251, %v3335, 0.0
    %3376 = vadd.xlane.f32.xlu0 %v3375
    %v3377 = vpop.xlane.xlu0 %3376
    %v3378 = vsel %vm3251, %v3337, 0.0
    %3379 = vadd.xlane.f32.xlu0 %v3378
    %v3380 = vpop.xlane.xlu0 %3379
    %v3381 = vsel %vm3251, %v3339, 0.0
    %3382 = vadd.xlane.f32.xlu0 %v3381
    %v3383 = vpop.xlane.xlu0 %3382
    %v3384 = vsel %vm3251, %v3341, 0.0
    %3385 = vadd.xlane.f32.xlu0 %v3384
    %v3386 = vpop.xlane.xlu0 %3385
    %v3387 = vsel %vm3251, %v3343, 0.0
    %3388 = vadd.xlane.f32.xlu0 %v3387
    %v3389 = vpop.xlane.xlu0 %3388
    %v3390 = vsel %vm3251, %v3345, 0.0
    %3391 = vadd.xlane.f32.xlu0 %v3390
    %v3392 = vpop.xlane.xlu0 %3391
    %v3393 = vsel %vm3251, %v3347, 0.0
    %3394 = vadd.xlane.f32.xlu0 %v3393
    %v3395 = vpop.xlane.xlu0 %3394
    %v3396 = vrcp.pop %v3350
    %v3397 = vrcp.pop %v3353
    %v3398 = vrcp.pop %v3356
    %v3399 = vrcp.pop %v3359
    %v3400 = vrcp.pop %v3362
    %v3401 = vrcp.pop %v3365
    %v3402 = vrcp.pop %v3368
    %v3403 = vrcp.pop %v3371
    %v3404 = vrcp.pop %v3374
    %v3405 = vrcp.pop %v3377
    %v3406 = vrcp.pop %v3380
    %v3407 = vrcp.pop %v3383
    %v3408 = vrcp.pop %v3386
    %v3409 = vrcp.pop %v3389
    %v3410 = vrcp.pop %v3392
    %v3411 = vrcp.pop %v3395
    %v3412 = vmul.f32 %v3317, %v3396
    %v3413 = vmul.f32 %v3319, %v3397
    %v3414 = vmul.f32 %v3321, %v3398
    %v3415 = vmul.f32 %v3323, %v3399
    %v3416 = vmul.f32 %v3325, %v3400
    %v3417 = vmul.f32 %v3327, %v3401
    %v3418 = vmul.f32 %v3329, %v3402
    %v3419 = vmul.f32 %v3331, %v3403
    %v3420 = vmul.f32 %v3333, %v3404
    %v3421 = vmul.f32 %v3335, %v3405
    %v3422 = vmul.f32 %v3337, %v3406
    %v3423 = vmul.f32 %v3339, %v3407
    %v3424 = vmul.f32 %v3341, %v3408
    %v3425 = vmul.f32 %v3343, %v3409
    %v3426 = vmul.f32 %v3345, %v3410
    %v3427 = vmul.f32 %v3347, %v3411
    %v3429 = vsel %vm3251, %v3412, 0
    %v3432 = vsel %vm3251, %v3413, 0
    %3434 = vmatprep.subr.mxu0 0.0
    %3435 = vmatpush1.msra.mxu0 %v2005
    %3436 = vmatprep.subr.mxu0 0.0
    %3437 = vmatpush1.msra.mxu0 %v2010
    %3438 = vmatprep.subr.mxu0 0.0
    %3439 = vmatpush1.msra.mxu0 0.0
    %3440 = vmatprep.subr.mxu0 0.0
    %3441 = vmatpush1.msra.mxu0 0.0
    %3442 = vmatprep.subr.mxu0 0.0
    %3443 = vmatpush1.msra.mxu0 0.0
    %3444 = vmatprep.subr.mxu0 0.0
    %3445 = vmatpush1.msra.mxu0 0.0
    %3446 = vmatprep.subr.mxu0 0.0
    %3447 = vmatpush1.msra.mxu0 0.0
    %3448 = vmatprep.subr.mxu0 0.0
    %3449 = vmatpush1.msra.mxu0 0.0
    %3450 = vmatprep.subr.mxu0 0.0
    %3451 = vmatpush1.msra.mxu0 0.0
    %3452 = vmatprep.subr.mxu0 0.0
    %3453 = vmatpush1.msra.mxu0 0.0
    %3454 = vmatprep.subr.mxu0 0.0
    %3455 = vmatpush1.msra.mxu0 0.0
    %3456 = vmatprep.subr.mxu0 0.0
    %3457 = vmatpush1.msra.mxu0 0.0
    %3458 = vmatprep.subr.mxu0 0.0
    %3459 = vmatpush1.msra.mxu0 0.0
    %3460 = vmatprep.subr.mxu0 0.0
    %3461 = vmatpush1.msra.mxu0 0.0
    %3462 = vmatprep.subr.mxu0 0.0
    %3463 = vmatpush1.msra.mxu0 0.0
    %3464 = vmatprep.subr.mxu0 0.0
    %3465 = vmatpush1.msra.mxu0 0.0
    %3466 = vmatprep.subr.mxu0 0.0
    %3467 = vmatpush1.msra.mxu0 0.0
    %3468 = vmatprep.subr.mxu0 0.0
    %3469 = vmatpush1.msra.mxu0 0.0
    %3470 = vmatprep.subr.mxu0 0.0
    %3471 = vmatpush1.msra.mxu0 0.0
    %3472 = vmatprep.subr.mxu0 0.0
    %3473 = vmatpush1.msra.mxu0 0.0
    %3474 = vmatprep.subr.mxu0 0.0
    %3475 = vmatpush1.msra.mxu0 0.0
    %3476 = vmatprep.subr.mxu0 0.0
    %3477 = vmatpush1.msra.mxu0 0.0
    %3478 = vmatprep.subr.mxu0 0.0
    %3479 = vmatpush1.msra.mxu0 0.0
    %3480 = vmatprep.subr.mxu0 0.0
    %3481 = vmatpush1.msra.mxu0 0.0
    %3482 = vmatprep.subr.mxu0 0.0
    %3483 = vmatpush1.msra.mxu0 0.0
    %3484 = vmatprep.subr.mxu0 0.0
    %3485 = vmatpush1.msra.mxu0 0.0
    %3486 = vmatprep.subr.mxu0 0.0
    %3487 = vmatpush1.msra.mxu0 0.0
    %3488 = vmatprep.subr.mxu0 0.0
    %3489 = vmatpush1.msra.mxu0 0.0
    %3490 = vmatprep.subr.mxu0 0.0
    %3491 = vmatpush1.msra.mxu0 0.0
    %3492 = vmatprep.subr.mxu0 0.0
    %3493 = vmatpush1.msra.mxu0 0.0
    %3494 = vmatprep.subr.mxu0 0.0
    %3495 = vmatpush1.msra.mxu0 0.0
    %3496 = vmatprep.subr.mxu0 0.0
    %3497 = vmatpush1.msra.mxu0 0.0
    %3498 = vmatprep.mubr.f32.mxu0 0.0
    %3499 = vmatmul.mubr.f32.gmra.mrb[0].mxu0 %v3429
    %v3500 = vpop.f32.mrb[0].mxu0
    %v3501 = vadd.f32 0.0, %v3500
    %v3502 = vpop.f32.mrb[0].mxu0
    %3503 = vmatprep.mubr.f32.mxu0 0.0
    %3504 = vmatmul.mubr.f32.gmra.mrb[0].mxu0 %v3432
    %v3505 = vpop.f32.mrb[0].mxu0
    %v3506 = vadd.f32 0.0, %v3505
    %v3507 = vpop.f32.mrb[0].mxu0
    %3508 = vdwg.mxu0
    %v3510 = vsel %vm3251, %v3414, 0
    %v3513 = vsel %vm3251, %v3415, 0
    %3515 = vmatprep.subr.mxu0 0.0
    %3516 = vmatpush1.msra.mxu0 %v2080
    %3517 = vmatprep.subr.mxu0 0.0
    %3518 = vmatpush1.msra.mxu0 %v2085
    %3519 = vmatprep.subr.mxu0 0.0
    %3520 = vmatpush1.msra.mxu0 0.0
    %3521 = vmatprep.subr.mxu0 0.0
    %3522 = vmatpush1.msra.mxu0 0.0
    %3523 = vmatprep.subr.mxu0 0.0
    %3524 = vmatpush1.msra.mxu0 0.0
    %3525 = vmatprep.subr.mxu0 0.0
    %3526 = vmatpush1.msra.mxu0 0.0
    %3527 = vmatprep.subr.mxu0 0.0
    %3528 = vmatpush1.msra.mxu0 0.0
    %3529 = vmatprep.subr.mxu0 0.0
    %3530 = vmatpush1.msra.mxu0 0.0
    %3531 = vmatprep.subr.mxu0 0.0
    %3532 = vmatpush1.msra.mxu0 0.0
    %3533 = vmatprep.subr.mxu0 0.0
    %3534 = vmatpush1.msra.mxu0 0.0
    %3535 = vmatprep.subr.mxu0 0.0
    %3536 = vmatpush1.msra.mxu0 0.0
    %3537 = vmatprep.subr.mxu0 0.0
    %3538 = vmatpush1.msra.mxu0 0.0
    %3539 = vmatprep.subr.mxu0 0.0
    %3540 = vmatpush1.msra.mxu0 0.0
    %3541 = vmatprep.subr.mxu0 0.0
    %3542 = vmatpush1.msra.mxu0 0.0
    %3543 = vmatprep.subr.mxu0 0.0
    %3544 = vmatpush1.msra.mxu0 0.0
    %3545 = vmatprep.subr.mxu0 0.0
    %3546 = vmatpush1.msra.mxu0 0.0
    %3547 = vmatprep.subr.mxu0 0.0
    %3548 = vmatpush1.msra.mxu0 0.0
    %3549 = vmatprep.subr.mxu0 0.0
    %3550 = vmatpush1.msra.mxu0 0.0
    %3551 = vmatprep.subr.mxu0 0.0
    %3552 = vmatpush1.msra.mxu0 0.0
    %3553 = vmatprep.subr.mxu0 0.0
    %3554 = vmatpush1.msra.mxu0 0.0
    %3555 = vmatprep.subr.mxu0 0.0
    %3556 = vmatpush1.msra.mxu0 0.0
    %3557 = vmatprep.subr.mxu0 0.0
    %3558 = vmatpush1.msra.mxu0 0.0
    %3559 = vmatprep.subr.mxu0 0.0
    %3560 = vmatpush1.msra.mxu0 0.0
    %3561 = vmatprep.subr.mxu0 0.0
    %3562 = vmatpush1.msra.mxu0 0.0
    %3563 = vmatprep.subr.mxu0 0.0
    %3564 = vmatpush1.msra.mxu0 0.0
    %3565 = vmatprep.subr.mxu0 0.0
    %3566 = vmatpush1.msra.mxu0 0.0
    %3567 = vmatprep.subr.mxu0 0.0
    %3568 = vmatpush1.msra.mxu0 0.0
    %3569 = vmatprep.subr.mxu0 0.0
    %3570 = vmatpush1.msra.mxu0 0.0
    %3571 = vmatprep.subr.mxu0 0.0
    %3572 = vmatpush1.msra.mxu0 0.0
    %3573 = vmatprep.subr.mxu0 0.0
    %3574 = vmatpush1.msra.mxu0 0.0
    %3575 = vmatprep.subr.mxu0 0.0
    %3576 = vmatpush1.msra.mxu0 0.0
    %3577 = vmatprep.subr.mxu0 0.0
    %3578 = vmatpush1.msra.mxu0 0.0
    %3579 = vmatprep.mubr.f32.mxu0 0.0
    %3580 = vmatmul.mubr.f32.gmra.mrb[0].mxu0 %v3510
    %v3581 = vpop.f32.mrb[0].mxu0
    %v3582 = vadd.f32 0.0, %v3581
    %v3583 = vpop.f32.mrb[0].mxu0
    %3584 = vmatprep.mubr.f32.mxu0 0.0
    %3585 = vmatmul.mubr.f32.gmra.mrb[0].mxu0 %v3513
    %v3586 = vpop.f32.mrb[0].mxu0
    %v3587 = vadd.f32 0.0, %v3586
    %v3588 = vpop.f32.mrb[0].mxu0
    %3589 = vdwg.mxu0
    %v3591 = vsel %vm3251, %v3416, 0
    %v3594 = vsel %vm3251, %v3417, 0
    %3596 = vmatprep.subr.mxu0 0.0
    %3597 = vmatpush1.msra.mxu0 %v2155
    %3598 = vmatprep.subr.mxu0 0.0
    %3599 = vmatpush1.msra.mxu0 %v2160
    %3600 = vmatprep.subr.mxu0 0.0
    %3601 = vmatpush1.msra.mxu0 0.0
    %3602 = vmatprep.subr.mxu0 0.0
    %3603 = vmatpush1.msra.mxu0 0.0
    %3604 = vmatprep.subr.mxu0 0.0
    %3605 = vmatpush1.msra.mxu0 0.0
    %3606 = vmatprep.subr.mxu0 0.0
    %3607 = vmatpush1.msra.mxu0 0.0
    %3608 = vmatprep.subr.mxu0 0.0
    %3609 = vmatpush1.msra.mxu0 0.0
    %3610 = vmatprep.subr.mxu0 0.0
    %3611 = vmatpush1.msra.mxu0 0.0
    %3612 = vmatprep.subr.mxu0 0.0
    %3613 = vmatpush1.msra.mxu0 0.0
    %3614 = vmatprep.subr.mxu0 0.0
    %3615 = vmatpush1.msra.mxu0 0.0
    %3616 = vmatprep.subr.mxu0 0.0
    %3617 = vmatpush1.msra.mxu0 0.0
    %3618 = vmatprep.subr.mxu0 0.0
    %3619 = vmatpush1.msra.mxu0 0.0
    %3620 = vmatprep.subr.mxu0 0.0
    %3621 = vmatpush1.msra.mxu0 0.0
    %3622 = vmatprep.subr.mxu0 0.0
    %3623 = vmatpush1.msra.mxu0 0.0
    %3624 = vmatprep.subr.mxu0 0.0
    %3625 = vmatpush1.msra.mxu0 0.0
    %3626 = vmatprep.subr.mxu0 0.0
    %3627 = vmatpush1.msra.mxu0 0.0
    %3628 = vmatprep.subr.mxu0 0.0
    %3629 = vmatpush1.msra.mxu0 0.0
    %3630 = vmatprep.subr.mxu0 0.0
    %3631 = vmatpush1.msra.mxu0 0.0
    %3632 = vmatprep.subr.mxu0 0.0
    %3633 = vmatpush1.msra.mxu0 0.0
    %3634 = vmatprep.subr.mxu0 0.0
    %3635 = vmatpush1.msra.mxu0 0.0
    %3636 = vmatprep.subr.mxu0 0.0
    %3637 = vmatpush1.msra.mxu0 0.0
    %3638 = vmatprep.subr.mxu0 0.0
    %3639 = vmatpush1.msra.mxu0 0.0
    %3640 = vmatprep.subr.mxu0 0.0
    %3641 = vmatpush1.msra.mxu0 0.0
    %3642 = vmatprep.subr.mxu0 0.0
    %3643 = vmatpush1.msra.mxu0 0.0
    %3644 = vmatprep.subr.mxu0 0.0
    %3645 = vmatpush1.msra.mxu0 0.0
    %3646 = vmatprep.subr.mxu0 0.0
    %3647 = vmatpush1.msra.mxu0 0.0
    %3648 = vmatprep.subr.mxu0 0.0
    %3649 = vmatpush1.msra.mxu0 0.0
    %3650 = vmatprep.subr.mxu0 0.0
    %3651 = vmatpush1.msra.mxu0 0.0
    %3652 = vmatprep.subr.mxu0 0.0
    %3653 = vmatpush1.msra.mxu0 0.0
    %3654 = vmatprep.subr.mxu0 0.0
    %3655 = vmatpush1.msra.mxu0 0.0
    %3656 = vmatprep.subr.mxu0 0.0
    %3657 = vmatpush1.msra.mxu0 0.0
    %3658 = vmatprep.subr.mxu0 0.0
    %3659 = vmatpush1.msra.mxu0 0.0
    %3660 = vmatprep.mubr.f32.mxu0 0.0
    %3661 = vmatmul.mubr.f32.gmra.mrb[0].mxu0 %v3591
    %v3662 = vpop.f32.mrb[0].mxu0
    %v3663 = vadd.f32 0.0, %v3662
    %v3664 = vpop.f32.mrb[0].mxu0
    %3665 = vmatprep.mubr.f32.mxu0 0.0
    %3666 = vmatmul.mubr.f32.gmra.mrb[0].mxu0 %v3594
    %v3667 = vpop.f32.mrb[0].mxu0
    %v3668 = vadd.f32 0.0, %v3667
    %v3669 = vpop.f32.mrb[0].mxu0
    %3670 = vdwg.mxu0
    %v3672 = vsel %vm3251, %v3418, 0
    %v3675 = vsel %vm3251, %v3419, 0
    %3677 = vmatprep.subr.mxu0 0.0
    %3678 = vmatpush1.msra.mxu0 %v2230
    %3679 = vmatprep.subr.mxu0 0.0
    %3680 = vmatpush1.msra.mxu0 %v2235
    %3681 = vmatprep.subr.mxu0 0.0
    %3682 = vmatpush1.msra.mxu0 0.0
    %3683 = vmatprep.subr.mxu0 0.0
    %3684 = vmatpush1.msra.mxu0 0.0
    %3685 = vmatprep.subr.mxu0 0.0
    %3686 = vmatpush1.msra.mxu0 0.0
    %3687 = vmatprep.subr.mxu0 0.0
    %3688 = vmatpush1.msra.mxu0 0.0
    %3689 = vmatprep.subr.mxu0 0.0
    %3690 = vmatpush1.msra.mxu0 0.0
    %3691 = vmatprep.subr.mxu0 0.0
    %3692 = vmatpush1.msra.mxu0 0.0
    %3693 = vmatprep.subr.mxu0 0.0
    %3694 = vmatpush1.msra.mxu0 0.0
    %3695 = vmatprep.subr.mxu0 0.0
    %3696 = vmatpush1.msra.mxu0 0.0
    %3697 = vmatprep.subr.mxu0 0.0
    %3698 = vmatpush1.msra.mxu0 0.0
    %3699 = vmatprep.subr.mxu0 0.0
    %3700 = vmatpush1.msra.mxu0 0.0
    %3701 = vmatprep.subr.mxu0 0.0
    %3702 = vmatpush1.msra.mxu0 0.0
    %3703 = vmatprep.subr.mxu0 0.0
    %3704 = vmatpush1.msra.mxu0 0.0
    %3705 = vmatprep.subr.mxu0 0.0
    %3706 = vmatpush1.msra.mxu0 0.0
    %3707 = vmatprep.subr.mxu0 0.0
    %3708 = vmatpush1.msra.mxu0 0.0
    %3709 = vmatprep.subr.mxu0 0.0
    %3710 = vmatpush1.msra.mxu0 0.0
    %3711 = vmatprep.subr.mxu0 0.0
    %3712 = vmatpush1.msra.mxu0 0.0
    %3713 = vmatprep.subr.mxu0 0.0
    %3714 = vmatpush1.msra.mxu0 0.0
    %3715 = vmatprep.subr.mxu0 0.0
    %3716 = vmatpush1.msra.mxu0 0.0
    %3717 = vmatprep.subr.mxu0 0.0
    %3718 = vmatpush1.msra.mxu0 0.0
    %3719 = vmatprep.subr.mxu0 0.0
    %3720 = vmatpush1.msra.mxu0 0.0
    %3721 = vmatprep.subr.mxu0 0.0
    %3722 = vmatpush1.msra.mxu0 0.0
    %3723 = vmatprep.subr.mxu0 0.0
    %3724 = vmatpush1.msra.mxu0 0.0
    %3725 = vmatprep.subr.mxu0 0.0
    %3726 = vmatpush1.msra.mxu0 0.0
    %3727 = vmatprep.subr.mxu0 0.0
    %3728 = vmatpush1.msra.mxu0 0.0
    %3729 = vmatprep.subr.mxu0 0.0
    %3730 = vmatpush1.msra.mxu0 0.0
    %3731 = vmatprep.subr.mxu0 0.0
    %3732 = vmatpush1.msra.mxu0 0.0
    %3733 = vmatprep.subr.mxu0 0.0
    %3734 = vmatpush1.msra.mxu0 0.0
    %3735 = vmatprep.subr.mxu0 0.0
    %3736 = vmatpush1.msra.mxu0 0.0
    %3737 = vmatprep.subr.mxu0 0.0
    %3738 = vmatpush1.msra.mxu0 0.0
    %3739 = vmatprep.subr.mxu0 0.0
    %3740 = vmatpush1.msra.mxu0 0.0
    %3741 = vmatprep.mubr.f32.mxu0 0.0
    %3742 = vmatmul.mubr.f32.gmra.mrb[0].mxu0 %v3672
    %v3743 = vpop.f32.mrb[0].mxu0
    %v3744 = vadd.f32 0.0, %v3743
    %v3745 = vpop.f32.mrb[0].mxu0
    %3746 = vmatprep.mubr.f32.mxu0 0.0
    %3747 = vmatmul.mubr.f32.gmra.mrb[0].mxu0 %v3675
    %v3748 = vpop.f32.mrb[0].mxu0
    %v3749 = vadd.f32 0.0, %v3748
    %v3750 = vpop.f32.mrb[0].mxu0
    %3751 = vdwg.mxu0
    %v3753 = vsel %vm3251, %v3420, 0
    %v3756 = vsel %vm3251, %v3421, 0
    %3758 = vmatprep.subr.mxu0 0.0
    %3759 = vmatpush1.msra.mxu0 %v2305
    %3760 = vmatprep.subr.mxu0 0.0
    %3761 = vmatpush1.msra.mxu0 %v2310
    %3762 = vmatprep.subr.mxu0 0.0
    %3763 = vmatpush1.msra.mxu0 0.0
    %3764 = vmatprep.subr.mxu0 0.0
    %3765 = vmatpush1.msra.mxu0 0.0
    %3766 = vmatprep.subr.mxu0 0.0
    %3767 = vmatpush1.msra.mxu0 0.0
    %3768 = vmatprep.subr.mxu0 0.0
    %3769 = vmatpush1.msra.mxu0 0.0
    %3770 = vmatprep.subr.mxu0 0.0
    %3771 = vmatpush1.msra.mxu0 0.0
    %3772 = vmatprep.subr.mxu0 0.0
    %3773 = vmatpush1.msra.mxu0 0.0
    %3774 = vmatprep.subr.mxu0 0.0
    %3775 = vmatpush1.msra.mxu0 0.0
    %3776 = vmatprep.subr.mxu0 0.0
    %3777 = vmatpush1.msra.mxu0 0.0
    %3778 = vmatprep.subr.mxu0 0.0
    %3779 = vmatpush1.msra.mxu0 0.0
    %3780 = vmatprep.subr.mxu0 0.0
    %3781 = vmatpush1.msra.mxu0 0.0
    %3782 = vmatprep.subr.mxu0 0.0
    %3783 = vmatpush1.msra.mxu0 0.0
    %3784 = vmatprep.subr.mxu0 0.0
    %3785 = vmatpush1.msra.mxu0 0.0
    %3786 = vmatprep.subr.mxu0 0.0
    %3787 = vmatpush1.msra.mxu0 0.0
    %3788 = vmatprep.subr.mxu0 0.0
    %3789 = vmatpush1.msra.mxu0 0.0
    %3790 = vmatprep.subr.mxu0 0.0
    %3791 = vmatpush1.msra.mxu0 0.0
    %3792 = vmatprep.subr.mxu0 0.0
    %3793 = vmatpush1.msra.mxu0 0.0
    %3794 = vmatprep.subr.mxu0 0.0
    %3795 = vmatpush1.msra.mxu0 0.0
    %3796 = vmatprep.subr.mxu0 0.0
    %3797 = vmatpush1.msra.mxu0 0.0
    %3798 = vmatprep.subr.mxu0 0.0
    %3799 = vmatpush1.msra.mxu0 0.0
    %3800 = vmatprep.subr.mxu0 0.0
    %3801 = vmatpush1.msra.mxu0 0.0
    %3802 = vmatprep.subr.mxu0 0.0
    %3803 = vmatpush1.msra.mxu0 0.0
    %3804 = vmatprep.subr.mxu0 0.0
    %3805 = vmatpush1.msra.mxu0 0.0
    %3806 = vmatprep.subr.mxu0 0.0
    %3807 = vmatpush1.msra.mxu0 0.0
    %3808 = vmatprep.subr.mxu0 0.0
    %3809 = vmatpush1.msra.mxu0 0.0
    %3810 = vmatprep.subr.mxu0 0.0
    %3811 = vmatpush1.msra.mxu0 0.0
    %3812 = vmatprep.subr.mxu0 0.0
    %3813 = vmatpush1.msra.mxu0 0.0
    %3814 = vmatprep.subr.mxu0 0.0
    %3815 = vmatpush1.msra.mxu0 0.0
    %3816 = vmatprep.subr.mxu0 0.0
    %3817 = vmatpush1.msra.mxu0 0.0
    %3818 = vmatprep.subr.mxu0 0.0
    %3819 = vmatpush1.msra.mxu0 0.0
    %3820 = vmatprep.subr.mxu0 0.0
    %3821 = vmatpush1.msra.mxu0 0.0
    %3822 = vmatprep.mubr.f32.mxu0 0.0
    %3823 = vmatmul.mubr.f32.gmra.mrb[0].mxu0 %v3753
    %v3824 = vpop.f32.mrb[0].mxu0
    %v3825 = vadd.f32 0.0, %v3824
    %v3826 = vpop.f32.mrb[0].mxu0
    %3827 = vmatprep.mubr.f32.mxu0 0.0
    %3828 = vmatmul.mubr.f32.gmra.mrb[0].mxu0 %v3756
    %v3829 = vpop.f32.mrb[0].mxu0
    %v3830 = vadd.f32 0.0, %v3829
    %v3831 = vpop.f32.mrb[0].mxu0
    %3832 = vdwg.mxu0
    %v3834 = vsel %vm3251, %v3422, 0
    %v3837 = vsel %vm3251, %v3423, 0
    %3839 = vmatprep.subr.mxu0 0.0
    %3840 = vmatpush1.msra.mxu0 %v2380
    %3841 = vmatprep.subr.mxu0 0.0
    %3842 = vmatpush1.msra.mxu0 %v2385
    %3843 = vmatprep.subr.mxu0 0.0
    %3844 = vmatpush1.msra.mxu0 0.0
    %3845 = vmatprep.subr.mxu0 0.0
    %3846 = vmatpush1.msra.mxu0 0.0
    %3847 = vmatprep.subr.mxu0 0.0
    %3848 = vmatpush1.msra.mxu0 0.0
    %3849 = vmatprep.subr.mxu0 0.0
    %3850 = vmatpush1.msra.mxu0 0.0
    %3851 = vmatprep.subr.mxu0 0.0
    %3852 = vmatpush1.msra.mxu0 0.0
    %3853 = vmatprep.subr.mxu0 0.0
    %3854 = vmatpush1.msra.mxu0 0.0
    %3855 = vmatprep.subr.mxu0 0.0
    %3856 = vmatpush1.msra.mxu0 0.0
    %3857 = vmatprep.subr.mxu0 0.0
    %3858 = vmatpush1.msra.mxu0 0.0
    %3859 = vmatprep.subr.mxu0 0.0
    %3860 = vmatpush1.msra.mxu0 0.0
    %3861 = vmatprep.subr.mxu0 0.0
    %3862 = vmatpush1.msra.mxu0 0.0
    %3863 = vmatprep.subr.mxu0 0.0
    %3864 = vmatpush1.msra.mxu0 0.0
    %3865 = vmatprep.subr.mxu0 0.0
    %3866 = vmatpush1.msra.mxu0 0.0
    %3867 = vmatprep.subr.mxu0 0.0
    %3868 = vmatpush1.msra.mxu0 0.0
    %3869 = vmatprep.subr.mxu0 0.0
    %3870 = vmatpush1.msra.mxu0 0.0
    %3871 = vmatprep.subr.mxu0 0.0
    %3872 = vmatpush1.msra.mxu0 0.0
    %3873 = vmatprep.subr.mxu0 0.0
    %3874 = vmatpush1.msra.mxu0 0.0
    %3875 = vmatprep.subr.mxu0 0.0
    %3876 = vmatpush1.msra.mxu0 0.0
    %3877 = vmatprep.subr.mxu0 0.0
    %3878 = vmatpush1.msra.mxu0 0.0
    %3879 = vmatprep.subr.mxu0 0.0
    %3880 = vmatpush1.msra.mxu0 0.0
    %3881 = vmatprep.subr.mxu0 0.0
    %3882 = vmatpush1.msra.mxu0 0.0
    %3883 = vmatprep.subr.mxu0 0.0
    %3884 = vmatpush1.msra.mxu0 0.0
    %3885 = vmatprep.subr.mxu0 0.0
    %3886 = vmatpush1.msra.mxu0 0.0
    %3887 = vmatprep.subr.mxu0 0.0
    %3888 = vmatpush1.msra.mxu0 0.0
    %3889 = vmatprep.subr.mxu0 0.0
    %3890 = vmatpush1.msra.mxu0 0.0
    %3891 = vmatprep.subr.mxu0 0.0
    %3892 = vmatpush1.msra.mxu0 0.0
    %3893 = vmatprep.subr.mxu0 0.0
    %3894 = vmatpush1.msra.mxu0 0.0
    %3895 = vmatprep.subr.mxu0 0.0
    %3896 = vmatpush1.msra.mxu0 0.0
    %3897 = vmatprep.subr.mxu0 0.0
    %3898 = vmatpush1.msra.mxu0 0.0
    %3899 = vmatprep.subr.mxu0 0.0
    %3900 = vmatpush1.msra.mxu0 0.0
    %3901 = vmatprep.subr.mxu0 0.0
    %3902 = vmatpush1.msra.mxu0 0.0
    %3903 = vmatprep.mubr.f32.mxu0 0.0
    %3904 = vmatmul.mubr.f32.gmra.mrb[0].mxu0 %v3834
    %v3905 = vpop.f32.mrb[0].mxu0
    %v3906 = vadd.f32 0.0, %v3905
    %v3907 = vpop.f32.mrb[0].mxu0
    %3908 = vmatprep.mubr.f32.mxu0 0.0
    %3909 = vmatmul.mubr.f32.gmra.mrb[0].mxu0 %v3837
    %v3910 = vpop.f32.mrb[0].mxu0
    %v3911 = vadd.f32 0.0, %v3910
    %v3912 = vpop.f32.mrb[0].mxu0
    %3913 = vdwg.mxu0
    %v3915 = vsel %vm3251, %v3424, 0
    %v3918 = vsel %vm3251, %v3425, 0
    %3920 = vmatprep.subr.mxu0 0.0
    %3921 = vmatpush1.msra.mxu0 %v2455
    %3922 = vmatprep.subr.mxu0 0.0
    %3923 = vmatpush1.msra.mxu0 %v2460
    %3924 = vmatprep.subr.mxu0 0.0
    %3925 = vmatpush1.msra.mxu0 0.0
    %3926 = vmatprep.subr.mxu0 0.0
    %3927 = vmatpush1.msra.mxu0 0.0
    %3928 = vmatprep.subr.mxu0 0.0
    %3929 = vmatpush1.msra.mxu0 0.0
    %3930 = vmatprep.subr.mxu0 0.0
    %3931 = vmatpush1.msra.mxu0 0.0
    %3932 = vmatprep.subr.mxu0 0.0
    %3933 = vmatpush1.msra.mxu0 0.0
    %3934 = vmatprep.subr.mxu0 0.0
    %3935 = vmatpush1.msra.mxu0 0.0
    %3936 = vmatprep.subr.mxu0 0.0
    %3937 = vmatpush1.msra.mxu0 0.0
    %3938 = vmatprep.subr.mxu0 0.0
    %3939 = vmatpush1.msra.mxu0 0.0
    %3940 = vmatprep.subr.mxu0 0.0
    %3941 = vmatpush1.msra.mxu0 0.0
    %3942 = vmatprep.subr.mxu0 0.0
    %3943 = vmatpush1.msra.mxu0 0.0
    %3944 = vmatprep.subr.mxu0 0.0
    %3945 = vmatpush1.msra.mxu0 0.0
    %3946 = vmatprep.subr.mxu0 0.0
    %3947 = vmatpush1.msra.mxu0 0.0
    %3948 = vmatprep.subr.mxu0 0.0
    %3949 = vmatpush1.msra.mxu0 0.0
    %3950 = vmatprep.subr.mxu0 0.0
    %3951 = vmatpush1.msra.mxu0 0.0
    %3952 = vmatprep.subr.mxu0 0.0
    %3953 = vmatpush1.msra.mxu0 0.0
    %3954 = vmatprep.subr.mxu0 0.0
    %3955 = vmatpush1.msra.mxu0 0.0
    %3956 = vmatprep.subr.mxu0 0.0
    %3957 = vmatpush1.msra.mxu0 0.0
    %3958 = vmatprep.subr.mxu0 0.0
    %3959 = vmatpush1.msra.mxu0 0.0
    %3960 = vmatprep.subr.mxu0 0.0
    %3961 = vmatpush1.msra.mxu0 0.0
    %3962 = vmatprep.subr.mxu0 0.0
    %3963 = vmatpush1.msra.mxu0 0.0
    %3964 = vmatprep.subr.mxu0 0.0
    %3965 = vmatpush1.msra.mxu0 0.0
    %3966 = vmatprep.subr.mxu0 0.0
    %3967 = vmatpush1.msra.mxu0 0.0
    %3968 = vmatprep.subr.mxu0 0.0
    %3969 = vmatpush1.msra.mxu0 0.0
    %3970 = vmatprep.subr.mxu0 0.0
    %3971 = vmatpush1.msra.mxu0 0.0
    %3972 = vmatprep.subr.mxu0 0.0
    %3973 = vmatpush1.msra.mxu0 0.0
    %3974 = vmatprep.subr.mxu0 0.0
    %3975 = vmatpush1.msra.mxu0 0.0
    %3976 = vmatprep.subr.mxu0 0.0
    %3977 = vmatpush1.msra.mxu0 0.0
    %3978 = vmatprep.subr.mxu0 0.0
    %3979 = vmatpush1.msra.mxu0 0.0
    %3980 = vmatprep.subr.mxu0 0.0
    %3981 = vmatpush1.msra.mxu0 0.0
    %3982 = vmatprep.subr.mxu0 0.0
    %3983 = vmatpush1.msra.mxu0 0.0
    %3984 = vmatprep.mubr.f32.mxu0 0.0
    %3985 = vmatmul.mubr.f32.gmra.mrb[0].mxu0 %v3915
    %v3986 = vpop.f32.mrb[0].mxu0
    %v3987 = vadd.f32 0.0, %v3986
    %v3988 = vpop.f32.mrb[0].mxu0
    %3989 = vmatprep.mubr.f32.mxu0 0.0
    %3990 = vmatmul.mubr.f32.gmra.mrb[0].mxu0 %v3918
    %v3991 = vpop.f32.mrb[0].mxu0
    %v3992 = vadd.f32 0.0, %v3991
    %v3993 = vpop.f32.mrb[0].mxu0
    %3994 = vdwg.mxu0
    %v3996 = vsel %vm3251, %v3426, 0
    %v3999 = vsel %vm3251, %v3427, 0
    %4001 = vmatprep.subr.mxu0 0.0
    %4002 = vmatpush1.msra.mxu0 %v2530
    %4003 = vmatprep.subr.mxu0 0.0
    %4004 = vmatpush1.msra.mxu0 %v2535
    %4005 = vmatprep.subr.mxu0 0.0
    %4006 = vmatpush1.msra.mxu0 0.0
    %4007 = vmatprep.subr.mxu0 0.0
    %4008 = vmatpush1.msra.mxu0 0.0
    %4009 = vmatprep.subr.mxu0 0.0
    %4010 = vmatpush1.msra.mxu0 0.0
    %4011 = vmatprep.subr.mxu0 0.0
    %4012 = vmatpush1.msra.mxu0 0.0
    %4013 = vmatprep.subr.mxu0 0.0
    %4014 = vmatpush1.msra.mxu0 0.0
    %4015 = vmatprep.subr.mxu0 0.0
    %4016 = vmatpush1.msra.mxu0 0.0
    %4017 = vmatprep.subr.mxu0 0.0
    %4018 = vmatpush1.msra.mxu0 0.0
    %4019 = vmatprep.subr.mxu0 0.0
    %4020 = vmatpush1.msra.mxu0 0.0
    %4021 = vmatprep.subr.mxu0 0.0
    %4022 = vmatpush1.msra.mxu0 0.0
    %4023 = vmatprep.subr.mxu0 0.0
    %4024 = vmatpush1.msra.mxu0 0.0
    %4025 = vmatprep.subr.mxu0 0.0
    %4026 = vmatpush1.msra.mxu0 0.0
    %4027 = vmatprep.subr.mxu0 0.0
    %4028 = vmatpush1.msra.mxu0 0.0
    %4029 = vmatprep.subr.mxu0 0.0
    %4030 = vmatpush1.msra.mxu0 0.0
    %4031 = vmatprep.subr.mxu0 0.0
    %4032 = vmatpush1.msra.mxu0 0.0
    %4033 = vmatprep.subr.mxu0 0.0
    %4034 = vmatpush1.msra.mxu0 0.0
    %4035 = vmatprep.subr.mxu0 0.0
    %4036 = vmatpush1.msra.mxu0 0.0
    %4037 = vmatprep.subr.mxu0 0.0
    %4038 = vmatpush1.msra.mxu0 0.0
    %4039 = vmatprep.subr.mxu0 0.0
    %4040 = vmatpush1.msra.mxu0 0.0
    %4041 = vmatprep.subr.mxu0 0.0
    %4042 = vmatpush1.msra.mxu0 0.0
    %4043 = vmatprep.subr.mxu0 0.0
    %4044 = vmatpush1.msra.mxu0 0.0
    %4045 = vmatprep.subr.mxu0 0.0
    %4046 = vmatpush1.msra.mxu0 0.0
    %4047 = vmatprep.subr.mxu0 0.0
    %4048 = vmatpush1.msra.mxu0 0.0
    %4049 = vmatprep.subr.mxu0 0.0
    %4050 = vmatpush1.msra.mxu0 0.0
    %4051 = vmatprep.subr.mxu0 0.0
    %4052 = vmatpush1.msra.mxu0 0.0
    %4053 = vmatprep.subr.mxu0 0.0
    %4054 = vmatpush1.msra.mxu0 0.0
    %4055 = vmatprep.subr.mxu0 0.0
    %4056 = vmatpush1.msra.mxu0 0.0
    %4057 = vmatprep.subr.mxu0 0.0
    %4058 = vmatpush1.msra.mxu0 0.0
    %4059 = vmatprep.subr.mxu0 0.0
    %4060 = vmatpush1.msra.mxu0 0.0
    %4061 = vmatprep.subr.mxu0 0.0
    %4062 = vmatpush1.msra.mxu0 0.0
    %4063 = vmatprep.subr.mxu0 0.0
    %4064 = vmatpush1.msra.mxu0 0.0
    %4065 = vmatprep.mubr.f32.mxu0 0.0
    %4066 = vmatmul.mubr.f32.gmra.mrb[0].mxu0 %v3996
    %v4067 = vpop.f32.mrb[0].mxu0
    %v4068 = vadd.f32 0.0, %v4067
    %v4069 = vpop.f32.mrb[0].mxu0
    %4070 = vmatprep.mubr.f32.mxu0 0.0
    %4071 = vmatmul.mubr.f32.gmra.mrb[0].mxu0 %v3999
    %v4072 = vpop.f32.mrb[0].mxu0
    %v4073 = vadd.f32 0.0, %v4072
    %v4074 = vpop.f32.mrb[0].mxu0
    %4075 = vdwg.mxu0
    %v4076 = vld [vmem:[%s14] sm:$0xff]
    %v4077 = vld [vmem:[%s14 + $0x8] sm:$0xff]
    %v4078 = vld [vmem:[%s14 + $0x10] sm:$0xff]
    %v4079 = vld [vmem:[%s14 + $0x18] sm:$0xff]
    %v4081 = vsel %vm2554, %v3501, 0
    %v4084 = vsel %vm2554, %v3506, 0
    %4086 = vmatprep.subr.mxu0 0.0
    %4087 = vmatpush1.msra.mxu0 %v4076
    %4088 = vmatprep.subr.mxu0 0.0
    %4089 = vmatpush1.msra.mxu0 0.0
    %4090 = vmatprep.subr.mxu0 0.0
    %4091 = vmatpush1.msra.mxu0 0.0
    %4092 = vmatprep.subr.mxu0 0.0
    %4093 = vmatpush1.msra.mxu0 0.0
    %4094 = vmatprep.subr.mxu0 0.0
    %4095 = vmatpush1.msra.mxu0 0.0
    %4096 = vmatprep.subr.mxu0 0.0
    %4097 = vmatpush1.msra.mxu0 0.0
    %4098 = vmatprep.subr.mxu0 0.0
    %4099 = vmatpush1.msra.mxu0 0.0
    %4100 = vmatprep.subr.mxu0 0.0
    %4101 = vmatpush1.msra.mxu0 0.0
    %4102 = vmatprep.subr.mxu0 0.0
    %4103 = vmatpush1.msra.mxu0 0.0
    %4104 = vmatprep.subr.mxu0 0.0
    %4105 = vmatpush1.msra.mxu0 0.0
    %4106 = vmatprep.subr.mxu0 0.0
    %4107 = vmatpush1.msra.mxu0 0.0
    %4108 = vmatprep.subr.mxu0 0.0
    %4109 = vmatpush1.msra.mxu0 0.0
    %4110 = vmatprep.subr.mxu0 0.0
    %4111 = vmatpush1.msra.mxu0 0.0
    %4112 = vmatprep.subr.mxu0 0.0
    %4113 = vmatpush1.msra.mxu0 0.0
    %4114 = vmatprep.subr.mxu0 0.0
    %4115 = vmatpush1.msra.mxu0 0.0
    %4116 = vmatprep.subr.mxu0 0.0
    %4117 = vmatpush1.msra.mxu0 0.0
    %4118 = vmatprep.subr.mxu0 0.0
    %4119 = vmatpush1.msra.mxu0 0.0
    %4120 = vmatprep.subr.mxu0 0.0
    %4121 = vmatpush1.msra.mxu0 0.0
    %4122 = vmatprep.subr.mxu0 0.0
    %4123 = vmatpush1.msra.mxu0 0.0
    %4124 = vmatprep.subr.mxu0 0.0
    %4125 = vmatpush1.msra.mxu0 0.0
    %4126 = vmatprep.subr.mxu0 0.0
    %4127 = vmatpush1.msra.mxu0 0.0
    %4128 = vmatprep.subr.mxu0 0.0
    %4129 = vmatpush1.msra.mxu0 0.0
    %4130 = vmatprep.subr.mxu0 0.0
    %4131 = vmatpush1.msra.mxu0 0.0
    %4132 = vmatprep.subr.mxu0 0.0
    %4133 = vmatpush1.msra.mxu0 0.0
    %4134 = vmatprep.subr.mxu0 0.0
    %4135 = vmatpush1.msra.mxu0 0.0
    %4136 = vmatprep.subr.mxu0 0.0
    %4137 = vmatpush1.msra.mxu0 0.0
    %4138 = vmatprep.subr.mxu0 0.0
    %4139 = vmatpush1.msra.mxu0 0.0
    %4140 = vmatprep.subr.mxu0 0.0
    %4141 = vmatpush1.msra.mxu0 0.0
    %4142 = vmatprep.subr.mxu0 0.0
    %4143 = vmatpush1.msra.mxu0 0.0
    %4144 = vmatprep.subr.mxu0 0.0
    %4145 = vmatpush1.msra.mxu0 0.0
    %4146 = vmatprep.subr.mxu0 0.0
    %4147 = vmatpush1.msra.mxu0 0.0
    %4148 = vmatprep.subr.mxu0 0.0
    %4149 = vmatpush1.msra.mxu0 0.0
    %4150 = vmatprep.mubr.f32.mxu0 0.0
    %4151 = vmatmul.mubr.f32.gmra.mrb[0].mxu0 %v4081
    %v4152 = vpop.f32.mrb[0].mxu0
    %v4153 = vadd.f32 0.0, %v4152
    %v4154 = vpop.f32.mrb[0].mxu0
    %4155 = vmatprep.mubr.f32.mxu0 0.0
    %4156 = vmatmul.mubr.f32.gmra.mrb[0].mxu0 %v4084
    %v4157 = vpop.f32.mrb[0].mxu0
    %v4158 = vadd.f32 0.0, %v4157
    %v4159 = vpop.f32.mrb[0].mxu0
    %4160 = vdwg.mxu0
    %v4162 = vsel %vm2554, %v3582, 0
    %v4165 = vsel %vm2554, %v3587, 0
    %4167 = vmatprep.subr.mxu0 0.0
    %4168 = vmatpush1.msra.mxu0 %v4077
    %4169 = vmatprep.subr.mxu0 0.0
    %4170 = vmatpush1.msra.mxu0 0.0
    %4171 = vmatprep.subr.mxu0 0.0
    %4172 = vmatpush1.msra.mxu0 0.0
    %4173 = vmatprep.subr.mxu0 0.0
    %4174 = vmatpush1.msra.mxu0 0.0
    %4175 = vmatprep.subr.mxu0 0.0
    %4176 = vmatpush1.msra.mxu0 0.0
    %4177 = vmatprep.subr.mxu0 0.0
    %4178 = vmatpush1.msra.mxu0 0.0
    %4179 = vmatprep.subr.mxu0 0.0
    %4180 = vmatpush1.msra.mxu0 0.0
    %4181 = vmatprep.subr.mxu0 0.0
    %4182 = vmatpush1.msra.mxu0 0.0
    %4183 = vmatprep.subr.mxu0 0.0
    %4184 = vmatpush1.msra.mxu0 0.0
    %4185 = vmatprep.subr.mxu0 0.0
    %4186 = vmatpush1.msra.mxu0 0.0
    %4187 = vmatprep.subr.mxu0 0.0
    %4188 = vmatpush1.msra.mxu0 0.0
    %4189 = vmatprep.subr.mxu0 0.0
    %4190 = vmatpush1.msra.mxu0 0.0
    %4191 = vmatprep.subr.mxu0 0.0
    %4192 = vmatpush1.msra.mxu0 0.0
    %4193 = vmatprep.subr.mxu0 0.0
    %4194 = vmatpush1.msra.mxu0 0.0
    %4195 = vmatprep.subr.mxu0 0.0
    %4196 = vmatpush1.msra.mxu0 0.0
    %4197 = vmatprep.subr.mxu0 0.0
    %4198 = vmatpush1.msra.mxu0 0.0
    %4199 = vmatprep.subr.mxu0 0.0
    %4200 = vmatpush1.msra.mxu0 0.0
    %4201 = vmatprep.subr.mxu0 0.0
    %4202 = vmatpush1.msra.mxu0 0.0
    %4203 = vmatprep.subr.mxu0 0.0
    %4204 = vmatpush1.msra.mxu0 0.0
    %4205 = vmatprep.subr.mxu0 0.0
    %4206 = vmatpush1.msra.mxu0 0.0
    %4207 = vmatprep.subr.mxu0 0.0
    %4208 = vmatpush1.msra.mxu0 0.0
    %4209 = vmatprep.subr.mxu0 0.0
    %4210 = vmatpush1.msra.mxu0 0.0
    %4211 = vmatprep.subr.mxu0 0.0
    %4212 = vmatpush1.msra.mxu0 0.0
    %4213 = vmatprep.subr.mxu0 0.0
    %4214 = vmatpush1.msra.mxu0 0.0
    %4215 = vmatprep.subr.mxu0 0.0
    %4216 = vmatpush1.msra.mxu0 0.0
    %4217 = vmatprep.subr.mxu0 0.0
    %4218 = vmatpush1.msra.mxu0 0.0
    %4219 = vmatprep.subr.mxu0 0.0
    %4220 = vmatpush1.msra.mxu0 0.0
    %4221 = vmatprep.subr.mxu0 0.0
    %4222 = vmatpush1.msra.mxu0 0.0
    %4223 = vmatprep.subr.mxu0 0.0
    %4224 = vmatpush1.msra.mxu0 0.0
    %4225 = vmatprep.subr.mxu0 0.0
    %4226 = vmatpush1.msra.mxu0 0.0
    %4227 = vmatprep.subr.mxu0 0.0
    %4228 = vmatpush1.msra.mxu0 0.0
    %4229 = vmatprep.subr.mxu0 0.0
    %4230 = vmatpush1.msra.mxu0 0.0
    %4231 = vmatprep.mubr.f32.mxu0 0.0
    %4232 = vmatmul.mubr.f32.gmra.mrb[0].mxu0 %v4162
    %v4233 = vpop.f32.mrb[0].mxu0
    %v4234 = vadd.f32 0.0, %v4233
    %v4235 = vpop.f32.mrb[0].mxu0
    %4236 = vmatprep.mubr.f32.mxu0 0.0
    %4237 = vmatmul.mubr.f32.gmra.mrb[0].mxu0 %v4165
    %v4238 = vpop.f32.mrb[0].mxu0
    %v4239 = vadd.f32 0.0, %v4238
    %v4240 = vpop.f32.mrb[0].mxu0
    %4241 = vdwg.mxu0
    %v4243 = vsel %vm2554, %v3663, 0
    %v4246 = vsel %vm2554, %v3668, 0
    %4248 = vmatprep.subr.mxu0 0.0
    %4249 = vmatpush1.msra.mxu0 %v4078
    %4250 = vmatprep.subr.mxu0 0.0
    %4251 = vmatpush1.msra.mxu0 0.0
    %4252 = vmatprep.subr.mxu0 0.0
    %4253 = vmatpush1.msra.mxu0 0.0
    %4254 = vmatprep.subr.mxu0 0.0
    %4255 = vmatpush1.msra.mxu0 0.0
    %4256 = vmatprep.subr.mxu0 0.0
    %4257 = vmatpush1.msra.mxu0 0.0
    %4258 = vmatprep.subr.mxu0 0.0
    %4259 = vmatpush1.msra.mxu0 0.0
    %4260 = vmatprep.subr.mxu0 0.0
    %4261 = vmatpush1.msra.mxu0 0.0
    %4262 = vmatprep.subr.mxu0 0.0
    %4263 = vmatpush1.msra.mxu0 0.0
    %4264 = vmatprep.subr.mxu0 0.0
    %4265 = vmatpush1.msra.mxu0 0.0
    %4266 = vmatprep.subr.mxu0 0.0
    %4267 = vmatpush1.msra.mxu0 0.0
    %4268 = vmatprep.subr.mxu0 0.0
    %4269 = vmatpush1.msra.mxu0 0.0
    %4270 = vmatprep.subr.mxu0 0.0
    %4271 = vmatpush1.msra.mxu0 0.0
    %4272 = vmatprep.subr.mxu0 0.0
    %4273 = vmatpush1.msra.mxu0 0.0
    %4274 = vmatprep.subr.mxu0 0.0
    %4275 = vmatpush1.msra.mxu0 0.0
    %4276 = vmatprep.subr.mxu0 0.0
    %4277 = vmatpush1.msra.mxu0 0.0
    %4278 = vmatprep.subr.mxu0 0.0
    %4279 = vmatpush1.msra.mxu0 0.0
    %4280 = vmatprep.subr.mxu0 0.0
    %4281 = vmatpush1.msra.mxu0 0.0
    %4282 = vmatprep.subr.mxu0 0.0
    %4283 = vmatpush1.msra.mxu0 0.0
    %4284 = vmatprep.subr.mxu0 0.0
    %4285 = vmatpush1.msra.mxu0 0.0
    %4286 = vmatprep.subr.mxu0 0.0
    %4287 = vmatpush1.msra.mxu0 0.0
    %4288 = vmatprep.subr.mxu0 0.0
    %4289 = vmatpush1.msra.mxu0 0.0
    %4290 = vmatprep.subr.mxu0 0.0
    %4291 = vmatpush1.msra.mxu0 0.0
    %4292 = vmatprep.subr.mxu0 0.0
    %4293 = vmatpush1.msra.mxu0 0.0
    %4294 = vmatprep.subr.mxu0 0.0
    %4295 = vmatpush1.msra.mxu0 0.0
    %4296 = vmatprep.subr.mxu0 0.0
    %4297 = vmatpush1.msra.mxu0 0.0
    %4298 = vmatprep.subr.mxu0 0.0
    %4299 = vmatpush1.msra.mxu0 0.0
    %4300 = vmatprep.subr.mxu0 0.0
    %4301 = vmatpush1.msra.mxu0 0.0
    %4302 = vmatprep.subr.mxu0 0.0
    %4303 = vmatpush1.msra.mxu0 0.0
    %4304 = vmatprep.subr.mxu0 0.0
    %4305 = vmatpush1.msra.mxu0 0.0
    %4306 = vmatprep.subr.mxu0 0.0
    %4307 = vmatpush1.msra.mxu0 0.0
    %4308 = vmatprep.subr.mxu0 0.0
    %4309 = vmatpush1.msra.mxu0 0.0
    %4310 = vmatprep.subr.mxu0 0.0
    %4311 = vmatpush1.msra.mxu0 0.0
    %4312 = vmatprep.mubr.f32.mxu0 0.0
    %4313 = vmatmul.mubr.f32.gmra.mrb[0].mxu0 %v4243
    %v4314 = vpop.f32.mrb[0].mxu0
    %v4315 = vadd.f32 0.0, %v4314
    %v4316 = vpop.f32.mrb[0].mxu0
    %4317 = vmatprep.mubr.f32.mxu0 0.0
    %4318 = vmatmul.mubr.f32.gmra.mrb[0].mxu0 %v4246
    %v4319 = vpop.f32.mrb[0].mxu0
    %v4320 = vadd.f32 0.0, %v4319
    %v4321 = vpop.f32.mrb[0].mxu0
    %4322 = vdwg.mxu0
    %v4324 = vsel %vm2554, %v3744, 0
    %v4327 = vsel %vm2554, %v3749, 0
    %4329 = vmatprep.subr.mxu0 0.0
    %4330 = vmatpush1.msra.mxu0 %v4079
    %4331 = vmatprep.subr.mxu0 0.0
    %4332 = vmatpush1.msra.mxu0 0.0
    %4333 = vmatprep.subr.mxu0 0.0
    %4334 = vmatpush1.msra.mxu0 0.0
    %4335 = vmatprep.subr.mxu0 0.0
    %4336 = vmatpush1.msra.mxu0 0.0
    %4337 = vmatprep.subr.mxu0 0.0
    %4338 = vmatpush1.msra.mxu0 0.0
    %4339 = vmatprep.subr.mxu0 0.0
    %4340 = vmatpush1.msra.mxu0 0.0
    %4341 = vmatprep.subr.mxu0 0.0
    %4342 = vmatpush1.msra.mxu0 0.0
    %4343 = vmatprep.subr.mxu0 0.0
    %4344 = vmatpush1.msra.mxu0 0.0
    %4345 = vmatprep.subr.mxu0 0.0
    %4346 = vmatpush1.msra.mxu0 0.0
    %4347 = vmatprep.subr.mxu0 0.0
    %4348 = vmatpush1.msra.mxu0 0.0
    %4349 = vmatprep.subr.mxu0 0.0
    %4350 = vmatpush1.msra.mxu0 0.0
    %4351 = vmatprep.subr.mxu0 0.0
    %4352 = vmatpush1.msra.mxu0 0.0
    %4353 = vmatprep.subr.mxu0 0.0
    %4354 = vmatpush1.msra.mxu0 0.0
    %4355 = vmatprep.subr.mxu0 0.0
    %4356 = vmatpush1.msra.mxu0 0.0
    %4357 = vmatprep.subr.mxu0 0.0
    %4358 = vmatpush1.msra.mxu0 0.0
    %4359 = vmatprep.subr.mxu0 0.0
    %4360 = vmatpush1.msra.mxu0 0.0
    %4361 = vmatprep.subr.mxu0 0.0
    %4362 = vmatpush1.msra.mxu0 0.0
    %4363 = vmatprep.subr.mxu0 0.0
    %4364 = vmatpush1.msra.mxu0 0.0
    %4365 = vmatprep.subr.mxu0 0.0
    %4366 = vmatpush1.msra.mxu0 0.0
    %4367 = vmatprep.subr.mxu0 0.0
    %4368 = vmatpush1.msra.mxu0 0.0
    %4369 = vmatprep.subr.mxu0 0.0
    %4370 = vmatpush1.msra.mxu0 0.0
    %4371 = vmatprep.subr.mxu0 0.0
    %4372 = vmatpush1.msra.mxu0 0.0
    %4373 = vmatprep.subr.mxu0 0.0
    %4374 = vmatpush1.msra.mxu0 0.0
    %4375 = vmatprep.subr.mxu0 0.0
    %4376 = vmatpush1.msra.mxu0 0.0
    %4377 = vmatprep.subr.mxu0 0.0
    %4378 = vmatpush1.msra.mxu0 0.0
    %4379 = vmatprep.subr.mxu0 0.0
    %4380 = vmatpush1.msra.mxu0 0.0
    %4381 = vmatprep.subr.mxu0 0.0
    %4382 = vmatpush1.msra.mxu0 0.0
    %4383 = vmatprep.subr.mxu0 0.0
    %4384 = vmatpush1.msra.mxu0 0.0
    %4385 = vmatprep.subr.mxu0 0.0
    %4386 = vmatpush1.msra.mxu0 0.0
    %4387 = vmatprep.subr.mxu0 0.0
    %4388 = vmatpush1.msra.mxu0 0.0
    %4389 = vmatprep.subr.mxu0 0.0
    %4390 = vmatpush1.msra.mxu0 0.0
    %4391 = vmatprep.subr.mxu0 0.0
    %4392 = vmatpush1.msra.mxu0 0.0
    %4393 = vmatprep.mubr.f32.mxu0 0.0
    %4394 = vmatmul.mubr.f32.gmra.mrb[0].mxu0 %v4324
    %v4395 = vpop.f32.mrb[0].mxu0
    %v4396 = vadd.f32 0.0, %v4395
    %v4397 = vpop.f32.mrb[0].mxu0
    %4398 = vmatprep.mubr.f32.mxu0 0.0
    %4399 = vmatmul.mubr.f32.gmra.mrb[0].mxu0 %v4327
    %v4400 = vpop.f32.mrb[0].mxu0
    %v4401 = vadd.f32 0.0, %v4400
    %v4402 = vpop.f32.mrb[0].mxu0
    %4403 = vdwg.mxu0
    %v4405 = vsel %vm2554, %v3825, 0
    %v4408 = vsel %vm2554, %v3830, 0
    %4410 = vmatprep.subr.mxu0 0.0
    %4411 = vmatpush1.msra.mxu0 %v4076
    %4412 = vmatprep.subr.mxu0 0.0
    %4413 = vmatpush1.msra.mxu0 0.0
    %4414 = vmatprep.subr.mxu0 0.0
    %4415 = vmatpush1.msra.mxu0 0.0
    %4416 = vmatprep.subr.mxu0 0.0
    %4417 = vmatpush1.msra.mxu0 0.0
    %4418 = vmatprep.subr.mxu0 0.0
    %4419 = vmatpush1.msra.mxu0 0.0
    %4420 = vmatprep.subr.mxu0 0.0
    %4421 = vmatpush1.msra.mxu0 0.0
    %4422 = vmatprep.subr.mxu0 0.0
    %4423 = vmatpush1.msra.mxu0 0.0
    %4424 = vmatprep.subr.mxu0 0.0
    %4425 = vmatpush1.msra.mxu0 0.0
    %4426 = vmatprep.subr.mxu0 0.0
    %4427 = vmatpush1.msra.mxu0 0.0
    %4428 = vmatprep.subr.mxu0 0.0
    %4429 = vmatpush1.msra.mxu0 0.0
    %4430 = vmatprep.subr.mxu0 0.0
    %4431 = vmatpush1.msra.mxu0 0.0
    %4432 = vmatprep.subr.mxu0 0.0
    %4433 = vmatpush1.msra.mxu0 0.0
    %4434 = vmatprep.subr.mxu0 0.0
    %4435 = vmatpush1.msra.mxu0 0.0
    %4436 = vmatprep.subr.mxu0 0.0
    %4437 = vmatpush1.msra.mxu0 0.0
    %4438 = vmatprep.subr.mxu0 0.0
    %4439 = vmatpush1.msra.mxu0 0.0
    %4440 = vmatprep.subr.mxu0 0.0
    %4441 = vmatpush1.msra.mxu0 0.0
    %4442 = vmatprep.subr.mxu0 0.0
    %4443 = vmatpush1.msra.mxu0 0.0
    %4444 = vmatprep.subr.mxu0 0.0
    %4445 = vmatpush1.msra.mxu0 0.0
    %4446 = vmatprep.subr.mxu0 0.0
    %4447 = vmatpush1.msra.mxu0 0.0
    %4448 = vmatprep.subr.mxu0 0.0
    %4449 = vmatpush1.msra.mxu0 0.0
    %4450 = vmatprep.subr.mxu0 0.0
    %4451 = vmatpush1.msra.mxu0 0.0
    %4452 = vmatprep.subr.mxu0 0.0
    %4453 = vmatpush1.msra.mxu0 0.0
    %4454 = vmatprep.subr.mxu0 0.0
    %4455 = vmatpush1.msra.mxu0 0.0
    %4456 = vmatprep.subr.mxu0 0.0
    %4457 = vmatpush1.msra.mxu0 0.0
    %4458 = vmatprep.subr.mxu0 0.0
    %4459 = vmatpush1.msra.mxu0 0.0
    %4460 = vmatprep.subr.mxu0 0.0
    %4461 = vmatpush1.msra.mxu0 0.0
    %4462 = vmatprep.subr.mxu0 0.0
    %4463 = vmatpush1.msra.mxu0 0.0
    %4464 = vmatprep.subr.mxu0 0.0
    %4465 = vmatpush1.msra.mxu0 0.0
    %4466 = vmatprep.subr.mxu0 0.0
    %4467 = vmatpush1.msra.mxu0 0.0
    %4468 = vmatprep.subr.mxu0 0.0
    %4469 = vmatpush1.msra.mxu0 0.0
    %4470 = vmatprep.subr.mxu0 0.0
    %4471 = vmatpush1.msra.mxu0 0.0
    %4472 = vmatprep.subr.mxu0 0.0
    %4473 = vmatpush1.msra.mxu0 0.0
    %4474 = vmatprep.mubr.f32.mxu0 0.0
    %4475 = vmatmul.mubr.f32.gmra.mrb[0].mxu0 %v4405
    %v4476 = vpop.f32.mrb[0].mxu0
    %v4477 = vadd.f32 0.0, %v4476
    %v4478 = vpop.f32.mrb[0].mxu0
    %4479 = vmatprep.mubr.f32.mxu0 0.0
    %4480 = vmatmul.mubr.f32.gmra.mrb[0].mxu0 %v4408
    %v4481 = vpop.f32.mrb[0].mxu0
    %v4482 = vadd.f32 0.0, %v4481
    %v4483 = vpop.f32.mrb[0].mxu0
    %4484 = vdwg.mxu0
    %v4486 = vsel %vm2554, %v3906, 0
    %v4489 = vsel %vm2554, %v3911, 0
    %4491 = vmatprep.subr.mxu0 0.0
    %4492 = vmatpush1.msra.mxu0 %v4077
    %4493 = vmatprep.subr.mxu0 0.0
    %4494 = vmatpush1.msra.mxu0 0.0
    %4495 = vmatprep.subr.mxu0 0.0
    %4496 = vmatpush1.msra.mxu0 0.0
    %4497 = vmatprep.subr.mxu0 0.0
    %4498 = vmatpush1.msra.mxu0 0.0
    %4499 = vmatprep.subr.mxu0 0.0
    %4500 = vmatpush1.msra.mxu0 0.0
    %4501 = vmatprep.subr.mxu0 0.0
    %4502 = vmatpush1.msra.mxu0 0.0
    %4503 = vmatprep.subr.mxu0 0.0
    %4504 = vmatpush1.msra.mxu0 0.0
    %4505 = vmatprep.subr.mxu0 0.0
    %4506 = vmatpush1.msra.mxu0 0.0
    %4507 = vmatprep.subr.mxu0 0.0
    %4508 = vmatpush1.msra.mxu0 0.0
    %4509 = vmatprep.subr.mxu0 0.0
    %4510 = vmatpush1.msra.mxu0 0.0
    %4511 = vmatprep.subr.mxu0 0.0
    %4512 = vmatpush1.msra.mxu0 0.0
    %4513 = vmatprep.subr.mxu0 0.0
    %4514 = vmatpush1.msra.mxu0 0.0
    %4515 = vmatprep.subr.mxu0 0.0
    %4516 = vmatpush1.msra.mxu0 0.0
    %4517 = vmatprep.subr.mxu0 0.0
    %4518 = vmatpush1.msra.mxu0 0.0
    %4519 = vmatprep.subr.mxu0 0.0
    %4520 = vmatpush1.msra.mxu0 0.0
    %4521 = vmatprep.subr.mxu0 0.0
    %4522 = vmatpush1.msra.mxu0 0.0
    %4523 = vmatprep.subr.mxu0 0.0
    %4524 = vmatpush1.msra.mxu0 0.0
    %4525 = vmatprep.subr.mxu0 0.0
    %4526 = vmatpush1.msra.mxu0 0.0
    %4527 = vmatprep.subr.mxu0 0.0
    %4528 = vmatpush1.msra.mxu0 0.0
    %4529 = vmatprep.subr.mxu0 0.0
    %4530 = vmatpush1.msra.mxu0 0.0
    %4531 = vmatprep.subr.mxu0 0.0
    %4532 = vmatpush1.msra.mxu0 0.0
    %4533 = vmatprep.subr.mxu0 0.0
    %4534 = vmatpush1.msra.mxu0 0.0
    %4535 = vmatprep.subr.mxu0 0.0
    %4536 = vmatpush1.msra.mxu0 0.0
    %4537 = vmatprep.subr.mxu0 0.0
    %4538 = vmatpush1.msra.mxu0 0.0
    %4539 = vmatprep.subr.mxu0 0.0
    %4540 = vmatpush1.msra.mxu0 0.0
    %4541 = vmatprep.subr.mxu0 0.0
    %4542 = vmatpush1.msra.mxu0 0.0
    %4543 = vmatprep.subr.mxu0 0.0
    %4544 = vmatpush1.msra.mxu0 0.0
    %4545 = vmatprep.subr.mxu0 0.0
    %4546 = vmatpush1.msra.mxu0 0.0
    %4547 = vmatprep.subr.mxu0 0.0
    %4548 = vmatpush1.msra.mxu0 0.0
    %4549 = vmatprep.subr.mxu0 0.0
    %4550 = vmatpush1.msra.mxu0 0.0
    %4551 = vmatprep.subr.mxu0 0.0
    %4552 = vmatpush1.msra.mxu0 0.0
    %4553 = vmatprep.subr.mxu0 0.0
    %4554 = vmatpush1.msra.mxu0 0.0
    %4555 = vmatprep.mubr.f32.mxu0 0.0
    %4556 = vmatmul.mubr.f32.gmra.mrb[0].mxu0 %v4486
    %v4557 = vpop.f32.mrb[0].mxu0
    %v4558 = vadd.f32 0.0, %v4557
    %v4559 = vpop.f32.mrb[0].mxu0
    %4560 = vmatprep.mubr.f32.mxu0 0.0
    %4561 = vmatmul.mubr.f32.gmra.mrb[0].mxu0 %v4489
    %v4562 = vpop.f32.mrb[0].mxu0
    %v4563 = vadd.f32 0.0, %v4562
    %v4564 = vpop.f32.mrb[0].mxu0
    %4565 = vdwg.mxu0
    %v4567 = vsel %vm2554, %v3987, 0
    %v4570 = vsel %vm2554, %v3992, 0
    %4572 = vmatprep.subr.mxu0 0.0
    %4573 = vmatpush1.msra.mxu0 %v4078
    %4574 = vmatprep.subr.mxu0 0.0
    %4575 = vmatpush1.msra.mxu0 0.0
    %4576 = vmatprep.subr.mxu0 0.0
    %4577 = vmatpush1.msra.mxu0 0.0
    %4578 = vmatprep.subr.mxu0 0.0
    %4579 = vmatpush1.msra.mxu0 0.0
    %4580 = vmatprep.subr.mxu0 0.0
    %4581 = vmatpush1.msra.mxu0 0.0
    %4582 = vmatprep.subr.mxu0 0.0
    %4583 = vmatpush1.msra.mxu0 0.0
    %4584 = vmatprep.subr.mxu0 0.0
    %4585 = vmatpush1.msra.mxu0 0.0
    %4586 = vmatprep.subr.mxu0 0.0
    %4587 = vmatpush1.msra.mxu0 0.0
    %4588 = vmatprep.subr.mxu0 0.0
    %4589 = vmatpush1.msra.mxu0 0.0
    %4590 = vmatprep.subr.mxu0 0.0
    %4591 = vmatpush1.msra.mxu0 0.0
    %4592 = vmatprep.subr.mxu0 0.0
    %4593 = vmatpush1.msra.mxu0 0.0
    %4594 = vmatprep.subr.mxu0 0.0
    %4595 = vmatpush1.msra.mxu0 0.0
    %4596 = vmatprep.subr.mxu0 0.0
    %4597 = vmatpush1.msra.mxu0 0.0
    %4598 = vmatprep.subr.mxu0 0.0
    %4599 = vmatpush1.msra.mxu0 0.0
    %4600 = vmatprep.subr.mxu0 0.0
    %4601 = vmatpush1.msra.mxu0 0.0
    %4602 = vmatprep.subr.mxu0 0.0
    %4603 = vmatpush1.msra.mxu0 0.0
    %4604 = vmatprep.subr.mxu0 0.0
    %4605 = vmatpush1.msra.mxu0 0.0
    %4606 = vmatprep.subr.mxu0 0.0
    %4607 = vmatpush1.msra.mxu0 0.0
    %4608 = vmatprep.subr.mxu0 0.0
    %4609 = vmatpush1.msra.mxu0 0.0
    %4610 = vmatprep.subr.mxu0 0.0
    %4611 = vmatpush1.msra.mxu0 0.0
    %4612 = vmatprep.subr.mxu0 0.0
    %4613 = vmatpush1.msra.mxu0 0.0
    %4614 = vmatprep.subr.mxu0 0.0
    %4615 = vmatpush1.msra.mxu0 0.0
    %4616 = vmatprep.subr.mxu0 0.0
    %4617 = vmatpush1.msra.mxu0 0.0
    %4618 = vmatprep.subr.mxu0 0.0
    %4619 = vmatpush1.msra.mxu0 0.0
    %4620 = vmatprep.subr.mxu0 0.0
    %4621 = vmatpush1.msra.mxu0 0.0
    %4622 = vmatprep.subr.mxu0 0.0
    %4623 = vmatpush1.msra.mxu0 0.0
    %4624 = vmatprep.subr.mxu0 0.0
    %4625 = vmatpush1.msra.mxu0 0.0
    %4626 = vmatprep.subr.mxu0 0.0
    %4627 = vmatpush1.msra.mxu0 0.0
    %4628 = vmatprep.subr.mxu0 0.0
    %4629 = vmatpush1.msra.mxu0 0.0
    %4630 = vmatprep.subr.mxu0 0.0
    %4631 = vmatpush1.msra.mxu0 0.0
    %4632 = vmatprep.subr.mxu0 0.0
    %4633 = vmatpush1.msra.mxu0 0.0
    %4634 = vmatprep.subr.mxu0 0.0
    %4635 = vmatpush1.msra.mxu0 0.0
    %4636 = vmatprep.mubr.f32.mxu0 0.0
    %4637 = vmatmul.mubr.f32.gmra.mrb[0].mxu0 %v4567
    %v4638 = vpop.f32.mrb[0].mxu0
    %v4639 = vadd.f32 0.0, %v4638
    %v4640 = vpop.f32.mrb[0].mxu0
    %4641 = vmatprep.mubr.f32.mxu0 0.0
    %4642 = vmatmul.mubr.f32.gmra.mrb[0].mxu0 %v4570
    %v4643 = vpop.f32.mrb[0].mxu0
    %v4644 = vadd.f32 0.0, %v4643
    %v4645 = vpop.f32.mrb[0].mxu0
    %4646 = vdwg.mxu0
    %v4648 = vsel %vm2554, %v4068, 0
    %v4651 = vsel %vm2554, %v4073, 0
    %4653 = vmatprep.subr.mxu0 0.0
    %4654 = vmatpush1.msra.mxu0 %v4079
    %4655 = vmatprep.subr.mxu0 0.0
    %4656 = vmatpush1.msra.mxu0 0.0
    %4657 = vmatprep.subr.mxu0 0.0
    %4658 = vmatpush1.msra.mxu0 0.0
    %4659 = vmatprep.subr.mxu0 0.0
    %4660 = vmatpush1.msra.mxu0 0.0
    %4661 = vmatprep.subr.mxu0 0.0
    %4662 = vmatpush1.msra.mxu0 0.0
    %4663 = vmatprep.subr.mxu0 0.0
    %4664 = vmatpush1.msra.mxu0 0.0
    %4665 = vmatprep.subr.mxu0 0.0
    %4666 = vmatpush1.msra.mxu0 0.0
    %4667 = vmatprep.subr.mxu0 0.0
    %4668 = vmatpush1.msra.mxu0 0.0
    %4669 = vmatprep.subr.mxu0 0.0
    %4670 = vmatpush1.msra.mxu0 0.0
    %4671 = vmatprep.subr.mxu0 0.0
    %4672 = vmatpush1.msra.mxu0 0.0
    %4673 = vmatprep.subr.mxu0 0.0
    %4674 = vmatpush1.msra.mxu0 0.0
    %4675 = vmatprep.subr.mxu0 0.0
    %4676 = vmatpush1.msra.mxu0 0.0
    %4677 = vmatprep.subr.mxu0 0.0
    %4678 = vmatpush1.msra.mxu0 0.0
    %4679 = vmatprep.subr.mxu0 0.0
    %4680 = vmatpush1.msra.mxu0 0.0
    %4681 = vmatprep.subr.mxu0 0.0
    %4682 = vmatpush1.msra.mxu0 0.0
    %4683 = vmatprep.subr.mxu0 0.0
    %4684 = vmatpush1.msra.mxu0 0.0
    %4685 = vmatprep.subr.mxu0 0.0
    %4686 = vmatpush1.msra.mxu0 0.0
    %4687 = vmatprep.subr.mxu0 0.0
    %4688 = vmatpush1.msra.mxu0 0.0
    %4689 = vmatprep.subr.mxu0 0.0
    %4690 = vmatpush1.msra.mxu0 0.0
    %4691 = vmatprep.subr.mxu0 0.0
    %4692 = vmatpush1.msra.mxu0 0.0
    %4693 = vmatprep.subr.mxu0 0.0
    %4694 = vmatpush1.msra.mxu0 0.0
    %4695 = vmatprep.subr.mxu0 0.0
    %4696 = vmatpush1.msra.mxu0 0.0
    %4697 = vmatprep.subr.mxu0 0.0
    %4698 = vmatpush1.msra.mxu0 0.0
    %4699 = vmatprep.subr.mxu0 0.0
    %4700 = vmatpush1.msra.mxu0 0.0
    %4701 = vmatprep.subr.mxu0 0.0
    %4702 = vmatpush1.msra.mxu0 0.0
    %4703 = vmatprep.subr.mxu0 0.0
    %4704 = vmatpush1.msra.mxu0 0.0
    %4705 = vmatprep.subr.mxu0 0.0
    %4706 = vmatpush1.msra.mxu0 0.0
    %4707 = vmatprep.subr.mxu0 0.0
    %4708 = vmatpush1.msra.mxu0 0.0
    %4709 = vmatprep.subr.mxu0 0.0
    %4710 = vmatpush1.msra.mxu0 0.0
    %4711 = vmatprep.subr.mxu0 0.0
    %4712 = vmatpush1.msra.mxu0 0.0
    %4713 = vmatprep.subr.mxu0 0.0
    %4714 = vmatpush1.msra.mxu0 0.0
    %4715 = vmatprep.subr.mxu0 0.0
    %4716 = vmatpush1.msra.mxu0 0.0
    %4717 = vmatprep.mubr.f32.mxu0 0.0
    %4718 = vmatmul.mubr.f32.gmra.mrb[0].mxu0 %v4648
    %v4719 = vpop.f32.mrb[0].mxu0
    %v4720 = vadd.f32 0.0, %v4719
    %v4721 = vpop.f32.mrb[0].mxu0
    %4722 = vmatprep.mubr.f32.mxu0 0.0
    %4723 = vmatmul.mubr.f32.gmra.mrb[0].mxu0 %v4651
    %v4724 = vpop.f32.mrb[0].mxu0
    %v4725 = vadd.f32 0.0, %v4724
    %v4726 = vpop.f32.mrb[0].mxu0
    %4727 = vdwg.mxu0
    %v4728 = vadd.f32 %v4153, %v4234
    %v4729 = vadd.f32 %v4158, %v4239
    %v4730 = vadd.f32 %v4477, %v4558
    %v4731 = vadd.f32 %v4482, %v4563
    %v4732 = vadd.f32 %v4728, %v4315
    %v4733 = vadd.f32 %v4729, %v4320
    %v4734 = vadd.f32 %v4730, %v4639
    %v4735 = vadd.f32 %v4731, %v4644
    %v4736 = vadd.f32 %v4732, %v4396
    %v4737 = vadd.f32 %v4733, %v4401
    %v4738 = vadd.f32 %v4734, %v4720
    %v4739 = vadd.f32 %v4735, %v4725
    %v4740 = vadd.f32 %v596, %v4736
    %v4741 = vadd.f32 %v597, %v4737
    %v4742 = vadd.f32 %v598, %v4738
    %v4743 = vadd.f32 %v599, %v4739
    %v4744 = vld [vmem:[%s15] sm:$0x1]
    %v4746 = vlaneseq
    %v4747 = vshrl.u32 %v4746, 7
    %v4748 = vsub.s32 0, %v4747
    %v4749 = vrot.slane %v4744, %v4748
    %v4751 = vadd.f32 %v4740, %v4749
    %v4752 = vadd.f32 %v4741, %v4749
    %v4753 = vadd.f32 %v4742, %v4749
    %v4754 = vadd.f32 %v4743, %v4749
    %v4755 = vld [vmem:[%s16] sm:$0x1]
    %v4756 = vld [vmem:[%s17] sm:$0x1]
    %v4757 = vsel %vm466, %v4751, 0.0
    %4758 = vadd.xlane.f32.xlu0 %v4757
    %v4759 = vpop.xlane.xlu0 %4758
    %v4760 = vsel %vm466, %v4752, 0.0
    %4761 = vadd.xlane.f32.xlu0 %v4760
    %v4762 = vpop.xlane.xlu0 %4761
    %v4763 = vsel %vm466, %v4753, 0.0
    %4764 = vadd.xlane.f32.xlu0 %v4763
    %v4765 = vpop.xlane.xlu0 %4764
    %v4766 = vsel %vm466, %v4754, 0.0
    %4767 = vadd.xlane.f32.xlu0 %v4766
    %v4768 = vpop.xlane.xlu0 %4767
    %v4769 = vmul.f32 %v4759, %v479
    %v4770 = vmul.f32 %v4762, %v479
    %v4771 = vmul.f32 %v4765, %v479
    %v4772 = vmul.f32 %v4768, %v479
    %v4773 = vsub.f32 %v4751, %v4769
    %v4774 = vsub.f32 %v4752, %v4770
    %v4775 = vsub.f32 %v4753, %v4771
    %v4776 = vsub.f32 %v4754, %v4772
    %v4777 = vmul.f32 %v4773, %v4773
    %v4778 = vmul.f32 %v4774, %v4774
    %v4779 = vmul.f32 %v4775, %v4775
    %v4780 = vmul.f32 %v4776, %v4776
    %v4781 = vsel %vm466, %v4777, 0.0
    %4782 = vadd.xlane.f32.xlu0 %v4781
    %v4783 = vpop.xlane.xlu0 %4782
    %v4784 = vsel %vm466, %v4778, 0.0
    %4785 = vadd.xlane.f32.xlu0 %v4784
    %v4786 = vpop.xlane.xlu0 %4785
    %v4787 = vsel %vm466, %v4779, 0.0
    %4788 = vadd.xlane.f32.xlu0 %v4787
    %v4789 = vpop.xlane.xlu0 %4788
    %v4790 = vsel %vm466, %v4780, 0.0
    %4791 = vadd.xlane.f32.xlu0 %v4790
    %v4792 = vpop.xlane.xlu0 %4791
    %v4793 = vmul.f32 %v4783, %v479
    %v4794 = vmul.f32 %v4786, %v479
    %v4795 = vmul.f32 %v4789, %v479
    %v4796 = vmul.f32 %v4792, %v479
    %v4797 = vadd.f32 %v4793, 1e-05
    %v4798 = vadd.f32 %v4794, 1e-05
    %v4799 = vadd.f32 %v4795, 1e-05
    %v4800 = vadd.f32 %v4796, 1e-05
    %v4801 = vrsqrt.pop %v4797
    %v4802 = vrsqrt.pop %v4798
    %v4803 = vrsqrt.pop %v4799
    %v4804 = vrsqrt.pop %v4800
    %v4805 = vmul.f32 %v4773, %v4801
    %v4806 = vmul.f32 %v4774, %v4802
    %v4807 = vmul.f32 %v4775, %v4803
    %v4808 = vmul.f32 %v4776, %v4804
    %v4810 = vlaneseq
    %v4811 = vshrl.u32 %v4810, 7
    %v4812 = vsub.s32 0, %v4811
    %v4813 = vrot.slane %v4755, %v4812
    %v4815 = vmul.f32 %v4805, %v4813
    %v4816 = vmul.f32 %v4806, %v4813
    %v4817 = vmul.f32 %v4807, %v4813
    %v4818 = vmul.f32 %v4808, %v4813
    %v4820 = vlaneseq
    %v4821 = vshrl.u32 %v4820, 7
    %v4822 = vsub.s32 0, %v4821
    %v4823 = vrot.slane %v4756, %v4822
    %v4825 = vadd.f32 %v4815, %v4823
    %v4826 = vadd.f32 %v4816, %v4823
    %v4827 = vadd.f32 %v4817, %v4823
    %v4828 = vadd.f32 %v4818, %v4823
    %v4829 = vld [vmem:[%s18] sm:$0xff]
    %v4830 = vld [vmem:[%s18 + $0x8] sm:$0xff]
    %v4831 = vld [vmem:[%s18 + $0x10] sm:$0xff]
    %v4832 = vld [vmem:[%s18 + $0x18] sm:$0xff]
    %v4833 = vld [vmem:[%s19] sm:$0x1]
    %v4835 = vlaneseq
    %v4836 = vshrl.u32 %v4835, 7
    %v4837 = vsub.s32 0, %v4836
    %v4838 = vrot.slane %v4833, %v4837
    %v4841 = vsel %vm466, %v4825, 0
    %v4844 = vsel %vm466, %v4826, 0
    %v4847 = vsel %vm466, %v4827, 0
    %v4850 = vsel %vm466, %v4828, 0
    %4852 = vmatprep.subr.mxu0 0.0
    %4853 = vmatpush1.msra.mxu0 %v4829
    %4854 = vmatprep.subr.mxu0 0.0
    %4855 = vmatpush1.msra.mxu0 %v4830
    %4856 = vmatprep.subr.mxu0 0.0
    %4857 = vmatpush1.msra.mxu0 %v4831
    %4858 = vmatprep.subr.mxu0 0.0
    %4859 = vmatpush1.msra.mxu0 %v4832
    %4860 = vmatprep.subr.mxu0 0.0
    %4861 = vmatpush1.msra.mxu0 0.0
    %4862 = vmatprep.subr.mxu0 0.0
    %4863 = vmatpush1.msra.mxu0 0.0
    %4864 = vmatprep.subr.mxu0 0.0
    %4865 = vmatpush1.msra.mxu0 0.0
    %4866 = vmatprep.subr.mxu0 0.0
    %4867 = vmatpush1.msra.mxu0 0.0
    %4868 = vmatprep.subr.mxu0 0.0
    %4869 = vmatpush1.msra.mxu0 0.0
    %4870 = vmatprep.subr.mxu0 0.0
    %4871 = vmatpush1.msra.mxu0 0.0
    %4872 = vmatprep.subr.mxu0 0.0
    %4873 = vmatpush1.msra.mxu0 0.0
    %4874 = vmatprep.subr.mxu0 0.0
    %4875 = vmatpush1.msra.mxu0 0.0
    %4876 = vmatprep.subr.mxu0 0.0
    %4877 = vmatpush1.msra.mxu0 0.0
    %4878 = vmatprep.subr.mxu0 0.0
    %4879 = vmatpush1.msra.mxu0 0.0
    %4880 = vmatprep.subr.mxu0 0.0
    %4881 = vmatpush1.msra.mxu0 0.0
    %4882 = vmatprep.subr.mxu0 0.0
    %4883 = vmatpush1.msra.mxu0 0.0
    %4884 = vmatprep.subr.mxu0 0.0
    %4885 = vmatpush1.msra.mxu0 0.0
    %4886 = vmatprep.subr.mxu0 0.0
    %4887 = vmatpush1.msra.mxu0 0.0
    %4888 = vmatprep.subr.mxu0 0.0
    %4889 = vmatpush1.msra.mxu0 0.0
    %4890 = vmatprep.subr.mxu0 0.0
    %4891 = vmatpush1.msra.mxu0 0.0
    %4892 = vmatprep.subr.mxu0 0.0
    %4893 = vmatpush1.msra.mxu0 0.0
    %4894 = vmatprep.subr.mxu0 0.0
    %4895 = vmatpush1.msra.mxu0 0.0
    %4896 = vmatprep.subr.mxu0 0.0
    %4897 = vmatpush1.msra.mxu0 0.0
    %4898 = vmatprep.subr.mxu0 0.0
    %4899 = vmatpush1.msra.mxu0 0.0
    %4900 = vmatprep.subr.mxu0 0.0
    %4901 = vmatpush1.msra.mxu0 0.0
    %4902 = vmatprep.subr.mxu0 0.0
    %4903 = vmatpush1.msra.mxu0 0.0
    %4904 = vmatprep.subr.mxu0 0.0
    %4905 = vmatpush1.msra.mxu0 0.0
    %4906 = vmatprep.subr.mxu0 0.0
    %4907 = vmatpush1.msra.mxu0 0.0
    %4908 = vmatprep.subr.mxu0 0.0
    %4909 = vmatpush1.msra.mxu0 0.0
    %4910 = vmatprep.subr.mxu0 0.0
    %4911 = vmatpush1.msra.mxu0 0.0
    %4912 = vmatprep.subr.mxu0 0.0
    %4913 = vmatpush1.msra.mxu0 0.0
    %4914 = vmatprep.subr.mxu0 0.0
    %4915 = vmatpush1.msra.mxu0 0.0
    %4916 = vmatprep.mubr.f32.mxu0 0.0
    %4917 = vmatmul.mubr.f32.gmra.mrb[0].mxu0 %v4841
    %v4918 = vpop.f32.mrb[0].mxu0
    %v4919 = vadd.f32 %v4838, %v4918
    %v4920 = vpop.f32.mrb[0].mxu0
    %4921 = vmatprep.mubr.f32.mxu0 0.0
    %4922 = vmatmul.mubr.f32.gmra.mrb[0].mxu0 %v4844
    %v4923 = vpop.f32.mrb[0].mxu0
    %v4924 = vadd.f32 %v4838, %v4923
    %v4925 = vpop.f32.mrb[0].mxu0
    %4926 = vmatprep.mubr.f32.mxu0 0.0
    %4927 = vmatmul.mubr.f32.gmra.mrb[0].mxu0 %v4847
    %v4928 = vpop.f32.mrb[0].mxu0
    %v4929 = vadd.f32 %v4838, %v4928
    %v4930 = vpop.f32.mrb[0].mxu0
    %4931 = vmatprep.mubr.f32.mxu0 0.0
    %4932 = vmatmul.mubr.f32.gmra.mrb[0].mxu0 %v4850
    %v4933 = vpop.f32.mrb[0].mxu0
    %v4934 = vadd.f32 %v4838, %v4933
    %v4935 = vpop.f32.mrb[0].mxu0
    %4936 = vdwg.mxu0
    %v4937 = vmul.f32 %v4919, 0.5
    %v4938 = vmul.f32 %v4924, 0.5
    %v4939 = vmul.f32 %v4929, 0.5
    %v4940 = vmul.f32 %v4934, 0.5
    %v4941 = vmul.f32 %v4919, 0.70710677
    %v4942 = vmul.f32 %v4924, 0.70710677
    %v4943 = vmul.f32 %v4929, 0.70710677
    %v4944 = vmul.f32 %v4934, 0.70710677
    %v4945 = vand.u32 2147483647, %v4941
    %v4946 = vand.u32 2147483647, %v4942
    %v4947 = vand.u32 2147483647, %v4943
    %v4948 = vand.u32 2147483647, %v4944
    %v4949 = vmul.f32 %v4945, 0.3275911
    %v4950 = vmul.f32 %v4946, 0.3275911
    %v4951 = vmul.f32 %v4947, 0.3275911
    %v4952 = vmul.f32 %v4948, 0.3275911
    %v4953 = vadd.f32 %v4949, 1.0
    %v4954 = vadd.f32 %v4950, 1.0
    %v4955 = vadd.f32 %v4951, 1.0
    %v4956 = vadd.f32 %v4952, 1.0
    %v4957 = vrcp.pop %v4953
    %v4958 = vmul.f32 1.0, %v4957
    %v4959 = vrcp.pop %v4954
    %v4960 = vmul.f32 1.0, %v4959
    %v4961 = vrcp.pop %v4955
    %v4962 = vmul.f32 1.0, %v4961
    %v4963 = vrcp.pop %v4956
    %v4964 = vmul.f32 1.0, %v4963
    %v4965 = vmul.f32 %v4958, 1.0614054
    %v4966 = vmul.f32 %v4960, 1.0614054
    %v4967 = vmul.f32 %v4962, 1.0614054
    %v4968 = vmul.f32 %v4964, 1.0614054
    %v4969 = vadd.f32 %v4965, -1.4531521
    %v4970 = vadd.f32 %v4966, -1.4531521
    %v4971 = vadd.f32 %v4967, -1.4531521
    %v4972 = vadd.f32 %v4968, -1.4531521
    %v4973 = vmul.f32 %v4969, %v4958
    %v4974 = vmul.f32 %v4970, %v4960
    %v4975 = vmul.f32 %v4971, %v4962
    %v4976 = vmul.f32 %v4972, %v4964
    %v4977 = vadd.f32 %v4973, 1.4214138
    %v4978 = vadd.f32 %v4974, 1.4214138
    %v4979 = vadd.f32 %v4975, 1.4214138
    %v4980 = vadd.f32 %v4976, 1.4214138
    %v4981 = vmul.f32 %v4977, %v4958
    %v4982 = vmul.f32 %v4978, %v4960
    %v4983 = vmul.f32 %v4979, %v4962
    %v4984 = vmul.f32 %v4980, %v4964
    %v4985 = vadd.f32 %v4981, -0.28449672
    %v4986 = vadd.f32 %v4982, -0.28449672
    %v4987 = vadd.f32 %v4983, -0.28449672
    %v4988 = vadd.f32 %v4984, -0.28449672
    %v4989 = vmul.f32 %v4985, %v4958
    %v4990 = vmul.f32 %v4986, %v4960
    %v4991 = vmul.f32 %v4987, %v4962
    %v4992 = vmul.f32 %v4988, %v4964
    %v4993 = vadd.f32 %v4989, 0.2548296
    %v4994 = vadd.f32 %v4990, 0.2548296
    %v4995 = vadd.f32 %v4991, 0.2548296
    %v4996 = vadd.f32 %v4992, 0.2548296
    %v4997 = vmul.f32 %v4993, %v4958
    %v4998 = vmul.f32 %v4994, %v4960
    %v4999 = vmul.f32 %v4995, %v4962
    %v5000 = vmul.f32 %v4996, %v4964
    %v5001 = vsub.f32 0.0, %v4945
    %v5002 = vsub.f32 0.0, %v4946
    %v5003 = vsub.f32 0.0, %v4947
    %v5004 = vsub.f32 0.0, %v4948
    %v5005 = vmul.f32 %v5001, %v4945
    %v5006 = vmul.f32 %v5002, %v4946
    %v5007 = vmul.f32 %v5003, %v4947
    %v5008 = vmul.f32 %v5004, %v4948
    %v5009 = vmul.f32 %v5005, 1.442695
    %v5010 = vpow.pop %v5009
    %v5011 = vmul.f32 %v5006, 1.442695
    %v5012 = vpow.pop %v5011
    %v5013 = vmul.f32 %v5007, 1.442695
    %v5014 = vpow.pop %v5013
    %v5015 = vmul.f32 %v5008, 1.442695
    %v5016 = vpow.pop %v5015
    %v5017 = vmul.f32 %v4997, %v5010
    %v5018 = vmul.f32 %v4998, %v5012
    %v5019 = vmul.f32 %v4999, %v5014
    %v5020 = vmul.f32 %v5000, %v5016
    %v5021 = vsub.f32 1.0, %v5017
    %v5022 = vsub.f32 1.0, %v5018
    %v5023 = vsub.f32 1.0, %v5019
    %v5024 = vsub.f32 1.0, %v5020
    %vm5025 = vcmp.ge.f32.partialorder %v4941, 0.0
    %vm5026 = vcmp.ge.f32.partialorder %v4942, 0.0
    %vm5027 = vcmp.ge.f32.partialorder %v4943, 0.0
    %vm5028 = vcmp.ge.f32.partialorder %v4944, 0.0
    %v5029 = vsub.f32 0.0, %v5021
    %v5030 = vsub.f32 0.0, %v5022
    %v5031 = vsub.f32 0.0, %v5023
    %v5032 = vsub.f32 0.0, %v5024
    %v5033 = vsel %vm5025, %v5021, %v5029
    %v5034 = vsel %vm5026, %v5022, %v5030
    %v5035 = vsel %vm5027, %v5023, %v5031
    %v5036 = vsel %vm5028, %v5024, %v5032
    %v5037 = vadd.f32 %v5033, 1.0
    %v5038 = vadd.f32 %v5034, 1.0
    %v5039 = vadd.f32 %v5035, 1.0
    %v5040 = vadd.f32 %v5036, 1.0
    %v5041 = vmul.f32 %v4937, %v5037
    %v5042 = vmul.f32 %v4938, %v5038
    %v5043 = vmul.f32 %v4939, %v5039
    %v5044 = vmul.f32 %v4940, %v5040
    %v5045 = vld [vmem:[%s20] sm:$0xff]
    %v5046 = vld [vmem:[%s20 + $0x8] sm:$0xff]
    %v5047 = vld [vmem:[%s20 + $0x10] sm:$0xff]
    %v5048 = vld [vmem:[%s20 + $0x18] sm:$0xff]
    %v5049 = vld [vmem:[%s20 + $0x20] sm:$0xff]
    %v5050 = vld [vmem:[%s20 + $0x28] sm:$0xff]
    %v5051 = vld [vmem:[%s20 + $0x30] sm:$0xff]
    %v5052 = vld [vmem:[%s20 + $0x38] sm:$0xff]
    %vm5053 = vcmask 523264
    %v5055 = vsel %vm5053, %v5041, 0
    %v5058 = vsel %vm5053, %v5042, 0
    %v5061 = vsel %vm5053, %v5043, 0
    %v5064 = vsel %vm5053, %v5044, 0
    %5066 = vmatprep.subr.mxu0 0.0
    %5067 = vmatpush1.msra.mxu0 %v5045
    %5068 = vmatprep.subr.mxu0 0.0
    %5069 = vmatpush1.msra.mxu0 %v5046
    %5070 = vmatprep.subr.mxu0 0.0
    %5071 = vmatpush1.msra.mxu0 %v5047
    %5072 = vmatprep.subr.mxu0 0.0
    %5073 = vmatpush1.msra.mxu0 %v5048
    %5074 = vmatprep.subr.mxu0 0.0
    %5075 = vmatpush1.msra.mxu0 %v5049
    %5076 = vmatprep.subr.mxu0 0.0
    %5077 = vmatpush1.msra.mxu0 %v5050
    %5078 = vmatprep.subr.mxu0 0.0
    %5079 = vmatpush1.msra.mxu0 %v5051
    %5080 = vmatprep.subr.mxu0 0.0
    %5081 = vmatpush1.msra.mxu0 %v5052
    %5082 = vmatprep.subr.mxu0 0.0
    %5083 = vmatpush1.msra.mxu0 0.0
    %5084 = vmatprep.subr.mxu0 0.0
    %5085 = vmatpush1.msra.mxu0 0.0
    %5086 = vmatprep.subr.mxu0 0.0
    %5087 = vmatpush1.msra.mxu0 0.0
    %5088 = vmatprep.subr.mxu0 0.0
    %5089 = vmatpush1.msra.mxu0 0.0
    %5090 = vmatprep.subr.mxu0 0.0
    %5091 = vmatpush1.msra.mxu0 0.0
    %5092 = vmatprep.subr.mxu0 0.0
    %5093 = vmatpush1.msra.mxu0 0.0
    %5094 = vmatprep.subr.mxu0 0.0
    %5095 = vmatpush1.msra.mxu0 0.0
    %5096 = vmatprep.subr.mxu0 0.0
    %5097 = vmatpush1.msra.mxu0 0.0
    %5098 = vmatprep.subr.mxu0 0.0
    %5099 = vmatpush1.msra.mxu0 0.0
    %5100 = vmatprep.subr.mxu0 0.0
    %5101 = vmatpush1.msra.mxu0 0.0
    %5102 = vmatprep.subr.mxu0 0.0
    %5103 = vmatpush1.msra.mxu0 0.0
    %5104 = vmatprep.subr.mxu0 0.0
    %5105 = vmatpush1.msra.mxu0 0.0
    %5106 = vmatprep.subr.mxu0 0.0
    %5107 = vmatpush1.msra.mxu0 0.0
    %5108 = vmatprep.subr.mxu0 0.0
    %5109 = vmatpush1.msra.mxu0 0.0
    %5110 = vmatprep.subr.mxu0 0.0
    %5111 = vmatpush1.msra.mxu0 0.0
    %5112 = vmatprep.subr.mxu0 0.0
    %5113 = vmatpush1.msra.mxu0 0.0
    %5114 = vmatprep.subr.mxu0 0.0
    %5115 = vmatpush1.msra.mxu0 0.0
    %5116 = vmatprep.subr.mxu0 0.0
    %5117 = vmatpush1.msra.mxu0 0.0
    %5118 = vmatprep.subr.mxu0 0.0
    %5119 = vmatpush1.msra.mxu0 0.0
    %5120 = vmatprep.subr.mxu0 0.0
    %5121 = vmatpush1.msra.mxu0 0.0
    %5122 = vmatprep.subr.mxu0 0.0
    %5123 = vmatpush1.msra.mxu0 0.0
    %5124 = vmatprep.subr.mxu0 0.0
    %5125 = vmatpush1.msra.mxu0 0.0
    %5126 = vmatprep.subr.mxu0 0.0
    %5127 = vmatpush1.msra.mxu0 0.0
    %5128 = vmatprep.subr.mxu0 0.0
    %5129 = vmatpush1.msra.mxu0 0.0
    %5130 = vmatprep.mubr.f32.mxu0 0.0
    %5131 = vmatmul.mubr.f32.gmra.mrb[0].mxu0 %v5055
    %v5132 = vpop.f32.mrb[0].mxu0
    %v5133 = vadd.f32 0.0, %v5132
    %v5134 = vpop.f32.mrb[0].mxu0
    %5135 = vmatprep.mubr.f32.mxu0 0.0
    %5136 = vmatmul.mubr.f32.gmra.mrb[0].mxu0 %v5058
    %v5137 = vpop.f32.mrb[0].mxu0
    %v5138 = vadd.f32 0.0, %v5137
    %v5139 = vpop.f32.mrb[0].mxu0
    %5140 = vmatprep.mubr.f32.mxu0 0.0
    %5141 = vmatmul.mubr.f32.gmra.mrb[0].mxu0 %v5061
    %v5142 = vpop.f32.mrb[0].mxu0
    %v5143 = vadd.f32 0.0, %v5142
    %v5144 = vpop.f32.mrb[0].mxu0
    %5145 = vmatprep.mubr.f32.mxu0 0.0
    %5146 = vmatmul.mubr.f32.gmra.mrb[0].mxu0 %v5064
    %v5147 = vpop.f32.mrb[0].mxu0
    %v5148 = vadd.f32 0.0, %v5147
    %v5149 = vpop.f32.mrb[0].mxu0
    %5150 = vdwg.mxu0
    %v5151 = vadd.f32 %v4751, %v5133
    %v5152 = vadd.f32 %v4752, %v5138
    %v5153 = vadd.f32 %v4753, %v5143
    %v5154 = vadd.f32 %v4754, %v5148
    %v5155 = vld [vmem:[%s21] sm:$0x1]
    %v5157 = vlaneseq
    %v5158 = vshrl.u32 %v5157, 7
    %v5159 = vsub.s32 0, %v5158
    %v5160 = vrot.slane %v5155, %v5159
    %v5162 = vadd.f32 %v5151, %v5160
    %v5163 = vadd.f32 %v5152, %v5160
    %v5164 = vadd.f32 %v5153, %v5160
    %v5165 = vadd.f32 %v5154, %v5160
    %s5166 = scalar_lea.vmem %s9, 1
    %v5167 = vld [vmem:[%s5166] sm:$0x1]
    %s5168 = scalar_lea.vmem %s10, 1
    %v5169 = vld [vmem:[%s5168] sm:$0x1]
    %v5170 = vsel %vm466, %v5162, 0.0
    %5171 = vadd.xlane.f32.xlu0 %v5170
    %v5172 = vpop.xlane.xlu0 %5171
    %v5173 = vsel %vm466, %v5163, 0.0
    %5174 = vadd.xlane.f32.xlu0 %v5173
    %v5175 = vpop.xlane.xlu0 %5174
    %v5176 = vsel %vm466, %v5164, 0.0
    %5177 = vadd.xlane.f32.xlu0 %v5176
    %v5178 = vpop.xlane.xlu0 %5177
    %v5179 = vsel %vm466, %v5165, 0.0
    %5180 = vadd.xlane.f32.xlu0 %v5179
    %v5181 = vpop.xlane.xlu0 %5180
    %v5182 = vmul.f32 %v5172, %v479
    %v5183 = vmul.f32 %v5175, %v479
    %v5184 = vmul.f32 %v5178, %v479
    %v5185 = vmul.f32 %v5181, %v479
    %v5186 = vsub.f32 %v5162, %v5182
    %v5187 = vsub.f32 %v5163, %v5183
    %v5188 = vsub.f32 %v5164, %v5184
    %v5189 = vsub.f32 %v5165, %v5185
    %v5190 = vmul.f32 %v5186, %v5186
    %v5191 = vmul.f32 %v5187, %v5187
    %v5192 = vmul.f32 %v5188, %v5188
    %v5193 = vmul.f32 %v5189, %v5189
    %v5194 = vsel %vm466, %v5190, 0.0
    %5195 = vadd.xlane.f32.xlu0 %v5194
    %v5196 = vpop.xlane.xlu0 %5195
    %v5197 = vsel %vm466, %v5191, 0.0
    %5198 = vadd.xlane.f32.xlu0 %v5197
    %v5199 = vpop.xlane.xlu0 %5198
    %v5200 = vsel %vm466, %v5192, 0.0
    %5201 = vadd.xlane.f32.xlu0 %v5200
    %v5202 = vpop.xlane.xlu0 %5201
    %v5203 = vsel %vm466, %v5193, 0.0
    %5204 = vadd.xlane.f32.xlu0 %v5203
    %v5205 = vpop.xlane.xlu0 %5204
    %v5206 = vmul.f32 %v5196, %v479
    %v5207 = vmul.f32 %v5199, %v479
    %v5208 = vmul.f32 %v5202, %v479
    %v5209 = vmul.f32 %v5205, %v479
    %v5210 = vadd.f32 %v5206, 1e-05
    %v5211 = vadd.f32 %v5207, 1e-05
    %v5212 = vadd.f32 %v5208, 1e-05
    %v5213 = vadd.f32 %v5209, 1e-05
    %v5214 = vrsqrt.pop %v5210
    %v5215 = vrsqrt.pop %v5211
    %v5216 = vrsqrt.pop %v5212
    %v5217 = vrsqrt.pop %v5213
    %v5218 = vmul.f32 %v5186, %v5214
    %v5219 = vmul.f32 %v5187, %v5215
    %v5220 = vmul.f32 %v5188, %v5216
    %v5221 = vmul.f32 %v5189, %v5217
    %v5223 = vlaneseq
    %v5224 = vshrl.u32 %v5223, 7
    %v5225 = vsub.s32 0, %v5224
    %v5226 = vrot.slane %v5167, %v5225
    %v5228 = vmul.f32 %v5218, %v5226
    %v5229 = vmul.f32 %v5219, %v5226
    %v5230 = vmul.f32 %v5220, %v5226
    %v5231 = vmul.f32 %v5221, %v5226
    %v5233 = vlaneseq
    %v5234 = vshrl.u32 %v5233, 7
    %v5235 = vsub.s32 0, %v5234
    %v5236 = vrot.slane %v5169, %v5235
    %v5238 = vadd.f32 %v5228, %v5236
    %v5239 = vadd.f32 %v5229, %v5236
    %v5240 = vadd.f32 %v5230, %v5236
    %v5241 = vadd.f32 %v5231, %v5236
    %s5242 = scalar_lea.vmem %s11, 128
    %v5243 = vld [vmem:[%s5242] sm:$0xff]
    %v5244 = vld [vmem:[%s5242 + $0x8] sm:$0xff]
    %v5245 = vld [vmem:[%s5242 + $0x10] sm:$0xff]
    %v5246 = vld [vmem:[%s5242 + $0x18] sm:$0xff]
    %v5247 = vld [vmem:[%s5242 + $0x20] sm:$0xff]
    %v5248 = vld [vmem:[%s5242 + $0x28] sm:$0xff]
    %v5249 = vld [vmem:[%s5242 + $0x30] sm:$0xff]
    %v5250 = vld [vmem:[%s5242 + $0x38] sm:$0xff]
    %v5251 = vld [vmem:[%s5242 + $0x40] sm:$0xff]
    %v5252 = vld [vmem:[%s5242 + $0x48] sm:$0xff]
    %v5253 = vld [vmem:[%s5242 + $0x50] sm:$0xff]
    %v5254 = vld [vmem:[%s5242 + $0x58] sm:$0xff]
    %v5255 = vld [vmem:[%s5242 + $0x60] sm:$0xff]
    %v5256 = vld [vmem:[%s5242 + $0x68] sm:$0xff]
    %v5257 = vld [vmem:[%s5242 + $0x70] sm:$0xff]
    %v5258 = vld [vmem:[%s5242 + $0x78] sm:$0xff]
    %s5259 = scalar_lea.vmem %s12, 128
    %v5260 = vld [vmem:[%s5259] sm:$0xff]
    %v5261 = vld [vmem:[%s5259 + $0x8] sm:$0xff]
    %v5262 = vld [vmem:[%s5259 + $0x10] sm:$0xff]
    %v5263 = vld [vmem:[%s5259 + $0x18] sm:$0xff]
    %v5264 = vld [vmem:[%s5259 + $0x20] sm:$0xff]
    %v5265 = vld [vmem:[%s5259 + $0x28] sm:$0xff]
    %v5266 = vld [vmem:[%s5259 + $0x30] sm:$0xff]
    %v5267 = vld [vmem:[%s5259 + $0x38] sm:$0xff]
    %v5268 = vld [vmem:[%s5259 + $0x40] sm:$0xff]
    %v5269 = vld [vmem:[%s5259 + $0x48] sm:$0xff]
    %v5270 = vld [vmem:[%s5259 + $0x50] sm:$0xff]
    %v5271 = vld [vmem:[%s5259 + $0x58] sm:$0xff]
    %v5272 = vld [vmem:[%s5259 + $0x60] sm:$0xff]
    %v5273 = vld [vmem:[%s5259 + $0x68] sm:$0xff]
    %v5274 = vld [vmem:[%s5259 + $0x70] sm:$0xff]
    %v5275 = vld [vmem:[%s5259 + $0x78] sm:$0xff]
    %s5276 = scalar_lea.vmem %s13, 128
    %v5277 = vld [vmem:[%s5276] sm:$0xff]
    %v5278 = vld [vmem:[%s5276 + $0x8] sm:$0xff]
    %v5279 = vld [vmem:[%s5276 + $0x10] sm:$0xff]
    %v5280 = vld [vmem:[%s5276 + $0x18] sm:$0xff]
    %v5281 = vld [vmem:[%s5276 + $0x20] sm:$0xff]
    %v5282 = vld [vmem:[%s5276 + $0x28] sm:$0xff]
    %v5283 = vld [vmem:[%s5276 + $0x30] sm:$0xff]
    %v5284 = vld [vmem:[%s5276 + $0x38] sm:$0xff]
    %v5285 = vld [vmem:[%s5276 + $0x40] sm:$0xff]
    %v5286 = vld [vmem:[%s5276 + $0x48] sm:$0xff]
    %v5287 = vld [vmem:[%s5276 + $0x50] sm:$0xff]
    %v5288 = vld [vmem:[%s5276 + $0x58] sm:$0xff]
    %v5289 = vld [vmem:[%s5276 + $0x60] sm:$0xff]
    %v5290 = vld [vmem:[%s5276 + $0x68] sm:$0xff]
    %v5291 = vld [vmem:[%s5276 + $0x70] sm:$0xff]
    %v5292 = vld [vmem:[%s5276 + $0x78] sm:$0xff]
    %v5294 = vsel %vm466, %v5238, 0
    %v5297 = vsel %vm466, %v5239, 0
    %5299 = vmatprep.subr.mxu0 0.0
    %5300 = vmatpush1.msra.mxu0 %v5243
    %5301 = vmatprep.subr.mxu0 0.0
    %5302 = vmatpush1.msra.mxu0 %v5244
    %5303 = vmatprep.subr.mxu0 0.0
    %5304 = vmatpush1.msra.mxu0 %v5245
    %5305 = vmatprep.subr.mxu0 0.0
    %5306 = vmatpush1.msra.mxu0 %v5246
    %5307 = vmatprep.subr.mxu0 0.0
    %5308 = vmatpush1.msra.mxu0 0.0
    %5309 = vmatprep.subr.mxu0 0.0
    %5310 = vmatpush1.msra.mxu0 0.0
    %5311 = vmatprep.subr.mxu0 0.0
    %5312 = vmatpush1.msra.mxu0 0.0
    %5313 = vmatprep.subr.mxu0 0.0
    %5314 = vmatpush1.msra.mxu0 0.0
    %5315 = vmatprep.subr.mxu0 0.0
    %5316 = vmatpush1.msra.mxu0 0.0
    %5317 = vmatprep.subr.mxu0 0.0
    %5318 = vmatpush1.msra.mxu0 0.0
    %5319 = vmatprep.subr.mxu0 0.0
    %5320 = vmatpush1.msra.mxu0 0.0
    %5321 = vmatprep.subr.mxu0 0.0
    %5322 = vmatpush1.msra.mxu0 0.0
    %5323 = vmatprep.subr.mxu0 0.0
    %5324 = vmatpush1.msra.mxu0 0.0
    %5325 = vmatprep.subr.mxu0 0.0
    %5326 = vmatpush1.msra.mxu0 0.0
    %5327 = vmatprep.subr.mxu0 0.0
    %5328 = vmatpush1.msra.mxu0 0.0
    %5329 = vmatprep.subr.mxu0 0.0
    %5330 = vmatpush1.msra.mxu0 0.0
    %5331 = vmatprep.subr.mxu0 0.0
    %5332 = vmatpush1.msra.mxu0 0.0
    %5333 = vmatprep.subr.mxu0 0.0
    %5334 = vmatpush1.msra.mxu0 0.0
    %5335 = vmatprep.subr.mxu0 0.0
    %5336 = vmatpush1.msra.mxu0 0.0
    %5337 = vmatprep.subr.mxu0 0.0
    %5338 = vmatpush1.msra.mxu0 0.0
    %5339 = vmatprep.subr.mxu0 0.0
    %5340 = vmatpush1.msra.mxu0 0.0
    %5341 = vmatprep.subr.mxu0 0.0
    %5342 = vmatpush1.msra.mxu0 0.0
    %5343 = vmatprep.subr.mxu0 0.0
    %5344 = vmatpush1.msra.mxu0 0.0
    %5345 = vmatprep.subr.mxu0 0.0
    %5346 = vmatpush1.msra.mxu0 0.0
    %5347 = vmatprep.subr.mxu0 0.0
    %5348 = vmatpush1.msra.mxu0 0.0
    %5349 = vmatprep.subr.mxu0 0.0
    %5350 = vmatpush1.msra.mxu0 0.0
    %5351 = vmatprep.subr.mxu0 0.0
    %5352 = vmatpush1.msra.mxu0 0.0
    %5353 = vmatprep.subr.mxu0 0.0
    %5354 = vmatpush1.msra.mxu0 0.0
    %5355 = vmatprep.subr.mxu0 0.0
    %5356 = vmatpush1.msra.mxu0 0.0
    %5357 = vmatprep.subr.mxu0 0.0
    %5358 = vmatpush1.msra.mxu0 0.0
    %5359 = vmatprep.subr.mxu0 0.0
    %5360 = vmatpush1.msra.mxu0 0.0
    %5361 = vmatprep.subr.mxu0 0.0
    %5362 = vmatpush1.msra.mxu0 0.0
    %5363 = vmatprep.mubr.f32.mxu0 0.0
    %5364 = vmatmul.mubr.f32.gmra.mrb[0].mxu0 %v5294
    %v5365 = vpop.f32.mrb[0].mxu0
    %v5366 = vadd.f32 0.0, %v5365
    %v5367 = vpop.f32.mrb[0].mxu0
    %5368 = vmatprep.mubr.f32.mxu0 0.0
    %5369 = vmatmul.mubr.f32.gmra.mrb[0].mxu0 %v5297
    %v5370 = vpop.f32.mrb[0].mxu0
    %v5371 = vadd.f32 0.0, %v5370
    %v5372 = vpop.f32.mrb[0].mxu0
    %5373 = vdwg.mxu0
    %5374 = vmatprep.subr.mxu0 0.0
    %5375 = vmatpush1.msra.mxu0 %v5247
    %5376 = vmatprep.subr.mxu0 0.0
    %5377 = vmatpush1.msra.mxu0 %v5248
    %5378 = vmatprep.subr.mxu0 0.0
    %5379 = vmatpush1.msra.mxu0 %v5249
    %5380 = vmatprep.subr.mxu0 0.0
    %5381 = vmatpush1.msra.mxu0 %v5250
    %5382 = vmatprep.subr.mxu0 0.0
    %5383 = vmatpush1.msra.mxu0 0.0
    %5384 = vmatprep.subr.mxu0 0.0
    %5385 = vmatpush1.msra.mxu0 0.0
    %5386 = vmatprep.subr.mxu0 0.0
    %5387 = vmatpush1.msra.mxu0 0.0
    %5388 = vmatprep.subr.mxu0 0.0
    %5389 = vmatpush1.msra.mxu0 0.0
    %5390 = vmatprep.subr.mxu0 0.0
    %5391 = vmatpush1.msra.mxu0 0.0
    %5392 = vmatprep.subr.mxu0 0.0
    %5393 = vmatpush1.msra.mxu0 0.0
    %5394 = vmatprep.subr.mxu0 0.0
    %5395 = vmatpush1.msra.mxu0 0.0
    %5396 = vmatprep.subr.mxu0 0.0
    %5397 = vmatpush1.msra.mxu0 0.0
    %5398 = vmatprep.subr.mxu0 0.0
    %5399 = vmatpush1.msra.mxu0 0.0
    %5400 = vmatprep.subr.mxu0 0.0
    %5401 = vmatpush1.msra.mxu0 0.0
    %5402 = vmatprep.subr.mxu0 0.0
    %5403 = vmatpush1.msra.mxu0 0.0
    %5404 = vmatprep.subr.mxu0 0.0
    %5405 = vmatpush1.msra.mxu0 0.0
    %5406 = vmatprep.subr.mxu0 0.0
    %5407 = vmatpush1.msra.mxu0 0.0
    %5408 = vmatprep.subr.mxu0 0.0
    %5409 = vmatpush1.msra.mxu0 0.0
    %5410 = vmatprep.subr.mxu0 0.0
    %5411 = vmatpush1.msra.mxu0 0.0
    %5412 = vmatprep.subr.mxu0 0.0
    %5413 = vmatpush1.msra.mxu0 0.0
    %5414 = vmatprep.subr.mxu0 0.0
    %5415 = vmatpush1.msra.mxu0 0.0
    %5416 = vmatprep.subr.mxu0 0.0
    %5417 = vmatpush1.msra.mxu0 0.0
    %5418 = vmatprep.subr.mxu0 0.0
    %5419 = vmatpush1.msra.mxu0 0.0
    %5420 = vmatprep.subr.mxu0 0.0
    %5421 = vmatpush1.msra.mxu0 0.0
    %5422 = vmatprep.subr.mxu0 0.0
    %5423 = vmatpush1.msra.mxu0 0.0
    %5424 = vmatprep.subr.mxu0 0.0
    %5425 = vmatpush1.msra.mxu0 0.0
    %5426 = vmatprep.subr.mxu0 0.0
    %5427 = vmatpush1.msra.mxu0 0.0
    %5428 = vmatprep.subr.mxu0 0.0
    %5429 = vmatpush1.msra.mxu0 0.0
    %5430 = vmatprep.subr.mxu0 0.0
    %5431 = vmatpush1.msra.mxu0 0.0
    %5432 = vmatprep.subr.mxu0 0.0
    %5433 = vmatpush1.msra.mxu0 0.0
    %5434 = vmatprep.subr.mxu0 0.0
    %5435 = vmatpush1.msra.mxu0 0.0
    %5436 = vmatprep.subr.mxu0 0.0
    %5437 = vmatpush1.msra.mxu0 0.0
    %5438 = vmatprep.mubr.f32.mxu0 0.0
    %5439 = vmatmul.mubr.f32.gmra.mrb[0].mxu0 %v5294
    %v5440 = vpop.f32.mrb[0].mxu0
    %v5441 = vadd.f32 0.0, %v5440
    %v5442 = vpop.f32.mrb[0].mxu0
    %5443 = vmatprep.mubr.f32.mxu0 0.0
    %5444 = vmatmul.mubr.f32.gmra.mrb[0].mxu0 %v5297
    %v5445 = vpop.f32.mrb[0].mxu0
    %v5446 = vadd.f32 0.0, %v5445
    %v5447 = vpop.f32.mrb[0].mxu0
    %5448 = vdwg.mxu0
    %5449 = vmatprep.subr.mxu0 0.0
    %5450 = vmatpush1.msra.mxu0 %v5251
    %5451 = vmatprep.subr.mxu0 0.0
    %5452 = vmatpush1.msra.mxu0 %v5252
    %5453 = vmatprep.subr.mxu0 0.0
    %5454 = vmatpush1.msra.mxu0 %v5253
    %5455 = vmatprep.subr.mxu0 0.0
    %5456 = vmatpush1.msra.mxu0 %v5254
    %5457 = vmatprep.subr.mxu0 0.0
    %5458 = vmatpush1.msra.mxu0 0.0
    %5459 = vmatprep.subr.mxu0 0.0
    %5460 = vmatpush1.msra.mxu0 0.0
    %5461 = vmatprep.subr.mxu0 0.0
    %5462 = vmatpush1.msra.mxu0 0.0
    %5463 = vmatprep.subr.mxu0 0.0
    %5464 = vmatpush1.msra.mxu0 0.0
    %5465 = vmatprep.subr.mxu0 0.0
    %5466 = vmatpush1.msra.mxu0 0.0
    %5467 = vmatprep.subr.mxu0 0.0
    %5468 = vmatpush1.msra.mxu0 0.0
    %5469 = vmatprep.subr.mxu0 0.0
    %5470 = vmatpush1.msra.mxu0 0.0
    %5471 = vmatprep.subr.mxu0 0.0
    %5472 = vmatpush1.msra.mxu0 0.0
    %5473 = vmatprep.subr.mxu0 0.0
    %5474 = vmatpush1.msra.mxu0 0.0
    %5475 = vmatprep.subr.mxu0 0.0
    %5476 = vmatpush1.msra.mxu0 0.0
    %5477 = vmatprep.subr.mxu0 0.0
    %5478 = vmatpush1.msra.mxu0 0.0
    %5479 = vmatprep.subr.mxu0 0.0
    %5480 = vmatpush1.msra.mxu0 0.0
    %5481 = vmatprep.subr.mxu0 0.0
    %5482 = vmatpush1.msra.mxu0 0.0
    %5483 = vmatprep.subr.mxu0 0.0
    %5484 = vmatpush1.msra.mxu0 0.0
    %5485 = vmatprep.subr.mxu0 0.0
    %5486 = vmatpush1.msra.mxu0 0.0
    %5487 = vmatprep.subr.mxu0 0.0
    %5488 = vmatpush1.msra.mxu0 0.0
    %5489 = vmatprep.subr.mxu0 0.0
    %5490 = vmatpush1.msra.mxu0 0.0
    %5491 = vmatprep.subr.mxu0 0.0
    %5492 = vmatpush1.msra.mxu0 0.0
    %5493 = vmatprep.subr.mxu0 0.0
    %5494 = vmatpush1.msra.mxu0 0.0
    %5495 = vmatprep.subr.mxu0 0.0
    %5496 = vmatpush1.msra.mxu0 0.0
    %5497 = vmatprep.subr.mxu0 0.0
    %5498 = vmatpush1.msra.mxu0 0.0
    %5499 = vmatprep.subr.mxu0 0.0
    %5500 = vmatpush1.msra.mxu0 0.0
    %5501 = vmatprep.subr.mxu0 0.0
    %5502 = vmatpush1.msra.mxu0 0.0
    %5503 = vmatprep.subr.mxu0 0.0
    %5504 = vmatpush1.msra.mxu0 0.0
    %5505 = vmatprep.subr.mxu0 0.0
    %5506 = vmatpush1.msra.mxu0 0.0
    %5507 = vmatprep.subr.mxu0 0.0
    %5508 = vmatpush1.msra.mxu0 0.0
    %5509 = vmatprep.subr.mxu0 0.0
    %5510 = vmatpush1.msra.mxu0 0.0
    %5511 = vmatprep.subr.mxu0 0.0
    %5512 = vmatpush1.msra.mxu0 0.0
    %5513 = vmatprep.mubr.f32.mxu0 0.0
    %5514 = vmatmul.mubr.f32.gmra.mrb[0].mxu0 %v5294
    %v5515 = vpop.f32.mrb[0].mxu0
    %v5516 = vadd.f32 0.0, %v5515
    %v5517 = vpop.f32.mrb[0].mxu0
    %5518 = vmatprep.mubr.f32.mxu0 0.0
    %5519 = vmatmul.mubr.f32.gmra.mrb[0].mxu0 %v5297
    %v5520 = vpop.f32.mrb[0].mxu0
    %v5521 = vadd.f32 0.0, %v5520
    %v5522 = vpop.f32.mrb[0].mxu0
    %5523 = vdwg.mxu0
    %5524 = vmatprep.subr.mxu0 0.0
    %5525 = vmatpush1.msra.mxu0 %v5255
    %5526 = vmatprep.subr.mxu0 0.0
    %5527 = vmatpush1.msra.mxu0 %v5256
    %5528 = vmatprep.subr.mxu0 0.0
    %5529 = vmatpush1.msra.mxu0 %v5257
    %5530 = vmatprep.subr.mxu0 0.0
    %5531 = vmatpush1.msra.mxu0 %v5258
    %5532 = vmatprep.subr.mxu0 0.0
    %5533 = vmatpush1.msra.mxu0 0.0
    %5534 = vmatprep.subr.mxu0 0.0
    %5535 = vmatpush1.msra.mxu0 0.0
    %5536 = vmatprep.subr.mxu0 0.0
    %5537 = vmatpush1.msra.mxu0 0.0
    %5538 = vmatprep.subr.mxu0 0.0
    %5539 = vmatpush1.msra.mxu0 0.0
    %5540 = vmatprep.subr.mxu0 0.0
    %5541 = vmatpush1.msra.mxu0 0.0
    %5542 = vmatprep.subr.mxu0 0.0
    %5543 = vmatpush1.msra.mxu0 0.0
    %5544 = vmatprep.subr.mxu0 0.0
    %5545 = vmatpush1.msra.mxu0 0.0
    %5546 = vmatprep.subr.mxu0 0.0
    %5547 = vmatpush1.msra.mxu0 0.0
    %5548 = vmatprep.subr.mxu0 0.0
    %5549 = vmatpush1.msra.mxu0 0.0
    %5550 = vmatprep.subr.mxu0 0.0
    %5551 = vmatpush1.msra.mxu0 0.0
    %5552 = vmatprep.subr.mxu0 0.0
    %5553 = vmatpush1.msra.mxu0 0.0
    %5554 = vmatprep.subr.mxu0 0.0
    %5555 = vmatpush1.msra.mxu0 0.0
    %5556 = vmatprep.subr.mxu0 0.0
    %5557 = vmatpush1.msra.mxu0 0.0
    %5558 = vmatprep.subr.mxu0 0.0
    %5559 = vmatpush1.msra.mxu0 0.0
    %5560 = vmatprep.subr.mxu0 0.0
    %5561 = vmatpush1.msra.mxu0 0.0
    %5562 = vmatprep.subr.mxu0 0.0
    %5563 = vmatpush1.msra.mxu0 0.0
    %5564 = vmatprep.subr.mxu0 0.0
    %5565 = vmatpush1.msra.mxu0 0.0
    %5566 = vmatprep.subr.mxu0 0.0
    %5567 = vmatpush1.msra.mxu0 0.0
    %5568 = vmatprep.subr.mxu0 0.0
    %5569 = vmatpush1.msra.mxu0 0.0
    %5570 = vmatprep.subr.mxu0 0.0
    %5571 = vmatpush1.msra.mxu0 0.0
    %5572 = vmatprep.subr.mxu0 0.0
    %5573 = vmatpush1.msra.mxu0 0.0
    %5574 = vmatprep.subr.mxu0 0.0
    %5575 = vmatpush1.msra.mxu0 0.0
    %5576 = vmatprep.subr.mxu0 0.0
    %5577 = vmatpush1.msra.mxu0 0.0
    %5578 = vmatprep.subr.mxu0 0.0
    %5579 = vmatpush1.msra.mxu0 0.0
    %5580 = vmatprep.subr.mxu0 0.0
    %5581 = vmatpush1.msra.mxu0 0.0
    %5582 = vmatprep.subr.mxu0 0.0
    %5583 = vmatpush1.msra.mxu0 0.0
    %5584 = vmatprep.subr.mxu0 0.0
    %5585 = vmatpush1.msra.mxu0 0.0
    %5586 = vmatprep.subr.mxu0 0.0
    %5587 = vmatpush1.msra.mxu0 0.0
    %5588 = vmatprep.mubr.f32.mxu0 0.0
    %5589 = vmatmul.mubr.f32.gmra.mrb[0].mxu0 %v5294
    %v5590 = vpop.f32.mrb[0].mxu0
    %v5591 = vadd.f32 0.0, %v5590
    %v5592 = vpop.f32.mrb[0].mxu0
    %5593 = vmatprep.mubr.f32.mxu0 0.0
    %5594 = vmatmul.mubr.f32.gmra.mrb[0].mxu0 %v5297
    %v5595 = vpop.f32.mrb[0].mxu0
    %v5596 = vadd.f32 0.0, %v5595
    %v5597 = vpop.f32.mrb[0].mxu0
    %5598 = vdwg.mxu0
    %v5600 = vsel %vm466, %v5240, 0
    %v5603 = vsel %vm466, %v5241, 0
    %5605 = vmatprep.subr.mxu0 0.0
    %5606 = vmatpush1.msra.mxu0 %v5243
    %5607 = vmatprep.subr.mxu0 0.0
    %5608 = vmatpush1.msra.mxu0 %v5244
    %5609 = vmatprep.subr.mxu0 0.0
    %5610 = vmatpush1.msra.mxu0 %v5245
    %5611 = vmatprep.subr.mxu0 0.0
    %5612 = vmatpush1.msra.mxu0 %v5246
    %5613 = vmatprep.subr.mxu0 0.0
    %5614 = vmatpush1.msra.mxu0 0.0
    %5615 = vmatprep.subr.mxu0 0.0
    %5616 = vmatpush1.msra.mxu0 0.0
    %5617 = vmatprep.subr.mxu0 0.0
    %5618 = vmatpush1.msra.mxu0 0.0
    %5619 = vmatprep.subr.mxu0 0.0
    %5620 = vmatpush1.msra.mxu0 0.0
    %5621 = vmatprep.subr.mxu0 0.0
    %5622 = vmatpush1.msra.mxu0 0.0
    %5623 = vmatprep.subr.mxu0 0.0
    %5624 = vmatpush1.msra.mxu0 0.0
    %5625 = vmatprep.subr.mxu0 0.0
    %5626 = vmatpush1.msra.mxu0 0.0
    %5627 = vmatprep.subr.mxu0 0.0
    %5628 = vmatpush1.msra.mxu0 0.0
    %5629 = vmatprep.subr.mxu0 0.0
    %5630 = vmatpush1.msra.mxu0 0.0
    %5631 = vmatprep.subr.mxu0 0.0
    %5632 = vmatpush1.msra.mxu0 0.0
    %5633 = vmatprep.subr.mxu0 0.0
    %5634 = vmatpush1.msra.mxu0 0.0
    %5635 = vmatprep.subr.mxu0 0.0
    %5636 = vmatpush1.msra.mxu0 0.0
    %5637 = vmatprep.subr.mxu0 0.0
    %5638 = vmatpush1.msra.mxu0 0.0
    %5639 = vmatprep.subr.mxu0 0.0
    %5640 = vmatpush1.msra.mxu0 0.0
    %5641 = vmatprep.subr.mxu0 0.0
    %5642 = vmatpush1.msra.mxu0 0.0
    %5643 = vmatprep.subr.mxu0 0.0
    %5644 = vmatpush1.msra.mxu0 0.0
    %5645 = vmatprep.subr.mxu0 0.0
    %5646 = vmatpush1.msra.mxu0 0.0
    %5647 = vmatprep.subr.mxu0 0.0
    %5648 = vmatpush1.msra.mxu0 0.0
    %5649 = vmatprep.subr.mxu0 0.0
    %5650 = vmatpush1.msra.mxu0 0.0
    %5651 = vmatprep.subr.mxu0 0.0
    %5652 = vmatpush1.msra.mxu0 0.0
    %5653 = vmatprep.subr.mxu0 0.0
    %5654 = vmatpush1.msra.mxu0 0.0
    %5655 = vmatprep.subr.mxu0 0.0
    %5656 = vmatpush1.msra.mxu0 0.0
    %5657 = vmatprep.subr.mxu0 0.0
    %5658 = vmatpush1.msra.mxu0 0.0
    %5659 = vmatprep.subr.mxu0 0.0
    %5660 = vmatpush1.msra.mxu0 0.0
    %5661 = vmatprep.subr.mxu0 0.0
    %5662 = vmatpush1.msra.mxu0 0.0
    %5663 = vmatprep.subr.mxu0 0.0
    %5664 = vmatpush1.msra.mxu0 0.0
    %5665 = vmatprep.subr.mxu0 0.0
    %5666 = vmatpush1.msra.mxu0 0.0
    %5667 = vmatprep.subr.mxu0 0.0
    %5668 = vmatpush1.msra.mxu0 0.0
    %5669 = vmatprep.mubr.f32.mxu0 0.0
    %5670 = vmatmul.mubr.f32.gmra.mrb[0].mxu0 %v5600
    %v5671 = vpop.f32.mrb[0].mxu0
    %v5672 = vadd.f32 0.0, %v5671
    %v5673 = vpop.f32.mrb[0].mxu0
    %5674 = vmatprep.mubr.f32.mxu0 0.0
    %5675 = vmatmul.mubr.f32.gmra.mrb[0].mxu0 %v5603
    %v5676 = vpop.f32.mrb[0].mxu0
    %v5677 = vadd.f32 0.0, %v5676
    %v5678 = vpop.f32.mrb[0].mxu0
    %5679 = vdwg.mxu0
    %5680 = vmatprep.subr.mxu0 0.0
    %5681 = vmatpush1.msra.mxu0 %v5247
    %5682 = vmatprep.subr.mxu0 0.0
    %5683 = vmatpush1.msra.mxu0 %v5248
    %5684 = vmatprep.subr.mxu0 0.0
    %5685 = vmatpush1.msra.mxu0 %v5249
    %5686 = vmatprep.subr.mxu0 0.0
    %5687 = vmatpush1.msra.mxu0 %v5250
    %5688 = vmatprep.subr.mxu0 0.0
    %5689 = vmatpush1.msra.mxu0 0.0
    %5690 = vmatprep.subr.mxu0 0.0
    %5691 = vmatpush1.msra.mxu0 0.0
    %5692 = vmatprep.subr.mxu0 0.0
    %5693 = vmatpush1.msra.mxu0 0.0
    %5694 = vmatprep.subr.mxu0 0.0
    %5695 = vmatpush1.msra.mxu0 0.0
    %5696 = vmatprep.subr.mxu0 0.0
    %5697 = vmatpush1.msra.mxu0 0.0
    %5698 = vmatprep.subr.mxu0 0.0
    %5699 = vmatpush1.msra.mxu0 0.0
    %5700 = vmatprep.subr.mxu0 0.0
    %5701 = vmatpush1.msra.mxu0 0.0
    %5702 = vmatprep.subr.mxu0 0.0
    %5703 = vmatpush1.msra.mxu0 0.0
    %5704 = vmatprep.subr.mxu0 0.0
    %5705 = vmatpush1.msra.mxu0 0.0
    %5706 = vmatprep.subr.mxu0 0.0
    %5707 = vmatpush1.msra.mxu0 0.0
    %5708 = vmatprep.subr.mxu0 0.0
    %5709 = vmatpush1.msra.mxu0 0.0
    %5710 = vmatprep.subr.mxu0 0.0
    %5711 = vmatpush1.msra.mxu0 0.0
    %5712 = vmatprep.subr.mxu0 0.0
    %5713 = vmatpush1.msra.mxu0 0.0
    %5714 = vmatprep.subr.mxu0 0.0
    %5715 = vmatpush1.msra.mxu0 0.0
    %5716 = vmatprep.subr.mxu0 0.0
    %5717 = vmatpush1.msra.mxu0 0.0
    %5718 = vmatprep.subr.mxu0 0.0
    %5719 = vmatpush1.msra.mxu0 0.0
    %5720 = vmatprep.subr.mxu0 0.0
    %5721 = vmatpush1.msra.mxu0 0.0
    %5722 = vmatprep.subr.mxu0 0.0
    %5723 = vmatpush1.msra.mxu0 0.0
    %5724 = vmatprep.subr.mxu0 0.0
    %5725 = vmatpush1.msra.mxu0 0.0
    %5726 = vmatprep.subr.mxu0 0.0
    %5727 = vmatpush1.msra.mxu0 0.0
    %5728 = vmatprep.subr.mxu0 0.0
    %5729 = vmatpush1.msra.mxu0 0.0
    %5730 = vmatprep.subr.mxu0 0.0
    %5731 = vmatpush1.msra.mxu0 0.0
    %5732 = vmatprep.subr.mxu0 0.0
    %5733 = vmatpush1.msra.mxu0 0.0
    %5734 = vmatprep.subr.mxu0 0.0
    %5735 = vmatpush1.msra.mxu0 0.0
    %5736 = vmatprep.subr.mxu0 0.0
    %5737 = vmatpush1.msra.mxu0 0.0
    %5738 = vmatprep.subr.mxu0 0.0
    %5739 = vmatpush1.msra.mxu0 0.0
    %5740 = vmatprep.subr.mxu0 0.0
    %5741 = vmatpush1.msra.mxu0 0.0
    %5742 = vmatprep.subr.mxu0 0.0
    %5743 = vmatpush1.msra.mxu0 0.0
    %5744 = vmatprep.mubr.f32.mxu0 0.0
    %5745 = vmatmul.mubr.f32.gmra.mrb[0].mxu0 %v5600
    %v5746 = vpop.f32.mrb[0].mxu0
    %v5747 = vadd.f32 0.0, %v5746
    %v5748 = vpop.f32.mrb[0].mxu0
    %5749 = vmatprep.mubr.f32.mxu0 0.0
    %5750 = vmatmul.mubr.f32.gmra.mrb[0].mxu0 %v5603
    %v5751 = vpop.f32.mrb[0].mxu0
    %v5752 = vadd.f32 0.0, %v5751
    %v5753 = vpop.f32.mrb[0].mxu0
    %5754 = vdwg.mxu0
    %5755 = vmatprep.subr.mxu0 0.0
    %5756 = vmatpush1.msra.mxu0 %v5251
    %5757 = vmatprep.subr.mxu0 0.0
    %5758 = vmatpush1.msra.mxu0 %v5252
    %5759 = vmatprep.subr.mxu0 0.0
    %5760 = vmatpush1.msra.mxu0 %v5253
    %5761 = vmatprep.subr.mxu0 0.0
    %5762 = vmatpush1.msra.mxu0 %v5254
    %5763 = vmatprep.subr.mxu0 0.0
    %5764 = vmatpush1.msra.mxu0 0.0
    %5765 = vmatprep.subr.mxu0 0.0
    %5766 = vmatpush1.msra.mxu0 0.0
    %5767 = vmatprep.subr.mxu0 0.0
    %5768 = vmatpush1.msra.mxu0 0.0
    %5769 = vmatprep.subr.mxu0 0.0
    %5770 = vmatpush1.msra.mxu0 0.0
    %5771 = vmatprep.subr.mxu0 0.0
    %5772 = vmatpush1.msra.mxu0 0.0
    %5773 = vmatprep.subr.mxu0 0.0
    %5774 = vmatpush1.msra.mxu0 0.0
    %5775 = vmatprep.subr.mxu0 0.0
    %5776 = vmatpush1.msra.mxu0 0.0
    %5777 = vmatprep.subr.mxu0 0.0
    %5778 = vmatpush1.msra.mxu0 0.0
    %5779 = vmatprep.subr.mxu0 0.0
    %5780 = vmatpush1.msra.mxu0 0.0
    %5781 = vmatprep.subr.mxu0 0.0
    %5782 = vmatpush1.msra.mxu0 0.0
    %5783 = vmatprep.subr.mxu0 0.0
    %5784 = vmatpush1.msra.mxu0 0.0
    %5785 = vmatprep.subr.mxu0 0.0
    %5786 = vmatpush1.msra.mxu0 0.0
    %5787 = vmatprep.subr.mxu0 0.0
    %5788 = vmatpush1.msra.mxu0 0.0
    %5789 = vmatprep.subr.mxu0 0.0
    %5790 = vmatpush1.msra.mxu0 0.0
    %5791 = vmatprep.subr.mxu0 0.0
    %5792 = vmatpush1.msra.mxu0 0.0
    %5793 = vmatprep.subr.mxu0 0.0
    %5794 = vmatpush1.msra.mxu0 0.0
    %5795 = vmatprep.subr.mxu0 0.0
    %5796 = vmatpush1.msra.mxu0 0.0
    %5797 = vmatprep.subr.mxu0 0.0
    %5798 = vmatpush1.msra.mxu0 0.0
    %5799 = vmatprep.subr.mxu0 0.0
    %5800 = vmatpush1.msra.mxu0 0.0
    %5801 = vmatprep.subr.mxu0 0.0
    %5802 = vmatpush1.msra.mxu0 0.0
    %5803 = vmatprep.subr.mxu0 0.0
    %5804 = vmatpush1.msra.mxu0 0.0
    %5805 = vmatprep.subr.mxu0 0.0
    %5806 = vmatpush1.msra.mxu0 0.0
    %5807 = vmatprep.subr.mxu0 0.0
    %5808 = vmatpush1.msra.mxu0 0.0
    %5809 = vmatprep.subr.mxu0 0.0
    %5810 = vmatpush1.msra.mxu0 0.0
    %5811 = vmatprep.subr.mxu0 0.0
    %5812 = vmatpush1.msra.mxu0 0.0
    %5813 = vmatprep.subr.mxu0 0.0
    %5814 = vmatpush1.msra.mxu0 0.0
    %5815 = vmatprep.subr.mxu0 0.0
    %5816 = vmatpush1.msra.mxu0 0.0
    %5817 = vmatprep.subr.mxu0 0.0
    %5818 = vmatpush1.msra.mxu0 0.0
    %5819 = vmatprep.mubr.f32.mxu0 0.0
    %5820 = vmatmul.mubr.f32.gmra.mrb[0].mxu0 %v5600
    %v5821 = vpop.f32.mrb[0].mxu0
    %v5822 = vadd.f32 0.0, %v5821
    %v5823 = vpop.f32.mrb[0].mxu0
    %5824 = vmatprep.mubr.f32.mxu0 0.0
    %5825 = vmatmul.mubr.f32.gmra.mrb[0].mxu0 %v5603
    %v5826 = vpop.f32.mrb[0].mxu0
    %v5827 = vadd.f32 0.0, %v5826
    %v5828 = vpop.f32.mrb[0].mxu0
    %5829 = vdwg.mxu0
    %5830 = vmatprep.subr.mxu0 0.0
    %5831 = vmatpush1.msra.mxu0 %v5255
    %5832 = vmatprep.subr.mxu0 0.0
    %5833 = vmatpush1.msra.mxu0 %v5256
    %5834 = vmatprep.subr.mxu0 0.0
    %5835 = vmatpush1.msra.mxu0 %v5257
    %5836 = vmatprep.subr.mxu0 0.0
    %5837 = vmatpush1.msra.mxu0 %v5258
    %5838 = vmatprep.subr.mxu0 0.0
    %5839 = vmatpush1.msra.mxu0 0.0
    %5840 = vmatprep.subr.mxu0 0.0
    %5841 = vmatpush1.msra.mxu0 0.0
    %5842 = vmatprep.subr.mxu0 0.0
    %5843 = vmatpush1.msra.mxu0 0.0
    %5844 = vmatprep.subr.mxu0 0.0
    %5845 = vmatpush1.msra.mxu0 0.0
    %5846 = vmatprep.subr.mxu0 0.0
    %5847 = vmatpush1.msra.mxu0 0.0
    %5848 = vmatprep.subr.mxu0 0.0
    %5849 = vmatpush1.msra.mxu0 0.0
    %5850 = vmatprep.subr.mxu0 0.0
    %5851 = vmatpush1.msra.mxu0 0.0
    %5852 = vmatprep.subr.mxu0 0.0
    %5853 = vmatpush1.msra.mxu0 0.0
    %5854 = vmatprep.subr.mxu0 0.0
    %5855 = vmatpush1.msra.mxu0 0.0
    %5856 = vmatprep.subr.mxu0 0.0
    %5857 = vmatpush1.msra.mxu0 0.0
    %5858 = vmatprep.subr.mxu0 0.0
    %5859 = vmatpush1.msra.mxu0 0.0
    %5860 = vmatprep.subr.mxu0 0.0
    %5861 = vmatpush1.msra.mxu0 0.0
    %5862 = vmatprep.subr.mxu0 0.0
    %5863 = vmatpush1.msra.mxu0 0.0
    %5864 = vmatprep.subr.mxu0 0.0
    %5865 = vmatpush1.msra.mxu0 0.0
    %5866 = vmatprep.subr.mxu0 0.0
    %5867 = vmatpush1.msra.mxu0 0.0
    %5868 = vmatprep.subr.mxu0 0.0
    %5869 = vmatpush1.msra.mxu0 0.0
    %5870 = vmatprep.subr.mxu0 0.0
    %5871 = vmatpush1.msra.mxu0 0.0
    %5872 = vmatprep.subr.mxu0 0.0
    %5873 = vmatpush1.msra.mxu0 0.0
    %5874 = vmatprep.subr.mxu0 0.0
    %5875 = vmatpush1.msra.mxu0 0.0
    %5876 = vmatprep.subr.mxu0 0.0
    %5877 = vmatpush1.msra.mxu0 0.0
    %5878 = vmatprep.subr.mxu0 0.0
    %5879 = vmatpush1.msra.mxu0 0.0
    %5880 = vmatprep.subr.mxu0 0.0
    %5881 = vmatpush1.msra.mxu0 0.0
    %5882 = vmatprep.subr.mxu0 0.0
    %5883 = vmatpush1.msra.mxu0 0.0
    %5884 = vmatprep.subr.mxu0 0.0
    %5885 = vmatpush1.msra.mxu0 0.0
    %5886 = vmatprep.subr.mxu0 0.0
    %5887 = vmatpush1.msra.mxu0 0.0
    %5888 = vmatprep.subr.mxu0 0.0
    %5889 = vmatpush1.msra.mxu0 0.0
    %5890 = vmatprep.subr.mxu0 0.0
    %5891 = vmatpush1.msra.mxu0 0.0
    %5892 = vmatprep.subr.mxu0 0.0
    %5893 = vmatpush1.msra.mxu0 0.0
    %5894 = vmatprep.mubr.f32.mxu0 0.0
    %5895 = vmatmul.mubr.f32.gmra.mrb[0].mxu0 %v5600
    %v5896 = vpop.f32.mrb[0].mxu0
    %v5897 = vadd.f32 0.0, %v5896
    %v5898 = vpop.f32.mrb[0].mxu0
    %5899 = vmatprep.mubr.f32.mxu0 0.0
    %5900 = vmatmul.mubr.f32.gmra.mrb[0].mxu0 %v5603
    %v5901 = vpop.f32.mrb[0].mxu0
    %v5902 = vadd.f32 0.0, %v5901
    %v5903 = vpop.f32.mrb[0].mxu0
    %5904 = vdwg.mxu0
    %5905 = vmatprep.subr.mxu0 0.0
    %5906 = vmatpush1.msra.mxu0 %v5260
    %5907 = vmatprep.subr.mxu0 0.0
    %5908 = vmatpush1.msra.mxu0 %v5261
    %5909 = vmatprep.subr.mxu0 0.0
    %5910 = vmatpush1.msra.mxu0 %v5262
    %5911 = vmatprep.subr.mxu0 0.0
    %5912 = vmatpush1.msra.mxu0 %v5263
    %5913 = vmatprep.subr.mxu0 0.0
    %5914 = vmatpush1.msra.mxu0 0.0
    %5915 = vmatprep.subr.mxu0 0.0
    %5916 = vmatpush1.msra.mxu0 0.0
    %5917 = vmatprep.subr.mxu0 0.0
    %5918 = vmatpush1.msra.mxu0 0.0
    %5919 = vmatprep.subr.mxu0 0.0
    %5920 = vmatpush1.msra.mxu0 0.0
    %5921 = vmatprep.subr.mxu0 0.0
    %5922 = vmatpush1.msra.mxu0 0.0
    %5923 = vmatprep.subr.mxu0 0.0
    %5924 = vmatpush1.msra.mxu0 0.0
    %5925 = vmatprep.subr.mxu0 0.0
    %5926 = vmatpush1.msra.mxu0 0.0
    %5927 = vmatprep.subr.mxu0 0.0
    %5928 = vmatpush1.msra.mxu0 0.0
    %5929 = vmatprep.subr.mxu0 0.0
    %5930 = vmatpush1.msra.mxu0 0.0
    %5931 = vmatprep.subr.mxu0 0.0
    %5932 = vmatpush1.msra.mxu0 0.0
    %5933 = vmatprep.subr.mxu0 0.0
    %5934 = vmatpush1.msra.mxu0 0.0
    %5935 = vmatprep.subr.mxu0 0.0
    %5936 = vmatpush1.msra.mxu0 0.0
    %5937 = vmatprep.subr.mxu0 0.0
    %5938 = vmatpush1.msra.mxu0 0.0
    %5939 = vmatprep.subr.mxu0 0.0
    %5940 = vmatpush1.msra.mxu0 0.0
    %5941 = vmatprep.subr.mxu0 0.0
    %5942 = vmatpush1.msra.mxu0 0.0
    %5943 = vmatprep.subr.mxu0 0.0
    %5944 = vmatpush1.msra.mxu0 0.0
    %5945 = vmatprep.subr.mxu0 0.0
    %5946 = vmatpush1.msra.mxu0 0.0
    %5947 = vmatprep.subr.mxu0 0.0
    %5948 = vmatpush1.msra.mxu0 0.0
    %5949 = vmatprep.subr.mxu0 0.0
    %5950 = vmatpush1.msra.mxu0 0.0
    %5951 = vmatprep.subr.mxu0 0.0
    %5952 = vmatpush1.msra.mxu0 0.0
    %5953 = vmatprep.subr.mxu0 0.0
    %5954 = vmatpush1.msra.mxu0 0.0
    %5955 = vmatprep.subr.mxu0 0.0
    %5956 = vmatpush1.msra.mxu0 0.0
    %5957 = vmatprep.subr.mxu0 0.0
    %5958 = vmatpush1.msra.mxu0 0.0
    %5959 = vmatprep.subr.mxu0 0.0
    %5960 = vmatpush1.msra.mxu0 0.0
    %5961 = vmatprep.subr.mxu0 0.0
    %5962 = vmatpush1.msra.mxu0 0.0
    %5963 = vmatprep.subr.mxu0 0.0
    %5964 = vmatpush1.msra.mxu0 0.0
    %5965 = vmatprep.subr.mxu0 0.0
    %5966 = vmatpush1.msra.mxu0 0.0
    %5967 = vmatprep.subr.mxu0 0.0
    %5968 = vmatpush1.msra.mxu0 0.0
    %5969 = vmatprep.mubr.f32.mxu0 0.0
    %5970 = vmatmul.mubr.f32.gmra.mrb[0].mxu0 %v5294
    %v5971 = vpop.f32.mrb[0].mxu0
    %v5972 = vadd.f32 0.0, %v5971
    %v5973 = vpop.f32.mrb[0].mxu0
    %5974 = vmatprep.mubr.f32.mxu0 0.0
    %5975 = vmatmul.mubr.f32.gmra.mrb[0].mxu0 %v5297
    %v5976 = vpop.f32.mrb[0].mxu0
    %v5977 = vadd.f32 0.0, %v5976
    %v5978 = vpop.f32.mrb[0].mxu0
    %5979 = vdwg.mxu0
    %5980 = vmatprep.subr.mxu0 0.0
    %5981 = vmatpush1.msra.mxu0 %v5264
    %5982 = vmatprep.subr.mxu0 0.0
    %5983 = vmatpush1.msra.mxu0 %v5265
    %5984 = vmatprep.subr.mxu0 0.0
    %5985 = vmatpush1.msra.mxu0 %v5266
    %5986 = vmatprep.subr.mxu0 0.0
    %5987 = vmatpush1.msra.mxu0 %v5267
    %5988 = vmatprep.subr.mxu0 0.0
    %5989 = vmatpush1.msra.mxu0 0.0
    %5990 = vmatprep.subr.mxu0 0.0
    %5991 = vmatpush1.msra.mxu0 0.0
    %5992 = vmatprep.subr.mxu0 0.0
    %5993 = vmatpush1.msra.mxu0 0.0
    %5994 = vmatprep.subr.mxu0 0.0
    %5995 = vmatpush1.msra.mxu0 0.0
    %5996 = vmatprep.subr.mxu0 0.0
    %5997 = vmatpush1.msra.mxu0 0.0
    %5998 = vmatprep.subr.mxu0 0.0
    %5999 = vmatpush1.msra.mxu0 0.0
    %6000 = vmatprep.subr.mxu0 0.0
    %6001 = vmatpush1.msra.mxu0 0.0
    %6002 = vmatprep.subr.mxu0 0.0
    %6003 = vmatpush1.msra.mxu0 0.0
    %6004 = vmatprep.subr.mxu0 0.0
    %6005 = vmatpush1.msra.mxu0 0.0
    %6006 = vmatprep.subr.mxu0 0.0
    %6007 = vmatpush1.msra.mxu0 0.0
    %6008 = vmatprep.subr.mxu0 0.0
    %6009 = vmatpush1.msra.mxu0 0.0
    %6010 = vmatprep.subr.mxu0 0.0
    %6011 = vmatpush1.msra.mxu0 0.0
    %6012 = vmatprep.subr.mxu0 0.0
    %6013 = vmatpush1.msra.mxu0 0.0
    %6014 = vmatprep.subr.mxu0 0.0
    %6015 = vmatpush1.msra.mxu0 0.0
    %6016 = vmatprep.subr.mxu0 0.0
    %6017 = vmatpush1.msra.mxu0 0.0
    %6018 = vmatprep.subr.mxu0 0.0
    %6019 = vmatpush1.msra.mxu0 0.0
    %6020 = vmatprep.subr.mxu0 0.0
    %6021 = vmatpush1.msra.mxu0 0.0
    %6022 = vmatprep.subr.mxu0 0.0
    %6023 = vmatpush1.msra.mxu0 0.0
    %6024 = vmatprep.subr.mxu0 0.0
    %6025 = vmatpush1.msra.mxu0 0.0
    %6026 = vmatprep.subr.mxu0 0.0
    %6027 = vmatpush1.msra.mxu0 0.0
    %6028 = vmatprep.subr.mxu0 0.0
    %6029 = vmatpush1.msra.mxu0 0.0
    %6030 = vmatprep.subr.mxu0 0.0
    %6031 = vmatpush1.msra.mxu0 0.0
    %6032 = vmatprep.subr.mxu0 0.0
    %6033 = vmatpush1.msra.mxu0 0.0
    %6034 = vmatprep.subr.mxu0 0.0
    %6035 = vmatpush1.msra.mxu0 0.0
    %6036 = vmatprep.subr.mxu0 0.0
    %6037 = vmatpush1.msra.mxu0 0.0
    %6038 = vmatprep.subr.mxu0 0.0
    %6039 = vmatpush1.msra.mxu0 0.0
    %6040 = vmatprep.subr.mxu0 0.0
    %6041 = vmatpush1.msra.mxu0 0.0
    %6042 = vmatprep.subr.mxu0 0.0
    %6043 = vmatpush1.msra.mxu0 0.0
    %6044 = vmatprep.mubr.f32.mxu0 0.0
    %6045 = vmatmul.mubr.f32.gmra.mrb[0].mxu0 %v5294
    %v6046 = vpop.f32.mrb[0].mxu0
    %v6047 = vadd.f32 0.0, %v6046
    %v6048 = vpop.f32.mrb[0].mxu0
    %6049 = vmatprep.mubr.f32.mxu0 0.0
    %6050 = vmatmul.mubr.f32.gmra.mrb[0].mxu0 %v5297
    %v6051 = vpop.f32.mrb[0].mxu0
    %v6052 = vadd.f32 0.0, %v6051
    %v6053 = vpop.f32.mrb[0].mxu0
    %6054 = vdwg.mxu0
    %6055 = vmatprep.subr.mxu0 0.0
    %6056 = vmatpush1.msra.mxu0 %v5268
    %6057 = vmatprep.subr.mxu0 0.0
    %6058 = vmatpush1.msra.mxu0 %v5269
    %6059 = vmatprep.subr.mxu0 0.0
    %6060 = vmatpush1.msra.mxu0 %v5270
    %6061 = vmatprep.subr.mxu0 0.0
    %6062 = vmatpush1.msra.mxu0 %v5271
    %6063 = vmatprep.subr.mxu0 0.0
    %6064 = vmatpush1.msra.mxu0 0.0
    %6065 = vmatprep.subr.mxu0 0.0
    %6066 = vmatpush1.msra.mxu0 0.0
    %6067 = vmatprep.subr.mxu0 0.0
    %6068 = vmatpush1.msra.mxu0 0.0
    %6069 = vmatprep.subr.mxu0 0.0
    %6070 = vmatpush1.msra.mxu0 0.0
    %6071 = vmatprep.subr.mxu0 0.0
    %6072 = vmatpush1.msra.mxu0 0.0
    %6073 = vmatprep.subr.mxu0 0.0
    %6074 = vmatpush1.msra.mxu0 0.0
    %6075 = vmatprep.subr.mxu0 0.0
    %6076 = vmatpush1.msra.mxu0 0.0
    %6077 = vmatprep.subr.mxu0 0.0
    %6078 = vmatpush1.msra.mxu0 0.0
    %6079 = vmatprep.subr.mxu0 0.0
    %6080 = vmatpush1.msra.mxu0 0.0
    %6081 = vmatprep.subr.mxu0 0.0
    %6082 = vmatpush1.msra.mxu0 0.0
    %6083 = vmatprep.subr.mxu0 0.0
    %6084 = vmatpush1.msra.mxu0 0.0
    %6085 = vmatprep.subr.mxu0 0.0
    %6086 = vmatpush1.msra.mxu0 0.0
    %6087 = vmatprep.subr.mxu0 0.0
    %6088 = vmatpush1.msra.mxu0 0.0
    %6089 = vmatprep.subr.mxu0 0.0
    %6090 = vmatpush1.msra.mxu0 0.0
    %6091 = vmatprep.subr.mxu0 0.0
    %6092 = vmatpush1.msra.mxu0 0.0
    %6093 = vmatprep.subr.mxu0 0.0
    %6094 = vmatpush1.msra.mxu0 0.0
    %6095 = vmatprep.subr.mxu0 0.0
    %6096 = vmatpush1.msra.mxu0 0.0
    %6097 = vmatprep.subr.mxu0 0.0
    %6098 = vmatpush1.msra.mxu0 0.0
    %6099 = vmatprep.subr.mxu0 0.0
    %6100 = vmatpush1.msra.mxu0 0.0
    %6101 = vmatprep.subr.mxu0 0.0
    %6102 = vmatpush1.msra.mxu0 0.0
    %6103 = vmatprep.subr.mxu0 0.0
    %6104 = vmatpush1.msra.mxu0 0.0
    %6105 = vmatprep.subr.mxu0 0.0
    %6106 = vmatpush1.msra.mxu0 0.0
    %6107 = vmatprep.subr.mxu0 0.0
    %6108 = vmatpush1.msra.mxu0 0.0
    %6109 = vmatprep.subr.mxu0 0.0
    %6110 = vmatpush1.msra.mxu0 0.0
    %6111 = vmatprep.subr.mxu0 0.0
    %6112 = vmatpush1.msra.mxu0 0.0
    %6113 = vmatprep.subr.mxu0 0.0
    %6114 = vmatpush1.msra.mxu0 0.0
    %6115 = vmatprep.subr.mxu0 0.0
    %6116 = vmatpush1.msra.mxu0 0.0
    %6117 = vmatprep.subr.mxu0 0.0
    %6118 = vmatpush1.msra.mxu0 0.0
    %6119 = vmatprep.mubr.f32.mxu0 0.0
    %6120 = vmatmul.mubr.f32.gmra.mrb[0].mxu0 %v5294
    %v6121 = vpop.f32.mrb[0].mxu0
    %v6122 = vadd.f32 0.0, %v6121
    %v6123 = vpop.f32.mrb[0].mxu0
    %6124 = vmatprep.mubr.f32.mxu0 0.0
    %6125 = vmatmul.mubr.f32.gmra.mrb[0].mxu0 %v5297
    %v6126 = vpop.f32.mrb[0].mxu0
    %v6127 = vadd.f32 0.0, %v6126
    %v6128 = vpop.f32.mrb[0].mxu0
    %6129 = vdwg.mxu0
    %6130 = vmatprep.subr.mxu0 0.0
    %6131 = vmatpush1.msra.mxu0 %v5272
    %6132 = vmatprep.subr.mxu0 0.0
    %6133 = vmatpush1.msra.mxu0 %v5273
    %6134 = vmatprep.subr.mxu0 0.0
    %6135 = vmatpush1.msra.mxu0 %v5274
    %6136 = vmatprep.subr.mxu0 0.0
    %6137 = vmatpush1.msra.mxu0 %v5275
    %6138 = vmatprep.subr.mxu0 0.0
    %6139 = vmatpush1.msra.mxu0 0.0
    %6140 = vmatprep.subr.mxu0 0.0
    %6141 = vmatpush1.msra.mxu0 0.0
    %6142 = vmatprep.subr.mxu0 0.0
    %6143 = vmatpush1.msra.mxu0 0.0
    %6144 = vmatprep.subr.mxu0 0.0
    %6145 = vmatpush1.msra.mxu0 0.0
    %6146 = vmatprep.subr.mxu0 0.0
    %6147 = vmatpush1.msra.mxu0 0.0
    %6148 = vmatprep.subr.mxu0 0.0
    %6149 = vmatpush1.msra.mxu0 0.0
    %6150 = vmatprep.subr.mxu0 0.0
    %6151 = vmatpush1.msra.mxu0 0.0
    %6152 = vmatprep.subr.mxu0 0.0
    %6153 = vmatpush1.msra.mxu0 0.0
    %6154 = vmatprep.subr.mxu0 0.0
    %6155 = vmatpush1.msra.mxu0 0.0
    %6156 = vmatprep.subr.mxu0 0.0
    %6157 = vmatpush1.msra.mxu0 0.0
    %6158 = vmatprep.subr.mxu0 0.0
    %6159 = vmatpush1.msra.mxu0 0.0
    %6160 = vmatprep.subr.mxu0 0.0
    %6161 = vmatpush1.msra.mxu0 0.0
    %6162 = vmatprep.subr.mxu0 0.0
    %6163 = vmatpush1.msra.mxu0 0.0
    %6164 = vmatprep.subr.mxu0 0.0
    %6165 = vmatpush1.msra.mxu0 0.0
    %6166 = vmatprep.subr.mxu0 0.0
    %6167 = vmatpush1.msra.mxu0 0.0
    %6168 = vmatprep.subr.mxu0 0.0
    %6169 = vmatpush1.msra.mxu0 0.0
    %6170 = vmatprep.subr.mxu0 0.0
    %6171 = vmatpush1.msra.mxu0 0.0
    %6172 = vmatprep.subr.mxu0 0.0
    %6173 = vmatpush1.msra.mxu0 0.0
    %6174 = vmatprep.subr.mxu0 0.0
    %6175 = vmatpush1.msra.mxu0 0.0
    %6176 = vmatprep.subr.mxu0 0.0
    %6177 = vmatpush1.msra.mxu0 0.0
    %6178 = vmatprep.subr.mxu0 0.0
    %6179 = vmatpush1.msra.mxu0 0.0
    %6180 = vmatprep.subr.mxu0 0.0
    %6181 = vmatpush1.msra.mxu0 0.0
    %6182 = vmatprep.subr.mxu0 0.0
    %6183 = vmatpush1.msra.mxu0 0.0
    %6184 = vmatprep.subr.mxu0 0.0
    %6185 = vmatpush1.msra.mxu0 0.0
    %6186 = vmatprep.subr.mxu0 0.0
    %6187 = vmatpush1.msra.mxu0 0.0
    %6188 = vmatprep.subr.mxu0 0.0
    %6189 = vmatpush1.msra.mxu0 0.0
    %6190 = vmatprep.subr.mxu0 0.0
    %6191 = vmatpush1.msra.mxu0 0.0
    %6192 = vmatprep.subr.mxu0 0.0
    %6193 = vmatpush1.msra.mxu0 0.0
    %6194 = vmatprep.mubr.f32.mxu0 0.0
    %6195 = vmatmul.mubr.f32.gmra.mrb[0].mxu0 %v5294
    %v6196 = vpop.f32.mrb[0].mxu0
    %v6197 = vadd.f32 0.0, %v6196
    %v6198 = vpop.f32.mrb[0].mxu0
    %6199 = vmatprep.mubr.f32.mxu0 0.0
    %6200 = vmatmul.mubr.f32.gmra.mrb[0].mxu0 %v5297
    %v6201 = vpop.f32.mrb[0].mxu0
    %v6202 = vadd.f32 0.0, %v6201
    %v6203 = vpop.f32.mrb[0].mxu0
    %6204 = vdwg.mxu0
    %6205 = vmatprep.subr.mxu0 0.0
    %6206 = vmatpush1.msra.mxu0 %v5260
    %6207 = vmatprep.subr.mxu0 0.0
    %6208 = vmatpush1.msra.mxu0 %v5261
    %6209 = vmatprep.subr.mxu0 0.0
    %6210 = vmatpush1.msra.mxu0 %v5262
    %6211 = vmatprep.subr.mxu0 0.0
    %6212 = vmatpush1.msra.mxu0 %v5263
    %6213 = vmatprep.subr.mxu0 0.0
    %6214 = vmatpush1.msra.mxu0 0.0
    %6215 = vmatprep.subr.mxu0 0.0
    %6216 = vmatpush1.msra.mxu0 0.0
    %6217 = vmatprep.subr.mxu0 0.0
    %6218 = vmatpush1.msra.mxu0 0.0
    %6219 = vmatprep.subr.mxu0 0.0
    %6220 = vmatpush1.msra.mxu0 0.0
    %6221 = vmatprep.subr.mxu0 0.0
    %6222 = vmatpush1.msra.mxu0 0.0
    %6223 = vmatprep.subr.mxu0 0.0
    %6224 = vmatpush1.msra.mxu0 0.0
    %6225 = vmatprep.subr.mxu0 0.0
    %6226 = vmatpush1.msra.mxu0 0.0
    %6227 = vmatprep.subr.mxu0 0.0
    %6228 = vmatpush1.msra.mxu0 0.0
    %6229 = vmatprep.subr.mxu0 0.0
    %6230 = vmatpush1.msra.mxu0 0.0
    %6231 = vmatprep.subr.mxu0 0.0
    %6232 = vmatpush1.msra.mxu0 0.0
    %6233 = vmatprep.subr.mxu0 0.0
    %6234 = vmatpush1.msra.mxu0 0.0
    %6235 = vmatprep.subr.mxu0 0.0
    %6236 = vmatpush1.msra.mxu0 0.0
    %6237 = vmatprep.subr.mxu0 0.0
    %6238 = vmatpush1.msra.mxu0 0.0
    %6239 = vmatprep.subr.mxu0 0.0
    %6240 = vmatpush1.msra.mxu0 0.0
    %6241 = vmatprep.subr.mxu0 0.0
    %6242 = vmatpush1.msra.mxu0 0.0
    %6243 = vmatprep.subr.mxu0 0.0
    %6244 = vmatpush1.msra.mxu0 0.0
    %6245 = vmatprep.subr.mxu0 0.0
    %6246 = vmatpush1.msra.mxu0 0.0
    %6247 = vmatprep.subr.mxu0 0.0
    %6248 = vmatpush1.msra.mxu0 0.0
    %6249 = vmatprep.subr.mxu0 0.0
    %6250 = vmatpush1.msra.mxu0 0.0
    %6251 = vmatprep.subr.mxu0 0.0
    %6252 = vmatpush1.msra.mxu0 0.0
    %6253 = vmatprep.subr.mxu0 0.0
    %6254 = vmatpush1.msra.mxu0 0.0
    %6255 = vmatprep.subr.mxu0 0.0
    %6256 = vmatpush1.msra.mxu0 0.0
    %6257 = vmatprep.subr.mxu0 0.0
    %6258 = vmatpush1.msra.mxu0 0.0
    %6259 = vmatprep.subr.mxu0 0.0
    %6260 = vmatpush1.msra.mxu0 0.0
    %6261 = vmatprep.subr.mxu0 0.0
    %6262 = vmatpush1.msra.mxu0 0.0
    %6263 = vmatprep.subr.mxu0 0.0
    %6264 = vmatpush1.msra.mxu0 0.0
    %6265 = vmatprep.subr.mxu0 0.0
    %6266 = vmatpush1.msra.mxu0 0.0
    %6267 = vmatprep.subr.mxu0 0.0
    %6268 = vmatpush1.msra.mxu0 0.0
    %6269 = vmatprep.mubr.f32.mxu0 0.0
    %6270 = vmatmul.mubr.f32.gmra.mrb[0].mxu0 %v5600
    %v6271 = vpop.f32.mrb[0].mxu0
    %v6272 = vadd.f32 0.0, %v6271
    %v6273 = vpop.f32.mrb[0].mxu0
    %6274 = vmatprep.mubr.f32.mxu0 0.0
    %6275 = vmatmul.mubr.f32.gmra.mrb[0].mxu0 %v5603
    %v6276 = vpop.f32.mrb[0].mxu0
    %v6277 = vadd.f32 0.0, %v6276
    %v6278 = vpop.f32.mrb[0].mxu0
    %6279 = vdwg.mxu0
    %6280 = vmatprep.subr.mxu0 0.0
    %6281 = vmatpush1.msra.mxu0 %v5264
    %6282 = vmatprep.subr.mxu0 0.0
    %6283 = vmatpush1.msra.mxu0 %v5265
    %6284 = vmatprep.subr.mxu0 0.0
    %6285 = vmatpush1.msra.mxu0 %v5266
    %6286 = vmatprep.subr.mxu0 0.0
    %6287 = vmatpush1.msra.mxu0 %v5267
    %6288 = vmatprep.subr.mxu0 0.0
    %6289 = vmatpush1.msra.mxu0 0.0
    %6290 = vmatprep.subr.mxu0 0.0
    %6291 = vmatpush1.msra.mxu0 0.0
    %6292 = vmatprep.subr.mxu0 0.0
    %6293 = vmatpush1.msra.mxu0 0.0
    %6294 = vmatprep.subr.mxu0 0.0
    %6295 = vmatpush1.msra.mxu0 0.0
    %6296 = vmatprep.subr.mxu0 0.0
    %6297 = vmatpush1.msra.mxu0 0.0
    %6298 = vmatprep.subr.mxu0 0.0
    %6299 = vmatpush1.msra.mxu0 0.0
    %6300 = vmatprep.subr.mxu0 0.0
    %6301 = vmatpush1.msra.mxu0 0.0
    %6302 = vmatprep.subr.mxu0 0.0
    %6303 = vmatpush1.msra.mxu0 0.0
    %6304 = vmatprep.subr.mxu0 0.0
    %6305 = vmatpush1.msra.mxu0 0.0
    %6306 = vmatprep.subr.mxu0 0.0
    %6307 = vmatpush1.msra.mxu0 0.0
    %6308 = vmatprep.subr.mxu0 0.0
    %6309 = vmatpush1.msra.mxu0 0.0
    %6310 = vmatprep.subr.mxu0 0.0
    %6311 = vmatpush1.msra.mxu0 0.0
    %6312 = vmatprep.subr.mxu0 0.0
    %6313 = vmatpush1.msra.mxu0 0.0
    %6314 = vmatprep.subr.mxu0 0.0
    %6315 = vmatpush1.msra.mxu0 0.0
    %6316 = vmatprep.subr.mxu0 0.0
    %6317 = vmatpush1.msra.mxu0 0.0
    %6318 = vmatprep.subr.mxu0 0.0
    %6319 = vmatpush1.msra.mxu0 0.0
    %6320 = vmatprep.subr.mxu0 0.0
    %6321 = vmatpush1.msra.mxu0 0.0
    %6322 = vmatprep.subr.mxu0 0.0
    %6323 = vmatpush1.msra.mxu0 0.0
    %6324 = vmatprep.subr.mxu0 0.0
    %6325 = vmatpush1.msra.mxu0 0.0
    %6326 = vmatprep.subr.mxu0 0.0
    %6327 = vmatpush1.msra.mxu0 0.0
    %6328 = vmatprep.subr.mxu0 0.0
    %6329 = vmatpush1.msra.mxu0 0.0
    %6330 = vmatprep.subr.mxu0 0.0
    %6331 = vmatpush1.msra.mxu0 0.0
    %6332 = vmatprep.subr.mxu0 0.0
    %6333 = vmatpush1.msra.mxu0 0.0
    %6334 = vmatprep.subr.mxu0 0.0
    %6335 = vmatpush1.msra.mxu0 0.0
    %6336 = vmatprep.subr.mxu0 0.0
    %6337 = vmatpush1.msra.mxu0 0.0
    %6338 = vmatprep.subr.mxu0 0.0
    %6339 = vmatpush1.msra.mxu0 0.0
    %6340 = vmatprep.subr.mxu0 0.0
    %6341 = vmatpush1.msra.mxu0 0.0
    %6342 = vmatprep.subr.mxu0 0.0
    %6343 = vmatpush1.msra.mxu0 0.0
    %6344 = vmatprep.mubr.f32.mxu0 0.0
    %6345 = vmatmul.mubr.f32.gmra.mrb[0].mxu0 %v5600
    %v6346 = vpop.f32.mrb[0].mxu0
    %v6347 = vadd.f32 0.0, %v6346
    %v6348 = vpop.f32.mrb[0].mxu0
    %6349 = vmatprep.mubr.f32.mxu0 0.0
    %6350 = vmatmul.mubr.f32.gmra.mrb[0].mxu0 %v5603
    %v6351 = vpop.f32.mrb[0].mxu0
    %v6352 = vadd.f32 0.0, %v6351
    %v6353 = vpop.f32.mrb[0].mxu0
    %6354 = vdwg.mxu0
    %6355 = vmatprep.subr.mxu0 0.0
    %6356 = vmatpush1.msra.mxu0 %v5268
    %6357 = vmatprep.subr.mxu0 0.0
    %6358 = vmatpush1.msra.mxu0 %v5269
    %6359 = vmatprep.subr.mxu0 0.0
    %6360 = vmatpush1.msra.mxu0 %v5270
    %6361 = vmatprep.subr.mxu0 0.0
    %6362 = vmatpush1.msra.mxu0 %v5271
    %6363 = vmatprep.subr.mxu0 0.0
    %6364 = vmatpush1.msra.mxu0 0.0
    %6365 = vmatprep.subr.mxu0 0.0
    %6366 = vmatpush1.msra.mxu0 0.0
    %6367 = vmatprep.subr.mxu0 0.0
    %6368 = vmatpush1.msra.mxu0 0.0
    %6369 = vmatprep.subr.mxu0 0.0
    %6370 = vmatpush1.msra.mxu0 0.0
    %6371 = vmatprep.subr.mxu0 0.0
    %6372 = vmatpush1.msra.mxu0 0.0
    %6373 = vmatprep.subr.mxu0 0.0
    %6374 = vmatpush1.msra.mxu0 0.0
    %6375 = vmatprep.subr.mxu0 0.0
    %6376 = vmatpush1.msra.mxu0 0.0
    %6377 = vmatprep.subr.mxu0 0.0
    %6378 = vmatpush1.msra.mxu0 0.0
    %6379 = vmatprep.subr.mxu0 0.0
    %6380 = vmatpush1.msra.mxu0 0.0
    %6381 = vmatprep.subr.mxu0 0.0
    %6382 = vmatpush1.msra.mxu0 0.0
    %6383 = vmatprep.subr.mxu0 0.0
    %6384 = vmatpush1.msra.mxu0 0.0
    %6385 = vmatprep.subr.mxu0 0.0
    %6386 = vmatpush1.msra.mxu0 0.0
    %6387 = vmatprep.subr.mxu0 0.0
    %6388 = vmatpush1.msra.mxu0 0.0
    %6389 = vmatprep.subr.mxu0 0.0
    %6390 = vmatpush1.msra.mxu0 0.0
    %6391 = vmatprep.subr.mxu0 0.0
    %6392 = vmatpush1.msra.mxu0 0.0
    %6393 = vmatprep.subr.mxu0 0.0
    %6394 = vmatpush1.msra.mxu0 0.0
    %6395 = vmatprep.subr.mxu0 0.0
    %6396 = vmatpush1.msra.mxu0 0.0
    %6397 = vmatprep.subr.mxu0 0.0
    %6398 = vmatpush1.msra.mxu0 0.0
    %6399 = vmatprep.subr.mxu0 0.0
    %6400 = vmatpush1.msra.mxu0 0.0
    %6401 = vmatprep.subr.mxu0 0.0
    %6402 = vmatpush1.msra.mxu0 0.0
    %6403 = vmatprep.subr.mxu0 0.0
    %6404 = vmatpush1.msra.mxu0 0.0
    %6405 = vmatprep.subr.mxu0 0.0
    %6406 = vmatpush1.msra.mxu0 0.0
    %6407 = vmatprep.subr.mxu0 0.0
    %6408 = vmatpush1.msra.mxu0 0.0
    %6409 = vmatprep.subr.mxu0 0.0
    %6410 = vmatpush1.msra.mxu0 0.0
    %6411 = vmatprep.subr.mxu0 0.0
    %6412 = vmatpush1.msra.mxu0 0.0
    %6413 = vmatprep.subr.mxu0 0.0
    %6414 = vmatpush1.msra.mxu0 0.0
    %6415 = vmatprep.subr.mxu0 0.0
    %6416 = vmatpush1.msra.mxu0 0.0
    %6417 = vmatprep.subr.mxu0 0.0
    %6418 = vmatpush1.msra.mxu0 0.0
    %6419 = vmatprep.mubr.f32.mxu0 0.0
    %6420 = vmatmul.mubr.f32.gmra.mrb[0].mxu0 %v5600
    %v6421 = vpop.f32.mrb[0].mxu0
    %v6422 = vadd.f32 0.0, %v6421
    %v6423 = vpop.f32.mrb[0].mxu0
    %6424 = vmatprep.mubr.f32.mxu0 0.0
    %6425 = vmatmul.mubr.f32.gmra.mrb[0].mxu0 %v5603
    %v6426 = vpop.f32.mrb[0].mxu0
    %v6427 = vadd.f32 0.0, %v6426
    %v6428 = vpop.f32.mrb[0].mxu0
    %6429 = vdwg.mxu0
    %6430 = vmatprep.subr.mxu0 0.0
    %6431 = vmatpush1.msra.mxu0 %v5272
    %6432 = vmatprep.subr.mxu0 0.0
    %6433 = vmatpush1.msra.mxu0 %v5273
    %6434 = vmatprep.subr.mxu0 0.0
    %6435 = vmatpush1.msra.mxu0 %v5274
    %6436 = vmatprep.subr.mxu0 0.0
    %6437 = vmatpush1.msra.mxu0 %v5275
    %6438 = vmatprep.subr.mxu0 0.0
    %6439 = vmatpush1.msra.mxu0 0.0
    %6440 = vmatprep.subr.mxu0 0.0
    %6441 = vmatpush1.msra.mxu0 0.0
    %6442 = vmatprep.subr.mxu0 0.0
    %6443 = vmatpush1.msra.mxu0 0.0
    %6444 = vmatprep.subr.mxu0 0.0
    %6445 = vmatpush1.msra.mxu0 0.0
    %6446 = vmatprep.subr.mxu0 0.0
    %6447 = vmatpush1.msra.mxu0 0.0
    %6448 = vmatprep.subr.mxu0 0.0
    %6449 = vmatpush1.msra.mxu0 0.0
    %6450 = vmatprep.subr.mxu0 0.0
    %6451 = vmatpush1.msra.mxu0 0.0
    %6452 = vmatprep.subr.mxu0 0.0
    %6453 = vmatpush1.msra.mxu0 0.0
    %6454 = vmatprep.subr.mxu0 0.0
    %6455 = vmatpush1.msra.mxu0 0.0
    %6456 = vmatprep.subr.mxu0 0.0
    %6457 = vmatpush1.msra.mxu0 0.0
    %6458 = vmatprep.subr.mxu0 0.0
    %6459 = vmatpush1.msra.mxu0 0.0
    %6460 = vmatprep.subr.mxu0 0.0
    %6461 = vmatpush1.msra.mxu0 0.0
    %6462 = vmatprep.subr.mxu0 0.0
    %6463 = vmatpush1.msra.mxu0 0.0
    %6464 = vmatprep.subr.mxu0 0.0
    %6465 = vmatpush1.msra.mxu0 0.0
    %6466 = vmatprep.subr.mxu0 0.0
    %6467 = vmatpush1.msra.mxu0 0.0
    %6468 = vmatprep.subr.mxu0 0.0
    %6469 = vmatpush1.msra.mxu0 0.0
    %6470 = vmatprep.subr.mxu0 0.0
    %6471 = vmatpush1.msra.mxu0 0.0
    %6472 = vmatprep.subr.mxu0 0.0
    %6473 = vmatpush1.msra.mxu0 0.0
    %6474 = vmatprep.subr.mxu0 0.0
    %6475 = vmatpush1.msra.mxu0 0.0
    %6476 = vmatprep.subr.mxu0 0.0
    %6477 = vmatpush1.msra.mxu0 0.0
    %6478 = vmatprep.subr.mxu0 0.0
    %6479 = vmatpush1.msra.mxu0 0.0
    %6480 = vmatprep.subr.mxu0 0.0
    %6481 = vmatpush1.msra.mxu0 0.0
    %6482 = vmatprep.subr.mxu0 0.0
    %6483 = vmatpush1.msra.mxu0 0.0
    %6484 = vmatprep.subr.mxu0 0.0
    %6485 = vmatpush1.msra.mxu0 0.0
    %6486 = vmatprep.subr.mxu0 0.0
    %6487 = vmatpush1.msra.mxu0 0.0
    %6488 = vmatprep.subr.mxu0 0.0
    %6489 = vmatpush1.msra.mxu0 0.0
    %6490 = vmatprep.subr.mxu0 0.0
    %6491 = vmatpush1.msra.mxu0 0.0
    %6492 = vmatprep.subr.mxu0 0.0
    %6493 = vmatpush1.msra.mxu0 0.0
    %6494 = vmatprep.mubr.f32.mxu0 0.0
    %6495 = vmatmul.mubr.f32.gmra.mrb[0].mxu0 %v5600
    %v6496 = vpop.f32.mrb[0].mxu0
    %v6497 = vadd.f32 0.0, %v6496
    %v6498 = vpop.f32.mrb[0].mxu0
    %6499 = vmatprep.mubr.f32.mxu0 0.0
    %6500 = vmatmul.mubr.f32.gmra.mrb[0].mxu0 %v5603
    %v6501 = vpop.f32.mrb[0].mxu0
    %v6502 = vadd.f32 0.0, %v6501
    %v6503 = vpop.f32.mrb[0].mxu0
    %6504 = vdwg.mxu0
    %6505 = vmatprep.subr.mxu0 0.0
    %6506 = vmatpush1.msra.mxu0 %v5277
    %6507 = vmatprep.subr.mxu0 0.0
    %6508 = vmatpush1.msra.mxu0 %v5278
    %6509 = vmatprep.subr.mxu0 0.0
    %6510 = vmatpush1.msra.mxu0 %v5279
    %6511 = vmatprep.subr.mxu0 0.0
    %6512 = vmatpush1.msra.mxu0 %v5280
    %6513 = vmatprep.subr.mxu0 0.0
    %6514 = vmatpush1.msra.mxu0 0.0
    %6515 = vmatprep.subr.mxu0 0.0
    %6516 = vmatpush1.msra.mxu0 0.0
    %6517 = vmatprep.subr.mxu0 0.0
    %6518 = vmatpush1.msra.mxu0 0.0
    %6519 = vmatprep.subr.mxu0 0.0
    %6520 = vmatpush1.msra.mxu0 0.0
    %6521 = vmatprep.subr.mxu0 0.0
    %6522 = vmatpush1.msra.mxu0 0.0
    %6523 = vmatprep.subr.mxu0 0.0
    %6524 = vmatpush1.msra.mxu0 0.0
    %6525 = vmatprep.subr.mxu0 0.0
    %6526 = vmatpush1.msra.mxu0 0.0
    %6527 = vmatprep.subr.mxu0 0.0
    %6528 = vmatpush1.msra.mxu0 0.0
    %6529 = vmatprep.subr.mxu0 0.0
    %6530 = vmatpush1.msra.mxu0 0.0
    %6531 = vmatprep.subr.mxu0 0.0
    %6532 = vmatpush1.msra.mxu0 0.0
    %6533 = vmatprep.subr.mxu0 0.0
    %6534 = vmatpush1.msra.mxu0 0.0
    %6535 = vmatprep.subr.mxu0 0.0
    %6536 = vmatpush1.msra.mxu0 0.0
    %6537 = vmatprep.subr.mxu0 0.0
    %6538 = vmatpush1.msra.mxu0 0.0
    %6539 = vmatprep.subr.mxu0 0.0
    %6540 = vmatpush1.msra.mxu0 0.0
    %6541 = vmatprep.subr.mxu0 0.0
    %6542 = vmatpush1.msra.mxu0 0.0
    %6543 = vmatprep.subr.mxu0 0.0
    %6544 = vmatpush1.msra.mxu0 0.0
    %6545 = vmatprep.subr.mxu0 0.0
    %6546 = vmatpush1.msra.mxu0 0.0
    %6547 = vmatprep.subr.mxu0 0.0
    %6548 = vmatpush1.msra.mxu0 0.0
    %6549 = vmatprep.subr.mxu0 0.0
    %6550 = vmatpush1.msra.mxu0 0.0
    %6551 = vmatprep.subr.mxu0 0.0
    %6552 = vmatpush1.msra.mxu0 0.0
    %6553 = vmatprep.subr.mxu0 0.0
    %6554 = vmatpush1.msra.mxu0 0.0
    %6555 = vmatprep.subr.mxu0 0.0
    %6556 = vmatpush1.msra.mxu0 0.0
    %6557 = vmatprep.subr.mxu0 0.0
    %6558 = vmatpush1.msra.mxu0 0.0
    %6559 = vmatprep.subr.mxu0 0.0
    %6560 = vmatpush1.msra.mxu0 0.0
    %6561 = vmatprep.subr.mxu0 0.0
    %6562 = vmatpush1.msra.mxu0 0.0
    %6563 = vmatprep.subr.mxu0 0.0
    %6564 = vmatpush1.msra.mxu0 0.0
    %6565 = vmatprep.subr.mxu0 0.0
    %6566 = vmatpush1.msra.mxu0 0.0
    %6567 = vmatprep.subr.mxu0 0.0
    %6568 = vmatpush1.msra.mxu0 0.0
    %6569 = vmatprep.mubr.f32.mxu0 0.0
    %6570 = vmatmul.mubr.f32.gmra.mrb[0].mxu0 %v5294
    %v6571 = vpop.f32.mrb[0].mxu0
    %v6572 = vadd.f32 0.0, %v6571
    %v6573 = vpop.f32.mrb[0].mxu0
    %6574 = vmatprep.mubr.f32.mxu0 0.0
    %6575 = vmatmul.mubr.f32.gmra.mrb[0].mxu0 %v5297
    %v6576 = vpop.f32.mrb[0].mxu0
    %v6577 = vadd.f32 0.0, %v6576
    %v6578 = vpop.f32.mrb[0].mxu0
    %6579 = vdwg.mxu0
    %6580 = vmatprep.subr.mxu0 0.0
    %6581 = vmatpush1.msra.mxu0 %v5281
    %6582 = vmatprep.subr.mxu0 0.0
    %6583 = vmatpush1.msra.mxu0 %v5282
    %6584 = vmatprep.subr.mxu0 0.0
    %6585 = vmatpush1.msra.mxu0 %v5283
    %6586 = vmatprep.subr.mxu0 0.0
    %6587 = vmatpush1.msra.mxu0 %v5284
    %6588 = vmatprep.subr.mxu0 0.0
    %6589 = vmatpush1.msra.mxu0 0.0
    %6590 = vmatprep.subr.mxu0 0.0
    %6591 = vmatpush1.msra.mxu0 0.0
    %6592 = vmatprep.subr.mxu0 0.0
    %6593 = vmatpush1.msra.mxu0 0.0
    %6594 = vmatprep.subr.mxu0 0.0
    %6595 = vmatpush1.msra.mxu0 0.0
    %6596 = vmatprep.subr.mxu0 0.0
    %6597 = vmatpush1.msra.mxu0 0.0
    %6598 = vmatprep.subr.mxu0 0.0
    %6599 = vmatpush1.msra.mxu0 0.0
    %6600 = vmatprep.subr.mxu0 0.0
    %6601 = vmatpush1.msra.mxu0 0.0
    %6602 = vmatprep.subr.mxu0 0.0
    %6603 = vmatpush1.msra.mxu0 0.0
    %6604 = vmatprep.subr.mxu0 0.0
    %6605 = vmatpush1.msra.mxu0 0.0
    %6606 = vmatprep.subr.mxu0 0.0
    %6607 = vmatpush1.msra.mxu0 0.0
    %6608 = vmatprep.subr.mxu0 0.0
    %6609 = vmatpush1.msra.mxu0 0.0
    %6610 = vmatprep.subr.mxu0 0.0
    %6611 = vmatpush1.msra.mxu0 0.0
    %6612 = vmatprep.subr.mxu0 0.0
    %6613 = vmatpush1.msra.mxu0 0.0
    %6614 = vmatprep.subr.mxu0 0.0
    %6615 = vmatpush1.msra.mxu0 0.0
    %6616 = vmatprep.subr.mxu0 0.0
    %6617 = vmatpush1.msra.mxu0 0.0
    %6618 = vmatprep.subr.mxu0 0.0
    %6619 = vmatpush1.msra.mxu0 0.0
    %6620 = vmatprep.subr.mxu0 0.0
    %6621 = vmatpush1.msra.mxu0 0.0
    %6622 = vmatprep.subr.mxu0 0.0
    %6623 = vmatpush1.msra.mxu0 0.0
    %6624 = vmatprep.subr.mxu0 0.0
    %6625 = vmatpush1.msra.mxu0 0.0
    %6626 = vmatprep.subr.mxu0 0.0
    %6627 = vmatpush1.msra.mxu0 0.0
    %6628 = vmatprep.subr.mxu0 0.0
    %6629 = vmatpush1.msra.mxu0 0.0
    %6630 = vmatprep.subr.mxu0 0.0
    %6631 = vmatpush1.msra.mxu0 0.0
    %6632 = vmatprep.subr.mxu0 0.0
    %6633 = vmatpush1.msra.mxu0 0.0
    %6634 = vmatprep.subr.mxu0 0.0
    %6635 = vmatpush1.msra.mxu0 0.0
    %6636 = vmatprep.subr.mxu0 0.0
    %6637 = vmatpush1.msra.mxu0 0.0
    %6638 = vmatprep.subr.mxu0 0.0
    %6639 = vmatpush1.msra.mxu0 0.0
    %6640 = vmatprep.subr.mxu0 0.0
    %6641 = vmatpush1.msra.mxu0 0.0
    %6642 = vmatprep.subr.mxu0 0.0
    %6643 = vmatpush1.msra.mxu0 0.0
    %6644 = vmatprep.mubr.f32.mxu0 0.0
    %6645 = vmatmul.mubr.f32.gmra.mrb[0].mxu0 %v5294
    %v6646 = vpop.f32.mrb[0].mxu0
    %v6647 = vadd.f32 0.0, %v6646
    %v6648 = vpop.f32.mrb[0].mxu0
    %6649 = vmatprep.mubr.f32.mxu0 0.0
    %6650 = vmatmul.mubr.f32.gmra.mrb[0].mxu0 %v5297
    %v6651 = vpop.f32.mrb[0].mxu0
    %v6652 = vadd.f32 0.0, %v6651
    %v6653 = vpop.f32.mrb[0].mxu0
    %6654 = vdwg.mxu0
    %6655 = vmatprep.subr.mxu0 0.0
    %6656 = vmatpush1.msra.mxu0 %v5285
    %6657 = vmatprep.subr.mxu0 0.0
    %6658 = vmatpush1.msra.mxu0 %v5286
    %6659 = vmatprep.subr.mxu0 0.0
    %6660 = vmatpush1.msra.mxu0 %v5287
    %6661 = vmatprep.subr.mxu0 0.0
    %6662 = vmatpush1.msra.mxu0 %v5288
    %6663 = vmatprep.subr.mxu0 0.0
    %6664 = vmatpush1.msra.mxu0 0.0
    %6665 = vmatprep.subr.mxu0 0.0
    %6666 = vmatpush1.msra.mxu0 0.0
    %6667 = vmatprep.subr.mxu0 0.0
    %6668 = vmatpush1.msra.mxu0 0.0
    %6669 = vmatprep.subr.mxu0 0.0
    %6670 = vmatpush1.msra.mxu0 0.0
    %6671 = vmatprep.subr.mxu0 0.0
    %6672 = vmatpush1.msra.mxu0 0.0
    %6673 = vmatprep.subr.mxu0 0.0
    %6674 = vmatpush1.msra.mxu0 0.0
    %6675 = vmatprep.subr.mxu0 0.0
    %6676 = vmatpush1.msra.mxu0 0.0
    %6677 = vmatprep.subr.mxu0 0.0
    %6678 = vmatpush1.msra.mxu0 0.0
    %6679 = vmatprep.subr.mxu0 0.0
    %6680 = vmatpush1.msra.mxu0 0.0
    %6681 = vmatprep.subr.mxu0 0.0
    %6682 = vmatpush1.msra.mxu0 0.0
    %6683 = vmatprep.subr.mxu0 0.0
    %6684 = vmatpush1.msra.mxu0 0.0
    %6685 = vmatprep.subr.mxu0 0.0
    %6686 = vmatpush1.msra.mxu0 0.0
    %6687 = vmatprep.subr.mxu0 0.0
    %6688 = vmatpush1.msra.mxu0 0.0
    %6689 = vmatprep.subr.mxu0 0.0
    %6690 = vmatpush1.msra.mxu0 0.0
    %6691 = vmatprep.subr.mxu0 0.0
    %6692 = vmatpush1.msra.mxu0 0.0
    %6693 = vmatprep.subr.mxu0 0.0
    %6694 = vmatpush1.msra.mxu0 0.0
    %6695 = vmatprep.subr.mxu0 0.0
    %6696 = vmatpush1.msra.mxu0 0.0
    %6697 = vmatprep.subr.mxu0 0.0
    %6698 = vmatpush1.msra.mxu0 0.0
    %6699 = vmatprep.subr.mxu0 0.0
    %6700 = vmatpush1.msra.mxu0 0.0
    %6701 = vmatprep.subr.mxu0 0.0
    %6702 = vmatpush1.msra.mxu0 0.0
    %6703 = vmatprep.subr.mxu0 0.0
    %6704 = vmatpush1.msra.mxu0 0.0
    %6705 = vmatprep.subr.mxu0 0.0
    %6706 = vmatpush1.msra.mxu0 0.0
    %6707 = vmatprep.subr.mxu0 0.0
    %6708 = vmatpush1.msra.mxu0 0.0
    %6709 = vmatprep.subr.mxu0 0.0
    %6710 = vmatpush1.msra.mxu0 0.0
    %6711 = vmatprep.subr.mxu0 0.0
    %6712 = vmatpush1.msra.mxu0 0.0
    %6713 = vmatprep.subr.mxu0 0.0
    %6714 = vmatpush1.msra.mxu0 0.0
    %6715 = vmatprep.subr.mxu0 0.0
    %6716 = vmatpush1.msra.mxu0 0.0
    %6717 = vmatprep.subr.mxu0 0.0
    %6718 = vmatpush1.msra.mxu0 0.0
    %6719 = vmatprep.mubr.f32.mxu0 0.0
    %6720 = vmatmul.mubr.f32.gmra.mrb[0].mxu0 %v5294
    %v6721 = vpop.f32.mrb[0].mxu0
    %v6722 = vadd.f32 0.0, %v6721
    %v6723 = vpop.f32.mrb[0].mxu0
    %6724 = vmatprep.mubr.f32.mxu0 0.0
    %6725 = vmatmul.mubr.f32.gmra.mrb[0].mxu0 %v5297
    %v6726 = vpop.f32.mrb[0].mxu0
    %v6727 = vadd.f32 0.0, %v6726
    %v6728 = vpop.f32.mrb[0].mxu0
    %6729 = vdwg.mxu0
    %6730 = vmatprep.subr.mxu0 0.0
    %6731 = vmatpush1.msra.mxu0 %v5289
    %6732 = vmatprep.subr.mxu0 0.0
    %6733 = vmatpush1.msra.mxu0 %v5290
    %6734 = vmatprep.subr.mxu0 0.0
    %6735 = vmatpush1.msra.mxu0 %v5291
    %6736 = vmatprep.subr.mxu0 0.0
    %6737 = vmatpush1.msra.mxu0 %v5292
    %6738 = vmatprep.subr.mxu0 0.0
    %6739 = vmatpush1.msra.mxu0 0.0
    %6740 = vmatprep.subr.mxu0 0.0
    %6741 = vmatpush1.msra.mxu0 0.0
    %6742 = vmatprep.subr.mxu0 0.0
    %6743 = vmatpush1.msra.mxu0 0.0
    %6744 = vmatprep.subr.mxu0 0.0
    %6745 = vmatpush1.msra.mxu0 0.0
    %6746 = vmatprep.subr.mxu0 0.0
    %6747 = vmatpush1.msra.mxu0 0.0
    %6748 = vmatprep.subr.mxu0 0.0
    %6749 = vmatpush1.msra.mxu0 0.0
    %6750 = vmatprep.subr.mxu0 0.0
    %6751 = vmatpush1.msra.mxu0 0.0
    %6752 = vmatprep.subr.mxu0 0.0
    %6753 = vmatpush1.msra.mxu0 0.0
    %6754 = vmatprep.subr.mxu0 0.0
    %6755 = vmatpush1.msra.mxu0 0.0
    %6756 = vmatprep.subr.mxu0 0.0
    %6757 = vmatpush1.msra.mxu0 0.0
    %6758 = vmatprep.subr.mxu0 0.0
    %6759 = vmatpush1.msra.mxu0 0.0
    %6760 = vmatprep.subr.mxu0 0.0
    %6761 = vmatpush1.msra.mxu0 0.0
    %6762 = vmatprep.subr.mxu0 0.0
    %6763 = vmatpush1.msra.mxu0 0.0
    %6764 = vmatprep.subr.mxu0 0.0
    %6765 = vmatpush1.msra.mxu0 0.0
    %6766 = vmatprep.subr.mxu0 0.0
    %6767 = vmatpush1.msra.mxu0 0.0
    %6768 = vmatprep.subr.mxu0 0.0
    %6769 = vmatpush1.msra.mxu0 0.0
    %6770 = vmatprep.subr.mxu0 0.0
    %6771 = vmatpush1.msra.mxu0 0.0
    %6772 = vmatprep.subr.mxu0 0.0
    %6773 = vmatpush1.msra.mxu0 0.0
    %6774 = vmatprep.subr.mxu0 0.0
    %6775 = vmatpush1.msra.mxu0 0.0
    %6776 = vmatprep.subr.mxu0 0.0
    %6777 = vmatpush1.msra.mxu0 0.0
    %6778 = vmatprep.subr.mxu0 0.0
    %6779 = vmatpush1.msra.mxu0 0.0
    %6780 = vmatprep.subr.mxu0 0.0
    %6781 = vmatpush1.msra.mxu0 0.0
    %6782 = vmatprep.subr.mxu0 0.0
    %6783 = vmatpush1.msra.mxu0 0.0
    %6784 = vmatprep.subr.mxu0 0.0
    %6785 = vmatpush1.msra.mxu0 0.0
    %6786 = vmatprep.subr.mxu0 0.0
    %6787 = vmatpush1.msra.mxu0 0.0
    %6788 = vmatprep.subr.mxu0 0.0
    %6789 = vmatpush1.msra.mxu0 0.0
    %6790 = vmatprep.subr.mxu0 0.0
    %6791 = vmatpush1.msra.mxu0 0.0
    %6792 = vmatprep.subr.mxu0 0.0
    %6793 = vmatpush1.msra.mxu0 0.0
    %6794 = vmatprep.mubr.f32.mxu0 0.0
    %6795 = vmatmul.mubr.f32.gmra.mrb[0].mxu0 %v5294
    %v6796 = vpop.f32.mrb[0].mxu0
    %v6797 = vadd.f32 0.0, %v6796
    %v6798 = vpop.f32.mrb[0].mxu0
    %6799 = vmatprep.mubr.f32.mxu0 0.0
    %6800 = vmatmul.mubr.f32.gmra.mrb[0].mxu0 %v5297
    %v6801 = vpop.f32.mrb[0].mxu0
    %v6802 = vadd.f32 0.0, %v6801
    %v6803 = vpop.f32.mrb[0].mxu0
    %6804 = vdwg.mxu0
    %6805 = vmatprep.subr.mxu0 0.0
    %6806 = vmatpush1.msra.mxu0 %v5277
    %6807 = vmatprep.subr.mxu0 0.0
    %6808 = vmatpush1.msra.mxu0 %v5278
    %6809 = vmatprep.subr.mxu0 0.0
    %6810 = vmatpush1.msra.mxu0 %v5279
    %6811 = vmatprep.subr.mxu0 0.0
    %6812 = vmatpush1.msra.mxu0 %v5280
    %6813 = vmatprep.subr.mxu0 0.0
    %6814 = vmatpush1.msra.mxu0 0.0
    %6815 = vmatprep.subr.mxu0 0.0
    %6816 = vmatpush1.msra.mxu0 0.0
    %6817 = vmatprep.subr.mxu0 0.0
    %6818 = vmatpush1.msra.mxu0 0.0
    %6819 = vmatprep.subr.mxu0 0.0
    %6820 = vmatpush1.msra.mxu0 0.0
    %6821 = vmatprep.subr.mxu0 0.0
    %6822 = vmatpush1.msra.mxu0 0.0
    %6823 = vmatprep.subr.mxu0 0.0
    %6824 = vmatpush1.msra.mxu0 0.0
    %6825 = vmatprep.subr.mxu0 0.0
    %6826 = vmatpush1.msra.mxu0 0.0
    %6827 = vmatprep.subr.mxu0 0.0
    %6828 = vmatpush1.msra.mxu0 0.0
    %6829 = vmatprep.subr.mxu0 0.0
    %6830 = vmatpush1.msra.mxu0 0.0
    %6831 = vmatprep.subr.mxu0 0.0
    %6832 = vmatpush1.msra.mxu0 0.0
    %6833 = vmatprep.subr.mxu0 0.0
    %6834 = vmatpush1.msra.mxu0 0.0
    %6835 = vmatprep.subr.mxu0 0.0
    %6836 = vmatpush1.msra.mxu0 0.0
    %6837 = vmatprep.subr.mxu0 0.0
    %6838 = vmatpush1.msra.mxu0 0.0
    %6839 = vmatprep.subr.mxu0 0.0
    %6840 = vmatpush1.msra.mxu0 0.0
    %6841 = vmatprep.subr.mxu0 0.0
    %6842 = vmatpush1.msra.mxu0 0.0
    %6843 = vmatprep.subr.mxu0 0.0
    %6844 = vmatpush1.msra.mxu0 0.0
    %6845 = vmatprep.subr.mxu0 0.0
    %6846 = vmatpush1.msra.mxu0 0.0
    %6847 = vmatprep.subr.mxu0 0.0
    %6848 = vmatpush1.msra.mxu0 0.0
    %6849 = vmatprep.subr.mxu0 0.0
    %6850 = vmatpush1.msra.mxu0 0.0
    %6851 = vmatprep.subr.mxu0 0.0
    %6852 = vmatpush1.msra.mxu0 0.0
    %6853 = vmatprep.subr.mxu0 0.0
    %6854 = vmatpush1.msra.mxu0 0.0
    %6855 = vmatprep.subr.mxu0 0.0
    %6856 = vmatpush1.msra.mxu0 0.0
    %6857 = vmatprep.subr.mxu0 0.0
    %6858 = vmatpush1.msra.mxu0 0.0
    %6859 = vmatprep.subr.mxu0 0.0
    %6860 = vmatpush1.msra.mxu0 0.0
    %6861 = vmatprep.subr.mxu0 0.0
    %6862 = vmatpush1.msra.mxu0 0.0
    %6863 = vmatprep.subr.mxu0 0.0
    %6864 = vmatpush1.msra.mxu0 0.0
    %6865 = vmatprep.subr.mxu0 0.0
    %6866 = vmatpush1.msra.mxu0 0.0
    %6867 = vmatprep.subr.mxu0 0.0
    %6868 = vmatpush1.msra.mxu0 0.0
    %6869 = vmatprep.mubr.f32.mxu0 0.0
    %6870 = vmatmul.mubr.f32.gmra.mrb[0].mxu0 %v5600
    %v6871 = vpop.f32.mrb[0].mxu0
    %v6872 = vadd.f32 0.0, %v6871
    %v6873 = vpop.f32.mrb[0].mxu0
    %6874 = vmatprep.mubr.f32.mxu0 0.0
    %6875 = vmatmul.mubr.f32.gmra.mrb[0].mxu0 %v5603
    %v6876 = vpop.f32.mrb[0].mxu0
    %v6877 = vadd.f32 0.0, %v6876
    %v6878 = vpop.f32.mrb[0].mxu0
    %6879 = vdwg.mxu0
    %6880 = vmatprep.subr.mxu0 0.0
    %6881 = vmatpush1.msra.mxu0 %v5281
    %6882 = vmatprep.subr.mxu0 0.0
    %6883 = vmatpush1.msra.mxu0 %v5282
    %6884 = vmatprep.subr.mxu0 0.0
    %6885 = vmatpush1.msra.mxu0 %v5283
    %6886 = vmatprep.subr.mxu0 0.0
    %6887 = vmatpush1.msra.mxu0 %v5284
    %6888 = vmatprep.subr.mxu0 0.0
    %6889 = vmatpush1.msra.mxu0 0.0
    %6890 = vmatprep.subr.mxu0 0.0
    %6891 = vmatpush1.msra.mxu0 0.0
    %6892 = vmatprep.subr.mxu0 0.0
    %6893 = vmatpush1.msra.mxu0 0.0
    %6894 = vmatprep.subr.mxu0 0.0
    %6895 = vmatpush1.msra.mxu0 0.0
    %6896 = vmatprep.subr.mxu0 0.0
    %6897 = vmatpush1.msra.mxu0 0.0
    %6898 = vmatprep.subr.mxu0 0.0
    %6899 = vmatpush1.msra.mxu0 0.0
    %6900 = vmatprep.subr.mxu0 0.0
    %6901 = vmatpush1.msra.mxu0 0.0
    %6902 = vmatprep.subr.mxu0 0.0
    %6903 = vmatpush1.msra.mxu0 0.0
    %6904 = vmatprep.subr.mxu0 0.0
    %6905 = vmatpush1.msra.mxu0 0.0
    %6906 = vmatprep.subr.mxu0 0.0
    %6907 = vmatpush1.msra.mxu0 0.0
    %6908 = vmatprep.subr.mxu0 0.0
    %6909 = vmatpush1.msra.mxu0 0.0
    %6910 = vmatprep.subr.mxu0 0.0
    %6911 = vmatpush1.msra.mxu0 0.0
    %6912 = vmatprep.subr.mxu0 0.0
    %6913 = vmatpush1.msra.mxu0 0.0
    %6914 = vmatprep.subr.mxu0 0.0
    %6915 = vmatpush1.msra.mxu0 0.0
    %6916 = vmatprep.subr.mxu0 0.0
    %6917 = vmatpush1.msra.mxu0 0.0
    %6918 = vmatprep.subr.mxu0 0.0
    %6919 = vmatpush1.msra.mxu0 0.0
    %6920 = vmatprep.subr.mxu0 0.0
    %6921 = vmatpush1.msra.mxu0 0.0
    %6922 = vmatprep.subr.mxu0 0.0
    %6923 = vmatpush1.msra.mxu0 0.0
    %6924 = vmatprep.subr.mxu0 0.0
    %6925 = vmatpush1.msra.mxu0 0.0
    %6926 = vmatprep.subr.mxu0 0.0
    %6927 = vmatpush1.msra.mxu0 0.0
    %6928 = vmatprep.subr.mxu0 0.0
    %6929 = vmatpush1.msra.mxu0 0.0
    %6930 = vmatprep.subr.mxu0 0.0
    %6931 = vmatpush1.msra.mxu0 0.0
    %6932 = vmatprep.subr.mxu0 0.0
    %6933 = vmatpush1.msra.mxu0 0.0
    %6934 = vmatprep.subr.mxu0 0.0
    %6935 = vmatpush1.msra.mxu0 0.0
    %6936 = vmatprep.subr.mxu0 0.0
    %6937 = vmatpush1.msra.mxu0 0.0
    %6938 = vmatprep.subr.mxu0 0.0
    %6939 = vmatpush1.msra.mxu0 0.0
    %6940 = vmatprep.subr.mxu0 0.0
    %6941 = vmatpush1.msra.mxu0 0.0
    %6942 = vmatprep.subr.mxu0 0.0
    %6943 = vmatpush1.msra.mxu0 0.0
    %6944 = vmatprep.mubr.f32.mxu0 0.0
    %6945 = vmatmul.mubr.f32.gmra.mrb[0].mxu0 %v5600
    %v6946 = vpop.f32.mrb[0].mxu0
    %v6947 = vadd.f32 0.0, %v6946
    %v6948 = vpop.f32.mrb[0].mxu0
    %6949 = vmatprep.mubr.f32.mxu0 0.0
    %6950 = vmatmul.mubr.f32.gmra.mrb[0].mxu0 %v5603
    %v6951 = vpop.f32.mrb[0].mxu0
    %v6952 = vadd.f32 0.0, %v6951
    %v6953 = vpop.f32.mrb[0].mxu0
    %6954 = vdwg.mxu0
    %6955 = vmatprep.subr.mxu0 0.0
    %6956 = vmatpush1.msra.mxu0 %v5285
    %6957 = vmatprep.subr.mxu0 0.0
    %6958 = vmatpush1.msra.mxu0 %v5286
    %6959 = vmatprep.subr.mxu0 0.0
    %6960 = vmatpush1.msra.mxu0 %v5287
    %6961 = vmatprep.subr.mxu0 0.0
    %6962 = vmatpush1.msra.mxu0 %v5288
    %6963 = vmatprep.subr.mxu0 0.0
    %6964 = vmatpush1.msra.mxu0 0.0
    %6965 = vmatprep.subr.mxu0 0.0
    %6966 = vmatpush1.msra.mxu0 0.0
    %6967 = vmatprep.subr.mxu0 0.0
    %6968 = vmatpush1.msra.mxu0 0.0
    %6969 = vmatprep.subr.mxu0 0.0
    %6970 = vmatpush1.msra.mxu0 0.0
    %6971 = vmatprep.subr.mxu0 0.0
    %6972 = vmatpush1.msra.mxu0 0.0
    %6973 = vmatprep.subr.mxu0 0.0
    %6974 = vmatpush1.msra.mxu0 0.0
    %6975 = vmatprep.subr.mxu0 0.0
    %6976 = vmatpush1.msra.mxu0 0.0
    %6977 = vmatprep.subr.mxu0 0.0
    %6978 = vmatpush1.msra.mxu0 0.0
    %6979 = vmatprep.subr.mxu0 0.0
    %6980 = vmatpush1.msra.mxu0 0.0
    %6981 = vmatprep.subr.mxu0 0.0
    %6982 = vmatpush1.msra.mxu0 0.0
    %6983 = vmatprep.subr.mxu0 0.0
    %6984 = vmatpush1.msra.mxu0 0.0
    %6985 = vmatprep.subr.mxu0 0.0
    %6986 = vmatpush1.msra.mxu0 0.0
    %6987 = vmatprep.subr.mxu0 0.0
    %6988 = vmatpush1.msra.mxu0 0.0
    %6989 = vmatprep.subr.mxu0 0.0
    %6990 = vmatpush1.msra.mxu0 0.0
    %6991 = vmatprep.subr.mxu0 0.0
    %6992 = vmatpush1.msra.mxu0 0.0
    %6993 = vmatprep.subr.mxu0 0.0
    %6994 = vmatpush1.msra.mxu0 0.0
    %6995 = vmatprep.subr.mxu0 0.0
    %6996 = vmatpush1.msra.mxu0 0.0
    %6997 = vmatprep.subr.mxu0 0.0
    %6998 = vmatpush1.msra.mxu0 0.0
    %6999 = vmatprep.subr.mxu0 0.0
    %7000 = vmatpush1.msra.mxu0 0.0
    %7001 = vmatprep.subr.mxu0 0.0
    %7002 = vmatpush1.msra.mxu0 0.0
    %7003 = vmatprep.subr.mxu0 0.0
    %7004 = vmatpush1.msra.mxu0 0.0
    %7005 = vmatprep.subr.mxu0 0.0
    %7006 = vmatpush1.msra.mxu0 0.0
    %7007 = vmatprep.subr.mxu0 0.0
    %7008 = vmatpush1.msra.mxu0 0.0
    %7009 = vmatprep.subr.mxu0 0.0
    %7010 = vmatpush1.msra.mxu0 0.0
    %7011 = vmatprep.subr.mxu0 0.0
    %7012 = vmatpush1.msra.mxu0 0.0
    %7013 = vmatprep.subr.mxu0 0.0
    %7014 = vmatpush1.msra.mxu0 0.0
    %7015 = vmatprep.subr.mxu0 0.0
    %7016 = vmatpush1.msra.mxu0 0.0
    %7017 = vmatprep.subr.mxu0 0.0
    %7018 = vmatpush1.msra.mxu0 0.0
    %7019 = vmatprep.mubr.f32.mxu0 0.0
    %7020 = vmatmul.mubr.f32.gmra.mrb[0].mxu0 %v5600
    %v7021 = vpop.f32.mrb[0].mxu0
    %v7022 = vadd.f32 0.0, %v7021
    %v7023 = vpop.f32.mrb[0].mxu0
    %7024 = vmatprep.mubr.f32.mxu0 0.0
    %7025 = vmatmul.mubr.f32.gmra.mrb[0].mxu0 %v5603
    %v7026 = vpop.f32.mrb[0].mxu0
    %v7027 = vadd.f32 0.0, %v7026
    %v7028 = vpop.f32.mrb[0].mxu0
    %7029 = vdwg.mxu0
    %7030 = vmatprep.subr.mxu0 0.0
    %7031 = vmatpush1.msra.mxu0 %v5289
    %7032 = vmatprep.subr.mxu0 0.0
    %7033 = vmatpush1.msra.mxu0 %v5290
    %7034 = vmatprep.subr.mxu0 0.0
    %7035 = vmatpush1.msra.mxu0 %v5291
    %7036 = vmatprep.subr.mxu0 0.0
    %7037 = vmatpush1.msra.mxu0 %v5292
    %7038 = vmatprep.subr.mxu0 0.0
    %7039 = vmatpush1.msra.mxu0 0.0
    %7040 = vmatprep.subr.mxu0 0.0
    %7041 = vmatpush1.msra.mxu0 0.0
    %7042 = vmatprep.subr.mxu0 0.0
    %7043 = vmatpush1.msra.mxu0 0.0
    %7044 = vmatprep.subr.mxu0 0.0
    %7045 = vmatpush1.msra.mxu0 0.0
    %7046 = vmatprep.subr.mxu0 0.0
    %7047 = vmatpush1.msra.mxu0 0.0
    %7048 = vmatprep.subr.mxu0 0.0
    %7049 = vmatpush1.msra.mxu0 0.0
    %7050 = vmatprep.subr.mxu0 0.0
    %7051 = vmatpush1.msra.mxu0 0.0
    %7052 = vmatprep.subr.mxu0 0.0
    %7053 = vmatpush1.msra.mxu0 0.0
    %7054 = vmatprep.subr.mxu0 0.0
    %7055 = vmatpush1.msra.mxu0 0.0
    %7056 = vmatprep.subr.mxu0 0.0
    %7057 = vmatpush1.msra.mxu0 0.0
    %7058 = vmatprep.subr.mxu0 0.0
    %7059 = vmatpush1.msra.mxu0 0.0
    %7060 = vmatprep.subr.mxu0 0.0
    %7061 = vmatpush1.msra.mxu0 0.0
    %7062 = vmatprep.subr.mxu0 0.0
    %7063 = vmatpush1.msra.mxu0 0.0
    %7064 = vmatprep.subr.mxu0 0.0
    %7065 = vmatpush1.msra.mxu0 0.0
    %7066 = vmatprep.subr.mxu0 0.0
    %7067 = vmatpush1.msra.mxu0 0.0
    %7068 = vmatprep.subr.mxu0 0.0
    %7069 = vmatpush1.msra.mxu0 0.0
    %7070 = vmatprep.subr.mxu0 0.0
    %7071 = vmatpush1.msra.mxu0 0.0
    %7072 = vmatprep.subr.mxu0 0.0
    %7073 = vmatpush1.msra.mxu0 0.0
    %7074 = vmatprep.subr.mxu0 0.0
    %7075 = vmatpush1.msra.mxu0 0.0
    %7076 = vmatprep.subr.mxu0 0.0
    %7077 = vmatpush1.msra.mxu0 0.0
    %7078 = vmatprep.subr.mxu0 0.0
    %7079 = vmatpush1.msra.mxu0 0.0
    %7080 = vmatprep.subr.mxu0 0.0
    %7081 = vmatpush1.msra.mxu0 0.0
    %7082 = vmatprep.subr.mxu0 0.0
    %7083 = vmatpush1.msra.mxu0 0.0
    %7084 = vmatprep.subr.mxu0 0.0
    %7085 = vmatpush1.msra.mxu0 0.0
    %7086 = vmatprep.subr.mxu0 0.0
    %7087 = vmatpush1.msra.mxu0 0.0
    %7088 = vmatprep.subr.mxu0 0.0
    %7089 = vmatpush1.msra.mxu0 0.0
    %7090 = vmatprep.subr.mxu0 0.0
    %7091 = vmatpush1.msra.mxu0 0.0
    %7092 = vmatprep.subr.mxu0 0.0
    %7093 = vmatpush1.msra.mxu0 0.0
    %7094 = vmatprep.mubr.f32.mxu0 0.0
    %7095 = vmatmul.mubr.f32.gmra.mrb[0].mxu0 %v5600
    %v7096 = vpop.f32.mrb[0].mxu0
    %v7097 = vadd.f32 0.0, %v7096
    %v7098 = vpop.f32.mrb[0].mxu0
    %7099 = vmatprep.mubr.f32.mxu0 0.0
    %7100 = vmatmul.mubr.f32.gmra.mrb[0].mxu0 %v5603
    %v7101 = vpop.f32.mrb[0].mxu0
    %v7102 = vadd.f32 0.0, %v7101
    %v7103 = vpop.f32.mrb[0].mxu0
    %7104 = vdwg.mxu0
    %v7105 = vmul.f32 %v5366, 0.35355338
    %v7106 = vmul.f32 %v5371, 0.35355338
    %v7107 = vmul.f32 %v5441, 0.35355338
    %v7108 = vmul.f32 %v5446, 0.35355338
    %v7109 = vmul.f32 %v5516, 0.35355338
    %v7110 = vmul.f32 %v5521, 0.35355338
    %v7111 = vmul.f32 %v5591, 0.35355338
    %v7112 = vmul.f32 %v5596, 0.35355338
    %v7113 = vmul.f32 %v5672, 0.35355338
    %v7114 = vmul.f32 %v5677, 0.35355338
    %v7115 = vmul.f32 %v5747, 0.35355338
    %v7116 = vmul.f32 %v5752, 0.35355338
    %v7117 = vmul.f32 %v5822, 0.35355338
    %v7118 = vmul.f32 %v5827, 0.35355338
    %v7119 = vmul.f32 %v5897, 0.35355338
    %v7120 = vmul.f32 %v5902, 0.35355338
    %v7122 = vsel %vm2554, %v7105, 0
    %v7125 = vsel %vm2554, %v7106, 0
    %v7128 = vsel %vm2554, %v5972, 0
    %v7131 = vsel %vm2554, %v5977, 0
    %7133 = vmatprep.subr.mxu0 0.0
    %7134 = vmatpush1.xpose.msra.mxu0 %v7128
    %7135 = vmatprep.subr.mxu0 0.0
    %7136 = vmatpush1.xpose.msra.mxu0 %v7131
    %7137 = vmatprep.subr.mxu0 0.0
    %7138 = vmatpush1.xpose.msra.mxu0 0.0
    %7139 = vmatprep.subr.mxu0 0.0
    %7140 = vmatpush1.xpose.msra.mxu0 0.0
    %7141 = vmatprep.subr.mxu0 0.0
    %7142 = vmatpush1.xpose.msra.mxu0 0.0
    %7143 = vmatprep.subr.mxu0 0.0
    %7144 = vmatpush1.xpose.msra.mxu0 0.0
    %7145 = vmatprep.subr.mxu0 0.0
    %7146 = vmatpush1.xpose.msra.mxu0 0.0
    %7147 = vmatprep.subr.mxu0 0.0
    %7148 = vmatpush1.xpose.msra.mxu0 0.0
    %7149 = vmatprep.subr.mxu0 0.0
    %7150 = vmatpush1.xpose.msra.mxu0 0.0
    %7151 = vmatprep.subr.mxu0 0.0
    %7152 = vmatpush1.xpose.msra.mxu0 0.0
    %7153 = vmatprep.subr.mxu0 0.0
    %7154 = vmatpush1.xpose.msra.mxu0 0.0
    %7155 = vmatprep.subr.mxu0 0.0
    %7156 = vmatpush1.xpose.msra.mxu0 0.0
    %7157 = vmatprep.subr.mxu0 0.0
    %7158 = vmatpush1.xpose.msra.mxu0 0.0
    %7159 = vmatprep.subr.mxu0 0.0
    %7160 = vmatpush1.xpose.msra.mxu0 0.0
    %7161 = vmatprep.subr.mxu0 0.0
    %7162 = vmatpush1.xpose.msra.mxu0 0.0
    %7163 = vmatprep.subr.mxu0 0.0
    %7164 = vmatpush1.xpose.msra.mxu0 0.0
    %7165 = vmatprep.subr.mxu0 0.0
    %7166 = vmatpush1.xpose.msra.mxu0 0.0
    %7167 = vmatprep.subr.mxu0 0.0
    %7168 = vmatpush1.xpose.msra.mxu0 0.0
    %7169 = vmatprep.subr.mxu0 0.0
    %7170 = vmatpush1.xpose.msra.mxu0 0.0
    %7171 = vmatprep.subr.mxu0 0.0
    %7172 = vmatpush1.xpose.msra.mxu0 0.0
    %7173 = vmatprep.subr.mxu0 0.0
    %7174 = vmatpush1.xpose.msra.mxu0 0.0
    %7175 = vmatprep.subr.mxu0 0.0
    %7176 = vmatpush1.xpose.msra.mxu0 0.0
    %7177 = vmatprep.subr.mxu0 0.0
    %7178 = vmatpush1.xpose.msra.mxu0 0.0
    %7179 = vmatprep.subr.mxu0 0.0
    %7180 = vmatpush1.xpose.msra.mxu0 0.0
    %7181 = vmatprep.subr.mxu0 0.0
    %7182 = vmatpush1.xpose.msra.mxu0 0.0
    %7183 = vmatprep.subr.mxu0 0.0
    %7184 = vmatpush1.xpose.msra.mxu0 0.0
    %7185 = vmatprep.subr.mxu0 0.0
    %7186 = vmatpush1.xpose.msra.mxu0 0.0
    %7187 = vmatprep.subr.mxu0 0.0
    %7188 = vmatpush1.xpose.msra.mxu0 0.0
    %7189 = vmatprep.subr.mxu0 0.0
    %7190 = vmatpush1.xpose.msra.mxu0 0.0
    %7191 = vmatprep.subr.mxu0 0.0
    %7192 = vmatpush1.xpose.msra.mxu0 0.0
    %7193 = vmatprep.subr.mxu0 0.0
    %7194 = vmatpush1.xpose.msra.mxu0 0.0
    %7195 = vmatprep.subr.mxu0 0.0
    %7196 = vmatpush1.xpose.msra.mxu0 0.0
    %7197 = vmatprep.mubr.f32.mxu0 0.0
    %7198 = vmatmul.mubr.f32.gmra.mrb[0].mxu0 %v7122
    %v7199 = vpop.f32.mrb[0].mxu0
    %v7200 = vadd.f32 %v603, %v7199
    %v7201 = vpop.f32.mrb[0].mxu0
    %7202 = vmatprep.mubr.f32.mxu0 0.0
    %7203 = vmatmul.mubr.f32.gmra.mrb[0].mxu0 %v7125
    %v7204 = vpop.f32.mrb[0].mxu0
    %v7205 = vadd.f32 %v603, %v7204
    %v7206 = vpop.f32.mrb[0].mxu0
    %7207 = vdwg.mxu0
    %v7209 = vsel %vm2554, %v7107, 0
    %v7212 = vsel %vm2554, %v7108, 0
    %v7215 = vsel %vm2554, %v6047, 0
    %v7218 = vsel %vm2554, %v6052, 0
    %7220 = vmatprep.subr.mxu0 0.0
    %7221 = vmatpush1.xpose.msra.mxu0 %v7215
    %7222 = vmatprep.subr.mxu0 0.0
    %7223 = vmatpush1.xpose.msra.mxu0 %v7218
    %7224 = vmatprep.subr.mxu0 0.0
    %7225 = vmatpush1.xpose.msra.mxu0 0.0
    %7226 = vmatprep.subr.mxu0 0.0
    %7227 = vmatpush1.xpose.msra.mxu0 0.0
    %7228 = vmatprep.subr.mxu0 0.0
    %7229 = vmatpush1.xpose.msra.mxu0 0.0
    %7230 = vmatprep.subr.mxu0 0.0
    %7231 = vmatpush1.xpose.msra.mxu0 0.0
    %7232 = vmatprep.subr.mxu0 0.0
    %7233 = vmatpush1.xpose.msra.mxu0 0.0
    %7234 = vmatprep.subr.mxu0 0.0
    %7235 = vmatpush1.xpose.msra.mxu0 0.0
    %7236 = vmatprep.subr.mxu0 0.0
    %7237 = vmatpush1.xpose.msra.mxu0 0.0
    %7238 = vmatprep.subr.mxu0 0.0
    %7239 = vmatpush1.xpose.msra.mxu0 0.0
    %7240 = vmatprep.subr.mxu0 0.0
    %7241 = vmatpush1.xpose.msra.mxu0 0.0
    %7242 = vmatprep.subr.mxu0 0.0
    %7243 = vmatpush1.xpose.msra.mxu0 0.0
    %7244 = vmatprep.subr.mxu0 0.0
    %7245 = vmatpush1.xpose.msra.mxu0 0.0
    %7246 = vmatprep.subr.mxu0 0.0
    %7247 = vmatpush1.xpose.msra.mxu0 0.0
    %7248 = vmatprep.subr.mxu0 0.0
    %7249 = vmatpush1.xpose.msra.mxu0 0.0
    %7250 = vmatprep.subr.mxu0 0.0
    %7251 = vmatpush1.xpose.msra.mxu0 0.0
    %7252 = vmatprep.subr.mxu0 0.0
    %7253 = vmatpush1.xpose.msra.mxu0 0.0
    %7254 = vmatprep.subr.mxu0 0.0
    %7255 = vmatpush1.xpose.msra.mxu0 0.0
    %7256 = vmatprep.subr.mxu0 0.0
    %7257 = vmatpush1.xpose.msra.mxu0 0.0
    %7258 = vmatprep.subr.mxu0 0.0
    %7259 = vmatpush1.xpose.msra.mxu0 0.0
    %7260 = vmatprep.subr.mxu0 0.0
    %7261 = vmatpush1.xpose.msra.mxu0 0.0
    %7262 = vmatprep.subr.mxu0 0.0
    %7263 = vmatpush1.xpose.msra.mxu0 0.0
    %7264 = vmatprep.subr.mxu0 0.0
    %7265 = vmatpush1.xpose.msra.mxu0 0.0
    %7266 = vmatprep.subr.mxu0 0.0
    %7267 = vmatpush1.xpose.msra.mxu0 0.0
    %7268 = vmatprep.subr.mxu0 0.0
    %7269 = vmatpush1.xpose.msra.mxu0 0.0
    %7270 = vmatprep.subr.mxu0 0.0
    %7271 = vmatpush1.xpose.msra.mxu0 0.0
    %7272 = vmatprep.subr.mxu0 0.0
    %7273 = vmatpush1.xpose.msra.mxu0 0.0
    %7274 = vmatprep.subr.mxu0 0.0
    %7275 = vmatpush1.xpose.msra.mxu0 0.0
    %7276 = vmatprep.subr.mxu0 0.0
    %7277 = vmatpush1.xpose.msra.mxu0 0.0
    %7278 = vmatprep.subr.mxu0 0.0
    %7279 = vmatpush1.xpose.msra.mxu0 0.0
    %7280 = vmatprep.subr.mxu0 0.0
    %7281 = vmatpush1.xpose.msra.mxu0 0.0
    %7282 = vmatprep.subr.mxu0 0.0
    %7283 = vmatpush1.xpose.msra.mxu0 0.0
    %7284 = vmatprep.mubr.f32.mxu0 0.0
    %7285 = vmatmul.mubr.f32.gmra.mrb[0].mxu0 %v7209
    %v7286 = vpop.f32.mrb[0].mxu0
    %v7287 = vadd.f32 %v603, %v7286
    %v7288 = vpop.f32.mrb[0].mxu0
    %7289 = vmatprep.mubr.f32.mxu0 0.0
    %7290 = vmatmul.mubr.f32.gmra.mrb[0].mxu0 %v7212
    %v7291 = vpop.f32.mrb[0].mxu0
    %v7292 = vadd.f32 %v603, %v7291
    %v7293 = vpop.f32.mrb[0].mxu0
    %7294 = vdwg.mxu0
    %v7296 = vsel %vm2554, %v7109, 0
    %v7299 = vsel %vm2554, %v7110, 0
    %v7302 = vsel %vm2554, %v6122, 0
    %v7305 = vsel %vm2554, %v6127, 0
    %7307 = vmatprep.subr.mxu0 0.0
    %7308 = vmatpush1.xpose.msra.mxu0 %v7302
    %7309 = vmatprep.subr.mxu0 0.0
    %7310 = vmatpush1.xpose.msra.mxu0 %v7305
    %7311 = vmatprep.subr.mxu0 0.0
    %7312 = vmatpush1.xpose.msra.mxu0 0.0
    %7313 = vmatprep.subr.mxu0 0.0
    %7314 = vmatpush1.xpose.msra.mxu0 0.0
    %7315 = vmatprep.subr.mxu0 0.0
    %7316 = vmatpush1.xpose.msra.mxu0 0.0
    %7317 = vmatprep.subr.mxu0 0.0
    %7318 = vmatpush1.xpose.msra.mxu0 0.0
    %7319 = vmatprep.subr.mxu0 0.0
    %7320 = vmatpush1.xpose.msra.mxu0 0.0
    %7321 = vmatprep.subr.mxu0 0.0
    %7322 = vmatpush1.xpose.msra.mxu0 0.0
    %7323 = vmatprep.subr.mxu0 0.0
    %7324 = vmatpush1.xpose.msra.mxu0 0.0
    %7325 = vmatprep.subr.mxu0 0.0
    %7326 = vmatpush1.xpose.msra.mxu0 0.0
    %7327 = vmatprep.subr.mxu0 0.0
    %7328 = vmatpush1.xpose.msra.mxu0 0.0
    %7329 = vmatprep.subr.mxu0 0.0
    %7330 = vmatpush1.xpose.msra.mxu0 0.0
    %7331 = vmatprep.subr.mxu0 0.0
    %7332 = vmatpush1.xpose.msra.mxu0 0.0
    %7333 = vmatprep.subr.mxu0 0.0
    %7334 = vmatpush1.xpose.msra.mxu0 0.0
    %7335 = vmatprep.subr.mxu0 0.0
    %7336 = vmatpush1.xpose.msra.mxu0 0.0
    %7337 = vmatprep.subr.mxu0 0.0
    %7338 = vmatpush1.xpose.msra.mxu0 0.0
    %7339 = vmatprep.subr.mxu0 0.0
    %7340 = vmatpush1.xpose.msra.mxu0 0.0
    %7341 = vmatprep.subr.mxu0 0.0
    %7342 = vmatpush1.xpose.msra.mxu0 0.0
    %7343 = vmatprep.subr.mxu0 0.0
    %7344 = vmatpush1.xpose.msra.mxu0 0.0
    %7345 = vmatprep.subr.mxu0 0.0
    %7346 = vmatpush1.xpose.msra.mxu0 0.0
    %7347 = vmatprep.subr.mxu0 0.0
    %7348 = vmatpush1.xpose.msra.mxu0 0.0
    %7349 = vmatprep.subr.mxu0 0.0
    %7350 = vmatpush1.xpose.msra.mxu0 0.0
    %7351 = vmatprep.subr.mxu0 0.0
    %7352 = vmatpush1.xpose.msra.mxu0 0.0
    %7353 = vmatprep.subr.mxu0 0.0
    %7354 = vmatpush1.xpose.msra.mxu0 0.0
    %7355 = vmatprep.subr.mxu0 0.0
    %7356 = vmatpush1.xpose.msra.mxu0 0.0
    %7357 = vmatprep.subr.mxu0 0.0
    %7358 = vmatpush1.xpose.msra.mxu0 0.0
    %7359 = vmatprep.subr.mxu0 0.0
    %7360 = vmatpush1.xpose.msra.mxu0 0.0
    %7361 = vmatprep.subr.mxu0 0.0
    %7362 = vmatpush1.xpose.msra.mxu0 0.0
    %7363 = vmatprep.subr.mxu0 0.0
    %7364 = vmatpush1.xpose.msra.mxu0 0.0
    %7365 = vmatprep.subr.mxu0 0.0
    %7366 = vmatpush1.xpose.msra.mxu0 0.0
    %7367 = vmatprep.subr.mxu0 0.0
    %7368 = vmatpush1.xpose.msra.mxu0 0.0
    %7369 = vmatprep.subr.mxu0 0.0
    %7370 = vmatpush1.xpose.msra.mxu0 0.0
    %7371 = vmatprep.mubr.f32.mxu0 0.0
    %7372 = vmatmul.mubr.f32.gmra.mrb[0].mxu0 %v7296
    %v7373 = vpop.f32.mrb[0].mxu0
    %v7374 = vadd.f32 %v603, %v7373
    %v7375 = vpop.f32.mrb[0].mxu0
    %7376 = vmatprep.mubr.f32.mxu0 0.0
    %7377 = vmatmul.mubr.f32.gmra.mrb[0].mxu0 %v7299
    %v7378 = vpop.f32.mrb[0].mxu0
    %v7379 = vadd.f32 %v603, %v7378
    %v7380 = vpop.f32.mrb[0].mxu0
    %7381 = vdwg.mxu0
    %v7383 = vsel %vm2554, %v7111, 0
    %v7386 = vsel %vm2554, %v7112, 0
    %v7389 = vsel %vm2554, %v6197, 0
    %v7392 = vsel %vm2554, %v6202, 0
    %7394 = vmatprep.subr.mxu0 0.0
    %7395 = vmatpush1.xpose.msra.mxu0 %v7389
    %7396 = vmatprep.subr.mxu0 0.0
    %7397 = vmatpush1.xpose.msra.mxu0 %v7392
    %7398 = vmatprep.subr.mxu0 0.0
    %7399 = vmatpush1.xpose.msra.mxu0 0.0
    %7400 = vmatprep.subr.mxu0 0.0
    %7401 = vmatpush1.xpose.msra.mxu0 0.0
    %7402 = vmatprep.subr.mxu0 0.0
    %7403 = vmatpush1.xpose.msra.mxu0 0.0
    %7404 = vmatprep.subr.mxu0 0.0
    %7405 = vmatpush1.xpose.msra.mxu0 0.0
    %7406 = vmatprep.subr.mxu0 0.0
    %7407 = vmatpush1.xpose.msra.mxu0 0.0
    %7408 = vmatprep.subr.mxu0 0.0
    %7409 = vmatpush1.xpose.msra.mxu0 0.0
    %7410 = vmatprep.subr.mxu0 0.0
    %7411 = vmatpush1.xpose.msra.mxu0 0.0
    %7412 = vmatprep.subr.mxu0 0.0
    %7413 = vmatpush1.xpose.msra.mxu0 0.0
    %7414 = vmatprep.subr.mxu0 0.0
    %7415 = vmatpush1.xpose.msra.mxu0 0.0
    %7416 = vmatprep.subr.mxu0 0.0
    %7417 = vmatpush1.xpose.msra.mxu0 0.0
    %7418 = vmatprep.subr.mxu0 0.0
    %7419 = vmatpush1.xpose.msra.mxu0 0.0
    %7420 = vmatprep.subr.mxu0 0.0
    %7421 = vmatpush1.xpose.msra.mxu0 0.0
    %7422 = vmatprep.subr.mxu0 0.0
    %7423 = vmatpush1.xpose.msra.mxu0 0.0
    %7424 = vmatprep.subr.mxu0 0.0
    %7425 = vmatpush1.xpose.msra.mxu0 0.0
    %7426 = vmatprep.subr.mxu0 0.0
    %7427 = vmatpush1.xpose.msra.mxu0 0.0
    %7428 = vmatprep.subr.mxu0 0.0
    %7429 = vmatpush1.xpose.msra.mxu0 0.0
    %7430 = vmatprep.subr.mxu0 0.0
    %7431 = vmatpush1.xpose.msra.mxu0 0.0
    %7432 = vmatprep.subr.mxu0 0.0
    %7433 = vmatpush1.xpose.msra.mxu0 0.0
    %7434 = vmatprep.subr.mxu0 0.0
    %7435 = vmatpush1.xpose.msra.mxu0 0.0
    %7436 = vmatprep.subr.mxu0 0.0
    %7437 = vmatpush1.xpose.msra.mxu0 0.0
    %7438 = vmatprep.subr.mxu0 0.0
    %7439 = vmatpush1.xpose.msra.mxu0 0.0
    %7440 = vmatprep.subr.mxu0 0.0
    %7441 = vmatpush1.xpose.msra.mxu0 0.0
    %7442 = vmatprep.subr.mxu0 0.0
    %7443 = vmatpush1.xpose.msra.mxu0 0.0
    %7444 = vmatprep.subr.mxu0 0.0
    %7445 = vmatpush1.xpose.msra.mxu0 0.0
    %7446 = vmatprep.subr.mxu0 0.0
    %7447 = vmatpush1.xpose.msra.mxu0 0.0
    %7448 = vmatprep.subr.mxu0 0.0
    %7449 = vmatpush1.xpose.msra.mxu0 0.0
    %7450 = vmatprep.subr.mxu0 0.0
    %7451 = vmatpush1.xpose.msra.mxu0 0.0
    %7452 = vmatprep.subr.mxu0 0.0
    %7453 = vmatpush1.xpose.msra.mxu0 0.0
    %7454 = vmatprep.subr.mxu0 0.0
    %7455 = vmatpush1.xpose.msra.mxu0 0.0
    %7456 = vmatprep.subr.mxu0 0.0
    %7457 = vmatpush1.xpose.msra.mxu0 0.0
    %7458 = vmatprep.mubr.f32.mxu0 0.0
    %7459 = vmatmul.mubr.f32.gmra.mrb[0].mxu0 %v7383
    %v7460 = vpop.f32.mrb[0].mxu0
    %v7461 = vadd.f32 %v603, %v7460
    %v7462 = vpop.f32.mrb[0].mxu0
    %7463 = vmatprep.mubr.f32.mxu0 0.0
    %7464 = vmatmul.mubr.f32.gmra.mrb[0].mxu0 %v7386
    %v7465 = vpop.f32.mrb[0].mxu0
    %v7466 = vadd.f32 %v603, %v7465
    %v7467 = vpop.f32.mrb[0].mxu0
    %7468 = vdwg.mxu0
    %v7470 = vsel %vm2554, %v7113, 0
    %v7473 = vsel %vm2554, %v7114, 0
    %v7476 = vsel %vm2554, %v6272, 0
    %v7479 = vsel %vm2554, %v6277, 0
    %7481 = vmatprep.subr.mxu0 0.0
    %7482 = vmatpush1.xpose.msra.mxu0 %v7476
    %7483 = vmatprep.subr.mxu0 0.0
    %7484 = vmatpush1.xpose.msra.mxu0 %v7479
    %7485 = vmatprep.subr.mxu0 0.0
    %7486 = vmatpush1.xpose.msra.mxu0 0.0
    %7487 = vmatprep.subr.mxu0 0.0
    %7488 = vmatpush1.xpose.msra.mxu0 0.0
    %7489 = vmatprep.subr.mxu0 0.0
    %7490 = vmatpush1.xpose.msra.mxu0 0.0
    %7491 = vmatprep.subr.mxu0 0.0
    %7492 = vmatpush1.xpose.msra.mxu0 0.0
    %7493 = vmatprep.subr.mxu0 0.0
    %7494 = vmatpush1.xpose.msra.mxu0 0.0
    %7495 = vmatprep.subr.mxu0 0.0
    %7496 = vmatpush1.xpose.msra.mxu0 0.0
    %7497 = vmatprep.subr.mxu0 0.0
    %7498 = vmatpush1.xpose.msra.mxu0 0.0
    %7499 = vmatprep.subr.mxu0 0.0
    %7500 = vmatpush1.xpose.msra.mxu0 0.0
    %7501 = vmatprep.subr.mxu0 0.0
    %7502 = vmatpush1.xpose.msra.mxu0 0.0
    %7503 = vmatprep.subr.mxu0 0.0
    %7504 = vmatpush1.xpose.msra.mxu0 0.0
    %7505 = vmatprep.subr.mxu0 0.0
    %7506 = vmatpush1.xpose.msra.mxu0 0.0
    %7507 = vmatprep.subr.mxu0 0.0
    %7508 = vmatpush1.xpose.msra.mxu0 0.0
    %7509 = vmatprep.subr.mxu0 0.0
    %7510 = vmatpush1.xpose.msra.mxu0 0.0
    %7511 = vmatprep.subr.mxu0 0.0
    %7512 = vmatpush1.xpose.msra.mxu0 0.0
    %7513 = vmatprep.subr.mxu0 0.0
    %7514 = vmatpush1.xpose.msra.mxu0 0.0
    %7515 = vmatprep.subr.mxu0 0.0
    %7516 = vmatpush1.xpose.msra.mxu0 0.0
    %7517 = vmatprep.subr.mxu0 0.0
    %7518 = vmatpush1.xpose.msra.mxu0 0.0
    %7519 = vmatprep.subr.mxu0 0.0
    %7520 = vmatpush1.xpose.msra.mxu0 0.0
    %7521 = vmatprep.subr.mxu0 0.0
    %7522 = vmatpush1.xpose.msra.mxu0 0.0
    %7523 = vmatprep.subr.mxu0 0.0
    %7524 = vmatpush1.xpose.msra.mxu0 0.0
    %7525 = vmatprep.subr.mxu0 0.0
    %7526 = vmatpush1.xpose.msra.mxu0 0.0
    %7527 = vmatprep.subr.mxu0 0.0
    %7528 = vmatpush1.xpose.msra.mxu0 0.0
    %7529 = vmatprep.subr.mxu0 0.0
    %7530 = vmatpush1.xpose.msra.mxu0 0.0
    %7531 = vmatprep.subr.mxu0 0.0
    %7532 = vmatpush1.xpose.msra.mxu0 0.0
    %7533 = vmatprep.subr.mxu0 0.0
    %7534 = vmatpush1.xpose.msra.mxu0 0.0
    %7535 = vmatprep.subr.mxu0 0.0
    %7536 = vmatpush1.xpose.msra.mxu0 0.0
    %7537 = vmatprep.subr.mxu0 0.0
    %7538 = vmatpush1.xpose.msra.mxu0 0.0
    %7539 = vmatprep.subr.mxu0 0.0
    %7540 = vmatpush1.xpose.msra.mxu0 0.0
    %7541 = vmatprep.subr.mxu0 0.0
    %7542 = vmatpush1.xpose.msra.mxu0 0.0
    %7543 = vmatprep.subr.mxu0 0.0
    %7544 = vmatpush1.xpose.msra.mxu0 0.0
    %7545 = vmatprep.mubr.f32.mxu0 0.0
    %7546 = vmatmul.mubr.f32.gmra.mrb[0].mxu0 %v7470
    %v7547 = vpop.f32.mrb[0].mxu0
    %v7548 = vadd.f32 %v603, %v7547
    %v7549 = vpop.f32.mrb[0].mxu0
    %7550 = vmatprep.mubr.f32.mxu0 0.0
    %7551 = vmatmul.mubr.f32.gmra.mrb[0].mxu0 %v7473
    %v7552 = vpop.f32.mrb[0].mxu0
    %v7553 = vadd.f32 %v603, %v7552
    %v7554 = vpop.f32.mrb[0].mxu0
    %7555 = vdwg.mxu0
    %v7557 = vsel %vm2554, %v7115, 0
    %v7560 = vsel %vm2554, %v7116, 0
    %v7563 = vsel %vm2554, %v6347, 0
    %v7566 = vsel %vm2554, %v6352, 0
    %7568 = vmatprep.subr.mxu0 0.0
    %7569 = vmatpush1.xpose.msra.mxu0 %v7563
    %7570 = vmatprep.subr.mxu0 0.0
    %7571 = vmatpush1.xpose.msra.mxu0 %v7566
    %7572 = vmatprep.subr.mxu0 0.0
    %7573 = vmatpush1.xpose.msra.mxu0 0.0
    %7574 = vmatprep.subr.mxu0 0.0
    %7575 = vmatpush1.xpose.msra.mxu0 0.0
    %7576 = vmatprep.subr.mxu0 0.0
    %7577 = vmatpush1.xpose.msra.mxu0 0.0
    %7578 = vmatprep.subr.mxu0 0.0
    %7579 = vmatpush1.xpose.msra.mxu0 0.0
    %7580 = vmatprep.subr.mxu0 0.0
    %7581 = vmatpush1.xpose.msra.mxu0 0.0
    %7582 = vmatprep.subr.mxu0 0.0
    %7583 = vmatpush1.xpose.msra.mxu0 0.0
    %7584 = vmatprep.subr.mxu0 0.0
    %7585 = vmatpush1.xpose.msra.mxu0 0.0
    %7586 = vmatprep.subr.mxu0 0.0
    %7587 = vmatpush1.xpose.msra.mxu0 0.0
    %7588 = vmatprep.subr.mxu0 0.0
    %7589 = vmatpush1.xpose.msra.mxu0 0.0
    %7590 = vmatprep.subr.mxu0 0.0
    %7591 = vmatpush1.xpose.msra.mxu0 0.0
    %7592 = vmatprep.subr.mxu0 0.0
    %7593 = vmatpush1.xpose.msra.mxu0 0.0
    %7594 = vmatprep.subr.mxu0 0.0
    %7595 = vmatpush1.xpose.msra.mxu0 0.0
    %7596 = vmatprep.subr.mxu0 0.0
    %7597 = vmatpush1.xpose.msra.mxu0 0.0
    %7598 = vmatprep.subr.mxu0 0.0
    %7599 = vmatpush1.xpose.msra.mxu0 0.0
    %7600 = vmatprep.subr.mxu0 0.0
    %7601 = vmatpush1.xpose.msra.mxu0 0.0
    %7602 = vmatprep.subr.mxu0 0.0
    %7603 = vmatpush1.xpose.msra.mxu0 0.0
    %7604 = vmatprep.subr.mxu0 0.0
    %7605 = vmatpush1.xpose.msra.mxu0 0.0
    %7606 = vmatprep.subr.mxu0 0.0
    %7607 = vmatpush1.xpose.msra.mxu0 0.0
    %7608 = vmatprep.subr.mxu0 0.0
    %7609 = vmatpush1.xpose.msra.mxu0 0.0
    %7610 = vmatprep.subr.mxu0 0.0
    %7611 = vmatpush1.xpose.msra.mxu0 0.0
    %7612 = vmatprep.subr.mxu0 0.0
    %7613 = vmatpush1.xpose.msra.mxu0 0.0
    %7614 = vmatprep.subr.mxu0 0.0
    %7615 = vmatpush1.xpose.msra.mxu0 0.0
    %7616 = vmatprep.subr.mxu0 0.0
    %7617 = vmatpush1.xpose.msra.mxu0 0.0
    %7618 = vmatprep.subr.mxu0 0.0
    %7619 = vmatpush1.xpose.msra.mxu0 0.0
    %7620 = vmatprep.subr.mxu0 0.0
    %7621 = vmatpush1.xpose.msra.mxu0 0.0
    %7622 = vmatprep.subr.mxu0 0.0
    %7623 = vmatpush1.xpose.msra.mxu0 0.0
    %7624 = vmatprep.subr.mxu0 0.0
    %7625 = vmatpush1.xpose.msra.mxu0 0.0
    %7626 = vmatprep.subr.mxu0 0.0
    %7627 = vmatpush1.xpose.msra.mxu0 0.0
    %7628 = vmatprep.subr.mxu0 0.0
    %7629 = vmatpush1.xpose.msra.mxu0 0.0
    %7630 = vmatprep.subr.mxu0 0.0
    %7631 = vmatpush1.xpose.msra.mxu0 0.0
    %7632 = vmatprep.mubr.f32.mxu0 0.0
    %7633 = vmatmul.mubr.f32.gmra.mrb[0].mxu0 %v7557
    %v7634 = vpop.f32.mrb[0].mxu0
    %v7635 = vadd.f32 %v603, %v7634
    %v7636 = vpop.f32.mrb[0].mxu0
    %7637 = vmatprep.mubr.f32.mxu0 0.0
    %7638 = vmatmul.mubr.f32.gmra.mrb[0].mxu0 %v7560
    %v7639 = vpop.f32.mrb[0].mxu0
    %v7640 = vadd.f32 %v603, %v7639
    %v7641 = vpop.f32.mrb[0].mxu0
    %7642 = vdwg.mxu0
    %v7644 = vsel %vm2554, %v7117, 0
    %v7647 = vsel %vm2554, %v7118, 0
    %v7650 = vsel %vm2554, %v6422, 0
    %v7653 = vsel %vm2554, %v6427, 0
    %7655 = vmatprep.subr.mxu0 0.0
    %7656 = vmatpush1.xpose.msra.mxu0 %v7650
    %7657 = vmatprep.subr.mxu0 0.0
    %7658 = vmatpush1.xpose.msra.mxu0 %v7653
    %7659 = vmatprep.subr.mxu0 0.0
    %7660 = vmatpush1.xpose.msra.mxu0 0.0
    %7661 = vmatprep.subr.mxu0 0.0
    %7662 = vmatpush1.xpose.msra.mxu0 0.0
    %7663 = vmatprep.subr.mxu0 0.0
    %7664 = vmatpush1.xpose.msra.mxu0 0.0
    %7665 = vmatprep.subr.mxu0 0.0
    %7666 = vmatpush1.xpose.msra.mxu0 0.0
    %7667 = vmatprep.subr.mxu0 0.0
    %7668 = vmatpush1.xpose.msra.mxu0 0.0
    %7669 = vmatprep.subr.mxu0 0.0
    %7670 = vmatpush1.xpose.msra.mxu0 0.0
    %7671 = vmatprep.subr.mxu0 0.0
    %7672 = vmatpush1.xpose.msra.mxu0 0.0
    %7673 = vmatprep.subr.mxu0 0.0
    %7674 = vmatpush1.xpose.msra.mxu0 0.0
    %7675 = vmatprep.subr.mxu0 0.0
    %7676 = vmatpush1.xpose.msra.mxu0 0.0
    %7677 = vmatprep.subr.mxu0 0.0
    %7678 = vmatpush1.xpose.msra.mxu0 0.0
    %7679 = vmatprep.subr.mxu0 0.0
    %7680 = vmatpush1.xpose.msra.mxu0 0.0
    %7681 = vmatprep.subr.mxu0 0.0
    %7682 = vmatpush1.xpose.msra.mxu0 0.0
    %7683 = vmatprep.subr.mxu0 0.0
    %7684 = vmatpush1.xpose.msra.mxu0 0.0
    %7685 = vmatprep.subr.mxu0 0.0
    %7686 = vmatpush1.xpose.msra.mxu0 0.0
    %7687 = vmatprep.subr.mxu0 0.0
    %7688 = vmatpush1.xpose.msra.mxu0 0.0
    %7689 = vmatprep.subr.mxu0 0.0
    %7690 = vmatpush1.xpose.msra.mxu0 0.0
    %7691 = vmatprep.subr.mxu0 0.0
    %7692 = vmatpush1.xpose.msra.mxu0 0.0
    %7693 = vmatprep.subr.mxu0 0.0
    %7694 = vmatpush1.xpose.msra.mxu0 0.0
    %7695 = vmatprep.subr.mxu0 0.0
    %7696 = vmatpush1.xpose.msra.mxu0 0.0
    %7697 = vmatprep.subr.mxu0 0.0
    %7698 = vmatpush1.xpose.msra.mxu0 0.0
    %7699 = vmatprep.subr.mxu0 0.0
    %7700 = vmatpush1.xpose.msra.mxu0 0.0
    %7701 = vmatprep.subr.mxu0 0.0
    %7702 = vmatpush1.xpose.msra.mxu0 0.0
    %7703 = vmatprep.subr.mxu0 0.0
    %7704 = vmatpush1.xpose.msra.mxu0 0.0
    %7705 = vmatprep.subr.mxu0 0.0
    %7706 = vmatpush1.xpose.msra.mxu0 0.0
    %7707 = vmatprep.subr.mxu0 0.0
    %7708 = vmatpush1.xpose.msra.mxu0 0.0
    %7709 = vmatprep.subr.mxu0 0.0
    %7710 = vmatpush1.xpose.msra.mxu0 0.0
    %7711 = vmatprep.subr.mxu0 0.0
    %7712 = vmatpush1.xpose.msra.mxu0 0.0
    %7713 = vmatprep.subr.mxu0 0.0
    %7714 = vmatpush1.xpose.msra.mxu0 0.0
    %7715 = vmatprep.subr.mxu0 0.0
    %7716 = vmatpush1.xpose.msra.mxu0 0.0
    %7717 = vmatprep.subr.mxu0 0.0
    %7718 = vmatpush1.xpose.msra.mxu0 0.0
    %7719 = vmatprep.mubr.f32.mxu0 0.0
    %7720 = vmatmul.mubr.f32.gmra.mrb[0].mxu0 %v7644
    %v7721 = vpop.f32.mrb[0].mxu0
    %v7722 = vadd.f32 %v603, %v7721
    %v7723 = vpop.f32.mrb[0].mxu0
    %7724 = vmatprep.mubr.f32.mxu0 0.0
    %7725 = vmatmul.mubr.f32.gmra.mrb[0].mxu0 %v7647
    %v7726 = vpop.f32.mrb[0].mxu0
    %v7727 = vadd.f32 %v603, %v7726
    %v7728 = vpop.f32.mrb[0].mxu0
    %7729 = vdwg.mxu0
    %v7731 = vsel %vm2554, %v7119, 0
    %v7734 = vsel %vm2554, %v7120, 0
    %v7737 = vsel %vm2554, %v6497, 0
    %v7740 = vsel %vm2554, %v6502, 0
    %7742 = vmatprep.subr.mxu0 0.0
    %7743 = vmatpush1.xpose.msra.mxu0 %v7737
    %7744 = vmatprep.subr.mxu0 0.0
    %7745 = vmatpush1.xpose.msra.mxu0 %v7740
    %7746 = vmatprep.subr.mxu0 0.0
    %7747 = vmatpush1.xpose.msra.mxu0 0.0
    %7748 = vmatprep.subr.mxu0 0.0
    %7749 = vmatpush1.xpose.msra.mxu0 0.0
    %7750 = vmatprep.subr.mxu0 0.0
    %7751 = vmatpush1.xpose.msra.mxu0 0.0
    %7752 = vmatprep.subr.mxu0 0.0
    %7753 = vmatpush1.xpose.msra.mxu0 0.0
    %7754 = vmatprep.subr.mxu0 0.0
    %7755 = vmatpush1.xpose.msra.mxu0 0.0
    %7756 = vmatprep.subr.mxu0 0.0
    %7757 = vmatpush1.xpose.msra.mxu0 0.0
    %7758 = vmatprep.subr.mxu0 0.0
    %7759 = vmatpush1.xpose.msra.mxu0 0.0
    %7760 = vmatprep.subr.mxu0 0.0
    %7761 = vmatpush1.xpose.msra.mxu0 0.0
    %7762 = vmatprep.subr.mxu0 0.0
    %7763 = vmatpush1.xpose.msra.mxu0 0.0
    %7764 = vmatprep.subr.mxu0 0.0
    %7765 = vmatpush1.xpose.msra.mxu0 0.0
    %7766 = vmatprep.subr.mxu0 0.0
    %7767 = vmatpush1.xpose.msra.mxu0 0.0
    %7768 = vmatprep.subr.mxu0 0.0
    %7769 = vmatpush1.xpose.msra.mxu0 0.0
    %7770 = vmatprep.subr.mxu0 0.0
    %7771 = vmatpush1.xpose.msra.mxu0 0.0
    %7772 = vmatprep.subr.mxu0 0.0
    %7773 = vmatpush1.xpose.msra.mxu0 0.0
    %7774 = vmatprep.subr.mxu0 0.0
    %7775 = vmatpush1.xpose.msra.mxu0 0.0
    %7776 = vmatprep.subr.mxu0 0.0
    %7777 = vmatpush1.xpose.msra.mxu0 0.0
    %7778 = vmatprep.subr.mxu0 0.0
    %7779 = vmatpush1.xpose.msra.mxu0 0.0
    %7780 = vmatprep.subr.mxu0 0.0
    %7781 = vmatpush1.xpose.msra.mxu0 0.0
    %7782 = vmatprep.subr.mxu0 0.0
    %7783 = vmatpush1.xpose.msra.mxu0 0.0
    %7784 = vmatprep.subr.mxu0 0.0
    %7785 = vmatpush1.xpose.msra.mxu0 0.0
    %7786 = vmatprep.subr.mxu0 0.0
    %7787 = vmatpush1.xpose.msra.mxu0 0.0
    %7788 = vmatprep.subr.mxu0 0.0
    %7789 = vmatpush1.xpose.msra.mxu0 0.0
    %7790 = vmatprep.subr.mxu0 0.0
    %7791 = vmatpush1.xpose.msra.mxu0 0.0
    %7792 = vmatprep.subr.mxu0 0.0
    %7793 = vmatpush1.xpose.msra.mxu0 0.0
    %7794 = vmatprep.subr.mxu0 0.0
    %7795 = vmatpush1.xpose.msra.mxu0 0.0
    %7796 = vmatprep.subr.mxu0 0.0
    %7797 = vmatpush1.xpose.msra.mxu0 0.0
    %7798 = vmatprep.subr.mxu0 0.0
    %7799 = vmatpush1.xpose.msra.mxu0 0.0
    %7800 = vmatprep.subr.mxu0 0.0
    %7801 = vmatpush1.xpose.msra.mxu0 0.0
    %7802 = vmatprep.subr.mxu0 0.0
    %7803 = vmatpush1.xpose.msra.mxu0 0.0
    %7804 = vmatprep.subr.mxu0 0.0
    %7805 = vmatpush1.xpose.msra.mxu0 0.0
    %7806 = vmatprep.mubr.f32.mxu0 0.0
    %7807 = vmatmul.mubr.f32.gmra.mrb[0].mxu0 %v7731
    %v7808 = vpop.f32.mrb[0].mxu0
    %v7809 = vadd.f32 %v603, %v7808
    %v7810 = vpop.f32.mrb[0].mxu0
    %7811 = vmatprep.mubr.f32.mxu0 0.0
    %7812 = vmatmul.mubr.f32.gmra.mrb[0].mxu0 %v7734
    %v7813 = vpop.f32.mrb[0].mxu0
    %v7814 = vadd.f32 %v603, %v7813
    %v7815 = vpop.f32.mrb[0].mxu0
    %7816 = vdwg.mxu0
    %v7817 = vsel %vm3251, %v7200, -inf
    %7818 = vmax.xlane.f32.xlu0 %v7817
    %v7819 = vpop.xlane.xlu0 %7818
    %v7820 = vsel %vm3251, %v7205, -inf
    %7821 = vmax.xlane.f32.xlu0 %v7820
    %v7822 = vpop.xlane.xlu0 %7821
    %v7823 = vsel %vm3251, %v7287, -inf
    %7824 = vmax.xlane.f32.xlu0 %v7823
    %v7825 = vpop.xlane.xlu0 %7824
    %v7826 = vsel %vm3251, %v7292, -inf
    %7827 = vmax.xlane.f32.xlu0 %v7826
    %v7828 = vpop.xlane.xlu0 %7827
    %v7829 = vsel %vm3251, %v7374, -inf
    %7830 = vmax.xlane.f32.xlu0 %v7829
    %v7831 = vpop.xlane.xlu0 %7830
    %v7832 = vsel %vm3251, %v7379, -inf
    %7833 = vmax.xlane.f32.xlu0 %v7832
    %v7834 = vpop.xlane.xlu0 %7833
    %v7835 = vsel %vm3251, %v7461, -inf
    %7836 = vmax.xlane.f32.xlu0 %v7835
    %v7837 = vpop.xlane.xlu0 %7836
    %v7838 = vsel %vm3251, %v7466, -inf
    %7839 = vmax.xlane.f32.xlu0 %v7838
    %v7840 = vpop.xlane.xlu0 %7839
    %v7841 = vsel %vm3251, %v7548, -inf
    %7842 = vmax.xlane.f32.xlu0 %v7841
    %v7843 = vpop.xlane.xlu0 %7842
    %v7844 = vsel %vm3251, %v7553, -inf
    %7845 = vmax.xlane.f32.xlu0 %v7844
    %v7846 = vpop.xlane.xlu0 %7845
    %v7847 = vsel %vm3251, %v7635, -inf
    %7848 = vmax.xlane.f32.xlu0 %v7847
    %v7849 = vpop.xlane.xlu0 %7848
    %v7850 = vsel %vm3251, %v7640, -inf
    %7851 = vmax.xlane.f32.xlu0 %v7850
    %v7852 = vpop.xlane.xlu0 %7851
    %v7853 = vsel %vm3251, %v7722, -inf
    %7854 = vmax.xlane.f32.xlu0 %v7853
    %v7855 = vpop.xlane.xlu0 %7854
    %v7856 = vsel %vm3251, %v7727, -inf
    %7857 = vmax.xlane.f32.xlu0 %v7856
    %v7858 = vpop.xlane.xlu0 %7857
    %v7859 = vsel %vm3251, %v7809, -inf
    %7860 = vmax.xlane.f32.xlu0 %v7859
    %v7861 = vpop.xlane.xlu0 %7860
    %v7862 = vsel %vm3251, %v7814, -inf
    %7863 = vmax.xlane.f32.xlu0 %v7862
    %v7864 = vpop.xlane.xlu0 %7863
    %v7865 = vsub.f32 %v7200, %v7819
    %v7866 = vsub.f32 %v7205, %v7822
    %v7867 = vsub.f32 %v7287, %v7825
    %v7868 = vsub.f32 %v7292, %v7828
    %v7869 = vsub.f32 %v7374, %v7831
    %v7870 = vsub.f32 %v7379, %v7834
    %v7871 = vsub.f32 %v7461, %v7837
    %v7872 = vsub.f32 %v7466, %v7840
    %v7873 = vsub.f32 %v7548, %v7843
    %v7874 = vsub.f32 %v7553, %v7846
    %v7875 = vsub.f32 %v7635, %v7849
    %v7876 = vsub.f32 %v7640, %v7852
    %v7877 = vsub.f32 %v7722, %v7855
    %v7878 = vsub.f32 %v7727, %v7858
    %v7879 = vsub.f32 %v7809, %v7861
    %v7880 = vsub.f32 %v7814, %v7864
    %v7881 = vmul.f32 %v7865, 1.442695
    %v7882 = vpow.pop %v7881
    %v7883 = vmul.f32 %v7866, 1.442695
    %v7884 = vpow.pop %v7883
    %v7885 = vmul.f32 %v7867, 1.442695
    %v7886 = vpow.pop %v7885
    %v7887 = vmul.f32 %v7868, 1.442695
    %v7888 = vpow.pop %v7887
    %v7889 = vmul.f32 %v7869, 1.442695
    %v7890 = vpow.pop %v7889
    %v7891 = vmul.f32 %v7870, 1.442695
    %v7892 = vpow.pop %v7891
    %v7893 = vmul.f32 %v7871, 1.442695
    %v7894 = vpow.pop %v7893
    %v7895 = vmul.f32 %v7872, 1.442695
    %v7896 = vpow.pop %v7895
    %v7897 = vmul.f32 %v7873, 1.442695
    %v7898 = vpow.pop %v7897
    %v7899 = vmul.f32 %v7874, 1.442695
    %v7900 = vpow.pop %v7899
    %v7901 = vmul.f32 %v7875, 1.442695
    %v7902 = vpow.pop %v7901
    %v7903 = vmul.f32 %v7876, 1.442695
    %v7904 = vpow.pop %v7903
    %v7905 = vmul.f32 %v7877, 1.442695
    %v7906 = vpow.pop %v7905
    %v7907 = vmul.f32 %v7878, 1.442695
    %v7908 = vpow.pop %v7907
    %v7909 = vmul.f32 %v7879, 1.442695
    %v7910 = vpow.pop %v7909
    %v7911 = vmul.f32 %v7880, 1.442695
    %v7912 = vpow.pop %v7911
    %v7913 = vsel %vm3251, %v7882, 0.0
    %7914 = vadd.xlane.f32.xlu0 %v7913
    %v7915 = vpop.xlane.xlu0 %7914
    %v7916 = vsel %vm3251, %v7884, 0.0
    %7917 = vadd.xlane.f32.xlu0 %v7916
    %v7918 = vpop.xlane.xlu0 %7917
    %v7919 = vsel %vm3251, %v7886, 0.0
    %7920 = vadd.xlane.f32.xlu0 %v7919
    %v7921 = vpop.xlane.xlu0 %7920
    %v7922 = vsel %vm3251, %v7888, 0.0
    %7923 = vadd.xlane.f32.xlu0 %v7922
    %v7924 = vpop.xlane.xlu0 %7923
    %v7925 = vsel %vm3251, %v7890, 0.0
    %7926 = vadd.xlane.f32.xlu0 %v7925
    %v7927 = vpop.xlane.xlu0 %7926
    %v7928 = vsel %vm3251, %v7892, 0.0
    %7929 = vadd.xlane.f32.xlu0 %v7928
    %v7930 = vpop.xlane.xlu0 %7929
    %v7931 = vsel %vm3251, %v7894, 0.0
    %7932 = vadd.xlane.f32.xlu0 %v7931
    %v7933 = vpop.xlane.xlu0 %7932
    %v7934 = vsel %vm3251, %v7896, 0.0
    %7935 = vadd.xlane.f32.xlu0 %v7934
    %v7936 = vpop.xlane.xlu0 %7935
    %v7937 = vsel %vm3251, %v7898, 0.0
    %7938 = vadd.xlane.f32.xlu0 %v7937
    %v7939 = vpop.xlane.xlu0 %7938
    %v7940 = vsel %vm3251, %v7900, 0.0
    %7941 = vadd.xlane.f32.xlu0 %v7940
    %v7942 = vpop.xlane.xlu0 %7941
    %v7943 = vsel %vm3251, %v7902, 0.0
    %7944 = vadd.xlane.f32.xlu0 %v7943
    %v7945 = vpop.xlane.xlu0 %7944
    %v7946 = vsel %vm3251, %v7904, 0.0
    %7947 = vadd.xlane.f32.xlu0 %v7946
    %v7948 = vpop.xlane.xlu0 %7947
    %v7949 = vsel %vm3251, %v7906, 0.0
    %7950 = vadd.xlane.f32.xlu0 %v7949
    %v7951 = vpop.xlane.xlu0 %7950
    %v7952 = vsel %vm3251, %v7908, 0.0
    %7953 = vadd.xlane.f32.xlu0 %v7952
    %v7954 = vpop.xlane.xlu0 %7953
    %v7955 = vsel %vm3251, %v7910, 0.0
    %7956 = vadd.xlane.f32.xlu0 %v7955
    %v7957 = vpop.xlane.xlu0 %7956
    %v7958 = vsel %vm3251, %v7912, 0.0
    %7959 = vadd.xlane.f32.xlu0 %v7958
    %v7960 = vpop.xlane.xlu0 %7959
    %v7961 = vrcp.pop %v7915
    %v7962 = vrcp.pop %v7918
    %v7963 = vrcp.pop %v7921
    %v7964 = vrcp.pop %v7924
    %v7965 = vrcp.pop %v7927
    %v7966 = vrcp.pop %v7930
    %v7967 = vrcp.pop %v7933
    %v7968 = vrcp.pop %v7936
    %v7969 = vrcp.pop %v7939
    %v7970 = vrcp.pop %v7942
    %v7971 = vrcp.pop %v7945
    %v7972 = vrcp.pop %v7948
    %v7973 = vrcp.pop %v7951
    %v7974 = vrcp.pop %v7954
    %v7975 = vrcp.pop %v7957
    %v7976 = vrcp.pop %v7960
    %v7977 = vmul.f32 %v7882, %v7961
    %v7978 = vmul.f32 %v7884, %v7962
    %v7979 = vmul.f32 %v7886, %v7963
    %v7980 = vmul.f32 %v7888, %v7964
    %v7981 = vmul.f32 %v7890, %v7965
    %v7982 = vmul.f32 %v7892, %v7966
    %v7983 = vmul.f32 %v7894, %v7967
    %v7984 = vmul.f32 %v7896, %v7968
    %v7985 = vmul.f32 %v7898, %v7969
    %v7986 = vmul.f32 %v7900, %v7970
    %v7987 = vmul.f32 %v7902, %v7971
    %v7988 = vmul.f32 %v7904, %v7972
    %v7989 = vmul.f32 %v7906, %v7973
    %v7990 = vmul.f32 %v7908, %v7974
    %v7991 = vmul.f32 %v7910, %v7975
    %v7992 = vmul.f32 %v7912, %v7976
    %v7994 = vsel %vm3251, %v7977, 0
    %v7997 = vsel %vm3251, %v7978, 0
    %7999 = vmatprep.subr.mxu0 0.0
    %8000 = vmatpush1.msra.mxu0 %v6572
    %8001 = vmatprep.subr.mxu0 0.0
    %8002 = vmatpush1.msra.mxu0 %v6577
    %8003 = vmatprep.subr.mxu0 0.0
    %8004 = vmatpush1.msra.mxu0 0.0
    %8005 = vmatprep.subr.mxu0 0.0
    %8006 = vmatpush1.msra.mxu0 0.0
    %8007 = vmatprep.subr.mxu0 0.0
    %8008 = vmatpush1.msra.mxu0 0.0
    %8009 = vmatprep.subr.mxu0 0.0
    %8010 = vmatpush1.msra.mxu0 0.0
    %8011 = vmatprep.subr.mxu0 0.0
    %8012 = vmatpush1.msra.mxu0 0.0
    %8013 = vmatprep.subr.mxu0 0.0
    %8014 = vmatpush1.msra.mxu0 0.0
    %8015 = vmatprep.subr.mxu0 0.0
    %8016 = vmatpush1.msra.mxu0 0.0
    %8017 = vmatprep.subr.mxu0 0.0
    %8018 = vmatpush1.msra.mxu0 0.0
    %8019 = vmatprep.subr.mxu0 0.0
    %8020 = vmatpush1.msra.mxu0 0.0
    %8021 = vmatprep.subr.mxu0 0.0
    %8022 = vmatpush1.msra.mxu0 0.0
    %8023 = vmatprep.subr.mxu0 0.0
    %8024 = vmatpush1.msra.mxu0 0.0
    %8025 = vmatprep.subr.mxu0 0.0
    %8026 = vmatpush1.msra.mxu0 0.0
    %8027 = vmatprep.subr.mxu0 0.0
    %8028 = vmatpush1.msra.mxu0 0.0
    %8029 = vmatprep.subr.mxu0 0.0
    %8030 = vmatpush1.msra.mxu0 0.0
    %8031 = vmatprep.subr.mxu0 0.0
    %8032 = vmatpush1.msra.mxu0 0.0
    %8033 = vmatprep.subr.mxu0 0.0
    %8034 = vmatpush1.msra.mxu0 0.0
    %8035 = vmatprep.subr.mxu0 0.0
    %8036 = vmatpush1.msra.mxu0 0.0
    %8037 = vmatprep.subr.mxu0 0.0
    %8038 = vmatpush1.msra.mxu0 0.0
    %8039 = vmatprep.subr.mxu0 0.0
    %8040 = vmatpush1.msra.mxu0 0.0
    %8041 = vmatprep.subr.mxu0 0.0
    %8042 = vmatpush1.msra.mxu0 0.0
    %8043 = vmatprep.subr.mxu0 0.0
    %8044 = vmatpush1.msra.mxu0 0.0
    %8045 = vmatprep.subr.mxu0 0.0
    %8046 = vmatpush1.msra.mxu0 0.0
    %8047 = vmatprep.subr.mxu0 0.0
    %8048 = vmatpush1.msra.mxu0 0.0
    %8049 = vmatprep.subr.mxu0 0.0
    %8050 = vmatpush1.msra.mxu0 0.0
    %8051 = vmatprep.subr.mxu0 0.0
    %8052 = vmatpush1.msra.mxu0 0.0
    %8053 = vmatprep.subr.mxu0 0.0
    %8054 = vmatpush1.msra.mxu0 0.0
    %8055 = vmatprep.subr.mxu0 0.0
    %8056 = vmatpush1.msra.mxu0 0.0
    %8057 = vmatprep.subr.mxu0 0.0
    %8058 = vmatpush1.msra.mxu0 0.0
    %8059 = vmatprep.subr.mxu0 0.0
    %8060 = vmatpush1.msra.mxu0 0.0
    %8061 = vmatprep.subr.mxu0 0.0
    %8062 = vmatpush1.msra.mxu0 0.0
    %8063 = vmatprep.mubr.f32.mxu0 0.0
    %8064 = vmatmul.mubr.f32.gmra.mrb[0].mxu0 %v7994
    %v8065 = vpop.f32.mrb[0].mxu0
    %v8066 = vadd.f32 0.0, %v8065
    %v8067 = vpop.f32.mrb[0].mxu0
    %8068 = vmatprep.mubr.f32.mxu0 0.0
    %8069 = vmatmul.mubr.f32.gmra.mrb[0].mxu0 %v7997
    %v8070 = vpop.f32.mrb[0].mxu0
    %v8071 = vadd.f32 0.0, %v8070
    %v8072 = vpop.f32.mrb[0].mxu0
    %8073 = vdwg.mxu0
    %v8075 = vsel %vm3251, %v7979, 0
    %v8078 = vsel %vm3251, %v7980, 0
    %8080 = vmatprep.subr.mxu0 0.0
    %8081 = vmatpush1.msra.mxu0 %v6647
    %8082 = vmatprep.subr.mxu0 0.0
    %8083 = vmatpush1.msra.mxu0 %v6652
    %8084 = vmatprep.subr.mxu0 0.0
    %8085 = vmatpush1.msra.mxu0 0.0
    %8086 = vmatprep.subr.mxu0 0.0
    %8087 = vmatpush1.msra.mxu0 0.0
    %8088 = vmatprep.subr.mxu0 0.0
    %8089 = vmatpush1.msra.mxu0 0.0
    %8090 = vmatprep.subr.mxu0 0.0
    %8091 = vmatpush1.msra.mxu0 0.0
    %8092 = vmatprep.subr.mxu0 0.0
    %8093 = vmatpush1.msra.mxu0 0.0
    %8094 = vmatprep.subr.mxu0 0.0
    %8095 = vmatpush1.msra.mxu0 0.0
    %8096 = vmatprep.subr.mxu0 0.0
    %8097 = vmatpush1.msra.mxu0 0.0
    %8098 = vmatprep.subr.mxu0 0.0
    %8099 = vmatpush1.msra.mxu0 0.0
    %8100 = vmatprep.subr.mxu0 0.0
    %8101 = vmatpush1.msra.mxu0 0.0
    %8102 = vmatprep.subr.mxu0 0.0
    %8103 = vmatpush1.msra.mxu0 0.0
    %8104 = vmatprep.subr.mxu0 0.0
    %8105 = vmatpush1.msra.mxu0 0.0
    %8106 = vmatprep.subr.mxu0 0.0
    %8107 = vmatpush1.msra.mxu0 0.0
    %8108 = vmatprep.subr.mxu0 0.0
    %8109 = vmatpush1.msra.mxu0 0.0
    %8110 = vmatprep.subr.mxu0 0.0
    %8111 = vmatpush1.msra.mxu0 0.0
    %8112 = vmatprep.subr.mxu0 0.0
    %8113 = vmatpush1.msra.mxu0 0.0
    %8114 = vmatprep.subr.mxu0 0.0
    %8115 = vmatpush1.msra.mxu0 0.0
    %8116 = vmatprep.subr.mxu0 0.0
    %8117 = vmatpush1.msra.mxu0 0.0
    %8118 = vmatprep.subr.mxu0 0.0
    %8119 = vmatpush1.msra.mxu0 0.0
    %8120 = vmatprep.subr.mxu0 0.0
    %8121 = vmatpush1.msra.mxu0 0.0
    %8122 = vmatprep.subr.mxu0 0.0
    %8123 = vmatpush1.msra.mxu0 0.0
    %8124 = vmatprep.subr.mxu0 0.0
    %8125 = vmatpush1.msra.mxu0 0.0
    %8126 = vmatprep.subr.mxu0 0.0
    %8127 = vmatpush1.msra.mxu0 0.0
    %8128 = vmatprep.subr.mxu0 0.0
    %8129 = vmatpush1.msra.mxu0 0.0
    %8130 = vmatprep.subr.mxu0 0.0
    %8131 = vmatpush1.msra.mxu0 0.0
    %8132 = vmatprep.subr.mxu0 0.0
    %8133 = vmatpush1.msra.mxu0 0.0
    %8134 = vmatprep.subr.mxu0 0.0
    %8135 = vmatpush1.msra.mxu0 0.0
    %8136 = vmatprep.subr.mxu0 0.0
    %8137 = vmatpush1.msra.mxu0 0.0
    %8138 = vmatprep.subr.mxu0 0.0
    %8139 = vmatpush1.msra.mxu0 0.0
    %8140 = vmatprep.subr.mxu0 0.0
    %8141 = vmatpush1.msra.mxu0 0.0
    %8142 = vmatprep.subr.mxu0 0.0
    %8143 = vmatpush1.msra.mxu0 0.0
    %8144 = vmatprep.mubr.f32.mxu0 0.0
    %8145 = vmatmul.mubr.f32.gmra.mrb[0].mxu0 %v8075
    %v8146 = vpop.f32.mrb[0].mxu0
    %v8147 = vadd.f32 0.0, %v8146
    %v8148 = vpop.f32.mrb[0].mxu0
    %8149 = vmatprep.mubr.f32.mxu0 0.0
    %8150 = vmatmul.mubr.f32.gmra.mrb[0].mxu0 %v8078
    %v8151 = vpop.f32.mrb[0].mxu0
    %v8152 = vadd.f32 0.0, %v8151
    %v8153 = vpop.f32.mrb[0].mxu0
    %8154 = vdwg.mxu0
    %v8156 = vsel %vm3251, %v7981, 0
    %v8159 = vsel %vm3251, %v7982, 0
    %8161 = vmatprep.subr.mxu0 0.0
    %8162 = vmatpush1.msra.mxu0 %v6722
    %8163 = vmatprep.subr.mxu0 0.0
    %8164 = vmatpush1.msra.mxu0 %v6727
    %8165 = vmatprep.subr.mxu0 0.0
    %8166 = vmatpush1.msra.mxu0 0.0
    %8167 = vmatprep.subr.mxu0 0.0
    %8168 = vmatpush1.msra.mxu0 0.0
    %8169 = vmatprep.subr.mxu0 0.0
    %8170 = vmatpush1.msra.mxu0 0.0
    %8171 = vmatprep.subr.mxu0 0.0
    %8172 = vmatpush1.msra.mxu0 0.0
    %8173 = vmatprep.subr.mxu0 0.0
    %8174 = vmatpush1.msra.mxu0 0.0
    %8175 = vmatprep.subr.mxu0 0.0
    %8176 = vmatpush1.msra.mxu0 0.0
    %8177 = vmatprep.subr.mxu0 0.0
    %8178 = vmatpush1.msra.mxu0 0.0
    %8179 = vmatprep.subr.mxu0 0.0
    %8180 = vmatpush1.msra.mxu0 0.0
    %8181 = vmatprep.subr.mxu0 0.0
    %8182 = vmatpush1.msra.mxu0 0.0
    %8183 = vmatprep.subr.mxu0 0.0
    %8184 = vmatpush1.msra.mxu0 0.0
    %8185 = vmatprep.subr.mxu0 0.0
    %8186 = vmatpush1.msra.mxu0 0.0
    %8187 = vmatprep.subr.mxu0 0.0
    %8188 = vmatpush1.msra.mxu0 0.0
    %8189 = vmatprep.subr.mxu0 0.0
    %8190 = vmatpush1.msra.mxu0 0.0
    %8191 = vmatprep.subr.mxu0 0.0
    %8192 = vmatpush1.msra.mxu0 0.0
    %8193 = vmatprep.subr.mxu0 0.0
    %8194 = vmatpush1.msra.mxu0 0.0
    %8195 = vmatprep.subr.mxu0 0.0
    %8196 = vmatpush1.msra.mxu0 0.0
    %8197 = vmatprep.subr.mxu0 0.0
    %8198 = vmatpush1.msra.mxu0 0.0
    %8199 = vmatprep.subr.mxu0 0.0
    %8200 = vmatpush1.msra.mxu0 0.0
    %8201 = vmatprep.subr.mxu0 0.0
    %8202 = vmatpush1.msra.mxu0 0.0
    %8203 = vmatprep.subr.mxu0 0.0
    %8204 = vmatpush1.msra.mxu0 0.0
    %8205 = vmatprep.subr.mxu0 0.0
    %8206 = vmatpush1.msra.mxu0 0.0
    %8207 = vmatprep.subr.mxu0 0.0
    %8208 = vmatpush1.msra.mxu0 0.0
    %8209 = vmatprep.subr.mxu0 0.0
    %8210 = vmatpush1.msra.mxu0 0.0
    %8211 = vmatprep.subr.mxu0 0.0
    %8212 = vmatpush1.msra.mxu0 0.0
    %8213 = vmatprep.subr.mxu0 0.0
    %8214 = vmatpush1.msra.mxu0 0.0
    %8215 = vmatprep.subr.mxu0 0.0
    %8216 = vmatpush1.msra.mxu0 0.0
    %8217 = vmatprep.subr.mxu0 0.0
    %8218 = vmatpush1.msra.mxu0 0.0
    %8219 = vmatprep.subr.mxu0 0.0
    %8220 = vmatpush1.msra.mxu0 0.0
    %8221 = vmatprep.subr.mxu0 0.0
    %8222 = vmatpush1.msra.mxu0 0.0
    %8223 = vmatprep.subr.mxu0 0.0
    %8224 = vmatpush1.msra.mxu0 0.0
    %8225 = vmatprep.mubr.f32.mxu0 0.0
    %8226 = vmatmul.mubr.f32.gmra.mrb[0].mxu0 %v8156
    %v8227 = vpop.f32.mrb[0].mxu0
    %v8228 = vadd.f32 0.0, %v8227
    %v8229 = vpop.f32.mrb[0].mxu0
    %8230 = vmatprep.mubr.f32.mxu0 0.0
    %8231 = vmatmul.mubr.f32.gmra.mrb[0].mxu0 %v8159
    %v8232 = vpop.f32.mrb[0].mxu0
    %v8233 = vadd.f32 0.0, %v8232
    %v8234 = vpop.f32.mrb[0].mxu0
    %8235 = vdwg.mxu0
    %v8237 = vsel %vm3251, %v7983, 0
    %v8240 = vsel %vm3251, %v7984, 0
    %8242 = vmatprep.subr.mxu0 0.0
    %8243 = vmatpush1.msra.mxu0 %v6797
    %8244 = vmatprep.subr.mxu0 0.0
    %8245 = vmatpush1.msra.mxu0 %v6802
    %8246 = vmatprep.subr.mxu0 0.0
    %8247 = vmatpush1.msra.mxu0 0.0
    %8248 = vmatprep.subr.mxu0 0.0
    %8249 = vmatpush1.msra.mxu0 0.0
    %8250 = vmatprep.subr.mxu0 0.0
    %8251 = vmatpush1.msra.mxu0 0.0
    %8252 = vmatprep.subr.mxu0 0.0
    %8253 = vmatpush1.msra.mxu0 0.0
    %8254 = vmatprep.subr.mxu0 0.0
    %8255 = vmatpush1.msra.mxu0 0.0
    %8256 = vmatprep.subr.mxu0 0.0
    %8257 = vmatpush1.msra.mxu0 0.0
    %8258 = vmatprep.subr.mxu0 0.0
    %8259 = vmatpush1.msra.mxu0 0.0
    %8260 = vmatprep.subr.mxu0 0.0
    %8261 = vmatpush1.msra.mxu0 0.0
    %8262 = vmatprep.subr.mxu0 0.0
    %8263 = vmatpush1.msra.mxu0 0.0
    %8264 = vmatprep.subr.mxu0 0.0
    %8265 = vmatpush1.msra.mxu0 0.0
    %8266 = vmatprep.subr.mxu0 0.0
    %8267 = vmatpush1.msra.mxu0 0.0
    %8268 = vmatprep.subr.mxu0 0.0
    %8269 = vmatpush1.msra.mxu0 0.0
    %8270 = vmatprep.subr.mxu0 0.0
    %8271 = vmatpush1.msra.mxu0 0.0
    %8272 = vmatprep.subr.mxu0 0.0
    %8273 = vmatpush1.msra.mxu0 0.0
    %8274 = vmatprep.subr.mxu0 0.0
    %8275 = vmatpush1.msra.mxu0 0.0
    %8276 = vmatprep.subr.mxu0 0.0
    %8277 = vmatpush1.msra.mxu0 0.0
    %8278 = vmatprep.subr.mxu0 0.0
    %8279 = vmatpush1.msra.mxu0 0.0
    %8280 = vmatprep.subr.mxu0 0.0
    %8281 = vmatpush1.msra.mxu0 0.0
    %8282 = vmatprep.subr.mxu0 0.0
    %8283 = vmatpush1.msra.mxu0 0.0
    %8284 = vmatprep.subr.mxu0 0.0
    %8285 = vmatpush1.msra.mxu0 0.0
    %8286 = vmatprep.subr.mxu0 0.0
    %8287 = vmatpush1.msra.mxu0 0.0
    %8288 = vmatprep.subr.mxu0 0.0
    %8289 = vmatpush1.msra.mxu0 0.0
    %8290 = vmatprep.subr.mxu0 0.0
    %8291 = vmatpush1.msra.mxu0 0.0
    %8292 = vmatprep.subr.mxu0 0.0
    %8293 = vmatpush1.msra.mxu0 0.0
    %8294 = vmatprep.subr.mxu0 0.0
    %8295 = vmatpush1.msra.mxu0 0.0
    %8296 = vmatprep.subr.mxu0 0.0
    %8297 = vmatpush1.msra.mxu0 0.0
    %8298 = vmatprep.subr.mxu0 0.0
    %8299 = vmatpush1.msra.mxu0 0.0
    %8300 = vmatprep.subr.mxu0 0.0
    %8301 = vmatpush1.msra.mxu0 0.0
    %8302 = vmatprep.subr.mxu0 0.0
    %8303 = vmatpush1.msra.mxu0 0.0
    %8304 = vmatprep.subr.mxu0 0.0
    %8305 = vmatpush1.msra.mxu0 0.0
    %8306 = vmatprep.mubr.f32.mxu0 0.0
    %8307 = vmatmul.mubr.f32.gmra.mrb[0].mxu0 %v8237
    %v8308 = vpop.f32.mrb[0].mxu0
    %v8309 = vadd.f32 0.0, %v8308
    %v8310 = vpop.f32.mrb[0].mxu0
    %8311 = vmatprep.mubr.f32.mxu0 0.0
    %8312 = vmatmul.mubr.f32.gmra.mrb[0].mxu0 %v8240
    %v8313 = vpop.f32.mrb[0].mxu0
    %v8314 = vadd.f32 0.0, %v8313
    %v8315 = vpop.f32.mrb[0].mxu0
    %8316 = vdwg.mxu0
    %v8318 = vsel %vm3251, %v7985, 0
    %v8321 = vsel %vm3251, %v7986, 0
    %8323 = vmatprep.subr.mxu0 0.0
    %8324 = vmatpush1.msra.mxu0 %v6872
    %8325 = vmatprep.subr.mxu0 0.0
    %8326 = vmatpush1.msra.mxu0 %v6877
    %8327 = vmatprep.subr.mxu0 0.0
    %8328 = vmatpush1.msra.mxu0 0.0
    %8329 = vmatprep.subr.mxu0 0.0
    %8330 = vmatpush1.msra.mxu0 0.0
    %8331 = vmatprep.subr.mxu0 0.0
    %8332 = vmatpush1.msra.mxu0 0.0
    %8333 = vmatprep.subr.mxu0 0.0
    %8334 = vmatpush1.msra.mxu0 0.0
    %8335 = vmatprep.subr.mxu0 0.0
    %8336 = vmatpush1.msra.mxu0 0.0
    %8337 = vmatprep.subr.mxu0 0.0
    %8338 = vmatpush1.msra.mxu0 0.0
    %8339 = vmatprep.subr.mxu0 0.0
    %8340 = vmatpush1.msra.mxu0 0.0
    %8341 = vmatprep.subr.mxu0 0.0
    %8342 = vmatpush1.msra.mxu0 0.0
    %8343 = vmatprep.subr.mxu0 0.0
    %8344 = vmatpush1.msra.mxu0 0.0
    %8345 = vmatprep.subr.mxu0 0.0
    %8346 = vmatpush1.msra.mxu0 0.0
    %8347 = vmatprep.subr.mxu0 0.0
    %8348 = vmatpush1.msra.mxu0 0.0
    %8349 = vmatprep.subr.mxu0 0.0
    %8350 = vmatpush1.msra.mxu0 0.0
    %8351 = vmatprep.subr.mxu0 0.0
    %8352 = vmatpush1.msra.mxu0 0.0
    %8353 = vmatprep.subr.mxu0 0.0
    %8354 = vmatpush1.msra.mxu0 0.0
    %8355 = vmatprep.subr.mxu0 0.0
    %8356 = vmatpush1.msra.mxu0 0.0
    %8357 = vmatprep.subr.mxu0 0.0
    %8358 = vmatpush1.msra.mxu0 0.0
    %8359 = vmatprep.subr.mxu0 0.0
    %8360 = vmatpush1.msra.mxu0 0.0
    %8361 = vmatprep.subr.mxu0 0.0
    %8362 = vmatpush1.msra.mxu0 0.0
    %8363 = vmatprep.subr.mxu0 0.0
    %8364 = vmatpush1.msra.mxu0 0.0
    %8365 = vmatprep.subr.mxu0 0.0
    %8366 = vmatpush1.msra.mxu0 0.0
    %8367 = vmatprep.subr.mxu0 0.0
    %8368 = vmatpush1.msra.mxu0 0.0
    %8369 = vmatprep.subr.mxu0 0.0
    %8370 = vmatpush1.msra.mxu0 0.0
    %8371 = vmatprep.subr.mxu0 0.0
    %8372 = vmatpush1.msra.mxu0 0.0
    %8373 = vmatprep.subr.mxu0 0.0
    %8374 = vmatpush1.msra.mxu0 0.0
    %8375 = vmatprep.subr.mxu0 0.0
    %8376 = vmatpush1.msra.mxu0 0.0
    %8377 = vmatprep.subr.mxu0 0.0
    %8378 = vmatpush1.msra.mxu0 0.0
    %8379 = vmatprep.subr.mxu0 0.0
    %8380 = vmatpush1.msra.mxu0 0.0
    %8381 = vmatprep.subr.mxu0 0.0
    %8382 = vmatpush1.msra.mxu0 0.0
    %8383 = vmatprep.subr.mxu0 0.0
    %8384 = vmatpush1.msra.mxu0 0.0
    %8385 = vmatprep.subr.mxu0 0.0
    %8386 = vmatpush1.msra.mxu0 0.0
    %8387 = vmatprep.mubr.f32.mxu0 0.0
    %8388 = vmatmul.mubr.f32.gmra.mrb[0].mxu0 %v8318
    %v8389 = vpop.f32.mrb[0].mxu0
    %v8390 = vadd.f32 0.0, %v8389
    %v8391 = vpop.f32.mrb[0].mxu0
    %8392 = vmatprep.mubr.f32.mxu0 0.0
    %8393 = vmatmul.mubr.f32.gmra.mrb[0].mxu0 %v8321
    %v8394 = vpop.f32.mrb[0].mxu0
    %v8395 = vadd.f32 0.0, %v8394
    %v8396 = vpop.f32.mrb[0].mxu0
    %8397 = vdwg.mxu0
    %v8399 = vsel %vm3251, %v7987, 0
    %v8402 = vsel %vm3251, %v7988, 0
    %8404 = vmatprep.subr.mxu0 0.0
    %8405 = vmatpush1.msra.mxu0 %v6947
    %8406 = vmatprep.subr.mxu0 0.0
    %8407 = vmatpush1.msra.mxu0 %v6952
    %8408 = vmatprep.subr.mxu0 0.0
    %8409 = vmatpush1.msra.mxu0 0.0
    %8410 = vmatprep.subr.mxu0 0.0
    %8411 = vmatpush1.msra.mxu0 0.0
    %8412 = vmatprep.subr.mxu0 0.0
    %8413 = vmatpush1.msra.mxu0 0.0
    %8414 = vmatprep.subr.mxu0 0.0
    %8415 = vmatpush1.msra.mxu0 0.0
    %8416 = vmatprep.subr.mxu0 0.0
    %8417 = vmatpush1.msra.mxu0 0.0
    %8418 = vmatprep.subr.mxu0 0.0
    %8419 = vmatpush1.msra.mxu0 0.0
    %8420 = vmatprep.subr.mxu0 0.0
    %8421 = vmatpush1.msra.mxu0 0.0
    %8422 = vmatprep.subr.mxu0 0.0
    %8423 = vmatpush1.msra.mxu0 0.0
    %8424 = vmatprep.subr.mxu0 0.0
    %8425 = vmatpush1.msra.mxu0 0.0
    %8426 = vmatprep.subr.mxu0 0.0
    %8427 = vmatpush1.msra.mxu0 0.0
    %8428 = vmatprep.subr.mxu0 0.0
    %8429 = vmatpush1.msra.mxu0 0.0
    %8430 = vmatprep.subr.mxu0 0.0
    %8431 = vmatpush1.msra.mxu0 0.0
    %8432 = vmatprep.subr.mxu0 0.0
    %8433 = vmatpush1.msra.mxu0 0.0
    %8434 = vmatprep.subr.mxu0 0.0
    %8435 = vmatpush1.msra.mxu0 0.0
    %8436 = vmatprep.subr.mxu0 0.0
    %8437 = vmatpush1.msra.mxu0 0.0
    %8438 = vmatprep.subr.mxu0 0.0
    %8439 = vmatpush1.msra.mxu0 0.0
    %8440 = vmatprep.subr.mxu0 0.0
    %8441 = vmatpush1.msra.mxu0 0.0
    %8442 = vmatprep.subr.mxu0 0.0
    %8443 = vmatpush1.msra.mxu0 0.0
    %8444 = vmatprep.subr.mxu0 0.0
    %8445 = vmatpush1.msra.mxu0 0.0
    %8446 = vmatprep.subr.mxu0 0.0
    %8447 = vmatpush1.msra.mxu0 0.0
    %8448 = vmatprep.subr.mxu0 0.0
    %8449 = vmatpush1.msra.mxu0 0.0
    %8450 = vmatprep.subr.mxu0 0.0
    %8451 = vmatpush1.msra.mxu0 0.0
    %8452 = vmatprep.subr.mxu0 0.0
    %8453 = vmatpush1.msra.mxu0 0.0
    %8454 = vmatprep.subr.mxu0 0.0
    %8455 = vmatpush1.msra.mxu0 0.0
    %8456 = vmatprep.subr.mxu0 0.0
    %8457 = vmatpush1.msra.mxu0 0.0
    %8458 = vmatprep.subr.mxu0 0.0
    %8459 = vmatpush1.msra.mxu0 0.0
    %8460 = vmatprep.subr.mxu0 0.0
    %8461 = vmatpush1.msra.mxu0 0.0
    %8462 = vmatprep.subr.mxu0 0.0
    %8463 = vmatpush1.msra.mxu0 0.0
    %8464 = vmatprep.subr.mxu0 0.0
    %8465 = vmatpush1.msra.mxu0 0.0
    %8466 = vmatprep.subr.mxu0 0.0
    %8467 = vmatpush1.msra.mxu0 0.0
    %8468 = vmatprep.mubr.f32.mxu0 0.0
    %8469 = vmatmul.mubr.f32.gmra.mrb[0].mxu0 %v8399
    %v8470 = vpop.f32.mrb[0].mxu0
    %v8471 = vadd.f32 0.0, %v8470
    %v8472 = vpop.f32.mrb[0].mxu0
    %8473 = vmatprep.mubr.f32.mxu0 0.0
    %8474 = vmatmul.mubr.f32.gmra.mrb[0].mxu0 %v8402
    %v8475 = vpop.f32.mrb[0].mxu0
    %v8476 = vadd.f32 0.0, %v8475
    %v8477 = vpop.f32.mrb[0].mxu0
    %8478 = vdwg.mxu0
    %v8480 = vsel %vm3251, %v7989, 0
    %v8483 = vsel %vm3251, %v7990, 0
    %8485 = vmatprep.subr.mxu0 0.0
    %8486 = vmatpush1.msra.mxu0 %v7022
    %8487 = vmatprep.subr.mxu0 0.0
    %8488 = vmatpush1.msra.mxu0 %v7027
    %8489 = vmatprep.subr.mxu0 0.0
    %8490 = vmatpush1.msra.mxu0 0.0
    %8491 = vmatprep.subr.mxu0 0.0
    %8492 = vmatpush1.msra.mxu0 0.0
    %8493 = vmatprep.subr.mxu0 0.0
    %8494 = vmatpush1.msra.mxu0 0.0
    %8495 = vmatprep.subr.mxu0 0.0
    %8496 = vmatpush1.msra.mxu0 0.0
    %8497 = vmatprep.subr.mxu0 0.0
    %8498 = vmatpush1.msra.mxu0 0.0
    %8499 = vmatprep.subr.mxu0 0.0
    %8500 = vmatpush1.msra.mxu0 0.0
    %8501 = vmatprep.subr.mxu0 0.0
    %8502 = vmatpush1.msra.mxu0 0.0
    %8503 = vmatprep.subr.mxu0 0.0
    %8504 = vmatpush1.msra.mxu0 0.0
    %8505 = vmatprep.subr.mxu0 0.0
    %8506 = vmatpush1.msra.mxu0 0.0
    %8507 = vmatprep.subr.mxu0 0.0
    %8508 = vmatpush1.msra.mxu0 0.0
    %8509 = vmatprep.subr.mxu0 0.0
    %8510 = vmatpush1.msra.mxu0 0.0
    %8511 = vmatprep.subr.mxu0 0.0
    %8512 = vmatpush1.msra.mxu0 0.0
    %8513 = vmatprep.subr.mxu0 0.0
    %8514 = vmatpush1.msra.mxu0 0.0
    %8515 = vmatprep.subr.mxu0 0.0
    %8516 = vmatpush1.msra.mxu0 0.0
    %8517 = vmatprep.subr.mxu0 0.0
    %8518 = vmatpush1.msra.mxu0 0.0
    %8519 = vmatprep.subr.mxu0 0.0
    %8520 = vmatpush1.msra.mxu0 0.0
    %8521 = vmatprep.subr.mxu0 0.0
    %8522 = vmatpush1.msra.mxu0 0.0
    %8523 = vmatprep.subr.mxu0 0.0
    %8524 = vmatpush1.msra.mxu0 0.0
    %8525 = vmatprep.subr.mxu0 0.0
    %8526 = vmatpush1.msra.mxu0 0.0
    %8527 = vmatprep.subr.mxu0 0.0
    %8528 = vmatpush1.msra.mxu0 0.0
    %8529 = vmatprep.subr.mxu0 0.0
    %8530 = vmatpush1.msra.mxu0 0.0
    %8531 = vmatprep.subr.mxu0 0.0
    %8532 = vmatpush1.msra.mxu0 0.0
    %8533 = vmatprep.subr.mxu0 0.0
    %8534 = vmatpush1.msra.mxu0 0.0
    %8535 = vmatprep.subr.mxu0 0.0
    %8536 = vmatpush1.msra.mxu0 0.0
    %8537 = vmatprep.subr.mxu0 0.0
    %8538 = vmatpush1.msra.mxu0 0.0
    %8539 = vmatprep.subr.mxu0 0.0
    %8540 = vmatpush1.msra.mxu0 0.0
    %8541 = vmatprep.subr.mxu0 0.0
    %8542 = vmatpush1.msra.mxu0 0.0
    %8543 = vmatprep.subr.mxu0 0.0
    %8544 = vmatpush1.msra.mxu0 0.0
    %8545 = vmatprep.subr.mxu0 0.0
    %8546 = vmatpush1.msra.mxu0 0.0
    %8547 = vmatprep.subr.mxu0 0.0
    %8548 = vmatpush1.msra.mxu0 0.0
    %8549 = vmatprep.mubr.f32.mxu0 0.0
    %8550 = vmatmul.mubr.f32.gmra.mrb[0].mxu0 %v8480
    %v8551 = vpop.f32.mrb[0].mxu0
    %v8552 = vadd.f32 0.0, %v8551
    %v8553 = vpop.f32.mrb[0].mxu0
    %8554 = vmatprep.mubr.f32.mxu0 0.0
    %8555 = vmatmul.mubr.f32.gmra.mrb[0].mxu0 %v8483
    %v8556 = vpop.f32.mrb[0].mxu0
    %v8557 = vadd.f32 0.0, %v8556
    %v8558 = vpop.f32.mrb[0].mxu0
    %8559 = vdwg.mxu0
    %v8561 = vsel %vm3251, %v7991, 0
    %v8564 = vsel %vm3251, %v7992, 0
    %8566 = vmatprep.subr.mxu0 0.0
    %8567 = vmatpush1.msra.mxu0 %v7097
    %8568 = vmatprep.subr.mxu0 0.0
    %8569 = vmatpush1.msra.mxu0 %v7102
    %8570 = vmatprep.subr.mxu0 0.0
    %8571 = vmatpush1.msra.mxu0 0.0
    %8572 = vmatprep.subr.mxu0 0.0
    %8573 = vmatpush1.msra.mxu0 0.0
    %8574 = vmatprep.subr.mxu0 0.0
    %8575 = vmatpush1.msra.mxu0 0.0
    %8576 = vmatprep.subr.mxu0 0.0
    %8577 = vmatpush1.msra.mxu0 0.0
    %8578 = vmatprep.subr.mxu0 0.0
    %8579 = vmatpush1.msra.mxu0 0.0
    %8580 = vmatprep.subr.mxu0 0.0
    %8581 = vmatpush1.msra.mxu0 0.0
    %8582 = vmatprep.subr.mxu0 0.0
    %8583 = vmatpush1.msra.mxu0 0.0
    %8584 = vmatprep.subr.mxu0 0.0
    %8585 = vmatpush1.msra.mxu0 0.0
    %8586 = vmatprep.subr.mxu0 0.0
    %8587 = vmatpush1.msra.mxu0 0.0
    %8588 = vmatprep.subr.mxu0 0.0
    %8589 = vmatpush1.msra.mxu0 0.0
    %8590 = vmatprep.subr.mxu0 0.0
    %8591 = vmatpush1.msra.mxu0 0.0
    %8592 = vmatprep.subr.mxu0 0.0
    %8593 = vmatpush1.msra.mxu0 0.0
    %8594 = vmatprep.subr.mxu0 0.0
    %8595 = vmatpush1.msra.mxu0 0.0
    %8596 = vmatprep.subr.mxu0 0.0
    %8597 = vmatpush1.msra.mxu0 0.0
    %8598 = vmatprep.subr.mxu0 0.0
    %8599 = vmatpush1.msra.mxu0 0.0
    %8600 = vmatprep.subr.mxu0 0.0
    %8601 = vmatpush1.msra.mxu0 0.0
    %8602 = vmatprep.subr.mxu0 0.0
    %8603 = vmatpush1.msra.mxu0 0.0
    %8604 = vmatprep.subr.mxu0 0.0
    %8605 = vmatpush1.msra.mxu0 0.0
    %8606 = vmatprep.subr.mxu0 0.0
    %8607 = vmatpush1.msra.mxu0 0.0
    %8608 = vmatprep.subr.mxu0 0.0
    %8609 = vmatpush1.msra.mxu0 0.0
    %8610 = vmatprep.subr.mxu0 0.0
    %8611 = vmatpush1.msra.mxu0 0.0
    %8612 = vmatprep.subr.mxu0 0.0
    %8613 = vmatpush1.msra.mxu0 0.0
    %8614 = vmatprep.subr.mxu0 0.0
    %8615 = vmatpush1.msra.mxu0 0.0
    %8616 = vmatprep.subr.mxu0 0.0
    %8617 = vmatpush1.msra.mxu0 0.0
    %8618 = vmatprep.subr.mxu0 0.0
    %8619 = vmatpush1.msra.mxu0 0.0
    %8620 = vmatprep.subr.mxu0 0.0
    %8621 = vmatpush1.msra.mxu0 0.0
    %8622 = vmatprep.subr.mxu0 0.0
    %8623 = vmatpush1.msra.mxu0 0.0
    %8624 = vmatprep.subr.mxu0 0.0
    %8625 = vmatpush1.msra.mxu0 0.0
    %8626 = vmatprep.subr.mxu0 0.0
    %8627 = vmatpush1.msra.mxu0 0.0
    %8628 = vmatprep.subr.mxu0 0.0
    %8629 = vmatpush1.msra.mxu0 0.0
    %8630 = vmatprep.mubr.f32.mxu0 0.0
    %8631 = vmatmul.mubr.f32.gmra.mrb[0].mxu0 %v8561
    %v8632 = vpop.f32.mrb[0].mxu0
    %v8633 = vadd.f32 0.0, %v8632
    %v8634 = vpop.f32.mrb[0].mxu0
    %8635 = vmatprep.mubr.f32.mxu0 0.0
    %8636 = vmatmul.mubr.f32.gmra.mrb[0].mxu0 %v8564
    %v8637 = vpop.f32.mrb[0].mxu0
    %v8638 = vadd.f32 0.0, %v8637
    %v8639 = vpop.f32.mrb[0].mxu0
    %8640 = vdwg.mxu0
    %s8641 = scalar_lea.vmem %s14, 32
    %v8642 = vld [vmem:[%s8641] sm:$0xff]
    %v8643 = vld [vmem:[%s8641 + $0x8] sm:$0xff]
    %v8644 = vld [vmem:[%s8641 + $0x10] sm:$0xff]
    %v8645 = vld [vmem:[%s8641 + $0x18] sm:$0xff]
    %v8647 = vsel %vm2554, %v8066, 0
    %v8650 = vsel %vm2554, %v8071, 0
    %8652 = vmatprep.subr.mxu0 0.0
    %8653 = vmatpush1.msra.mxu0 %v8642
    %8654 = vmatprep.subr.mxu0 0.0
    %8655 = vmatpush1.msra.mxu0 0.0
    %8656 = vmatprep.subr.mxu0 0.0
    %8657 = vmatpush1.msra.mxu0 0.0
    %8658 = vmatprep.subr.mxu0 0.0
    %8659 = vmatpush1.msra.mxu0 0.0
    %8660 = vmatprep.subr.mxu0 0.0
    %8661 = vmatpush1.msra.mxu0 0.0
    %8662 = vmatprep.subr.mxu0 0.0
    %8663 = vmatpush1.msra.mxu0 0.0
    %8664 = vmatprep.subr.mxu0 0.0
    %8665 = vmatpush1.msra.mxu0 0.0
    %8666 = vmatprep.subr.mxu0 0.0
    %8667 = vmatpush1.msra.mxu0 0.0
    %8668 = vmatprep.subr.mxu0 0.0
    %8669 = vmatpush1.msra.mxu0 0.0
    %8670 = vmatprep.subr.mxu0 0.0
    %8671 = vmatpush1.msra.mxu0 0.0
    %8672 = vmatprep.subr.mxu0 0.0
    %8673 = vmatpush1.msra.mxu0 0.0
    %8674 = vmatprep.subr.mxu0 0.0
    %8675 = vmatpush1.msra.mxu0 0.0
    %8676 = vmatprep.subr.mxu0 0.0
    %8677 = vmatpush1.msra.mxu0 0.0
    %8678 = vmatprep.subr.mxu0 0.0
    %8679 = vmatpush1.msra.mxu0 0.0
    %8680 = vmatprep.subr.mxu0 0.0
    %8681 = vmatpush1.msra.mxu0 0.0
    %8682 = vmatprep.subr.mxu0 0.0
    %8683 = vmatpush1.msra.mxu0 0.0
    %8684 = vmatprep.subr.mxu0 0.0
    %8685 = vmatpush1.msra.mxu0 0.0
    %8686 = vmatprep.subr.mxu0 0.0
    %8687 = vmatpush1.msra.mxu0 0.0
    %8688 = vmatprep.subr.mxu0 0.0
    %8689 = vmatpush1.msra.mxu0 0.0
    %8690 = vmatprep.subr.mxu0 0.0
    %8691 = vmatpush1.msra.mxu0 0.0
    %8692 = vmatprep.subr.mxu0 0.0
    %8693 = vmatpush1.msra.mxu0 0.0
    %8694 = vmatprep.subr.mxu0 0.0
    %8695 = vmatpush1.msra.mxu0 0.0
    %8696 = vmatprep.subr.mxu0 0.0
    %8697 = vmatpush1.msra.mxu0 0.0
    %8698 = vmatprep.subr.mxu0 0.0
    %8699 = vmatpush1.msra.mxu0 0.0
    %8700 = vmatprep.subr.mxu0 0.0
    %8701 = vmatpush1.msra.mxu0 0.0
    %8702 = vmatprep.subr.mxu0 0.0
    %8703 = vmatpush1.msra.mxu0 0.0
    %8704 = vmatprep.subr.mxu0 0.0
    %8705 = vmatpush1.msra.mxu0 0.0
    %8706 = vmatprep.subr.mxu0 0.0
    %8707 = vmatpush1.msra.mxu0 0.0
    %8708 = vmatprep.subr.mxu0 0.0
    %8709 = vmatpush1.msra.mxu0 0.0
    %8710 = vmatprep.subr.mxu0 0.0
    %8711 = vmatpush1.msra.mxu0 0.0
    %8712 = vmatprep.subr.mxu0 0.0
    %8713 = vmatpush1.msra.mxu0 0.0
    %8714 = vmatprep.subr.mxu0 0.0
    %8715 = vmatpush1.msra.mxu0 0.0
    %8716 = vmatprep.mubr.f32.mxu0 0.0
    %8717 = vmatmul.mubr.f32.gmra.mrb[0].mxu0 %v8647
    %v8718 = vpop.f32.mrb[0].mxu0
    %v8719 = vadd.f32 0.0, %v8718
    %v8720 = vpop.f32.mrb[0].mxu0
    %8721 = vmatprep.mubr.f32.mxu0 0.0
    %8722 = vmatmul.mubr.f32.gmra.mrb[0].mxu0 %v8650
    %v8723 = vpop.f32.mrb[0].mxu0
    %v8724 = vadd.f32 0.0, %v8723
    %v8725 = vpop.f32.mrb[0].mxu0
    %8726 = vdwg.mxu0
    %v8728 = vsel %vm2554, %v8147, 0
    %v8731 = vsel %vm2554, %v8152, 0
    %8733 = vmatprep.subr.mxu0 0.0
    %8734 = vmatpush1.msra.mxu0 %v8643
    %8735 = vmatprep.subr.mxu0 0.0
    %8736 = vmatpush1.msra.mxu0 0.0
    %8737 = vmatprep.subr.mxu0 0.0
    %8738 = vmatpush1.msra.mxu0 0.0
    %8739 = vmatprep.subr.mxu0 0.0
    %8740 = vmatpush1.msra.mxu0 0.0
    %8741 = vmatprep.subr.mxu0 0.0
    %8742 = vmatpush1.msra.mxu0 0.0
    %8743 = vmatprep.subr.mxu0 0.0
    %8744 = vmatpush1.msra.mxu0 0.0
    %8745 = vmatprep.subr.mxu0 0.0
    %8746 = vmatpush1.msra.mxu0 0.0
    %8747 = vmatprep.subr.mxu0 0.0
    %8748 = vmatpush1.msra.mxu0 0.0
    %8749 = vmatprep.subr.mxu0 0.0
    %8750 = vmatpush1.msra.mxu0 0.0
    %8751 = vmatprep.subr.mxu0 0.0
    %8752 = vmatpush1.msra.mxu0 0.0
    %8753 = vmatprep.subr.mxu0 0.0
    %8754 = vmatpush1.msra.mxu0 0.0
    %8755 = vmatprep.subr.mxu0 0.0
    %8756 = vmatpush1.msra.mxu0 0.0
    %8757 = vmatprep.subr.mxu0 0.0
    %8758 = vmatpush1.msra.mxu0 0.0
    %8759 = vmatprep.subr.mxu0 0.0
    %8760 = vmatpush1.msra.mxu0 0.0
    %8761 = vmatprep.subr.mxu0 0.0
    %8762 = vmatpush1.msra.mxu0 0.0
    %8763 = vmatprep.subr.mxu0 0.0
    %8764 = vmatpush1.msra.mxu0 0.0
    %8765 = vmatprep.subr.mxu0 0.0
    %8766 = vmatpush1.msra.mxu0 0.0
    %8767 = vmatprep.subr.mxu0 0.0
    %8768 = vmatpush1.msra.mxu0 0.0
    %8769 = vmatprep.subr.mxu0 0.0
    %8770 = vmatpush1.msra.mxu0 0.0
    %8771 = vmatprep.subr.mxu0 0.0
    %8772 = vmatpush1.msra.mxu0 0.0
    %8773 = vmatprep.subr.mxu0 0.0
    %8774 = vmatpush1.msra.mxu0 0.0
    %8775 = vmatprep.subr.mxu0 0.0
    %8776 = vmatpush1.msra.mxu0 0.0
    %8777 = vmatprep.subr.mxu0 0.0
    %8778 = vmatpush1.msra.mxu0 0.0
    %8779 = vmatprep.subr.mxu0 0.0
    %8780 = vmatpush1.msra.mxu0 0.0
    %8781 = vmatprep.subr.mxu0 0.0
    %8782 = vmatpush1.msra.mxu0 0.0
    %8783 = vmatprep.subr.mxu0 0.0
    %8784 = vmatpush1.msra.mxu0 0.0
    %8785 = vmatprep.subr.mxu0 0.0
    %8786 = vmatpush1.msra.mxu0 0.0
    %8787 = vmatprep.subr.mxu0 0.0
    %8788 = vmatpush1.msra.mxu0 0.0
    %8789 = vmatprep.subr.mxu0 0.0
    %8790 = vmatpush1.msra.mxu0 0.0
    %8791 = vmatprep.subr.mxu0 0.0
    %8792 = vmatpush1.msra.mxu0 0.0
    %8793 = vmatprep.subr.mxu0 0.0
    %8794 = vmatpush1.msra.mxu0 0.0
    %8795 = vmatprep.subr.mxu0 0.0
    %8796 = vmatpush1.msra.mxu0 0.0
    %8797 = vmatprep.mubr.f32.mxu0 0.0
    %8798 = vmatmul.mubr.f32.gmra.mrb[0].mxu0 %v8728
    %v8799 = vpop.f32.mrb[0].mxu0
    %v8800 = vadd.f32 0.0, %v8799
    %v8801 = vpop.f32.mrb[0].mxu0
    %8802 = vmatprep.mubr.f32.mxu0 0.0
    %8803 = vmatmul.mubr.f32.gmra.mrb[0].mxu0 %v8731
    %v8804 = vpop.f32.mrb[0].mxu0
    %v8805 = vadd.f32 0.0, %v8804
    %v8806 = vpop.f32.mrb[0].mxu0
    %8807 = vdwg.mxu0
    %v8809 = vsel %vm2554, %v8228, 0
    %v8812 = vsel %vm2554, %v8233, 0
    %8814 = vmatprep.subr.mxu0 0.0
    %8815 = vmatpush1.msra.mxu0 %v8644
    %8816 = vmatprep.subr.mxu0 0.0
    %8817 = vmatpush1.msra.mxu0 0.0
    %8818 = vmatprep.subr.mxu0 0.0
    %8819 = vmatpush1.msra.mxu0 0.0
    %8820 = vmatprep.subr.mxu0 0.0
    %8821 = vmatpush1.msra.mxu0 0.0
    %8822 = vmatprep.subr.mxu0 0.0
    %8823 = vmatpush1.msra.mxu0 0.0
    %8824 = vmatprep.subr.mxu0 0.0
    %8825 = vmatpush1.msra.mxu0 0.0
    %8826 = vmatprep.subr.mxu0 0.0
    %8827 = vmatpush1.msra.mxu0 0.0
    %8828 = vmatprep.subr.mxu0 0.0
    %8829 = vmatpush1.msra.mxu0 0.0
    %8830 = vmatprep.subr.mxu0 0.0
    %8831 = vmatpush1.msra.mxu0 0.0
    %8832 = vmatprep.subr.mxu0 0.0
    %8833 = vmatpush1.msra.mxu0 0.0
    %8834 = vmatprep.subr.mxu0 0.0
    %8835 = vmatpush1.msra.mxu0 0.0
    %8836 = vmatprep.subr.mxu0 0.0
    %8837 = vmatpush1.msra.mxu0 0.0
    %8838 = vmatprep.subr.mxu0 0.0
    %8839 = vmatpush1.msra.mxu0 0.0
    %8840 = vmatprep.subr.mxu0 0.0
    %8841 = vmatpush1.msra.mxu0 0.0
    %8842 = vmatprep.subr.mxu0 0.0
    %8843 = vmatpush1.msra.mxu0 0.0
    %8844 = vmatprep.subr.mxu0 0.0
    %8845 = vmatpush1.msra.mxu0 0.0
    %8846 = vmatprep.subr.mxu0 0.0
    %8847 = vmatpush1.msra.mxu0 0.0
    %8848 = vmatprep.subr.mxu0 0.0
    %8849 = vmatpush1.msra.mxu0 0.0
    %8850 = vmatprep.subr.mxu0 0.0
    %8851 = vmatpush1.msra.mxu0 0.0
    %8852 = vmatprep.subr.mxu0 0.0
    %8853 = vmatpush1.msra.mxu0 0.0
    %8854 = vmatprep.subr.mxu0 0.0
    %8855 = vmatpush1.msra.mxu0 0.0
    %8856 = vmatprep.subr.mxu0 0.0
    %8857 = vmatpush1.msra.mxu0 0.0
    %8858 = vmatprep.subr.mxu0 0.0
    %8859 = vmatpush1.msra.mxu0 0.0
    %8860 = vmatprep.subr.mxu0 0.0
    %8861 = vmatpush1.msra.mxu0 0.0
    %8862 = vmatprep.subr.mxu0 0.0
    %8863 = vmatpush1.msra.mxu0 0.0
    %8864 = vmatprep.subr.mxu0 0.0
    %8865 = vmatpush1.msra.mxu0 0.0
    %8866 = vmatprep.subr.mxu0 0.0
    %8867 = vmatpush1.msra.mxu0 0.0
    %8868 = vmatprep.subr.mxu0 0.0
    %8869 = vmatpush1.msra.mxu0 0.0
    %8870 = vmatprep.subr.mxu0 0.0
    %8871 = vmatpush1.msra.mxu0 0.0
    %8872 = vmatprep.subr.mxu0 0.0
    %8873 = vmatpush1.msra.mxu0 0.0
    %8874 = vmatprep.subr.mxu0 0.0
    %8875 = vmatpush1.msra.mxu0 0.0
    %8876 = vmatprep.subr.mxu0 0.0
    %8877 = vmatpush1.msra.mxu0 0.0
    %8878 = vmatprep.mubr.f32.mxu0 0.0
    %8879 = vmatmul.mubr.f32.gmra.mrb[0].mxu0 %v8809
    %v8880 = vpop.f32.mrb[0].mxu0
    %v8881 = vadd.f32 0.0, %v8880
    %v8882 = vpop.f32.mrb[0].mxu0
    %8883 = vmatprep.mubr.f32.mxu0 0.0
    %8884 = vmatmul.mubr.f32.gmra.mrb[0].mxu0 %v8812
    %v8885 = vpop.f32.mrb[0].mxu0
    %v8886 = vadd.f32 0.0, %v8885
    %v8887 = vpop.f32.mrb[0].mxu0
    %8888 = vdwg.mxu0
    %v8890 = vsel %vm2554, %v8309, 0
    %v8893 = vsel %vm2554, %v8314, 0
    %8895 = vmatprep.subr.mxu0 0.0
    %8896 = vmatpush1.msra.mxu0 %v8645
    %8897 = vmatprep.subr.mxu0 0.0
    %8898 = vmatpush1.msra.mxu0 0.0
    %8899 = vmatprep.subr.mxu0 0.0
    %8900 = vmatpush1.msra.mxu0 0.0
    %8901 = vmatprep.subr.mxu0 0.0
    %8902 = vmatpush1.msra.mxu0 0.0
    %8903 = vmatprep.subr.mxu0 0.0
    %8904 = vmatpush1.msra.mxu0 0.0
    %8905 = vmatprep.subr.mxu0 0.0
    %8906 = vmatpush1.msra.mxu0 0.0
    %8907 = vmatprep.subr.mxu0 0.0
    %8908 = vmatpush1.msra.mxu0 0.0
    %8909 = vmatprep.subr.mxu0 0.0
    %8910 = vmatpush1.msra.mxu0 0.0
    %8911 = vmatprep.subr.mxu0 0.0
    %8912 = vmatpush1.msra.mxu0 0.0
    %8913 = vmatprep.subr.mxu0 0.0
    %8914 = vmatpush1.msra.mxu0 0.0
    %8915 = vmatprep.subr.mxu0 0.0
    %8916 = vmatpush1.msra.mxu0 0.0
    %8917 = vmatprep.subr.mxu0 0.0
    %8918 = vmatpush1.msra.mxu0 0.0
    %8919 = vmatprep.subr.mxu0 0.0
    %8920 = vmatpush1.msra.mxu0 0.0
    %8921 = vmatprep.subr.mxu0 0.0
    %8922 = vmatpush1.msra.mxu0 0.0
    %8923 = vmatprep.subr.mxu0 0.0
    %8924 = vmatpush1.msra.mxu0 0.0
    %8925 = vmatprep.subr.mxu0 0.0
    %8926 = vmatpush1.msra.mxu0 0.0
    %8927 = vmatprep.subr.mxu0 0.0
    %8928 = vmatpush1.msra.mxu0 0.0
    %8929 = vmatprep.subr.mxu0 0.0
    %8930 = vmatpush1.msra.mxu0 0.0
    %8931 = vmatprep.subr.mxu0 0.0
    %8932 = vmatpush1.msra.mxu0 0.0
    %8933 = vmatprep.subr.mxu0 0.0
    %8934 = vmatpush1.msra.mxu0 0.0
    %8935 = vmatprep.subr.mxu0 0.0
    %8936 = vmatpush1.msra.mxu0 0.0
    %8937 = vmatprep.subr.mxu0 0.0
    %8938 = vmatpush1.msra.mxu0 0.0
    %8939 = vmatprep.subr.mxu0 0.0
    %8940 = vmatpush1.msra.mxu0 0.0
    %8941 = vmatprep.subr.mxu0 0.0
    %8942 = vmatpush1.msra.mxu0 0.0
    %8943 = vmatprep.subr.mxu0 0.0
    %8944 = vmatpush1.msra.mxu0 0.0
    %8945 = vmatprep.subr.mxu0 0.0
    %8946 = vmatpush1.msra.mxu0 0.0
    %8947 = vmatprep.subr.mxu0 0.0
    %8948 = vmatpush1.msra.mxu0 0.0
    %8949 = vmatprep.subr.mxu0 0.0
    %8950 = vmatpush1.msra.mxu0 0.0
    %8951 = vmatprep.subr.mxu0 0.0
    %8952 = vmatpush1.msra.mxu0 0.0
    %8953 = vmatprep.subr.mxu0 0.0
    %8954 = vmatpush1.msra.mxu0 0.0
    %8955 = vmatprep.subr.mxu0 0.0
    %8956 = vmatpush1.msra.mxu0 0.0
    %8957 = vmatprep.subr.mxu0 0.0
    %8958 = vmatpush1.msra.mxu0 0.0
    %8959 = vmatprep.mubr.f32.mxu0 0.0
    %8960 = vmatmul.mubr.f32.gmra.mrb[0].mxu0 %v8890
    %v8961 = vpop.f32.mrb[0].mxu0
    %v8962 = vadd.f32 0.0, %v8961
    %v8963 = vpop.f32.mrb[0].mxu0
    %8964 = vmatprep.mubr.f32.mxu0 0.0
    %8965 = vmatmul.mubr.f32.gmra.mrb[0].mxu0 %v8893
    %v8966 = vpop.f32.mrb[0].mxu0
    %v8967 = vadd.f32 0.0, %v8966
    %v8968 = vpop.f32.mrb[0].mxu0
    %8969 = vdwg.mxu0
    %v8971 = vsel %vm2554, %v8390, 0
    %v8974 = vsel %vm2554, %v8395, 0
    %8976 = vmatprep.subr.mxu0 0.0
    %8977 = vmatpush1.msra.mxu0 %v8642
    %8978 = vmatprep.subr.mxu0 0.0
    %8979 = vmatpush1.msra.mxu0 0.0
    %8980 = vmatprep.subr.mxu0 0.0
    %8981 = vmatpush1.msra.mxu0 0.0
    %8982 = vmatprep.subr.mxu0 0.0
    %8983 = vmatpush1.msra.mxu0 0.0
    %8984 = vmatprep.subr.mxu0 0.0
    %8985 = vmatpush1.msra.mxu0 0.0
    %8986 = vmatprep.subr.mxu0 0.0
    %8987 = vmatpush1.msra.mxu0 0.0
    %8988 = vmatprep.subr.mxu0 0.0
    %8989 = vmatpush1.msra.mxu0 0.0
    %8990 = vmatprep.subr.mxu0 0.0
    %8991 = vmatpush1.msra.mxu0 0.0
    %8992 = vmatprep.subr.mxu0 0.0
    %8993 = vmatpush1.msra.mxu0 0.0
    %8994 = vmatprep.subr.mxu0 0.0
    %8995 = vmatpush1.msra.mxu0 0.0
    %8996 = vmatprep.subr.mxu0 0.0
    %8997 = vmatpush1.msra.mxu0 0.0
    %8998 = vmatprep.subr.mxu0 0.0
    %8999 = vmatpush1.msra.mxu0 0.0
    %9000 = vmatprep.subr.mxu0 0.0
    %9001 = vmatpush1.msra.mxu0 0.0
    %9002 = vmatprep.subr.mxu0 0.0
    %9003 = vmatpush1.msra.mxu0 0.0
    %9004 = vmatprep.subr.mxu0 0.0
    %9005 = vmatpush1.msra.mxu0 0.0
    %9006 = vmatprep.subr.mxu0 0.0
    %9007 = vmatpush1.msra.mxu0 0.0
    %9008 = vmatprep.subr.mxu0 0.0
    %9009 = vmatpush1.msra.mxu0 0.0
    %9010 = vmatprep.subr.mxu0 0.0
    %9011 = vmatpush1.msra.mxu0 0.0
    %9012 = vmatprep.subr.mxu0 0.0
    %9013 = vmatpush1.msra.mxu0 0.0
    %9014 = vmatprep.subr.mxu0 0.0
    %9015 = vmatpush1.msra.mxu0 0.0
    %9016 = vmatprep.subr.mxu0 0.0
    %9017 = vmatpush1.msra.mxu0 0.0
    %9018 = vmatprep.subr.mxu0 0.0
    %9019 = vmatpush1.msra.mxu0 0.0
    %9020 = vmatprep.subr.mxu0 0.0
    %9021 = vmatpush1.msra.mxu0 0.0
    %9022 = vmatprep.subr.mxu0 0.0
    %9023 = vmatpush1.msra.mxu0 0.0
    %9024 = vmatprep.subr.mxu0 0.0
    %9025 = vmatpush1.msra.mxu0 0.0
    %9026 = vmatprep.subr.mxu0 0.0
    %9027 = vmatpush1.msra.mxu0 0.0
    %9028 = vmatprep.subr.mxu0 0.0
    %9029 = vmatpush1.msra.mxu0 0.0
    %9030 = vmatprep.subr.mxu0 0.0
    %9031 = vmatpush1.msra.mxu0 0.0
    %9032 = vmatprep.subr.mxu0 0.0
    %9033 = vmatpush1.msra.mxu0 0.0
    %9034 = vmatprep.subr.mxu0 0.0
    %9035 = vmatpush1.msra.mxu0 0.0
    %9036 = vmatprep.subr.mxu0 0.0
    %9037 = vmatpush1.msra.mxu0 0.0
    %9038 = vmatprep.subr.mxu0 0.0
    %9039 = vmatpush1.msra.mxu0 0.0
    %9040 = vmatprep.mubr.f32.mxu0 0.0
    %9041 = vmatmul.mubr.f32.gmra.mrb[0].mxu0 %v8971
    %v9042 = vpop.f32.mrb[0].mxu0
    %v9043 = vadd.f32 0.0, %v9042
    %v9044 = vpop.f32.mrb[0].mxu0
    %9045 = vmatprep.mubr.f32.mxu0 0.0
    %9046 = vmatmul.mubr.f32.gmra.mrb[0].mxu0 %v8974
    %v9047 = vpop.f32.mrb[0].mxu0
    %v9048 = vadd.f32 0.0, %v9047
    %v9049 = vpop.f32.mrb[0].mxu0
    %9050 = vdwg.mxu0
    %v9052 = vsel %vm2554, %v8471, 0
    %v9055 = vsel %vm2554, %v8476, 0
    %9057 = vmatprep.subr.mxu0 0.0
    %9058 = vmatpush1.msra.mxu0 %v8643
    %9059 = vmatprep.subr.mxu0 0.0
    %9060 = vmatpush1.msra.mxu0 0.0
    %9061 = vmatprep.subr.mxu0 0.0
    %9062 = vmatpush1.msra.mxu0 0.0
    %9063 = vmatprep.subr.mxu0 0.0
    %9064 = vmatpush1.msra.mxu0 0.0
    %9065 = vmatprep.subr.mxu0 0.0
    %9066 = vmatpush1.msra.mxu0 0.0
    %9067 = vmatprep.subr.mxu0 0.0
    %9068 = vmatpush1.msra.mxu0 0.0
    %9069 = vmatprep.subr.mxu0 0.0
    %9070 = vmatpush1.msra.mxu0 0.0
    %9071 = vmatprep.subr.mxu0 0.0
    %9072 = vmatpush1.msra.mxu0 0.0
    %9073 = vmatprep.subr.mxu0 0.0
    %9074 = vmatpush1.msra.mxu0 0.0
    %9075 = vmatprep.subr.mxu0 0.0
    %9076 = vmatpush1.msra.mxu0 0.0
    %9077 = vmatprep.subr.mxu0 0.0
    %9078 = vmatpush1.msra.mxu0 0.0
    %9079 = vmatprep.subr.mxu0 0.0
    %9080 = vmatpush1.msra.mxu0 0.0
    %9081 = vmatprep.subr.mxu0 0.0
    %9082 = vmatpush1.msra.mxu0 0.0
    %9083 = vmatprep.subr.mxu0 0.0
    %9084 = vmatpush1.msra.mxu0 0.0
    %9085 = vmatprep.subr.mxu0 0.0
    %9086 = vmatpush1.msra.mxu0 0.0
    %9087 = vmatprep.subr.mxu0 0.0
    %9088 = vmatpush1.msra.mxu0 0.0
    %9089 = vmatprep.subr.mxu0 0.0
    %9090 = vmatpush1.msra.mxu0 0.0
    %9091 = vmatprep.subr.mxu0 0.0
    %9092 = vmatpush1.msra.mxu0 0.0
    %9093 = vmatprep.subr.mxu0 0.0
    %9094 = vmatpush1.msra.mxu0 0.0
    %9095 = vmatprep.subr.mxu0 0.0
    %9096 = vmatpush1.msra.mxu0 0.0
    %9097 = vmatprep.subr.mxu0 0.0
    %9098 = vmatpush1.msra.mxu0 0.0
    %9099 = vmatprep.subr.mxu0 0.0
    %9100 = vmatpush1.msra.mxu0 0.0
    %9101 = vmatprep.subr.mxu0 0.0
    %9102 = vmatpush1.msra.mxu0 0.0
    %9103 = vmatprep.subr.mxu0 0.0
    %9104 = vmatpush1.msra.mxu0 0.0
    %9105 = vmatprep.subr.mxu0 0.0
    %9106 = vmatpush1.msra.mxu0 0.0
    %9107 = vmatprep.subr.mxu0 0.0
    %9108 = vmatpush1.msra.mxu0 0.0
    %9109 = vmatprep.subr.mxu0 0.0
    %9110 = vmatpush1.msra.mxu0 0.0
    %9111 = vmatprep.subr.mxu0 0.0
    %9112 = vmatpush1.msra.mxu0 0.0
    %9113 = vmatprep.subr.mxu0 0.0
    %9114 = vmatpush1.msra.mxu0 0.0
    %9115 = vmatprep.subr.mxu0 0.0
    %9116 = vmatpush1.msra.mxu0 0.0
    %9117 = vmatprep.subr.mxu0 0.0
    %9118 = vmatpush1.msra.mxu0 0.0
    %9119 = vmatprep.subr.mxu0 0.0
    %9120 = vmatpush1.msra.mxu0 0.0
    %9121 = vmatprep.mubr.f32.mxu0 0.0
    %9122 = vmatmul.mubr.f32.gmra.mrb[0].mxu0 %v9052
    %v9123 = vpop.f32.mrb[0].mxu0
    %v9124 = vadd.f32 0.0, %v9123
    %v9125 = vpop.f32.mrb[0].mxu0
    %9126 = vmatprep.mubr.f32.mxu0 0.0
    %9127 = vmatmul.mubr.f32.gmra.mrb[0].mxu0 %v9055
    %v9128 = vpop.f32.mrb[0].mxu0
    %v9129 = vadd.f32 0.0, %v9128
    %v9130 = vpop.f32.mrb[0].mxu0
    %9131 = vdwg.mxu0
    %v9133 = vsel %vm2554, %v8552, 0
    %v9136 = vsel %vm2554, %v8557, 0
    %9138 = vmatprep.subr.mxu0 0.0
    %9139 = vmatpush1.msra.mxu0 %v8644
    %9140 = vmatprep.subr.mxu0 0.0
    %9141 = vmatpush1.msra.mxu0 0.0
    %9142 = vmatprep.subr.mxu0 0.0
    %9143 = vmatpush1.msra.mxu0 0.0
    %9144 = vmatprep.subr.mxu0 0.0
    %9145 = vmatpush1.msra.mxu0 0.0
    %9146 = vmatprep.subr.mxu0 0.0
    %9147 = vmatpush1.msra.mxu0 0.0
    %9148 = vmatprep.subr.mxu0 0.0
    %9149 = vmatpush1.msra.mxu0 0.0
    %9150 = vmatprep.subr.mxu0 0.0
    %9151 = vmatpush1.msra.mxu0 0.0
    %9152 = vmatprep.subr.mxu0 0.0
    %9153 = vmatpush1.msra.mxu0 0.0
    %9154 = vmatprep.subr.mxu0 0.0
    %9155 = vmatpush1.msra.mxu0 0.0
    %9156 = vmatprep.subr.mxu0 0.0
    %9157 = vmatpush1.msra.mxu0 0.0
    %9158 = vmatprep.subr.mxu0 0.0
    %9159 = vmatpush1.msra.mxu0 0.0
    %9160 = vmatprep.subr.mxu0 0.0
    %9161 = vmatpush1.msra.mxu0 0.0
    %9162 = vmatprep.subr.mxu0 0.0
    %9163 = vmatpush1.msra.mxu0 0.0
    %9164 = vmatprep.subr.mxu0 0.0
    %9165 = vmatpush1.msra.mxu0 0.0
    %9166 = vmatprep.subr.mxu0 0.0
    %9167 = vmatpush1.msra.mxu0 0.0
    %9168 = vmatprep.subr.mxu0 0.0
    %9169 = vmatpush1.msra.mxu0 0.0
    %9170 = vmatprep.subr.mxu0 0.0
    %9171 = vmatpush1.msra.mxu0 0.0
    %9172 = vmatprep.subr.mxu0 0.0
    %9173 = vmatpush1.msra.mxu0 0.0
    %9174 = vmatprep.subr.mxu0 0.0
    %9175 = vmatpush1.msra.mxu0 0.0
    %9176 = vmatprep.subr.mxu0 0.0
    %9177 = vmatpush1.msra.mxu0 0.0
    %9178 = vmatprep.subr.mxu0 0.0
    %9179 = vmatpush1.msra.mxu0 0.0
    %9180 = vmatprep.subr.mxu0 0.0
    %9181 = vmatpush1.msra.mxu0 0.0
    %9182 = vmatprep.subr.mxu0 0.0
    %9183 = vmatpush1.msra.mxu0 0.0
    %9184 = vmatprep.subr.mxu0 0.0
    %9185 = vmatpush1.msra.mxu0 0.0
    %9186 = vmatprep.subr.mxu0 0.0
    %9187 = vmatpush1.msra.mxu0 0.0
    %9188 = vmatprep.subr.mxu0 0.0
    %9189 = vmatpush1.msra.mxu0 0.0
    %9190 = vmatprep.subr.mxu0 0.0
    %9191 = vmatpush1.msra.mxu0 0.0
    %9192 = vmatprep.subr.mxu0 0.0
    %9193 = vmatpush1.msra.mxu0 0.0
    %9194 = vmatprep.subr.mxu0 0.0
    %9195 = vmatpush1.msra.mxu0 0.0
    %9196 = vmatprep.subr.mxu0 0.0
    %9197 = vmatpush1.msra.mxu0 0.0
    %9198 = vmatprep.subr.mxu0 0.0
    %9199 = vmatpush1.msra.mxu0 0.0
    %9200 = vmatprep.subr.mxu0 0.0
    %9201 = vmatpush1.msra.mxu0 0.0
    %9202 = vmatprep.mubr.f32.mxu0 0.0
    %9203 = vmatmul.mubr.f32.gmra.mrb[0].mxu0 %v9133
    %v9204 = vpop.f32.mrb[0].mxu0
    %v9205 = vadd.f32 0.0, %v9204
    %v9206 = vpop.f32.mrb[0].mxu0
    %9207 = vmatprep.mubr.f32.mxu0 0.0
    %9208 = vmatmul.mubr.f32.gmra.mrb[0].mxu0 %v9136
    %v9209 = vpop.f32.mrb[0].mxu0
    %v9210 = vadd.f32 0.0, %v9209
    %v9211 = vpop.f32.mrb[0].mxu0
    %9212 = vdwg.mxu0
    %v9214 = vsel %vm2554, %v8633, 0
    %v9217 = vsel %vm2554, %v8638, 0
    %9219 = vmatprep.subr.mxu0 0.0
    %9220 = vmatpush1.msra.mxu0 %v8645
    %9221 = vmatprep.subr.mxu0 0.0
    %9222 = vmatpush1.msra.mxu0 0.0
    %9223 = vmatprep.subr.mxu0 0.0
    %9224 = vmatpush1.msra.mxu0 0.0
    %9225 = vmatprep.subr.mxu0 0.0
    %9226 = vmatpush1.msra.mxu0 0.0
    %9227 = vmatprep.subr.mxu0 0.0
    %9228 = vmatpush1.msra.mxu0 0.0
    %9229 = vmatprep.subr.mxu0 0.0
    %9230 = vmatpush1.msra.mxu0 0.0
    %9231 = vmatprep.subr.mxu0 0.0
    %9232 = vmatpush1.msra.mxu0 0.0
    %9233 = vmatprep.subr.mxu0 0.0
    %9234 = vmatpush1.msra.mxu0 0.0
    %9235 = vmatprep.subr.mxu0 0.0
    %9236 = vmatpush1.msra.mxu0 0.0
    %9237 = vmatprep.subr.mxu0 0.0
    %9238 = vmatpush1.msra.mxu0 0.0
    %9239 = vmatprep.subr.mxu0 0.0
    %9240 = vmatpush1.msra.mxu0 0.0
    %9241 = vmatprep.subr.mxu0 0.0
    %9242 = vmatpush1.msra.mxu0 0.0
    %9243 = vmatprep.subr.mxu0 0.0
    %9244 = vmatpush1.msra.mxu0 0.0
    %9245 = vmatprep.subr.mxu0 0.0
    %9246 = vmatpush1.msra.mxu0 0.0
    %9247 = vmatprep.subr.mxu0 0.0
    %9248 = vmatpush1.msra.mxu0 0.0
    %9249 = vmatprep.subr.mxu0 0.0
    %9250 = vmatpush1.msra.mxu0 0.0
    %9251 = vmatprep.subr.mxu0 0.0
    %9252 = vmatpush1.msra.mxu0 0.0
    %9253 = vmatprep.subr.mxu0 0.0
    %9254 = vmatpush1.msra.mxu0 0.0
    %9255 = vmatprep.subr.mxu0 0.0
    %9256 = vmatpush1.msra.mxu0 0.0
    %9257 = vmatprep.subr.mxu0 0.0
    %9258 = vmatpush1.msra.mxu0 0.0
    %9259 = vmatprep.subr.mxu0 0.0
    %9260 = vmatpush1.msra.mxu0 0.0
    %9261 = vmatprep.subr.mxu0 0.0
    %9262 = vmatpush1.msra.mxu0 0.0
    %9263 = vmatprep.subr.mxu0 0.0
    %9264 = vmatpush1.msra.mxu0 0.0
    %9265 = vmatprep.subr.mxu0 0.0
    %9266 = vmatpush1.msra.mxu0 0.0
    %9267 = vmatprep.subr.mxu0 0.0
    %9268 = vmatpush1.msra.mxu0 0.0
    %9269 = vmatprep.subr.mxu0 0.0
    %9270 = vmatpush1.msra.mxu0 0.0
    %9271 = vmatprep.subr.mxu0 0.0
    %9272 = vmatpush1.msra.mxu0 0.0
    %9273 = vmatprep.subr.mxu0 0.0
    %9274 = vmatpush1.msra.mxu0 0.0
    %9275 = vmatprep.subr.mxu0 0.0
    %9276 = vmatpush1.msra.mxu0 0.0
    %9277 = vmatprep.subr.mxu0 0.0
    %9278 = vmatpush1.msra.mxu0 0.0
    %9279 = vmatprep.subr.mxu0 0.0
    %9280 = vmatpush1.msra.mxu0 0.0
    %9281 = vmatprep.subr.mxu0 0.0
    %9282 = vmatpush1.msra.mxu0 0.0
    %9283 = vmatprep.mubr.f32.mxu0 0.0
    %9284 = vmatmul.mubr.f32.gmra.mrb[0].mxu0 %v9214
    %v9285 = vpop.f32.mrb[0].mxu0
    %v9286 = vadd.f32 0.0, %v9285
    %v9287 = vpop.f32.mrb[0].mxu0
    %9288 = vmatprep.mubr.f32.mxu0 0.0
    %9289 = vmatmul.mubr.f32.gmra.mrb[0].mxu0 %v9217
    %v9290 = vpop.f32.mrb[0].mxu0
    %v9291 = vadd.f32 0.0, %v9290
    %v9292 = vpop.f32.mrb[0].mxu0
    %9293 = vdwg.mxu0
    %v9294 = vadd.f32 %v8719, %v8800
    %v9295 = vadd.f32 %v8724, %v8805
    %v9296 = vadd.f32 %v9043, %v9124
    %v9297 = vadd.f32 %v9048, %v9129
    %v9298 = vadd.f32 %v9294, %v8881
    %v9299 = vadd.f32 %v9295, %v8886
    %v9300 = vadd.f32 %v9296, %v9205
    %v9301 = vadd.f32 %v9297, %v9210
    %v9302 = vadd.f32 %v9298, %v8962
    %v9303 = vadd.f32 %v9299, %v8967
    %v9304 = vadd.f32 %v9300, %v9286
    %v9305 = vadd.f32 %v9301, %v9291
    %v9306 = vadd.f32 %v5162, %v9302
    %v9307 = vadd.f32 %v5163, %v9303
    %v9308 = vadd.f32 %v5164, %v9304
    %v9309 = vadd.f32 %v5165, %v9305
    %s9310 = scalar_lea.vmem %s15, 1
    %v9311 = vld [vmem:[%s9310] sm:$0x1]
    %v9313 = vlaneseq
    %v9314 = vshrl.u32 %v9313, 7
    %v9315 = vsub.s32 0, %v9314
    %v9316 = vrot.slane %v9311, %v9315
    %v9318 = vadd.f32 %v9306, %v9316
    %v9319 = vadd.f32 %v9307, %v9316
    %v9320 = vadd.f32 %v9308, %v9316
    %v9321 = vadd.f32 %v9309, %v9316
    %s9322 = scalar_lea.vmem %s16, 1
    %v9323 = vld [vmem:[%s9322] sm:$0x1]
    %s9324 = scalar_lea.vmem %s17, 1
    %v9325 = vld [vmem:[%s9324] sm:$0x1]
    %v9326 = vsel %vm466, %v9318, 0.0
    %9327 = vadd.xlane.f32.xlu0 %v9326
    %v9328 = vpop.xlane.xlu0 %9327
    %v9329 = vsel %vm466, %v9319, 0.0
    %9330 = vadd.xlane.f32.xlu0 %v9329
    %v9331 = vpop.xlane.xlu0 %9330
    %v9332 = vsel %vm466, %v9320, 0.0
    %9333 = vadd.xlane.f32.xlu0 %v9332
    %v9334 = vpop.xlane.xlu0 %9333
    %v9335 = vsel %vm466, %v9321, 0.0
    %9336 = vadd.xlane.f32.xlu0 %v9335
    %v9337 = vpop.xlane.xlu0 %9336
    %v9338 = vmul.f32 %v9328, %v479
    %v9339 = vmul.f32 %v9331, %v479
    %v9340 = vmul.f32 %v9334, %v479
    %v9341 = vmul.f32 %v9337, %v479
    %v9342 = vsub.f32 %v9318, %v9338
    %v9343 = vsub.f32 %v9319, %v9339
    %v9344 = vsub.f32 %v9320, %v9340
    %v9345 = vsub.f32 %v9321, %v9341
    %v9346 = vmul.f32 %v9342, %v9342
    %v9347 = vmul.f32 %v9343, %v9343
    %v9348 = vmul.f32 %v9344, %v9344
    %v9349 = vmul.f32 %v9345, %v9345
    %v9350 = vsel %vm466, %v9346, 0.0
    %9351 = vadd.xlane.f32.xlu0 %v9350
    %v9352 = vpop.xlane.xlu0 %9351
    %v9353 = vsel %vm466, %v9347, 0.0
    %9354 = vadd.xlane.f32.xlu0 %v9353
    %v9355 = vpop.xlane.xlu0 %9354
    %v9356 = vsel %vm466, %v9348, 0.0
    %9357 = vadd.xlane.f32.xlu0 %v9356
    %v9358 = vpop.xlane.xlu0 %9357
    %v9359 = vsel %vm466, %v9349, 0.0
    %9360 = vadd.xlane.f32.xlu0 %v9359
    %v9361 = vpop.xlane.xlu0 %9360
    %v9362 = vmul.f32 %v9352, %v479
    %v9363 = vmul.f32 %v9355, %v479
    %v9364 = vmul.f32 %v9358, %v479
    %v9365 = vmul.f32 %v9361, %v479
    %v9366 = vadd.f32 %v9362, 1e-05
    %v9367 = vadd.f32 %v9363, 1e-05
    %v9368 = vadd.f32 %v9364, 1e-05
    %v9369 = vadd.f32 %v9365, 1e-05
    %v9370 = vrsqrt.pop %v9366
    %v9371 = vrsqrt.pop %v9367
    %v9372 = vrsqrt.pop %v9368
    %v9373 = vrsqrt.pop %v9369
    %v9374 = vmul.f32 %v9342, %v9370
    %v9375 = vmul.f32 %v9343, %v9371
    %v9376 = vmul.f32 %v9344, %v9372
    %v9377 = vmul.f32 %v9345, %v9373
    %v9379 = vlaneseq
    %v9380 = vshrl.u32 %v9379, 7
    %v9381 = vsub.s32 0, %v9380
    %v9382 = vrot.slane %v9323, %v9381
    %v9384 = vmul.f32 %v9374, %v9382
    %v9385 = vmul.f32 %v9375, %v9382
    %v9386 = vmul.f32 %v9376, %v9382
    %v9387 = vmul.f32 %v9377, %v9382
    %v9389 = vlaneseq
    %v9390 = vshrl.u32 %v9389, 7
    %v9391 = vsub.s32 0, %v9390
    %v9392 = vrot.slane %v9325, %v9391
    %v9394 = vadd.f32 %v9384, %v9392
    %v9395 = vadd.f32 %v9385, %v9392
    %v9396 = vadd.f32 %v9386, %v9392
    %v9397 = vadd.f32 %v9387, %v9392
    %s9398 = scalar_lea.vmem %s18, 32
    %v9399 = vld [vmem:[%s9398] sm:$0xff]
    %v9400 = vld [vmem:[%s9398 + $0x8] sm:$0xff]
    %v9401 = vld [vmem:[%s9398 + $0x10] sm:$0xff]
    %v9402 = vld [vmem:[%s9398 + $0x18] sm:$0xff]
    %s9403 = scalar_lea.vmem %s19, 1
    %v9404 = vld [vmem:[%s9403] sm:$0x1]
    %v9406 = vlaneseq
    %v9407 = vshrl.u32 %v9406, 7
    %v9408 = vsub.s32 0, %v9407
    %v9409 = vrot.slane %v9404, %v9408
    %v9412 = vsel %vm466, %v9394, 0
    %v9415 = vsel %vm466, %v9395, 0
    %v9418 = vsel %vm466, %v9396, 0
    %v9421 = vsel %vm466, %v9397, 0
    %9423 = vmatprep.subr.mxu0 0.0
    %9424 = vmatpush1.msra.mxu0 %v9399
    %9425 = vmatprep.subr.mxu0 0.0
    %9426 = vmatpush1.msra.mxu0 %v9400
    %9427 = vmatprep.subr.mxu0 0.0
    %9428 = vmatpush1.msra.mxu0 %v9401
    %9429 = vmatprep.subr.mxu0 0.0
    %9430 = vmatpush1.msra.mxu0 %v9402
    %9431 = vmatprep.subr.mxu0 0.0
    %9432 = vmatpush1.msra.mxu0 0.0
    %9433 = vmatprep.subr.mxu0 0.0
    %9434 = vmatpush1.msra.mxu0 0.0
    %9435 = vmatprep.subr.mxu0 0.0
    %9436 = vmatpush1.msra.mxu0 0.0
    %9437 = vmatprep.subr.mxu0 0.0
    %9438 = vmatpush1.msra.mxu0 0.0
    %9439 = vmatprep.subr.mxu0 0.0
    %9440 = vmatpush1.msra.mxu0 0.0
    %9441 = vmatprep.subr.mxu0 0.0
    %9442 = vmatpush1.msra.mxu0 0.0
    %9443 = vmatprep.subr.mxu0 0.0
    %9444 = vmatpush1.msra.mxu0 0.0
    %9445 = vmatprep.subr.mxu0 0.0
    %9446 = vmatpush1.msra.mxu0 0.0
    %9447 = vmatprep.subr.mxu0 0.0
    %9448 = vmatpush1.msra.mxu0 0.0
    %9449 = vmatprep.subr.mxu0 0.0
    %9450 = vmatpush1.msra.mxu0 0.0
    %9451 = vmatprep.subr.mxu0 0.0
    %9452 = vmatpush1.msra.mxu0 0.0
    %9453 = vmatprep.subr.mxu0 0.0
    %9454 = vmatpush1.msra.mxu0 0.0
    %9455 = vmatprep.subr.mxu0 0.0
    %9456 = vmatpush1.msra.mxu0 0.0
    %9457 = vmatprep.subr.mxu0 0.0
    %9458 = vmatpush1.msra.mxu0 0.0
    %9459 = vmatprep.subr.mxu0 0.0
    %9460 = vmatpush1.msra.mxu0 0.0
    %9461 = vmatprep.subr.mxu0 0.0
    %9462 = vmatpush1.msra.mxu0 0.0
    %9463 = vmatprep.subr.mxu0 0.0
    %9464 = vmatpush1.msra.mxu0 0.0
    %9465 = vmatprep.subr.mxu0 0.0
    %9466 = vmatpush1.msra.mxu0 0.0
    %9467 = vmatprep.subr.mxu0 0.0
    %9468 = vmatpush1.msra.mxu0 0.0
    %9469 = vmatprep.subr.mxu0 0.0
    %9470 = vmatpush1.msra.mxu0 0.0
    %9471 = vmatprep.subr.mxu0 0.0
    %9472 = vmatpush1.msra.mxu0 0.0
    %9473 = vmatprep.subr.mxu0 0.0
    %9474 = vmatpush1.msra.mxu0 0.0
    %9475 = vmatprep.subr.mxu0 0.0
    %9476 = vmatpush1.msra.mxu0 0.0
    %9477 = vmatprep.subr.mxu0 0.0
    %9478 = vmatpush1.msra.mxu0 0.0
    %9479 = vmatprep.subr.mxu0 0.0
    %9480 = vmatpush1.msra.mxu0 0.0
    %9481 = vmatprep.subr.mxu0 0.0
    %9482 = vmatpush1.msra.mxu0 0.0
    %9483 = vmatprep.subr.mxu0 0.0
    %9484 = vmatpush1.msra.mxu0 0.0
    %9485 = vmatprep.subr.mxu0 0.0
    %9486 = vmatpush1.msra.mxu0 0.0
    %9487 = vmatprep.mubr.f32.mxu0 0.0
    %9488 = vmatmul.mubr.f32.gmra.mrb[0].mxu0 %v9412
    %v9489 = vpop.f32.mrb[0].mxu0
    %v9490 = vadd.f32 %v9409, %v9489
    %v9491 = vpop.f32.mrb[0].mxu0
    %9492 = vmatprep.mubr.f32.mxu0 0.0
    %9493 = vmatmul.mubr.f32.gmra.mrb[0].mxu0 %v9415
    %v9494 = vpop.f32.mrb[0].mxu0
    %v9495 = vadd.f32 %v9409, %v9494
    %v9496 = vpop.f32.mrb[0].mxu0
    %9497 = vmatprep.mubr.f32.mxu0 0.0
    %9498 = vmatmul.mubr.f32.gmra.mrb[0].mxu0 %v9418
    %v9499 = vpop.f32.mrb[0].mxu0
    %v9500 = vadd.f32 %v9409, %v9499
    %v9501 = vpop.f32.mrb[0].mxu0
    %9502 = vmatprep.mubr.f32.mxu0 0.0
    %9503 = vmatmul.mubr.f32.gmra.mrb[0].mxu0 %v9421
    %v9504 = vpop.f32.mrb[0].mxu0
    %v9505 = vadd.f32 %v9409, %v9504
    %v9506 = vpop.f32.mrb[0].mxu0
    %9507 = vdwg.mxu0
    %v9508 = vmul.f32 %v9490, 0.5
    %v9509 = vmul.f32 %v9495, 0.5
    %v9510 = vmul.f32 %v9500, 0.5
    %v9511 = vmul.f32 %v9505, 0.5
    %v9512 = vmul.f32 %v9490, 0.70710677
    %v9513 = vmul.f32 %v9495, 0.70710677
    %v9514 = vmul.f32 %v9500, 0.70710677
    %v9515 = vmul.f32 %v9505, 0.70710677
    %v9516 = vand.u32 2147483647, %v9512
    %v9517 = vand.u32 2147483647, %v9513
    %v9518 = vand.u32 2147483647, %v9514
    %v9519 = vand.u32 2147483647, %v9515
    %v9520 = vmul.f32 %v9516, 0.3275911
    %v9521 = vmul.f32 %v9517, 0.3275911
    %v9522 = vmul.f32 %v9518, 0.3275911
    %v9523 = vmul.f32 %v9519, 0.3275911
    %v9524 = vadd.f32 %v9520, 1.0
    %v9525 = vadd.f32 %v9521, 1.0
    %v9526 = vadd.f32 %v9522, 1.0
    %v9527 = vadd.f32 %v9523, 1.0
    %v9528 = vrcp.pop %v9524
    %v9529 = vmul.f32 1.0, %v9528
    %v9530 = vrcp.pop %v9525
    %v9531 = vmul.f32 1.0, %v9530
    %v9532 = vrcp.pop %v9526
    %v9533 = vmul.f32 1.0, %v9532
    %v9534 = vrcp.pop %v9527
    %v9535 = vmul.f32 1.0, %v9534
    %v9536 = vmul.f32 %v9529, 1.0614054
    %v9537 = vmul.f32 %v9531, 1.0614054
    %v9538 = vmul.f32 %v9533, 1.0614054
    %v9539 = vmul.f32 %v9535, 1.0614054
    %v9540 = vadd.f32 %v9536, -1.4531521
    %v9541 = vadd.f32 %v9537, -1.4531521
    %v9542 = vadd.f32 %v9538, -1.4531521
    %v9543 = vadd.f32 %v9539, -1.4531521
    %v9544 = vmul.f32 %v9540, %v9529
    %v9545 = vmul.f32 %v9541, %v9531
    %v9546 = vmul.f32 %v9542, %v9533
    %v9547 = vmul.f32 %v9543, %v9535
    %v9548 = vadd.f32 %v9544, 1.4214138
    %v9549 = vadd.f32 %v9545, 1.4214138
    %v9550 = vadd.f32 %v9546, 1.4214138
    %v9551 = vadd.f32 %v9547, 1.4214138
    %v9552 = vmul.f32 %v9548, %v9529
    %v9553 = vmul.f32 %v9549, %v9531
    %v9554 = vmul.f32 %v9550, %v9533
    %v9555 = vmul.f32 %v9551, %v9535
    %v9556 = vadd.f32 %v9552, -0.28449672
    %v9557 = vadd.f32 %v9553, -0.28449672
    %v9558 = vadd.f32 %v9554, -0.28449672
    %v9559 = vadd.f32 %v9555, -0.28449672
    %v9560 = vmul.f32 %v9556, %v9529
    %v9561 = vmul.f32 %v9557, %v9531
    %v9562 = vmul.f32 %v9558, %v9533
    %v9563 = vmul.f32 %v9559, %v9535
    %v9564 = vadd.f32 %v9560, 0.2548296
    %v9565 = vadd.f32 %v9561, 0.2548296
    %v9566 = vadd.f32 %v9562, 0.2548296
    %v9567 = vadd.f32 %v9563, 0.2548296
    %v9568 = vmul.f32 %v9564, %v9529
    %v9569 = vmul.f32 %v9565, %v9531
    %v9570 = vmul.f32 %v9566, %v9533
    %v9571 = vmul.f32 %v9567, %v9535
    %v9572 = vsub.f32 0.0, %v9516
    %v9573 = vsub.f32 0.0, %v9517
    %v9574 = vsub.f32 0.0, %v9518
    %v9575 = vsub.f32 0.0, %v9519
    %v9576 = vmul.f32 %v9572, %v9516
    %v9577 = vmul.f32 %v9573, %v9517
    %v9578 = vmul.f32 %v9574, %v9518
    %v9579 = vmul.f32 %v9575, %v9519
    %v9580 = vmul.f32 %v9576, 1.442695
    %v9581 = vpow.pop %v9580
    %v9582 = vmul.f32 %v9577, 1.442695
    %v9583 = vpow.pop %v9582
    %v9584 = vmul.f32 %v9578, 1.442695
    %v9585 = vpow.pop %v9584
    %v9586 = vmul.f32 %v9579, 1.442695
    %v9587 = vpow.pop %v9586
    %v9588 = vmul.f32 %v9568, %v9581
    %v9589 = vmul.f32 %v9569, %v9583
    %v9590 = vmul.f32 %v9570, %v9585
    %v9591 = vmul.f32 %v9571, %v9587
    %v9592 = vsub.f32 1.0, %v9588
    %v9593 = vsub.f32 1.0, %v9589
    %v9594 = vsub.f32 1.0, %v9590
    %v9595 = vsub.f32 1.0, %v9591
    %vm9596 = vcmp.ge.f32.partialorder %v9512, 0.0
    %vm9597 = vcmp.ge.f32.partialorder %v9513, 0.0
    %vm9598 = vcmp.ge.f32.partialorder %v9514, 0.0
    %vm9599 = vcmp.ge.f32.partialorder %v9515, 0.0
    %v9600 = vsub.f32 0.0, %v9592
    %v9601 = vsub.f32 0.0, %v9593
    %v9602 = vsub.f32 0.0, %v9594
    %v9603 = vsub.f32 0.0, %v9595
    %v9604 = vsel %vm9596, %v9592, %v9600
    %v9605 = vsel %vm9597, %v9593, %v9601
    %v9606 = vsel %vm9598, %v9594, %v9602
    %v9607 = vsel %vm9599, %v9595, %v9603
    %v9608 = vadd.f32 %v9604, 1.0
    %v9609 = vadd.f32 %v9605, 1.0
    %v9610 = vadd.f32 %v9606, 1.0
    %v9611 = vadd.f32 %v9607, 1.0
    %v9612 = vmul.f32 %v9508, %v9608
    %v9613 = vmul.f32 %v9509, %v9609
    %v9614 = vmul.f32 %v9510, %v9610
    %v9615 = vmul.f32 %v9511, %v9611
    %s9616 = scalar_lea.vmem %s20, 64
    %v9617 = vld [vmem:[%s9616] sm:$0xff]
    %v9618 = vld [vmem:[%s9616 + $0x8] sm:$0xff]
    %v9619 = vld [vmem:[%s9616 + $0x10] sm:$0xff]
    %v9620 = vld [vmem:[%s9616 + $0x18] sm:$0xff]
    %v9621 = vld [vmem:[%s9616 + $0x20] sm:$0xff]
    %v9622 = vld [vmem:[%s9616 + $0x28] sm:$0xff]
    %v9623 = vld [vmem:[%s9616 + $0x30] sm:$0xff]
    %v9624 = vld [vmem:[%s9616 + $0x38] sm:$0xff]
    %v9626 = vsel %vm5053, %v9612, 0
    %v9629 = vsel %vm5053, %v9613, 0
    %v9632 = vsel %vm5053, %v9614, 0
    %v9635 = vsel %vm5053, %v9615, 0
    %9637 = vmatprep.subr.mxu0 0.0
    %9638 = vmatpush1.msra.mxu0 %v9617
    %9639 = vmatprep.subr.mxu0 0.0
    %9640 = vmatpush1.msra.mxu0 %v9618
    %9641 = vmatprep.subr.mxu0 0.0
    %9642 = vmatpush1.msra.mxu0 %v9619
    %9643 = vmatprep.subr.mxu0 0.0
    %9644 = vmatpush1.msra.mxu0 %v9620
    %9645 = vmatprep.subr.mxu0 0.0
    %9646 = vmatpush1.msra.mxu0 %v9621
    %9647 = vmatprep.subr.mxu0 0.0
    %9648 = vmatpush1.msra.mxu0 %v9622
    %9649 = vmatprep.subr.mxu0 0.0
    %9650 = vmatpush1.msra.mxu0 %v9623
    %9651 = vmatprep.subr.mxu0 0.0
    %9652 = vmatpush1.msra.mxu0 %v9624
    %9653 = vmatprep.subr.mxu0 0.0
    %9654 = vmatpush1.msra.mxu0 0.0
    %9655 = vmatprep.subr.mxu0 0.0
    %9656 = vmatpush1.msra.mxu0 0.0
    %9657 = vmatprep.subr.mxu0 0.0
    %9658 = vmatpush1.msra.mxu0 0.0
    %9659 = vmatprep.subr.mxu0 0.0
    %9660 = vmatpush1.msra.mxu0 0.0
    %9661 = vmatprep.subr.mxu0 0.0
    %9662 = vmatpush1.msra.mxu0 0.0
    %9663 = vmatprep.subr.mxu0 0.0
    %9664 = vmatpush1.msra.mxu0 0.0
    %9665 = vmatprep.subr.mxu0 0.0
    %9666 = vmatpush1.msra.mxu0 0.0
    %9667 = vmatprep.subr.mxu0 0.0
    %9668 = vmatpush1.msra.mxu0 0.0
    %9669 = vmatprep.subr.mxu0 0.0
    %9670 = vmatpush1.msra.mxu0 0.0
    %9671 = vmatprep.subr.mxu0 0.0
    %9672 = vmatpush1.msra.mxu0 0.0
    %9673 = vmatprep.subr.mxu0 0.0
    %9674 = vmatpush1.msra.mxu0 0.0
    %9675 = vmatprep.subr.mxu0 0.0
    %9676 = vmatpush1.msra.mxu0 0.0
    %9677 = vmatprep.subr.mxu0 0.0
    %9678 = vmatpush1.msra.mxu0 0.0
    %9679 = vmatprep.subr.mxu0 0.0
    %9680 = vmatpush1.msra.mxu0 0.0
    %9681 = vmatprep.subr.mxu0 0.0
    %9682 = vmatpush1.msra.mxu0 0.0
    %9683 = vmatprep.subr.mxu0 0.0
    %9684 = vmatpush1.msra.mxu0 0.0
    %9685 = vmatprep.subr.mxu0 0.0
    %9686 = vmatpush1.msra.mxu0 0.0
    %9687 = vmatprep.subr.mxu0 0.0
    %9688 = vmatpush1.msra.mxu0 0.0
    %9689 = vmatprep.subr.mxu0 0.0
    %9690 = vmatpush1.msra.mxu0 0.0
    %9691 = vmatprep.subr.mxu0 0.0
    %9692 = vmatpush1.msra.mxu0 0.0
    %9693 = vmatprep.subr.mxu0 0.0
    %9694 = vmatpush1.msra.mxu0 0.0
    %9695 = vmatprep.subr.mxu0 0.0
    %9696 = vmatpush1.msra.mxu0 0.0
    %9697 = vmatprep.subr.mxu0 0.0
    %9698 = vmatpush1.msra.mxu0 0.0
    %9699 = vmatprep.subr.mxu0 0.0
    %9700 = vmatpush1.msra.mxu0 0.0
    %9701 = vmatprep.mubr.f32.mxu0 0.0
    %9702 = vmatmul.mubr.f32.gmra.mrb[0].mxu0 %v9626
    %v9703 = vpop.f32.mrb[0].mxu0
    %v9704 = vadd.f32 0.0, %v9703
    %v9705 = vpop.f32.mrb[0].mxu0
    %9706 = vmatprep.mubr.f32.mxu0 0.0
    %9707 = vmatmul.mubr.f32.gmra.mrb[0].mxu0 %v9629
    %v9708 = vpop.f32.mrb[0].mxu0
    %v9709 = vpop.f32.mrb[0].mxu0
    %9710 = vmatprep.mubr.f32.mxu0 0.0
    %9711 = vmatmul.mubr.f32.gmra.mrb[0].mxu0 %v9632
    %v9712 = vpop.f32.mrb[0].mxu0
    %v9713 = vadd.f32 0.0, %v9712
    %v9714 = vpop.f32.mrb[0].mxu0
    %9715 = vmatprep.mubr.f32.mxu0 0.0
    %9716 = vmatmul.mubr.f32.gmra.mrb[0].mxu0 %v9635
    %v9717 = vpop.f32.mrb[0].mxu0
    %v9718 = vpop.f32.mrb[0].mxu0
    %9719 = vdwg.mxu0
    %v9720 = vadd.f32 %v9318, %v9704
    %v9721 = vadd.f32 %v9320, %v9713
    %s9722 = scalar_lea.vmem %s21, 1
    %v9723 = vld [vmem:[%s9722] sm:$0x1]
    %v9725 = vlaneseq
    %v9726 = vshrl.u32 %v9725, 7
    %v9727 = vsub.s32 0, %v9726
    %v9728 = vrot.slane %v9723, %v9727
    %v9730 = vadd.f32 %v9720, %v9728
    %v9731 = vadd.f32 %v9721, %v9728
    %v9732 = vld [vmem:[%s22] sm:$0x1]
    %v9733 = vld [vmem:[%s23] sm:$0x1]
    %v9736 = vrot.slane %v9731, 7
    %vm9737 = vcmask 1041409
    %v9738 = vsel %vm9737, %v9736, %v9730
    %vm9740 = vcmask 254976
    %v9741 = vsel %vm9740, %v9738, 0.0
    %9742 = vadd.xlane.f32.xlu0 %v9741
    %v9743 = vpop.xlane.xlu0 %9742
    %v9744 = vmul.f32 %v9743, %v479
    %v9746 = vrot.slane %v9744, 1
    %v9749 = vsub.f32 %v9730, %v9744
    %v9750 = vsub.f32 %v9731, %v9746
    %v9751 = vmul.f32 %v9749, %v9749
    %v9752 = vmul.f32 %v9750, %v9750
    %v9755 = vrot.slane %v9752, 7
    %v9756 = vsel %vm9737, %v9755, %v9751
    %v9758 = vsel %vm9740, %v9756, 0.0
    %9759 = vadd.xlane.f32.xlu0 %v9758
    %v9760 = vpop.xlane.xlu0 %9759
    %v9761 = vmul.f32 %v9760, %v479
    %v9762 = vadd.f32 %v9761, 1e-05
    %v9763 = vrsqrt.pop %v9762
    %v9765 = vrot.slane %v9763, 1
    %v9768 = vmul.f32 %v9749, %v9763
    %v9769 = vmul.f32 %v9750, %v9765
    %v9771 = vlaneseq
    %v9772 = vshrl.u32 %v9771, 7
    %v9773 = vsub.s32 0, %v9772
    %v9774 = vrot.slane %v9732, %v9773
    %v9776 = vmul.f32 %v9768, %v9774
    %v9777 = vmul.f32 %v9769, %v9774
    %v9779 = vlaneseq
    %v9780 = vshrl.u32 %v9779, 7
    %v9781 = vsub.s32 0, %v9780
    %v9782 = vrot.slane %v9733, %v9781
    %v9784 = vadd.f32 %v9776, %v9782
    %v9785 = vadd.f32 %v9777, %v9782
    %v9786 = vld [vmem:[%s24] sm:$0xff]
    %v9787 = vld [vmem:[%s24 + $0x8] sm:$0xff]
    %v9788 = vld [vmem:[%s24 + $0x10] sm:$0xff]
    %v9789 = vld [vmem:[%s24 + $0x18] sm:$0xff]
    %v9790 = vld [vmem:[%s25] sm:$0x1]
    %v9792 = vlaneseq
    %v9793 = vshrl.u32 %v9792, 7
    %v9794 = vsub.s32 0, %v9793
    %v9795 = vrot.slane %v9790, %v9794
    %v9799 = vrot.slane %v9785, 7
    %v9800 = vsel %vm9737, %v9799, %v9784
    %v9801 = vsel %vm466, %v9800, 0
    %9803 = vmatprep.subr.mxu0 0.0
    %9804 = vmatpush1.msra.mxu0 %v9786
    %9805 = vmatprep.subr.mxu0 0.0
    %9806 = vmatpush1.msra.mxu0 %v9787
    %9807 = vmatprep.subr.mxu0 0.0
    %9808 = vmatpush1.msra.mxu0 %v9788
    %9809 = vmatprep.subr.mxu0 0.0
    %9810 = vmatpush1.msra.mxu0 %v9789
    %9811 = vmatprep.subr.mxu0 0.0
    %9812 = vmatpush1.msra.mxu0 0.0
    %9813 = vmatprep.subr.mxu0 0.0
    %9814 = vmatpush1.msra.mxu0 0.0
    %9815 = vmatprep.subr.mxu0 0.0
    %9816 = vmatpush1.msra.mxu0 0.0
    %9817 = vmatprep.subr.mxu0 0.0
    %9818 = vmatpush1.msra.mxu0 0.0
    %9819 = vmatprep.subr.mxu0 0.0
    %9820 = vmatpush1.msra.mxu0 0.0
    %9821 = vmatprep.subr.mxu0 0.0
    %9822 = vmatpush1.msra.mxu0 0.0
    %9823 = vmatprep.subr.mxu0 0.0
    %9824 = vmatpush1.msra.mxu0 0.0
    %9825 = vmatprep.subr.mxu0 0.0
    %9826 = vmatpush1.msra.mxu0 0.0
    %9827 = vmatprep.subr.mxu0 0.0
    %9828 = vmatpush1.msra.mxu0 0.0
    %9829 = vmatprep.subr.mxu0 0.0
    %9830 = vmatpush1.msra.mxu0 0.0
    %9831 = vmatprep.subr.mxu0 0.0
    %9832 = vmatpush1.msra.mxu0 0.0
    %9833 = vmatprep.subr.mxu0 0.0
    %9834 = vmatpush1.msra.mxu0 0.0
    %9835 = vmatprep.subr.mxu0 0.0
    %9836 = vmatpush1.msra.mxu0 0.0
    %9837 = vmatprep.subr.mxu0 0.0
    %9838 = vmatpush1.msra.mxu0 0.0
    %9839 = vmatprep.subr.mxu0 0.0
    %9840 = vmatpush1.msra.mxu0 0.0
    %9841 = vmatprep.subr.mxu0 0.0
    %9842 = vmatpush1.msra.mxu0 0.0
    %9843 = vmatprep.subr.mxu0 0.0
    %9844 = vmatpush1.msra.mxu0 0.0
    %9845 = vmatprep.subr.mxu0 0.0
    %9846 = vmatpush1.msra.mxu0 0.0
    %9847 = vmatprep.subr.mxu0 0.0
    %9848 = vmatpush1.msra.mxu0 0.0
    %9849 = vmatprep.subr.mxu0 0.0
    %9850 = vmatpush1.msra.mxu0 0.0
    %9851 = vmatprep.subr.mxu0 0.0
    %9852 = vmatpush1.msra.mxu0 0.0
    %9853 = vmatprep.subr.mxu0 0.0
    %9854 = vmatpush1.msra.mxu0 0.0
    %9855 = vmatprep.subr.mxu0 0.0
    %9856 = vmatpush1.msra.mxu0 0.0
    %9857 = vmatprep.subr.mxu0 0.0
    %9858 = vmatpush1.msra.mxu0 0.0
    %9859 = vmatprep.subr.mxu0 0.0
    %9860 = vmatpush1.msra.mxu0 0.0
    %9861 = vmatprep.subr.mxu0 0.0
    %9862 = vmatpush1.msra.mxu0 0.0
    %9863 = vmatprep.subr.mxu0 0.0
    %9864 = vmatpush1.msra.mxu0 0.0
    %9865 = vmatprep.subr.mxu0 0.0
    %9866 = vmatpush1.msra.mxu0 0.0
    %9867 = vmatprep.mubr.f32.mxu0 0.0
    %9868 = vmatmul.mubr.f32.gmra.mrb[0].mxu0 %v9801
    %v9869 = vpop.f32.mrb[0].mxu0
    %v9870 = vadd.f32 %v9795, %v9869
    %v9871 = vpop.f32.mrb[0].mxu0
    %9872 = vdwg.mxu0
    %vm9873 = vcmask 74752
    %9874 = vst.msk [vmem:[#allocation2] sm:$0x3] %vm9873, %v9870
    // Predicated region
    $region106: #{vit_forward.1} parent=1 // pred_check
      _
    $region107: #{vit_forward.1} parent=1 // pred_check_branch
      %9876 = sbr.rel (0) target = $region109
    $region108: #{vit_forward.1} parent=1 // pred_region
      %s9878 = ssub.s32 32, 32
      %9879 = vsyncadd [#allocation3], %s9878
      %s9881 = sshll.u32 [#allocation2], 4
      %s9882 = int_to_ptr.vmem [resolvable:$true] %s9881
      %9884 = dma.vmem_to_hbm [thread:$0]  %s9882, 32, %s26, [#allocation3]
    $region109: #{vit_forward.1} parent=1 // pred_fallthru
      _
    // Predicated region
    $region110: #{vit_forward.1} parent=1 // pred_check
      _
    $region111: #{vit_forward.1} parent=1 // pred_check_branch
      %9886 = sbr.rel (0) target = $region113
    $region112: #{vit_forward.1} parent=1 // pred_region
      %9887 = dma.done [#allocation3], 32
    $region113: #{vit_forward.1} parent=1 // pred_fallthru
      _
    %9888 = vsyncpa [#allocation3], 1

</llo_original>
